<compile_context>
chip_gen: v7x
topology: tpu7x:2x2x1
jax: 0.10.0
libtpu: 0.0.40
codegen_flags: <defaults>
</compile_context>

<pallas_src>
import functools
import math

import jax
import jax.numpy as jnp
from jax import lax
from jax.experimental import pallas as pl
from jax.experimental.pallas import tpu as pltpu


def _full_spec(shape):
    return pl.BlockSpec(shape, lambda i, _s=shape: tuple(0 for _ in _s))


# ----------------------- in-kernel fused conv+BN+ReLU ------------------------

def _conv_bn_relu(a, rs_ref, wband_ref, gamma_ref, beta_ref):
    # a        : (N*H, W*Cin) bf16 activation, rows=(n,h), lanes=(w,ci)
    # rs_ref   : (3, N*Ho, N*H) bf16 exact 0/1 stride-2 row selectors (per kh tap)
    # wband_ref: (3, W*Cin, Wo*Cout) bf16 width-banded weights (kw taps folded in)
    # gamma/beta: (1, Cout) f32 BatchNorm affine parameters
    r_out = rs_ref.shape[1]
    f_out = wband_ref.shape[2]
    cout = gamma_ref.shape[1]
    wo = f_out // cout

    acc = jnp.zeros((r_out, f_out), jnp.float32)
    for dh in range(3):
        rows = jnp.dot(rs_ref[dh], a, preferred_element_type=jnp.float32)
        acc = acc + jnp.dot(rows.astype(jnp.bfloat16), wband_ref[dh],
                            preferred_element_type=jnp.float32)

    # BatchNorm2d with batch statistics (two-pass, mean-shifted variance) + ReLU.
    # Lane k = q*Cout + co  ->  channel co; per-channel sums via a 0/1 selector.
    inv_count = 1.0 / float(r_out * wo)                    # count = N*Ho*Wo
    ki = lax.broadcasted_iota(jnp.int32, (f_out, cout), 0)
    ci = lax.broadcasted_iota(jnp.int32, (f_out, cout), 1)
    sel = ((ki % cout) == ci).astype(jnp.float32)          # (F_out, Cout)
    mean_c = jnp.dot(jnp.sum(acc, axis=0, keepdims=True), sel,
                     preferred_element_type=jnp.float32) * inv_count
    centered = acc - jnp.tile(mean_c, (1, wo))
    var_c = jnp.dot(jnp.sum(centered * centered, axis=0, keepdims=True), sel,
                    preferred_element_type=jnp.float32) * inv_count
    g = gamma_ref[...] * lax.rsqrt(var_c + 1e-5)
    y = centered * jnp.tile(g, (1, wo)) + jnp.tile(beta_ref[...], (1, wo))
    return jnp.maximum(y, 0.0).astype(jnp.bfloat16)        # ReLU


# --------------- fully fused GST encoder (conv stack + GRU + attn) -----------

def _gst_fused_kernel(*refs, n_layers, n_heads):
    x_ref = refs[0]
    o_ref = refs[-1]
    conv_refs = refs[1:1 + 4 * n_layers]
    (wih_ref, whh_ref, bih_ref, bhh_ref, tmsel_ref,
     wqT_ref, bq_ref, kbd_ref, vbd_ref, nmask_ref, woT_ref, bo_ref) = \
        refs[1 + 4 * n_layers:-1]

    n_batch, hidden = o_ref.shape
    seq_len = tmsel_ref.shape[0] // 8
    kc = hidden // n_heads

    # ---- ReferenceEncoder conv stack: 6x Conv2d+BN+ReLU, VMEM resident -------
    a = x_ref[...]                                   # (N*T, in_channels) bf16
    for i in range(n_layers):
        rs, wb, gm, bt = conv_refs[4 * i:4 * i + 4]
        a = _conv_bn_relu(a, rs, wb, gm, bt)
    # a: (N*T', W'*C') bf16, rows=(n, t), lanes=(w, c); wih is pre-permuted to
    # consume this lane order, so no transpose / reshape is needed.

    # ---- GRU: hoisted input projections + serial recurrence -----------------
    gi_all = jnp.dot(a, wih_ref[...],
                     preferred_element_type=jnp.float32) + bih_ref[...]
    # one relayout matmul to time-major, batch padded to 8 sublanes: (T*8, 3H)
    gi_tm = jnp.dot(tmsel_ref[...], gi_all, preferred_element_type=jnp.float32)
    whh = whh_ref[...]
    bhh = bhh_ref[...]
    h = jnp.zeros((8, hidden), jnp.float32)
    # TODO(synk): for long sequences switch to lax.fori_loop (+unroll) indexing
    #   a (T, 8, 3H) VMEM scratch; at seq_len=2 the static loop is best.
    for t in range(seq_len):
        gi = gi_tm[t * 8:(t + 1) * 8, :]             # 8-aligned sublane slice
        gh = jnp.dot(h.astype(jnp.bfloat16), whh,
                     preferred_element_type=jnp.float32) + bhh
        r = jax.nn.sigmoid(gi[:, :hidden] + gh[:, :hidden])
        z = jax.nn.sigmoid(gi[:, hidden:2 * hidden] + gh[:, hidden:2 * hidden])
        cand = jnp.tanh(gi[:, 2 * hidden:] + r * gh[:, 2 * hidden:])
        h = (1.0 - z) * cand + z * h

    # ---- StyleTokenLayer multi-head attention (query length 1, folded heads) -
    q = jnp.dot(h.astype(jnp.bfloat16), wqT_ref[...],
                preferred_element_type=jnp.float32) + bq_ref[...]
    q = q * (1.0 / math.sqrt(kc))
    s = jnp.dot(q.astype(jnp.bfloat16), kbd_ref[...],
                preferred_element_type=jnp.float32)        # (8, n_heads*n_tokens)
    # per-row global max shift is exact for every per-head softmax group
    p = jnp.exp(s - jnp.max(s, axis=-1, keepdims=True))
    denom = jnp.dot(p, nmask_ref[...], preferred_element_type=jnp.float32)
    p = p / denom
    attn = jnp.dot(p.astype(jnp.bfloat16), vbd_ref[...],
                   preferred_element_type=jnp.float32)     # (8, hidden)
    out = jnp.dot(attn.astype(jnp.bfloat16), woT_ref[...],
                  preferred_element_type=jnp.float32) + bo_ref[...]
    o_ref[...] = out[:n_batch, :]


# ------------------------- wrapper-side constant builders --------------------

def _make_rowsel(n, h_in, h_out):
    # (3, N*Ho, N*H) exact 0/1 selectors: out row (n,p), tap dh -> in row 2p-1+dh
    p = jnp.arange(h_out)
    hh = jnp.arange(h_in)
    eye_n = jnp.eye(n, dtype=jnp.float32)
    taps = []
    for dh in range(3):
        m = (hh[None, :] == (2 * p[:, None] - 1 + dh)).astype(jnp.float32)
        taps.append(jnp.kron(eye_n, m))
    return jnp.stack(taps, 0).astype(jnp.bfloat16)


def _make_time_major_sel(n, seq_len):
    # (T*8, N*T) selector: out row t*8+i <- in row i*T+t for i < n, else zeros
    r = jnp.arange(seq_len * 8)
    c = jnp.arange(n * seq_len)
    sel = ((r[:, None] // 8 == c[None, :] % seq_len) &
           (r[:, None] % 8 == c[None, :] // seq_len) &
           ((r[:, None] % 8) < n))
    return sel.astype(jnp.float32)


# ------------------------------- parameters ---------------------------------

def calculate_channels(L, kernel_size, stride, pad, n_convs):
    for _ in range(n_convs):
        L = (L - kernel_size + 2 * pad) // stride + 1
    return L


def init_params(key, *, in_channels, hidden_channels, filter_channel_list,
                n_tokens, n_heads):
    filters = [1] + list(filter_channel_list)
    n_layers = len(filter_channel_list)
    keys = iter(jax.random.split(key, 4 * n_layers + 16))

    convs = []
    w_dim = in_channels
    for i in range(n_layers):
        cin, cout = filters[i], filters[i + 1]
        wo = (w_dim - 1) // 2 + 1
        # PyTorch Conv2d weight layout (Cout, Cin, kh, kw).  Conv bias omitted:
        # it is cancelled exactly by BatchNorm's batch-mean subtraction.
        w = 0.1 * jax.random.normal(next(keys), (cout, cin, 3, 3), jnp.float32)
        win = jnp.arange(w_dim)
        q = jnp.arange(wo)
        taps = []
        for dh in range(3):
            acc = jnp.zeros((w_dim, cin, wo, cout), jnp.float32)
            for dw in range(3):
                m = (win[:, None] == (2 * q[None, :] - 1 + dw)).astype(jnp.float32)
                acc = acc + jnp.einsum("wq,oc->wcqo", m, w[:, :, dh, dw])
            taps.append(acc.reshape(w_dim * cin, wo * cout))
        wband = jnp.stack(taps, 0).astype(jnp.bfloat16)     # (3, W*Cin, Wo*Cout)
        gamma = 1.0 + 0.1 * jax.random.normal(next(keys), (1, cout), jnp.float32)
        beta = 0.1 * jax.random.normal(next(keys), (1, cout), jnp.float32)
        convs.append(dict(wband=wband, gamma=gamma, beta=beta))
        w_dim = wo

    L = calculate_channels(in_channels, 3, 2, 1, n_layers)
    C_last = filter_channel_list[-1]
    D = C_last * L
    H = hidden_channels
    s = 1.0 / math.sqrt(H)
    w_ih = s * jax.random.normal(next(keys), (3 * H, D), jnp.float32)  # [r|z|n]
    w_hh = s * jax.random.normal(next(keys), (3 * H, H), jnp.float32)
    b_ih = s * jax.random.normal(next(keys), (3 * H,), jnp.float32)
    b_hh = s * jax.random.normal(next(keys), (3 * H,), jnp.float32)
    # permute wih input features from PyTorch (c, w) order to the kernel's
    # (w, c) lane order (identity when L == 1)
    wih_k = jnp.transpose(w_ih.reshape(3 * H, C_last, L), (2, 1, 0)).reshape(D, 3 * H)
    gru = dict(wih=wih_k.astype(jnp.bfloat16),
               whh=w_hh.T.astype(jnp.bfloat16),
               bih=b_ih.reshape(1, 3 * H), bhh=b_hh.reshape(1, 3 * H))

    emb = 0.5 * jax.random.normal(next(keys), (H, n_tokens), jnp.float32)
    wq = 0.1 * jax.random.normal(next(keys), (H, H), jnp.float32)
    wk = 0.1 * jax.random.normal(next(keys), (H, H), jnp.float32)
    wv = 0.1 * jax.random.normal(next(keys), (H, H), jnp.float32)
    wo_ = 0.1 * jax.random.normal(next(keys), (H, H), jnp.float32)
    bq = 0.1 * jax.random.normal(next(keys), (H,), jnp.float32)
    bk = 0.1 * jax.random.normal(next(keys), (H,), jnp.float32)
    bv = 0.1 * jax.random.normal(next(keys), (H,), jnp.float32)
    bo = 0.1 * jax.random.normal(next(keys), (H,), jnp.float32)

    # Token key/value path is parameter-only: fold tanh(emb) -> conv_k/conv_v
    # into block-diagonal K_bd (H, n_heads*n_tokens) / V_bd (n_heads*n_tokens, H).
    kc = H // n_heads
    e = jnp.tanh(emb)
    kmat = jnp.dot(wk, e) + bk[:, None]
    vmat = jnp.dot(wv, e) + bv[:, None]
    eyeh = jnp.eye(n_heads, dtype=jnp.float32)
    k3 = kmat.reshape(n_heads, kc, n_tokens)
    v3 = vmat.reshape(n_heads, kc, n_tokens)
    kbd = jnp.einsum("aim,ab->aibm", k3, eyeh).reshape(H, n_heads * n_tokens)
    vbd = jnp.einsum("ajm,ab->ambj", v3, eyeh).reshape(n_heads * n_tokens, H)

    style = dict(wqT=wq.T.astype(jnp.bfloat16), bq=bq.reshape(1, H),
                 kbd=kbd.astype(jnp.bfloat16), vbd=vbd.astype(jnp.bfloat16),
                 woT=wo_.T.astype(jnp.bfloat16), bo=bo.reshape(1, H))
    return dict(convs=convs, gru=gru, style=style)


# --------------------------------- forward ----------------------------------

@functools.partial(jax.jit, static_argnames=("n_heads",))
def global_style_token_encoder(x, params, *, n_heads):
    n, t, in_ch = x.shape
    n_layers = len(params["convs"])
    hidden = params["gru"]["whh"].shape[0]

    # conv-stack shape chain along the time (H) axis: kernel 3, stride 2, pad 1
    h_dims = [t]
    for _ in range(n_layers):
        h_dims.append((h_dims[-1] - 1) // 2 + 1)
    seq_len = h_dims[-1]

    # PyTorch: x.view(N, 1, T, in_channels) NCHW -> kernel rows=(n,h), lanes=(w,c=1)
    x2 = x.reshape(n * t, in_ch).astype(jnp.bfloat16)

    # shape-only selector constants (folded at compile time)
    rowsels = [_make_rowsel(n, h_dims[i], h_dims[i + 1]) for i in range(n_layers)]
    tmsel = _make_time_major_sel(n, seq_len)
    g_lanes = params["style"]["kbd"].shape[1]
    n_tokens = g_lanes // n_heads
    gidx = jnp.arange(g_lanes)
    nmask = ((gidx[:, None] // n_tokens) ==
             (gidx[None, :] // n_tokens)).astype(jnp.float32)

    conv_args = []
    for i, layer in enumerate(params["convs"]):
        conv_args += [rowsels[i], layer["wband"], layer["gamma"], layer["beta"]]

    args = [x2] + conv_args + [
        params["gru"]["wih"], params["gru"]["whh"],
        params["gru"]["bih"], params["gru"]["bhh"], tmsel,
        params["style"]["wqT"], params["style"]["bq"],
        params["style"]["kbd"], params["style"]["vbd"], nmask,
        params["style"]["woT"], params["style"]["bo"]]

    kernel = functools.partial(_gst_fused_kernel, n_layers=n_layers,
                               n_heads=n_heads)
    out = pl.pallas_call(
        kernel,
        out_shape=jax.ShapeDtypeStruct((n, hidden), jnp.float32),
        grid=(1,),
        in_specs=[_full_spec(a.shape) for a in args],
        out_specs=_full_spec((n, hidden)),
        compiler_params=pltpu.CompilerParams(
            dimension_semantics=("arbitrary",)),
    )(*args)
    return out.reshape(n, hidden, 1)        # matches PyTorch (N, hidden, 1)


if __name__ == "__main__":
    N, T = 2, 128
    in_channels = 16
    hidden_channels = 32
    filter_channel_list = [4, 4, 8, 8, 16, 16]
    n_tokens = 8
    n_heads = 4

    key = jax.random.PRNGKey(0)
    kp, kx = jax.random.split(key)
    params = init_params(kp, in_channels=in_channels,
                         hidden_channels=hidden_channels,
                         filter_channel_list=filter_channel_list,
                         n_tokens=n_tokens, n_heads=n_heads)
    x = jax.random.normal(kx, (N, T, in_channels), jnp.float32)

    out = global_style_token_encoder(x, params, n_heads=n_heads)
    out = jax.block_until_ready(out)

    assert out.shape == (N, hidden_channels, 1), out.shape
    assert bool(jnp.all(jnp.isfinite(out)))
    print("KERNEL_OK")
</pallas_src>

<mosaic_0001>
module attributes {stable_mosaic.version = 11 : i64} {
  func.func @_gst_fused_kernel(%arg0: i32, %arg1: memref<256x16xbf16, #tpu.memory_space<vmem>>, %arg2: memref<3x128x256xbf16, #tpu.memory_space<vmem>>, %arg3: memref<3x16x32xbf16, #tpu.memory_space<vmem>>, %arg4: memref<1x4xf32, #tpu.memory_space<vmem>>, %arg5: memref<1x4xf32, #tpu.memory_space<vmem>>, %arg6: memref<3x64x128xbf16, #tpu.memory_space<vmem>>, %arg7: memref<3x32x16xbf16, #tpu.memory_space<vmem>>, %arg8: memref<1x4xf32, #tpu.memory_space<vmem>>, %arg9: memref<1x4xf32, #tpu.memory_space<vmem>>, %arg10: memref<3x32x64xbf16, #tpu.memory_space<vmem>>, %arg11: memref<3x16x16xbf16, #tpu.memory_space<vmem>>, %arg12: memref<1x8xf32, #tpu.memory_space<vmem>>, %arg13: memref<1x8xf32, #tpu.memory_space<vmem>>, %arg14: memref<3x16x32xbf16, #tpu.memory_space<vmem>>, %arg15: memref<3x16x8xbf16, #tpu.memory_space<vmem>>, %arg16: memref<1x8xf32, #tpu.memory_space<vmem>>, %arg17: memref<1x8xf32, #tpu.memory_space<vmem>>, %arg18: memref<3x8x16xbf16, #tpu.memory_space<vmem>>, %arg19: memref<3x8x16xbf16, #tpu.memory_space<vmem>>, %arg20: memref<1x16xf32, #tpu.memory_space<vmem>>, %arg21: memref<1x16xf32, #tpu.memory_space<vmem>>, %arg22: memref<3x4x8xbf16, #tpu.memory_space<vmem>>, %arg23: memref<3x16x16xbf16, #tpu.memory_space<vmem>>, %arg24: memref<1x16xf32, #tpu.memory_space<vmem>>, %arg25: memref<1x16xf32, #tpu.memory_space<vmem>>, %arg26: memref<16x96xbf16, #tpu.memory_space<vmem>>, %arg27: memref<32x96xbf16, #tpu.memory_space<vmem>>, %arg28: memref<1x96xf32, #tpu.memory_space<vmem>>, %arg29: memref<1x96xf32, #tpu.memory_space<vmem>>, %arg30: memref<16x4xf32, #tpu.memory_space<vmem>>, %arg31: memref<32x32xbf16, #tpu.memory_space<vmem>>, %arg32: memref<1x32xf32, #tpu.memory_space<vmem>>, %arg33: memref<32x32xbf16, #tpu.memory_space<vmem>>, %arg34: memref<32x32xbf16, #tpu.memory_space<vmem>>, %arg35: memref<32x32xf32, #tpu.memory_space<vmem>>, %arg36: memref<32x32xbf16, #tpu.memory_space<vmem>>, %arg37: memref<1x32xf32, #tpu.memory_space<vmem>>, %arg38: memref<2x32xf32, #tpu.memory_space<vmem>>) attributes {dimension_semantics = [#tpu.dimension_semantics<arbitrary>], iteration_bounds = array<i64: 1>, scalar_prefetch = 0 : i64, scratch_operands = 0 : i64, tpu.core_type = #tpu.core_type<tc>, window_params = [{pipeline_mode = #tpu.pipeline_mode<synchronous>, transform_indices = @transform_0, window_bounds = array<i64: 256, 16>}, {pipeline_mode = #tpu.pipeline_mode<synchronous>, transform_indices = @transform_1, window_bounds = array<i64: 3, 128, 256>}, {pipeline_mode = #tpu.pipeline_mode<synchronous>, transform_indices = @transform_2, window_bounds = array<i64: 3, 16, 32>}, {pipeline_mode = #tpu.pipeline_mode<synchronous>, transform_indices = @transform_3, window_bounds = array<i64: 1, 4>}, {pipeline_mode = #tpu.pipeline_mode<synchronous>, transform_indices = @transform_4, window_bounds = array<i64: 1, 4>}, {pipeline_mode = #tpu.pipeline_mode<synchronous>, transform_indices = @transform_5, window_bounds = array<i64: 3, 64, 128>}, {pipeline_mode = #tpu.pipeline_mode<synchronous>, transform_indices = @transform_6, window_bounds = array<i64: 3, 32, 16>}, {pipeline_mode = #tpu.pipeline_mode<synchronous>, transform_indices = @transform_7, window_bounds = array<i64: 1, 4>}, {pipeline_mode = #tpu.pipeline_mode<synchronous>, transform_indices = @transform_8, window_bounds = array<i64: 1, 4>}, {pipeline_mode = #tpu.pipeline_mode<synchronous>, transform_indices = @transform_9, window_bounds = array<i64: 3, 32, 64>}, {pipeline_mode = #tpu.pipeline_mode<synchronous>, transform_indices = @transform_10, window_bounds = array<i64: 3, 16, 16>}, {pipeline_mode = #tpu.pipeline_mode<synchronous>, transform_indices = @transform_11, window_bounds = array<i64: 1, 8>}, {pipeline_mode = #tpu.pipeline_mode<synchronous>, transform_indices = @transform_12, window_bounds = array<i64: 1, 8>}, {pipeline_mode = #tpu.pipeline_mode<synchronous>, transform_indices = @transform_13, window_bounds = array<i64: 3, 16, 32>}, {pipeline_mode = #tpu.pipeline_mode<synchronous>, transform_indices = @transform_14, window_bounds = array<i64: 3, 16, 8>}, {pipeline_mode = #tpu.pipeline_mode<synchronous>, transform_indices = @transform_15, window_bounds = array<i64: 1, 8>}, {pipeline_mode = #tpu.pipeline_mode<synchronous>, transform_indices = @transform_16, window_bounds = array<i64: 1, 8>}, {pipeline_mode = #tpu.pipeline_mode<synchronous>, transform_indices = @transform_17, window_bounds = array<i64: 3, 8, 16>}, {pipeline_mode = #tpu.pipeline_mode<synchronous>, transform_indices = @transform_18, window_bounds = array<i64: 3, 8, 16>}, {pipeline_mode = #tpu.pipeline_mode<synchronous>, transform_indices = @transform_19, window_bounds = array<i64: 1, 16>}, {pipeline_mode = #tpu.pipeline_mode<synchronous>, transform_indices = @transform_20, window_bounds = array<i64: 1, 16>}, {pipeline_mode = #tpu.pipeline_mode<synchronous>, transform_indices = @transform_21, window_bounds = array<i64: 3, 4, 8>}, {pipeline_mode = #tpu.pipeline_mode<synchronous>, transform_indices = @transform_22, window_bounds = array<i64: 3, 16, 16>}, {pipeline_mode = #tpu.pipeline_mode<synchronous>, transform_indices = @transform_23, window_bounds = array<i64: 1, 16>}, {pipeline_mode = #tpu.pipeline_mode<synchronous>, transform_indices = @transform_24, window_bounds = array<i64: 1, 16>}, {pipeline_mode = #tpu.pipeline_mode<synchronous>, transform_indices = @transform_25, window_bounds = array<i64: 16, 96>}, {pipeline_mode = #tpu.pipeline_mode<synchronous>, transform_indices = @transform_26, window_bounds = array<i64: 32, 96>}, {pipeline_mode = #tpu.pipeline_mode<synchronous>, transform_indices = @transform_27, window_bounds = array<i64: 1, 96>}, {pipeline_mode = #tpu.pipeline_mode<synchronous>, transform_indices = @transform_28, window_bounds = array<i64: 1, 96>}, {pipeline_mode = #tpu.pipeline_mode<synchronous>, transform_indices = @transform_29, window_bounds = array<i64: 16, 4>}, {pipeline_mode = #tpu.pipeline_mode<synchronous>, transform_indices = @transform_30, window_bounds = array<i64: 32, 32>}, {pipeline_mode = #tpu.pipeline_mode<synchronous>, transform_indices = @transform_31, window_bounds = array<i64: 1, 32>}, {pipeline_mode = #tpu.pipeline_mode<synchronous>, transform_indices = @transform_32, window_bounds = array<i64: 32, 32>}, {pipeline_mode = #tpu.pipeline_mode<synchronous>, transform_indices = @transform_33, window_bounds = array<i64: 32, 32>}, {pipeline_mode = #tpu.pipeline_mode<synchronous>, transform_indices = @transform_34, window_bounds = array<i64: 32, 32>}, {pipeline_mode = #tpu.pipeline_mode<synchronous>, transform_indices = @transform_35, window_bounds = array<i64: 32, 32>}, {pipeline_mode = #tpu.pipeline_mode<synchronous>, transform_indices = @transform_36, window_bounds = array<i64: 1, 32>}, {pipeline_mode = #tpu.pipeline_mode<synchronous>, transform_indices = @transform_37, window_bounds = array<i64: 2, 32>}]} {
    %c0 = arith.constant 0 : index
    %c0_0 = arith.constant 0 : index
    %0 = vector.load %arg1[%c0, %c0_0] : memref<256x16xbf16, #tpu.memory_space<vmem>>, vector<256x16xbf16>
    %cst = arith.constant 0.000000e+00 : f32
    %1 = vector.broadcast %cst : f32 to vector<128x32xf32>
    %c0_1 = arith.constant 0 : index
    %c0_2 = arith.constant 0 : index
    %c0_3 = arith.constant 0 : index
    %2 = vector.load %arg2[%c0_1, %c0_2, %c0_3] : memref<3x128x256xbf16, #tpu.memory_space<vmem>>, vector<1x128x256xbf16>
    %3 = vector.shape_cast %2 : vector<1x128x256xbf16> to vector<128x256xbf16>
    %cst_4 = arith.constant dense<0.000000e+00> : vector<128x16xf32>
    %4 = tpu.matmul %3, %0, %cst_4 {dimension_numbers = #tpu.dot_dimension_numbers<[1], [0], [0], [1], [0, 0, 1, 1], [], []>} : vector<128x256xbf16>, vector<256x16xbf16>, vector<128x16xf32> -> vector<128x16xf32>
    %5 = arith.truncf %4 : vector<128x16xf32> to vector<128x16xbf16>
    %c0_5 = arith.constant 0 : index
    %c0_6 = arith.constant 0 : index
    %c0_7 = arith.constant 0 : index
    %6 = vector.load %arg3[%c0_5, %c0_6, %c0_7] : memref<3x16x32xbf16, #tpu.memory_space<vmem>>, vector<1x16x32xbf16>
    %7 = vector.shape_cast %6 : vector<1x16x32xbf16> to vector<16x32xbf16>
    %cst_8 = arith.constant dense<0.000000e+00> : vector<128x32xf32>
    %8 = tpu.matmul %5, %7, %cst_8 {dimension_numbers = #tpu.dot_dimension_numbers<[1], [0], [0], [1], [0, 0, 1, 1], [], []>} : vector<128x16xbf16>, vector<16x32xbf16>, vector<128x32xf32> -> vector<128x32xf32>
    %9 = arith.addf %1, %8 : vector<128x32xf32>
    %c1 = arith.constant 1 : index
    %c0_9 = arith.constant 0 : index
    %c0_10 = arith.constant 0 : index
    %10 = vector.load %arg2[%c1, %c0_9, %c0_10] : memref<3x128x256xbf16, #tpu.memory_space<vmem>>, vector<1x128x256xbf16>
    %11 = vector.shape_cast %10 : vector<1x128x256xbf16> to vector<128x256xbf16>
    %cst_11 = arith.constant dense<0.000000e+00> : vector<128x16xf32>
    %12 = tpu.matmul %11, %0, %cst_11 {dimension_numbers = #tpu.dot_dimension_numbers<[1], [0], [0], [1], [0, 0, 1, 1], [], []>} : vector<128x256xbf16>, vector<256x16xbf16>, vector<128x16xf32> -> vector<128x16xf32>
    %13 = arith.truncf %12 : vector<128x16xf32> to vector<128x16xbf16>
    %c1_12 = arith.constant 1 : index
    %c0_13 = arith.constant 0 : index
    %c0_14 = arith.constant 0 : index
    %14 = vector.load %arg3[%c1_12, %c0_13, %c0_14] : memref<3x16x32xbf16, #tpu.memory_space<vmem>>, vector<1x16x32xbf16>
    %15 = vector.shape_cast %14 : vector<1x16x32xbf16> to vector<16x32xbf16>
    %cst_15 = arith.constant dense<0.000000e+00> : vector<128x32xf32>
    %16 = tpu.matmul %13, %15, %cst_15 {dimension_numbers = #tpu.dot_dimension_numbers<[1], [0], [0], [1], [0, 0, 1, 1], [], []>} : vector<128x16xbf16>, vector<16x32xbf16>, vector<128x32xf32> -> vector<128x32xf32>
    %17 = arith.addf %9, %16 : vector<128x32xf32>
    %c2 = arith.constant 2 : index
    %c0_16 = arith.constant 0 : index
    %c0_17 = arith.constant 0 : index
    %18 = vector.load %arg2[%c2, %c0_16, %c0_17] : memref<3x128x256xbf16, #tpu.memory_space<vmem>>, vector<1x128x256xbf16>
    %19 = vector.shape_cast %18 : vector<1x128x256xbf16> to vector<128x256xbf16>
    %cst_18 = arith.constant dense<0.000000e+00> : vector<128x16xf32>
    %20 = tpu.matmul %19, %0, %cst_18 {dimension_numbers = #tpu.dot_dimension_numbers<[1], [0], [0], [1], [0, 0, 1, 1], [], []>} : vector<128x256xbf16>, vector<256x16xbf16>, vector<128x16xf32> -> vector<128x16xf32>
    %21 = arith.truncf %20 : vector<128x16xf32> to vector<128x16xbf16>
    %c2_19 = arith.constant 2 : index
    %c0_20 = arith.constant 0 : index
    %c0_21 = arith.constant 0 : index
    %22 = vector.load %arg3[%c2_19, %c0_20, %c0_21] : memref<3x16x32xbf16, #tpu.memory_space<vmem>>, vector<1x16x32xbf16>
    %23 = vector.shape_cast %22 : vector<1x16x32xbf16> to vector<16x32xbf16>
    %cst_22 = arith.constant dense<0.000000e+00> : vector<128x32xf32>
    %24 = tpu.matmul %21, %23, %cst_22 {dimension_numbers = #tpu.dot_dimension_numbers<[1], [0], [0], [1], [0, 0, 1, 1], [], []>} : vector<128x16xbf16>, vector<16x32xbf16>, vector<128x32xf32> -> vector<128x32xf32>
    %25 = arith.addf %17, %24 : vector<128x32xf32>
    %26 = tpu.iota {dimensions = array<i32: 0>} : vector<32x4xi32>
    %27 = tpu.iota {dimensions = array<i32: 1>} : vector<32x4xi32>
    %c4_i32 = arith.constant 4 : i32
    %c0_i32 = arith.constant 0 : i32
    %28 = arith.cmpi eq, %c4_i32, %c0_i32 : i32
    %c1_i32 = arith.constant 1 : i32
    %29 = arith.select %28, %c1_i32, %c4_i32 : i32
    %30 = vector.broadcast %29 : i32 to vector<32x4xi32>
    %31 = arith.remsi %26, %30 : vector<32x4xi32>
    %c0_i32_23 = arith.constant 0 : i32
    %32 = vector.broadcast %c0_i32_23 : i32 to vector<32x4xi32>
    %33 = arith.cmpi ne, %31, %32 : vector<32x4xi32>
    %c0_i32_24 = arith.constant 0 : i32
    %34 = vector.broadcast %c0_i32_24 : i32 to vector<32x4xi32>
    %35 = arith.cmpi slt, %31, %34 : vector<32x4xi32>
    %c0_i32_25 = arith.constant 0 : i32
    %36 = arith.cmpi slt, %29, %c0_i32_25 : i32
    %37 = vector.broadcast %36 : i1 to vector<32x4xi1>
    %38 = vector.broadcast %37 : vector<32x4xi1> to vector<32x4xi1>
    %39 = arith.xori %35, %38 : vector<32x4xi1>
    %40 = arith.andi %39, %33 : vector<32x4xi1>
    %41 = vector.broadcast %29 : i32 to vector<32x4xi32>
    %42 = arith.addi %31, %41 : vector<32x4xi32>
    %43 = arith.select %40, %42, %31 : vector<32x4xi1>, vector<32x4xi32>
    %44 = arith.cmpi eq, %43, %27 : vector<32x4xi32>
    %45 = arith.extui %44 : vector<32x4xi1> to vector<32x4xi32>
    %46 = arith.sitofp %45 : vector<32x4xi32> to vector<32x4xf32>
    %cst_26 = arith.constant dense<0.000000e+00> : vector<32xf32>
    %47 = vector.multi_reduction <add>, %25, %cst_26 [0] : vector<128x32xf32> to vector<32xf32>
    %48 = vector.shape_cast %47 : vector<32xf32> to vector<1x32xf32>
    %cst_27 = arith.constant dense<0.000000e+00> : vector<1x4xf32>
    %49 = tpu.matmul %48, %46, %cst_27 {dimension_numbers = #tpu.dot_dimension_numbers<[1], [0], [0], [1], [0, 0, 1, 1], [], []>} : vector<1x32xf32>, vector<32x4xf32>, vector<1x4xf32> -> vector<1x4xf32>
    %cst_28 = arith.constant 9.765625E-4 : f32
    %50 = vector.broadcast %cst_28 : f32 to vector<1x4xf32>
    %51 = arith.mulf %49, %50 : vector<1x4xf32>
    %52 = tpu.concatenate %51, %51, %51, %51, %51, %51, %51, %51 in 1 : vector<1x4xf32>, vector<1x4xf32>, vector<1x4xf32>, vector<1x4xf32>, vector<1x4xf32>, vector<1x4xf32>, vector<1x4xf32>, vector<1x4xf32> -> vector<1x32xf32>
    %53 = vector.broadcast %52 : vector<1x32xf32> to vector<128x32xf32>
    %54 = arith.subf %25, %53 : vector<128x32xf32>
    %55 = arith.mulf %54, %54 : vector<128x32xf32>
    %cst_29 = arith.constant dense<0.000000e+00> : vector<32xf32>
    %56 = vector.multi_reduction <add>, %55, %cst_29 [0] : vector<128x32xf32> to vector<32xf32>
    %57 = vector.shape_cast %56 : vector<32xf32> to vector<1x32xf32>
    %cst_30 = arith.constant dense<0.000000e+00> : vector<1x4xf32>
    %58 = tpu.matmul %57, %46, %cst_30 {dimension_numbers = #tpu.dot_dimension_numbers<[1], [0], [0], [1], [0, 0, 1, 1], [], []>} : vector<1x32xf32>, vector<32x4xf32>, vector<1x4xf32> -> vector<1x4xf32>
    %cst_31 = arith.constant 9.765625E-4 : f32
    %59 = vector.broadcast %cst_31 : f32 to vector<1x4xf32>
    %60 = arith.mulf %58, %59 : vector<1x4xf32>
    %c0_32 = arith.constant 0 : index
    %c0_33 = arith.constant 0 : index
    %61 = vector.load %arg4[%c0_32, %c0_33] : memref<1x4xf32, #tpu.memory_space<vmem>>, vector<1x4xf32>
    %cst_34 = arith.constant 9.99999974E-6 : f32
    %62 = vector.broadcast %cst_34 : f32 to vector<1x4xf32>
    %63 = arith.addf %60, %62 : vector<1x4xf32>
    %64 = math.rsqrt %63 : vector<1x4xf32>
    %65 = arith.mulf %61, %64 : vector<1x4xf32>
    %66 = tpu.concatenate %65, %65, %65, %65, %65, %65, %65, %65 in 1 : vector<1x4xf32>, vector<1x4xf32>, vector<1x4xf32>, vector<1x4xf32>, vector<1x4xf32>, vector<1x4xf32>, vector<1x4xf32>, vector<1x4xf32> -> vector<1x32xf32>
    %67 = vector.broadcast %66 : vector<1x32xf32> to vector<128x32xf32>
    %68 = arith.mulf %54, %67 : vector<128x32xf32>
    %c0_35 = arith.constant 0 : index
    %c0_36 = arith.constant 0 : index
    %69 = vector.load %arg5[%c0_35, %c0_36] : memref<1x4xf32, #tpu.memory_space<vmem>>, vector<1x4xf32>
    %70 = tpu.concatenate %69, %69, %69, %69, %69, %69, %69, %69 in 1 : vector<1x4xf32>, vector<1x4xf32>, vector<1x4xf32>, vector<1x4xf32>, vector<1x4xf32>, vector<1x4xf32>, vector<1x4xf32>, vector<1x4xf32> -> vector<1x32xf32>
    %71 = vector.broadcast %70 : vector<1x32xf32> to vector<128x32xf32>
    %72 = arith.addf %68, %71 : vector<128x32xf32>
    %cst_37 = arith.constant 0.000000e+00 : f32
    %73 = vector.broadcast %cst_37 : f32 to vector<128x32xf32>
    %74 = arith.maximumf %72, %73 : vector<128x32xf32>
    %75 = arith.truncf %74 : vector<128x32xf32> to vector<128x32xbf16>
    %cst_38 = arith.constant 0.000000e+00 : f32
    %76 = vector.broadcast %cst_38 : f32 to vector<64x16xf32>
    %c0_39 = arith.constant 0 : index
    %c0_40 = arith.constant 0 : index
    %c0_41 = arith.constant 0 : index
    %77 = vector.load %arg6[%c0_39, %c0_40, %c0_41] : memref<3x64x128xbf16, #tpu.memory_space<vmem>>, vector<1x64x128xbf16>
    %78 = vector.shape_cast %77 : vector<1x64x128xbf16> to vector<64x128xbf16>
    %cst_42 = arith.constant dense<0.000000e+00> : vector<64x32xf32>
    %79 = tpu.matmul %78, %75, %cst_42 {dimension_numbers = #tpu.dot_dimension_numbers<[1], [0], [0], [1], [0, 0, 1, 1], [], []>} : vector<64x128xbf16>, vector<128x32xbf16>, vector<64x32xf32> -> vector<64x32xf32>
    %80 = arith.truncf %79 : vector<64x32xf32> to vector<64x32xbf16>
    %c0_43 = arith.constant 0 : index
    %c0_44 = arith.constant 0 : index
    %c0_45 = arith.constant 0 : index
    %81 = vector.load %arg7[%c0_43, %c0_44, %c0_45] : memref<3x32x16xbf16, #tpu.memory_space<vmem>>, vector<1x32x16xbf16>
    %82 = vector.shape_cast %81 : vector<1x32x16xbf16> to vector<32x16xbf16>
    %cst_46 = arith.constant dense<0.000000e+00> : vector<64x16xf32>
    %83 = tpu.matmul %80, %82, %cst_46 {dimension_numbers = #tpu.dot_dimension_numbers<[1], [0], [0], [1], [0, 0, 1, 1], [], []>} : vector<64x32xbf16>, vector<32x16xbf16>, vector<64x16xf32> -> vector<64x16xf32>
    %84 = arith.addf %76, %83 : vector<64x16xf32>
    %c1_47 = arith.constant 1 : index
    %c0_48 = arith.constant 0 : index
    %c0_49 = arith.constant 0 : index
    %85 = vector.load %arg6[%c1_47, %c0_48, %c0_49] : memref<3x64x128xbf16, #tpu.memory_space<vmem>>, vector<1x64x128xbf16>
    %86 = vector.shape_cast %85 : vector<1x64x128xbf16> to vector<64x128xbf16>
    %cst_50 = arith.constant dense<0.000000e+00> : vector<64x32xf32>
    %87 = tpu.matmul %86, %75, %cst_50 {dimension_numbers = #tpu.dot_dimension_numbers<[1], [0], [0], [1], [0, 0, 1, 1], [], []>} : vector<64x128xbf16>, vector<128x32xbf16>, vector<64x32xf32> -> vector<64x32xf32>
    %88 = arith.truncf %87 : vector<64x32xf32> to vector<64x32xbf16>
    %c1_51 = arith.constant 1 : index
    %c0_52 = arith.constant 0 : index
    %c0_53 = arith.constant 0 : index
    %89 = vector.load %arg7[%c1_51, %c0_52, %c0_53] : memref<3x32x16xbf16, #tpu.memory_space<vmem>>, vector<1x32x16xbf16>
    %90 = vector.shape_cast %89 : vector<1x32x16xbf16> to vector<32x16xbf16>
    %cst_54 = arith.constant dense<0.000000e+00> : vector<64x16xf32>
    %91 = tpu.matmul %88, %90, %cst_54 {dimension_numbers = #tpu.dot_dimension_numbers<[1], [0], [0], [1], [0, 0, 1, 1], [], []>} : vector<64x32xbf16>, vector<32x16xbf16>, vector<64x16xf32> -> vector<64x16xf32>
    %92 = arith.addf %84, %91 : vector<64x16xf32>
    %c2_55 = arith.constant 2 : index
    %c0_56 = arith.constant 0 : index
    %c0_57 = arith.constant 0 : index
    %93 = vector.load %arg6[%c2_55, %c0_56, %c0_57] : memref<3x64x128xbf16, #tpu.memory_space<vmem>>, vector<1x64x128xbf16>
    %94 = vector.shape_cast %93 : vector<1x64x128xbf16> to vector<64x128xbf16>
    %cst_58 = arith.constant dense<0.000000e+00> : vector<64x32xf32>
    %95 = tpu.matmul %94, %75, %cst_58 {dimension_numbers = #tpu.dot_dimension_numbers<[1], [0], [0], [1], [0, 0, 1, 1], [], []>} : vector<64x128xbf16>, vector<128x32xbf16>, vector<64x32xf32> -> vector<64x32xf32>
    %96 = arith.truncf %95 : vector<64x32xf32> to vector<64x32xbf16>
    %c2_59 = arith.constant 2 : index
    %c0_60 = arith.constant 0 : index
    %c0_61 = arith.constant 0 : index
    %97 = vector.load %arg7[%c2_59, %c0_60, %c0_61] : memref<3x32x16xbf16, #tpu.memory_space<vmem>>, vector<1x32x16xbf16>
    %98 = vector.shape_cast %97 : vector<1x32x16xbf16> to vector<32x16xbf16>
    %cst_62 = arith.constant dense<0.000000e+00> : vector<64x16xf32>
    %99 = tpu.matmul %96, %98, %cst_62 {dimension_numbers = #tpu.dot_dimension_numbers<[1], [0], [0], [1], [0, 0, 1, 1], [], []>} : vector<64x32xbf16>, vector<32x16xbf16>, vector<64x16xf32> -> vector<64x16xf32>
    %100 = arith.addf %92, %99 : vector<64x16xf32>
    %101 = tpu.iota {dimensions = array<i32: 0>} : vector<16x4xi32>
    %102 = tpu.iota {dimensions = array<i32: 1>} : vector<16x4xi32>
    %c4_i32_63 = arith.constant 4 : i32
    %c0_i32_64 = arith.constant 0 : i32
    %103 = arith.cmpi eq, %c4_i32_63, %c0_i32_64 : i32
    %c1_i32_65 = arith.constant 1 : i32
    %104 = arith.select %103, %c1_i32_65, %c4_i32_63 : i32
    %105 = vector.broadcast %104 : i32 to vector<16x4xi32>
    %106 = arith.remsi %101, %105 : vector<16x4xi32>
    %c0_i32_66 = arith.constant 0 : i32
    %107 = vector.broadcast %c0_i32_66 : i32 to vector<16x4xi32>
    %108 = arith.cmpi ne, %106, %107 : vector<16x4xi32>
    %c0_i32_67 = arith.constant 0 : i32
    %109 = vector.broadcast %c0_i32_67 : i32 to vector<16x4xi32>
    %110 = arith.cmpi slt, %106, %109 : vector<16x4xi32>
    %c0_i32_68 = arith.constant 0 : i32
    %111 = arith.cmpi slt, %104, %c0_i32_68 : i32
    %112 = vector.broadcast %111 : i1 to vector<16x4xi1>
    %113 = vector.broadcast %112 : vector<16x4xi1> to vector<16x4xi1>
    %114 = arith.xori %110, %113 : vector<16x4xi1>
    %115 = arith.andi %114, %108 : vector<16x4xi1>
    %116 = vector.broadcast %104 : i32 to vector<16x4xi32>
    %117 = arith.addi %106, %116 : vector<16x4xi32>
    %118 = arith.select %115, %117, %106 : vector<16x4xi1>, vector<16x4xi32>
    %119 = arith.cmpi eq, %118, %102 : vector<16x4xi32>
    %120 = arith.extui %119 : vector<16x4xi1> to vector<16x4xi32>
    %121 = arith.sitofp %120 : vector<16x4xi32> to vector<16x4xf32>
    %cst_69 = arith.constant dense<0.000000e+00> : vector<16xf32>
    %122 = vector.multi_reduction <add>, %100, %cst_69 [0] : vector<64x16xf32> to vector<16xf32>
    %123 = vector.shape_cast %122 : vector<16xf32> to vector<1x16xf32>
    %cst_70 = arith.constant dense<0.000000e+00> : vector<1x4xf32>
    %124 = tpu.matmul %123, %121, %cst_70 {dimension_numbers = #tpu.dot_dimension_numbers<[1], [0], [0], [1], [0, 0, 1, 1], [], []>} : vector<1x16xf32>, vector<16x4xf32>, vector<1x4xf32> -> vector<1x4xf32>
    %cst_71 = arith.constant 3.906250e-03 : f32
    %125 = vector.broadcast %cst_71 : f32 to vector<1x4xf32>
    %126 = arith.mulf %124, %125 : vector<1x4xf32>
    %127 = tpu.concatenate %126, %126, %126, %126 in 1 : vector<1x4xf32>, vector<1x4xf32>, vector<1x4xf32>, vector<1x4xf32> -> vector<1x16xf32>
    %128 = vector.broadcast %127 : vector<1x16xf32> to vector<64x16xf32>
    %129 = arith.subf %100, %128 : vector<64x16xf32>
    %130 = arith.mulf %129, %129 : vector<64x16xf32>
    %cst_72 = arith.constant dense<0.000000e+00> : vector<16xf32>
    %131 = vector.multi_reduction <add>, %130, %cst_72 [0] : vector<64x16xf32> to vector<16xf32>
    %132 = vector.shape_cast %131 : vector<16xf32> to vector<1x16xf32>
    %cst_73 = arith.constant dense<0.000000e+00> : vector<1x4xf32>
    %133 = tpu.matmul %132, %121, %cst_73 {dimension_numbers = #tpu.dot_dimension_numbers<[1], [0], [0], [1], [0, 0, 1, 1], [], []>} : vector<1x16xf32>, vector<16x4xf32>, vector<1x4xf32> -> vector<1x4xf32>
    %cst_74 = arith.constant 3.906250e-03 : f32
    %134 = vector.broadcast %cst_74 : f32 to vector<1x4xf32>
    %135 = arith.mulf %133, %134 : vector<1x4xf32>
    %c0_75 = arith.constant 0 : index
    %c0_76 = arith.constant 0 : index
    %136 = vector.load %arg8[%c0_75, %c0_76] : memref<1x4xf32, #tpu.memory_space<vmem>>, vector<1x4xf32>
    %cst_77 = arith.constant 9.99999974E-6 : f32
    %137 = vector.broadcast %cst_77 : f32 to vector<1x4xf32>
    %138 = arith.addf %135, %137 : vector<1x4xf32>
    %139 = math.rsqrt %138 : vector<1x4xf32>
    %140 = arith.mulf %136, %139 : vector<1x4xf32>
    %141 = tpu.concatenate %140, %140, %140, %140 in 1 : vector<1x4xf32>, vector<1x4xf32>, vector<1x4xf32>, vector<1x4xf32> -> vector<1x16xf32>
    %142 = vector.broadcast %141 : vector<1x16xf32> to vector<64x16xf32>
    %143 = arith.mulf %129, %142 : vector<64x16xf32>
    %c0_78 = arith.constant 0 : index
    %c0_79 = arith.constant 0 : index
    %144 = vector.load %arg9[%c0_78, %c0_79] : memref<1x4xf32, #tpu.memory_space<vmem>>, vector<1x4xf32>
    %145 = tpu.concatenate %144, %144, %144, %144 in 1 : vector<1x4xf32>, vector<1x4xf32>, vector<1x4xf32>, vector<1x4xf32> -> vector<1x16xf32>
    %146 = vector.broadcast %145 : vector<1x16xf32> to vector<64x16xf32>
    %147 = arith.addf %143, %146 : vector<64x16xf32>
    %cst_80 = arith.constant 0.000000e+00 : f32
    %148 = vector.broadcast %cst_80 : f32 to vector<64x16xf32>
    %149 = arith.maximumf %147, %148 : vector<64x16xf32>
    %150 = arith.truncf %149 : vector<64x16xf32> to vector<64x16xbf16>
    %cst_81 = arith.constant 0.000000e+00 : f32
    %151 = vector.broadcast %cst_81 : f32 to vector<32x16xf32>
    %c0_82 = arith.constant 0 : index
    %c0_83 = arith.constant 0 : index
    %c0_84 = arith.constant 0 : index
    %152 = vector.load %arg10[%c0_82, %c0_83, %c0_84] : memref<3x32x64xbf16, #tpu.memory_space<vmem>>, vector<1x32x64xbf16>
    %153 = vector.shape_cast %152 : vector<1x32x64xbf16> to vector<32x64xbf16>
    %cst_85 = arith.constant dense<0.000000e+00> : vector<32x16xf32>
    %154 = tpu.matmul %153, %150, %cst_85 {dimension_numbers = #tpu.dot_dimension_numbers<[1], [0], [0], [1], [0, 0, 1, 1], [], []>} : vector<32x64xbf16>, vector<64x16xbf16>, vector<32x16xf32> -> vector<32x16xf32>
    %155 = arith.truncf %154 : vector<32x16xf32> to vector<32x16xbf16>
    %c0_86 = arith.constant 0 : index
    %c0_87 = arith.constant 0 : index
    %c0_88 = arith.constant 0 : index
    %156 = vector.load %arg11[%c0_86, %c0_87, %c0_88] : memref<3x16x16xbf16, #tpu.memory_space<vmem>>, vector<1x16x16xbf16>
    %157 = vector.shape_cast %156 : vector<1x16x16xbf16> to vector<16x16xbf16>
    %cst_89 = arith.constant dense<0.000000e+00> : vector<32x16xf32>
    %158 = tpu.matmul %155, %157, %cst_89 {dimension_numbers = #tpu.dot_dimension_numbers<[1], [0], [0], [1], [0, 0, 1, 1], [], []>} : vector<32x16xbf16>, vector<16x16xbf16>, vector<32x16xf32> -> vector<32x16xf32>
    %159 = arith.addf %151, %158 : vector<32x16xf32>
    %c1_90 = arith.constant 1 : index
    %c0_91 = arith.constant 0 : index
    %c0_92 = arith.constant 0 : index
    %160 = vector.load %arg10[%c1_90, %c0_91, %c0_92] : memref<3x32x64xbf16, #tpu.memory_space<vmem>>, vector<1x32x64xbf16>
    %161 = vector.shape_cast %160 : vector<1x32x64xbf16> to vector<32x64xbf16>
    %cst_93 = arith.constant dense<0.000000e+00> : vector<32x16xf32>
    %162 = tpu.matmul %161, %150, %cst_93 {dimension_numbers = #tpu.dot_dimension_numbers<[1], [0], [0], [1], [0, 0, 1, 1], [], []>} : vector<32x64xbf16>, vector<64x16xbf16>, vector<32x16xf32> -> vector<32x16xf32>
    %163 = arith.truncf %162 : vector<32x16xf32> to vector<32x16xbf16>
    %c1_94 = arith.constant 1 : index
    %c0_95 = arith.constant 0 : index
    %c0_96 = arith.constant 0 : index
    %164 = vector.load %arg11[%c1_94, %c0_95, %c0_96] : memref<3x16x16xbf16, #tpu.memory_space<vmem>>, vector<1x16x16xbf16>
    %165 = vector.shape_cast %164 : vector<1x16x16xbf16> to vector<16x16xbf16>
    %cst_97 = arith.constant dense<0.000000e+00> : vector<32x16xf32>
    %166 = tpu.matmul %163, %165, %cst_97 {dimension_numbers = #tpu.dot_dimension_numbers<[1], [0], [0], [1], [0, 0, 1, 1], [], []>} : vector<32x16xbf16>, vector<16x16xbf16>, vector<32x16xf32> -> vector<32x16xf32>
    %167 = arith.addf %159, %166 : vector<32x16xf32>
    %c2_98 = arith.constant 2 : index
    %c0_99 = arith.constant 0 : index
    %c0_100 = arith.constant 0 : index
    %168 = vector.load %arg10[%c2_98, %c0_99, %c0_100] : memref<3x32x64xbf16, #tpu.memory_space<vmem>>, vector<1x32x64xbf16>
    %169 = vector.shape_cast %168 : vector<1x32x64xbf16> to vector<32x64xbf16>
    %cst_101 = arith.constant dense<0.000000e+00> : vector<32x16xf32>
    %170 = tpu.matmul %169, %150, %cst_101 {dimension_numbers = #tpu.dot_dimension_numbers<[1], [0], [0], [1], [0, 0, 1, 1], [], []>} : vector<32x64xbf16>, vector<64x16xbf16>, vector<32x16xf32> -> vector<32x16xf32>
    %171 = arith.truncf %170 : vector<32x16xf32> to vector<32x16xbf16>
    %c2_102 = arith.constant 2 : index
    %c0_103 = arith.constant 0 : index
    %c0_104 = arith.constant 0 : index
    %172 = vector.load %arg11[%c2_102, %c0_103, %c0_104] : memref<3x16x16xbf16, #tpu.memory_space<vmem>>, vector<1x16x16xbf16>
    %173 = vector.shape_cast %172 : vector<1x16x16xbf16> to vector<16x16xbf16>
    %cst_105 = arith.constant dense<0.000000e+00> : vector<32x16xf32>
    %174 = tpu.matmul %171, %173, %cst_105 {dimension_numbers = #tpu.dot_dimension_numbers<[1], [0], [0], [1], [0, 0, 1, 1], [], []>} : vector<32x16xbf16>, vector<16x16xbf16>, vector<32x16xf32> -> vector<32x16xf32>
    %175 = arith.addf %167, %174 : vector<32x16xf32>
    %176 = tpu.iota {dimensions = array<i32: 0>} : vector<16x8xi32>
    %177 = tpu.iota {dimensions = array<i32: 1>} : vector<16x8xi32>
    %c8_i32 = arith.constant 8 : i32
    %c0_i32_106 = arith.constant 0 : i32
    %178 = arith.cmpi eq, %c8_i32, %c0_i32_106 : i32
    %c1_i32_107 = arith.constant 1 : i32
    %179 = arith.select %178, %c1_i32_107, %c8_i32 : i32
    %180 = vector.broadcast %179 : i32 to vector<16x8xi32>
    %181 = arith.remsi %176, %180 : vector<16x8xi32>
    %c0_i32_108 = arith.constant 0 : i32
    %182 = vector.broadcast %c0_i32_108 : i32 to vector<16x8xi32>
    %183 = arith.cmpi ne, %181, %182 : vector<16x8xi32>
    %c0_i32_109 = arith.constant 0 : i32
    %184 = vector.broadcast %c0_i32_109 : i32 to vector<16x8xi32>
    %185 = arith.cmpi slt, %181, %184 : vector<16x8xi32>
    %c0_i32_110 = arith.constant 0 : i32
    %186 = arith.cmpi slt, %179, %c0_i32_110 : i32
    %187 = vector.broadcast %186 : i1 to vector<16x8xi1>
    %188 = vector.broadcast %187 : vector<16x8xi1> to vector<16x8xi1>
    %189 = arith.xori %185, %188 : vector<16x8xi1>
    %190 = arith.andi %189, %183 : vector<16x8xi1>
    %191 = vector.broadcast %179 : i32 to vector<16x8xi32>
    %192 = arith.addi %181, %191 : vector<16x8xi32>
    %193 = arith.select %190, %192, %181 : vector<16x8xi1>, vector<16x8xi32>
    %194 = arith.cmpi eq, %193, %177 : vector<16x8xi32>
    %195 = arith.extui %194 : vector<16x8xi1> to vector<16x8xi32>
    %196 = arith.sitofp %195 : vector<16x8xi32> to vector<16x8xf32>
    %cst_111 = arith.constant dense<0.000000e+00> : vector<16xf32>
    %197 = vector.multi_reduction <add>, %175, %cst_111 [0] : vector<32x16xf32> to vector<16xf32>
    %198 = vector.shape_cast %197 : vector<16xf32> to vector<1x16xf32>
    %cst_112 = arith.constant dense<0.000000e+00> : vector<1x8xf32>
    %199 = tpu.matmul %198, %196, %cst_112 {dimension_numbers = #tpu.dot_dimension_numbers<[1], [0], [0], [1], [0, 0, 1, 1], [], []>} : vector<1x16xf32>, vector<16x8xf32>, vector<1x8xf32> -> vector<1x8xf32>
    %cst_113 = arith.constant 1.562500e-02 : f32
    %200 = vector.broadcast %cst_113 : f32 to vector<1x8xf32>
    %201 = arith.mulf %199, %200 : vector<1x8xf32>
    %202 = tpu.concatenate %201, %201 in 1 : vector<1x8xf32>, vector<1x8xf32> -> vector<1x16xf32>
    %203 = vector.broadcast %202 : vector<1x16xf32> to vector<32x16xf32>
    %204 = arith.subf %175, %203 : vector<32x16xf32>
    %205 = arith.mulf %204, %204 : vector<32x16xf32>
    %cst_114 = arith.constant dense<0.000000e+00> : vector<16xf32>
    %206 = vector.multi_reduction <add>, %205, %cst_114 [0] : vector<32x16xf32> to vector<16xf32>
    %207 = vector.shape_cast %206 : vector<16xf32> to vector<1x16xf32>
    %cst_115 = arith.constant dense<0.000000e+00> : vector<1x8xf32>
    %208 = tpu.matmul %207, %196, %cst_115 {dimension_numbers = #tpu.dot_dimension_numbers<[1], [0], [0], [1], [0, 0, 1, 1], [], []>} : vector<1x16xf32>, vector<16x8xf32>, vector<1x8xf32> -> vector<1x8xf32>
    %cst_116 = arith.constant 1.562500e-02 : f32
    %209 = vector.broadcast %cst_116 : f32 to vector<1x8xf32>
    %210 = arith.mulf %208, %209 : vector<1x8xf32>
    %c0_117 = arith.constant 0 : index
    %c0_118 = arith.constant 0 : index
    %211 = vector.load %arg12[%c0_117, %c0_118] : memref<1x8xf32, #tpu.memory_space<vmem>>, vector<1x8xf32>
    %cst_119 = arith.constant 9.99999974E-6 : f32
    %212 = vector.broadcast %cst_119 : f32 to vector<1x8xf32>
    %213 = arith.addf %210, %212 : vector<1x8xf32>
    %214 = math.rsqrt %213 : vector<1x8xf32>
    %215 = arith.mulf %211, %214 : vector<1x8xf32>
    %216 = tpu.concatenate %215, %215 in 1 : vector<1x8xf32>, vector<1x8xf32> -> vector<1x16xf32>
    %217 = vector.broadcast %216 : vector<1x16xf32> to vector<32x16xf32>
    %218 = arith.mulf %204, %217 : vector<32x16xf32>
    %c0_120 = arith.constant 0 : index
    %c0_121 = arith.constant 0 : index
    %219 = vector.load %arg13[%c0_120, %c0_121] : memref<1x8xf32, #tpu.memory_space<vmem>>, vector<1x8xf32>
    %220 = tpu.concatenate %219, %219 in 1 : vector<1x8xf32>, vector<1x8xf32> -> vector<1x16xf32>
    %221 = vector.broadcast %220 : vector<1x16xf32> to vector<32x16xf32>
    %222 = arith.addf %218, %221 : vector<32x16xf32>
    %cst_122 = arith.constant 0.000000e+00 : f32
    %223 = vector.broadcast %cst_122 : f32 to vector<32x16xf32>
    %224 = arith.maximumf %222, %223 : vector<32x16xf32>
    %225 = arith.truncf %224 : vector<32x16xf32> to vector<32x16xbf16>
    %cst_123 = arith.constant 0.000000e+00 : f32
    %226 = vector.broadcast %cst_123 : f32 to vector<16x8xf32>
    %c0_124 = arith.constant 0 : index
    %c0_125 = arith.constant 0 : index
    %c0_126 = arith.constant 0 : index
    %227 = vector.load %arg14[%c0_124, %c0_125, %c0_126] : memref<3x16x32xbf16, #tpu.memory_space<vmem>>, vector<1x16x32xbf16>
    %228 = vector.shape_cast %227 : vector<1x16x32xbf16> to vector<16x32xbf16>
    %cst_127 = arith.constant dense<0.000000e+00> : vector<16x16xf32>
    %229 = tpu.matmul %228, %225, %cst_127 {dimension_numbers = #tpu.dot_dimension_numbers<[1], [0], [0], [1], [0, 0, 1, 1], [], []>} : vector<16x32xbf16>, vector<32x16xbf16>, vector<16x16xf32> -> vector<16x16xf32>
    %230 = arith.truncf %229 : vector<16x16xf32> to vector<16x16xbf16>
    %c0_128 = arith.constant 0 : index
    %c0_129 = arith.constant 0 : index
    %c0_130 = arith.constant 0 : index
    %231 = vector.load %arg15[%c0_128, %c0_129, %c0_130] : memref<3x16x8xbf16, #tpu.memory_space<vmem>>, vector<1x16x8xbf16>
    %232 = vector.shape_cast %231 : vector<1x16x8xbf16> to vector<16x8xbf16>
    %cst_131 = arith.constant dense<0.000000e+00> : vector<16x8xf32>
    %233 = tpu.matmul %230, %232, %cst_131 {dimension_numbers = #tpu.dot_dimension_numbers<[1], [0], [0], [1], [0, 0, 1, 1], [], []>} : vector<16x16xbf16>, vector<16x8xbf16>, vector<16x8xf32> -> vector<16x8xf32>
    %234 = arith.addf %226, %233 : vector<16x8xf32>
    %c1_132 = arith.constant 1 : index
    %c0_133 = arith.constant 0 : index
    %c0_134 = arith.constant 0 : index
    %235 = vector.load %arg14[%c1_132, %c0_133, %c0_134] : memref<3x16x32xbf16, #tpu.memory_space<vmem>>, vector<1x16x32xbf16>
    %236 = vector.shape_cast %235 : vector<1x16x32xbf16> to vector<16x32xbf16>
    %cst_135 = arith.constant dense<0.000000e+00> : vector<16x16xf32>
    %237 = tpu.matmul %236, %225, %cst_135 {dimension_numbers = #tpu.dot_dimension_numbers<[1], [0], [0], [1], [0, 0, 1, 1], [], []>} : vector<16x32xbf16>, vector<32x16xbf16>, vector<16x16xf32> -> vector<16x16xf32>
    %238 = arith.truncf %237 : vector<16x16xf32> to vector<16x16xbf16>
    %c1_136 = arith.constant 1 : index
    %c0_137 = arith.constant 0 : index
    %c0_138 = arith.constant 0 : index
    %239 = vector.load %arg15[%c1_136, %c0_137, %c0_138] : memref<3x16x8xbf16, #tpu.memory_space<vmem>>, vector<1x16x8xbf16>
    %240 = vector.shape_cast %239 : vector<1x16x8xbf16> to vector<16x8xbf16>
    %cst_139 = arith.constant dense<0.000000e+00> : vector<16x8xf32>
    %241 = tpu.matmul %238, %240, %cst_139 {dimension_numbers = #tpu.dot_dimension_numbers<[1], [0], [0], [1], [0, 0, 1, 1], [], []>} : vector<16x16xbf16>, vector<16x8xbf16>, vector<16x8xf32> -> vector<16x8xf32>
    %242 = arith.addf %234, %241 : vector<16x8xf32>
    %c2_140 = arith.constant 2 : index
    %c0_141 = arith.constant 0 : index
    %c0_142 = arith.constant 0 : index
    %243 = vector.load %arg14[%c2_140, %c0_141, %c0_142] : memref<3x16x32xbf16, #tpu.memory_space<vmem>>, vector<1x16x32xbf16>
    %244 = vector.shape_cast %243 : vector<1x16x32xbf16> to vector<16x32xbf16>
    %cst_143 = arith.constant dense<0.000000e+00> : vector<16x16xf32>
    %245 = tpu.matmul %244, %225, %cst_143 {dimension_numbers = #tpu.dot_dimension_numbers<[1], [0], [0], [1], [0, 0, 1, 1], [], []>} : vector<16x32xbf16>, vector<32x16xbf16>, vector<16x16xf32> -> vector<16x16xf32>
    %246 = arith.truncf %245 : vector<16x16xf32> to vector<16x16xbf16>
    %c2_144 = arith.constant 2 : index
    %c0_145 = arith.constant 0 : index
    %c0_146 = arith.constant 0 : index
    %247 = vector.load %arg15[%c2_144, %c0_145, %c0_146] : memref<3x16x8xbf16, #tpu.memory_space<vmem>>, vector<1x16x8xbf16>
    %248 = vector.shape_cast %247 : vector<1x16x8xbf16> to vector<16x8xbf16>
    %cst_147 = arith.constant dense<0.000000e+00> : vector<16x8xf32>
    %249 = tpu.matmul %246, %248, %cst_147 {dimension_numbers = #tpu.dot_dimension_numbers<[1], [0], [0], [1], [0, 0, 1, 1], [], []>} : vector<16x16xbf16>, vector<16x8xbf16>, vector<16x8xf32> -> vector<16x8xf32>
    %250 = arith.addf %242, %249 : vector<16x8xf32>
    %251 = tpu.iota {dimensions = array<i32: 0>} : vector<8x8xi32>
    %252 = tpu.iota {dimensions = array<i32: 1>} : vector<8x8xi32>
    %c8_i32_148 = arith.constant 8 : i32
    %c0_i32_149 = arith.constant 0 : i32
    %253 = arith.cmpi eq, %c8_i32_148, %c0_i32_149 : i32
    %c1_i32_150 = arith.constant 1 : i32
    %254 = arith.select %253, %c1_i32_150, %c8_i32_148 : i32
    %255 = vector.broadcast %254 : i32 to vector<8x8xi32>
    %256 = arith.remsi %251, %255 : vector<8x8xi32>
    %c0_i32_151 = arith.constant 0 : i32
    %257 = vector.broadcast %c0_i32_151 : i32 to vector<8x8xi32>
    %258 = arith.cmpi ne, %256, %257 : vector<8x8xi32>
    %c0_i32_152 = arith.constant 0 : i32
    %259 = vector.broadcast %c0_i32_152 : i32 to vector<8x8xi32>
    %260 = arith.cmpi slt, %256, %259 : vector<8x8xi32>
    %c0_i32_153 = arith.constant 0 : i32
    %261 = arith.cmpi slt, %254, %c0_i32_153 : i32
    %262 = vector.broadcast %261 : i1 to vector<8x8xi1>
    %263 = vector.broadcast %262 : vector<8x8xi1> to vector<8x8xi1>
    %264 = arith.xori %260, %263 : vector<8x8xi1>
    %265 = arith.andi %264, %258 : vector<8x8xi1>
    %266 = vector.broadcast %254 : i32 to vector<8x8xi32>
    %267 = arith.addi %256, %266 : vector<8x8xi32>
    %268 = arith.select %265, %267, %256 : vector<8x8xi1>, vector<8x8xi32>
    %269 = arith.cmpi eq, %268, %252 : vector<8x8xi32>
    %270 = arith.extui %269 : vector<8x8xi1> to vector<8x8xi32>
    %271 = arith.sitofp %270 : vector<8x8xi32> to vector<8x8xf32>
    %cst_154 = arith.constant dense<0.000000e+00> : vector<8xf32>
    %272 = vector.multi_reduction <add>, %250, %cst_154 [0] : vector<16x8xf32> to vector<8xf32>
    %273 = vector.shape_cast %272 : vector<8xf32> to vector<1x8xf32>
    %cst_155 = arith.constant dense<0.000000e+00> : vector<1x8xf32>
    %274 = tpu.matmul %273, %271, %cst_155 {dimension_numbers = #tpu.dot_dimension_numbers<[1], [0], [0], [1], [0, 0, 1, 1], [], []>} : vector<1x8xf32>, vector<8x8xf32>, vector<1x8xf32> -> vector<1x8xf32>
    %cst_156 = arith.constant 6.250000e-02 : f32
    %275 = vector.broadcast %cst_156 : f32 to vector<1x8xf32>
    %276 = arith.mulf %274, %275 : vector<1x8xf32>
    %277 = vector.broadcast %276 : vector<1x8xf32> to vector<16x8xf32>
    %278 = arith.subf %250, %277 : vector<16x8xf32>
    %279 = arith.mulf %278, %278 : vector<16x8xf32>
    %cst_157 = arith.constant dense<0.000000e+00> : vector<8xf32>
    %280 = vector.multi_reduction <add>, %279, %cst_157 [0] : vector<16x8xf32> to vector<8xf32>
    %281 = vector.shape_cast %280 : vector<8xf32> to vector<1x8xf32>
    %cst_158 = arith.constant dense<0.000000e+00> : vector<1x8xf32>
    %282 = tpu.matmul %281, %271, %cst_158 {dimension_numbers = #tpu.dot_dimension_numbers<[1], [0], [0], [1], [0, 0, 1, 1], [], []>} : vector<1x8xf32>, vector<8x8xf32>, vector<1x8xf32> -> vector<1x8xf32>
    %cst_159 = arith.constant 6.250000e-02 : f32
    %283 = vector.broadcast %cst_159 : f32 to vector<1x8xf32>
    %284 = arith.mulf %282, %283 : vector<1x8xf32>
    %c0_160 = arith.constant 0 : index
    %c0_161 = arith.constant 0 : index
    %285 = vector.load %arg16[%c0_160, %c0_161] : memref<1x8xf32, #tpu.memory_space<vmem>>, vector<1x8xf32>
    %cst_162 = arith.constant 9.99999974E-6 : f32
    %286 = vector.broadcast %cst_162 : f32 to vector<1x8xf32>
    %287 = arith.addf %284, %286 : vector<1x8xf32>
    %288 = math.rsqrt %287 : vector<1x8xf32>
    %289 = arith.mulf %285, %288 : vector<1x8xf32>
    %290 = vector.broadcast %289 : vector<1x8xf32> to vector<16x8xf32>
    %291 = arith.mulf %278, %290 : vector<16x8xf32>
    %c0_163 = arith.constant 0 : index
    %c0_164 = arith.constant 0 : index
    %292 = vector.load %arg17[%c0_163, %c0_164] : memref<1x8xf32, #tpu.memory_space<vmem>>, vector<1x8xf32>
    %293 = vector.broadcast %292 : vector<1x8xf32> to vector<16x8xf32>
    %294 = arith.addf %291, %293 : vector<16x8xf32>
    %cst_165 = arith.constant 0.000000e+00 : f32
    %295 = vector.broadcast %cst_165 : f32 to vector<16x8xf32>
    %296 = arith.maximumf %294, %295 : vector<16x8xf32>
    %297 = arith.truncf %296 : vector<16x8xf32> to vector<16x8xbf16>
    %cst_166 = arith.constant 0.000000e+00 : f32
    %298 = vector.broadcast %cst_166 : f32 to vector<8x16xf32>
    %c0_167 = arith.constant 0 : index
    %c0_168 = arith.constant 0 : index
    %c0_169 = arith.constant 0 : index
    %299 = vector.load %arg18[%c0_167, %c0_168, %c0_169] : memref<3x8x16xbf16, #tpu.memory_space<vmem>>, vector<1x8x16xbf16>
    %300 = vector.shape_cast %299 : vector<1x8x16xbf16> to vector<8x16xbf16>
    %cst_170 = arith.constant dense<0.000000e+00> : vector<8x8xf32>
    %301 = tpu.matmul %300, %297, %cst_170 {dimension_numbers = #tpu.dot_dimension_numbers<[1], [0], [0], [1], [0, 0, 1, 1], [], []>} : vector<8x16xbf16>, vector<16x8xbf16>, vector<8x8xf32> -> vector<8x8xf32>
    %302 = arith.truncf %301 : vector<8x8xf32> to vector<8x8xbf16>
    %c0_171 = arith.constant 0 : index
    %c0_172 = arith.constant 0 : index
    %c0_173 = arith.constant 0 : index
    %303 = vector.load %arg19[%c0_171, %c0_172, %c0_173] : memref<3x8x16xbf16, #tpu.memory_space<vmem>>, vector<1x8x16xbf16>
    %304 = vector.shape_cast %303 : vector<1x8x16xbf16> to vector<8x16xbf16>
    %cst_174 = arith.constant dense<0.000000e+00> : vector<8x16xf32>
    %305 = tpu.matmul %302, %304, %cst_174 {dimension_numbers = #tpu.dot_dimension_numbers<[1], [0], [0], [1], [0, 0, 1, 1], [], []>} : vector<8x8xbf16>, vector<8x16xbf16>, vector<8x16xf32> -> vector<8x16xf32>
    %306 = arith.addf %298, %305 : vector<8x16xf32>
    %c1_175 = arith.constant 1 : index
    %c0_176 = arith.constant 0 : index
    %c0_177 = arith.constant 0 : index
    %307 = vector.load %arg18[%c1_175, %c0_176, %c0_177] : memref<3x8x16xbf16, #tpu.memory_space<vmem>>, vector<1x8x16xbf16>
    %308 = vector.shape_cast %307 : vector<1x8x16xbf16> to vector<8x16xbf16>
    %cst_178 = arith.constant dense<0.000000e+00> : vector<8x8xf32>
    %309 = tpu.matmul %308, %297, %cst_178 {dimension_numbers = #tpu.dot_dimension_numbers<[1], [0], [0], [1], [0, 0, 1, 1], [], []>} : vector<8x16xbf16>, vector<16x8xbf16>, vector<8x8xf32> -> vector<8x8xf32>
    %310 = arith.truncf %309 : vector<8x8xf32> to vector<8x8xbf16>
    %c1_179 = arith.constant 1 : index
    %c0_180 = arith.constant 0 : index
    %c0_181 = arith.constant 0 : index
    %311 = vector.load %arg19[%c1_179, %c0_180, %c0_181] : memref<3x8x16xbf16, #tpu.memory_space<vmem>>, vector<1x8x16xbf16>
    %312 = vector.shape_cast %311 : vector<1x8x16xbf16> to vector<8x16xbf16>
    %cst_182 = arith.constant dense<0.000000e+00> : vector<8x16xf32>
    %313 = tpu.matmul %310, %312, %cst_182 {dimension_numbers = #tpu.dot_dimension_numbers<[1], [0], [0], [1], [0, 0, 1, 1], [], []>} : vector<8x8xbf16>, vector<8x16xbf16>, vector<8x16xf32> -> vector<8x16xf32>
    %314 = arith.addf %306, %313 : vector<8x16xf32>
    %c2_183 = arith.constant 2 : index
    %c0_184 = arith.constant 0 : index
    %c0_185 = arith.constant 0 : index
    %315 = vector.load %arg18[%c2_183, %c0_184, %c0_185] : memref<3x8x16xbf16, #tpu.memory_space<vmem>>, vector<1x8x16xbf16>
    %316 = vector.shape_cast %315 : vector<1x8x16xbf16> to vector<8x16xbf16>
    %cst_186 = arith.constant dense<0.000000e+00> : vector<8x8xf32>
    %317 = tpu.matmul %316, %297, %cst_186 {dimension_numbers = #tpu.dot_dimension_numbers<[1], [0], [0], [1], [0, 0, 1, 1], [], []>} : vector<8x16xbf16>, vector<16x8xbf16>, vector<8x8xf32> -> vector<8x8xf32>
    %318 = arith.truncf %317 : vector<8x8xf32> to vector<8x8xbf16>
    %c2_187 = arith.constant 2 : index
    %c0_188 = arith.constant 0 : index
    %c0_189 = arith.constant 0 : index
    %319 = vector.load %arg19[%c2_187, %c0_188, %c0_189] : memref<3x8x16xbf16, #tpu.memory_space<vmem>>, vector<1x8x16xbf16>
    %320 = vector.shape_cast %319 : vector<1x8x16xbf16> to vector<8x16xbf16>
    %cst_190 = arith.constant dense<0.000000e+00> : vector<8x16xf32>
    %321 = tpu.matmul %318, %320, %cst_190 {dimension_numbers = #tpu.dot_dimension_numbers<[1], [0], [0], [1], [0, 0, 1, 1], [], []>} : vector<8x8xbf16>, vector<8x16xbf16>, vector<8x16xf32> -> vector<8x16xf32>
    %322 = arith.addf %314, %321 : vector<8x16xf32>
    %323 = tpu.iota {dimensions = array<i32: 0>} : vector<16x16xi32>
    %324 = tpu.iota {dimensions = array<i32: 1>} : vector<16x16xi32>
    %c16_i32 = arith.constant 16 : i32
    %c0_i32_191 = arith.constant 0 : i32
    %325 = arith.cmpi eq, %c16_i32, %c0_i32_191 : i32
    %c1_i32_192 = arith.constant 1 : i32
    %326 = arith.select %325, %c1_i32_192, %c16_i32 : i32
    %327 = vector.broadcast %326 : i32 to vector<16x16xi32>
    %328 = arith.remsi %323, %327 : vector<16x16xi32>
    %c0_i32_193 = arith.constant 0 : i32
    %329 = vector.broadcast %c0_i32_193 : i32 to vector<16x16xi32>
    %330 = arith.cmpi ne, %328, %329 : vector<16x16xi32>
    %c0_i32_194 = arith.constant 0 : i32
    %331 = vector.broadcast %c0_i32_194 : i32 to vector<16x16xi32>
    %332 = arith.cmpi slt, %328, %331 : vector<16x16xi32>
    %c0_i32_195 = arith.constant 0 : i32
    %333 = arith.cmpi slt, %326, %c0_i32_195 : i32
    %334 = vector.broadcast %333 : i1 to vector<16x16xi1>
    %335 = vector.broadcast %334 : vector<16x16xi1> to vector<16x16xi1>
    %336 = arith.xori %332, %335 : vector<16x16xi1>
    %337 = arith.andi %336, %330 : vector<16x16xi1>
    %338 = vector.broadcast %326 : i32 to vector<16x16xi32>
    %339 = arith.addi %328, %338 : vector<16x16xi32>
    %340 = arith.select %337, %339, %328 : vector<16x16xi1>, vector<16x16xi32>
    %341 = arith.cmpi eq, %340, %324 : vector<16x16xi32>
    %342 = arith.extui %341 : vector<16x16xi1> to vector<16x16xi32>
    %343 = arith.sitofp %342 : vector<16x16xi32> to vector<16x16xf32>
    %cst_196 = arith.constant dense<0.000000e+00> : vector<16xf32>
    %344 = vector.multi_reduction <add>, %322, %cst_196 [0] : vector<8x16xf32> to vector<16xf32>
    %345 = vector.shape_cast %344 : vector<16xf32> to vector<1x16xf32>
    %cst_197 = arith.constant dense<0.000000e+00> : vector<1x16xf32>
    %346 = tpu.matmul %345, %343, %cst_197 {dimension_numbers = #tpu.dot_dimension_numbers<[1], [0], [0], [1], [0, 0, 1, 1], [], []>} : vector<1x16xf32>, vector<16x16xf32>, vector<1x16xf32> -> vector<1x16xf32>
    %cst_198 = arith.constant 1.250000e-01 : f32
    %347 = vector.broadcast %cst_198 : f32 to vector<1x16xf32>
    %348 = arith.mulf %346, %347 : vector<1x16xf32>
    %349 = vector.broadcast %348 : vector<1x16xf32> to vector<8x16xf32>
    %350 = arith.subf %322, %349 : vector<8x16xf32>
    %351 = arith.mulf %350, %350 : vector<8x16xf32>
    %cst_199 = arith.constant dense<0.000000e+00> : vector<16xf32>
    %352 = vector.multi_reduction <add>, %351, %cst_199 [0] : vector<8x16xf32> to vector<16xf32>
    %353 = vector.shape_cast %352 : vector<16xf32> to vector<1x16xf32>
    %cst_200 = arith.constant dense<0.000000e+00> : vector<1x16xf32>
    %354 = tpu.matmul %353, %343, %cst_200 {dimension_numbers = #tpu.dot_dimension_numbers<[1], [0], [0], [1], [0, 0, 1, 1], [], []>} : vector<1x16xf32>, vector<16x16xf32>, vector<1x16xf32> -> vector<1x16xf32>
    %cst_201 = arith.constant 1.250000e-01 : f32
    %355 = vector.broadcast %cst_201 : f32 to vector<1x16xf32>
    %356 = arith.mulf %354, %355 : vector<1x16xf32>
    %c0_202 = arith.constant 0 : index
    %c0_203 = arith.constant 0 : index
    %357 = vector.load %arg20[%c0_202, %c0_203] : memref<1x16xf32, #tpu.memory_space<vmem>>, vector<1x16xf32>
    %cst_204 = arith.constant 9.99999974E-6 : f32
    %358 = vector.broadcast %cst_204 : f32 to vector<1x16xf32>
    %359 = arith.addf %356, %358 : vector<1x16xf32>
    %360 = math.rsqrt %359 : vector<1x16xf32>
    %361 = arith.mulf %357, %360 : vector<1x16xf32>
    %362 = vector.broadcast %361 : vector<1x16xf32> to vector<8x16xf32>
    %363 = arith.mulf %350, %362 : vector<8x16xf32>
    %c0_205 = arith.constant 0 : index
    %c0_206 = arith.constant 0 : index
    %364 = vector.load %arg21[%c0_205, %c0_206] : memref<1x16xf32, #tpu.memory_space<vmem>>, vector<1x16xf32>
    %365 = vector.broadcast %364 : vector<1x16xf32> to vector<8x16xf32>
    %366 = arith.addf %363, %365 : vector<8x16xf32>
    %cst_207 = arith.constant 0.000000e+00 : f32
    %367 = vector.broadcast %cst_207 : f32 to vector<8x16xf32>
    %368 = arith.maximumf %366, %367 : vector<8x16xf32>
    %369 = arith.truncf %368 : vector<8x16xf32> to vector<8x16xbf16>
    %cst_208 = arith.constant 0.000000e+00 : f32
    %370 = vector.broadcast %cst_208 : f32 to vector<4x16xf32>
    %c0_209 = arith.constant 0 : index
    %c0_210 = arith.constant 0 : index
    %c0_211 = arith.constant 0 : index
    %371 = vector.load %arg22[%c0_209, %c0_210, %c0_211] : memref<3x4x8xbf16, #tpu.memory_space<vmem>>, vector<1x4x8xbf16>
    %372 = vector.shape_cast %371 : vector<1x4x8xbf16> to vector<4x8xbf16>
    %cst_212 = arith.constant dense<0.000000e+00> : vector<4x16xf32>
    %373 = tpu.matmul %372, %369, %cst_212 {dimension_numbers = #tpu.dot_dimension_numbers<[1], [0], [0], [1], [0, 0, 1, 1], [], []>} : vector<4x8xbf16>, vector<8x16xbf16>, vector<4x16xf32> -> vector<4x16xf32>
    %374 = arith.truncf %373 : vector<4x16xf32> to vector<4x16xbf16>
    %c0_213 = arith.constant 0 : index
    %c0_214 = arith.constant 0 : index
    %c0_215 = arith.constant 0 : index
    %375 = vector.load %arg23[%c0_213, %c0_214, %c0_215] : memref<3x16x16xbf16, #tpu.memory_space<vmem>>, vector<1x16x16xbf16>
    %376 = vector.shape_cast %375 : vector<1x16x16xbf16> to vector<16x16xbf16>
    %cst_216 = arith.constant dense<0.000000e+00> : vector<4x16xf32>
    %377 = tpu.matmul %374, %376, %cst_216 {dimension_numbers = #tpu.dot_dimension_numbers<[1], [0], [0], [1], [0, 0, 1, 1], [], []>} : vector<4x16xbf16>, vector<16x16xbf16>, vector<4x16xf32> -> vector<4x16xf32>
    %378 = arith.addf %370, %377 : vector<4x16xf32>
    %c1_217 = arith.constant 1 : index
    %c0_218 = arith.constant 0 : index
    %c0_219 = arith.constant 0 : index
    %379 = vector.load %arg22[%c1_217, %c0_218, %c0_219] : memref<3x4x8xbf16, #tpu.memory_space<vmem>>, vector<1x4x8xbf16>
    %380 = vector.shape_cast %379 : vector<1x4x8xbf16> to vector<4x8xbf16>
    %cst_220 = arith.constant dense<0.000000e+00> : vector<4x16xf32>
    %381 = tpu.matmul %380, %369, %cst_220 {dimension_numbers = #tpu.dot_dimension_numbers<[1], [0], [0], [1], [0, 0, 1, 1], [], []>} : vector<4x8xbf16>, vector<8x16xbf16>, vector<4x16xf32> -> vector<4x16xf32>
    %382 = arith.truncf %381 : vector<4x16xf32> to vector<4x16xbf16>
    %c1_221 = arith.constant 1 : index
    %c0_222 = arith.constant 0 : index
    %c0_223 = arith.constant 0 : index
    %383 = vector.load %arg23[%c1_221, %c0_222, %c0_223] : memref<3x16x16xbf16, #tpu.memory_space<vmem>>, vector<1x16x16xbf16>
    %384 = vector.shape_cast %383 : vector<1x16x16xbf16> to vector<16x16xbf16>
    %cst_224 = arith.constant dense<0.000000e+00> : vector<4x16xf32>
    %385 = tpu.matmul %382, %384, %cst_224 {dimension_numbers = #tpu.dot_dimension_numbers<[1], [0], [0], [1], [0, 0, 1, 1], [], []>} : vector<4x16xbf16>, vector<16x16xbf16>, vector<4x16xf32> -> vector<4x16xf32>
    %386 = arith.addf %378, %385 : vector<4x16xf32>
    %c2_225 = arith.constant 2 : index
    %c0_226 = arith.constant 0 : index
    %c0_227 = arith.constant 0 : index
    %387 = vector.load %arg22[%c2_225, %c0_226, %c0_227] : memref<3x4x8xbf16, #tpu.memory_space<vmem>>, vector<1x4x8xbf16>
    %388 = vector.shape_cast %387 : vector<1x4x8xbf16> to vector<4x8xbf16>
    %cst_228 = arith.constant dense<0.000000e+00> : vector<4x16xf32>
    %389 = tpu.matmul %388, %369, %cst_228 {dimension_numbers = #tpu.dot_dimension_numbers<[1], [0], [0], [1], [0, 0, 1, 1], [], []>} : vector<4x8xbf16>, vector<8x16xbf16>, vector<4x16xf32> -> vector<4x16xf32>
    %390 = arith.truncf %389 : vector<4x16xf32> to vector<4x16xbf16>
    %c2_229 = arith.constant 2 : index
    %c0_230 = arith.constant 0 : index
    %c0_231 = arith.constant 0 : index
    %391 = vector.load %arg23[%c2_229, %c0_230, %c0_231] : memref<3x16x16xbf16, #tpu.memory_space<vmem>>, vector<1x16x16xbf16>
    %392 = vector.shape_cast %391 : vector<1x16x16xbf16> to vector<16x16xbf16>
    %cst_232 = arith.constant dense<0.000000e+00> : vector<4x16xf32>
    %393 = tpu.matmul %390, %392, %cst_232 {dimension_numbers = #tpu.dot_dimension_numbers<[1], [0], [0], [1], [0, 0, 1, 1], [], []>} : vector<4x16xbf16>, vector<16x16xbf16>, vector<4x16xf32> -> vector<4x16xf32>
    %394 = arith.addf %386, %393 : vector<4x16xf32>
    %395 = tpu.iota {dimensions = array<i32: 0>} : vector<16x16xi32>
    %396 = tpu.iota {dimensions = array<i32: 1>} : vector<16x16xi32>
    %c16_i32_233 = arith.constant 16 : i32
    %c0_i32_234 = arith.constant 0 : i32
    %397 = arith.cmpi eq, %c16_i32_233, %c0_i32_234 : i32
    %c1_i32_235 = arith.constant 1 : i32
    %398 = arith.select %397, %c1_i32_235, %c16_i32_233 : i32
    %399 = vector.broadcast %398 : i32 to vector<16x16xi32>
    %400 = arith.remsi %395, %399 : vector<16x16xi32>
    %c0_i32_236 = arith.constant 0 : i32
    %401 = vector.broadcast %c0_i32_236 : i32 to vector<16x16xi32>
    %402 = arith.cmpi ne, %400, %401 : vector<16x16xi32>
    %c0_i32_237 = arith.constant 0 : i32
    %403 = vector.broadcast %c0_i32_237 : i32 to vector<16x16xi32>
    %404 = arith.cmpi slt, %400, %403 : vector<16x16xi32>
    %c0_i32_238 = arith.constant 0 : i32
    %405 = arith.cmpi slt, %398, %c0_i32_238 : i32
    %406 = vector.broadcast %405 : i1 to vector<16x16xi1>
    %407 = vector.broadcast %406 : vector<16x16xi1> to vector<16x16xi1>
    %408 = arith.xori %404, %407 : vector<16x16xi1>
    %409 = arith.andi %408, %402 : vector<16x16xi1>
    %410 = vector.broadcast %398 : i32 to vector<16x16xi32>
    %411 = arith.addi %400, %410 : vector<16x16xi32>
    %412 = arith.select %409, %411, %400 : vector<16x16xi1>, vector<16x16xi32>
    %413 = arith.cmpi eq, %412, %396 : vector<16x16xi32>
    %414 = arith.extui %413 : vector<16x16xi1> to vector<16x16xi32>
    %415 = arith.sitofp %414 : vector<16x16xi32> to vector<16x16xf32>
    %cst_239 = arith.constant dense<0.000000e+00> : vector<16xf32>
    %416 = vector.multi_reduction <add>, %394, %cst_239 [0] : vector<4x16xf32> to vector<16xf32>
    %417 = vector.shape_cast %416 : vector<16xf32> to vector<1x16xf32>
    %cst_240 = arith.constant dense<0.000000e+00> : vector<1x16xf32>
    %418 = tpu.matmul %417, %415, %cst_240 {dimension_numbers = #tpu.dot_dimension_numbers<[1], [0], [0], [1], [0, 0, 1, 1], [], []>} : vector<1x16xf32>, vector<16x16xf32>, vector<1x16xf32> -> vector<1x16xf32>
    %cst_241 = arith.constant 2.500000e-01 : f32
    %419 = vector.broadcast %cst_241 : f32 to vector<1x16xf32>
    %420 = arith.mulf %418, %419 : vector<1x16xf32>
    %421 = vector.broadcast %420 : vector<1x16xf32> to vector<4x16xf32>
    %422 = arith.subf %394, %421 : vector<4x16xf32>
    %423 = arith.mulf %422, %422 : vector<4x16xf32>
    %cst_242 = arith.constant dense<0.000000e+00> : vector<16xf32>
    %424 = vector.multi_reduction <add>, %423, %cst_242 [0] : vector<4x16xf32> to vector<16xf32>
    %425 = vector.shape_cast %424 : vector<16xf32> to vector<1x16xf32>
    %cst_243 = arith.constant dense<0.000000e+00> : vector<1x16xf32>
    %426 = tpu.matmul %425, %415, %cst_243 {dimension_numbers = #tpu.dot_dimension_numbers<[1], [0], [0], [1], [0, 0, 1, 1], [], []>} : vector<1x16xf32>, vector<16x16xf32>, vector<1x16xf32> -> vector<1x16xf32>
    %cst_244 = arith.constant 2.500000e-01 : f32
    %427 = vector.broadcast %cst_244 : f32 to vector<1x16xf32>
    %428 = arith.mulf %426, %427 : vector<1x16xf32>
    %c0_245 = arith.constant 0 : index
    %c0_246 = arith.constant 0 : index
    %429 = vector.load %arg24[%c0_245, %c0_246] : memref<1x16xf32, #tpu.memory_space<vmem>>, vector<1x16xf32>
    %cst_247 = arith.constant 9.99999974E-6 : f32
    %430 = vector.broadcast %cst_247 : f32 to vector<1x16xf32>
    %431 = arith.addf %428, %430 : vector<1x16xf32>
    %432 = math.rsqrt %431 : vector<1x16xf32>
    %433 = arith.mulf %429, %432 : vector<1x16xf32>
    %434 = vector.broadcast %433 : vector<1x16xf32> to vector<4x16xf32>
    %435 = arith.mulf %422, %434 : vector<4x16xf32>
    %c0_248 = arith.constant 0 : index
    %c0_249 = arith.constant 0 : index
    %436 = vector.load %arg25[%c0_248, %c0_249] : memref<1x16xf32, #tpu.memory_space<vmem>>, vector<1x16xf32>
    %437 = vector.broadcast %436 : vector<1x16xf32> to vector<4x16xf32>
    %438 = arith.addf %435, %437 : vector<4x16xf32>
    %cst_250 = arith.constant 0.000000e+00 : f32
    %439 = vector.broadcast %cst_250 : f32 to vector<4x16xf32>
    %440 = arith.maximumf %438, %439 : vector<4x16xf32>
    %441 = arith.truncf %440 : vector<4x16xf32> to vector<4x16xbf16>
    %c0_251 = arith.constant 0 : index
    %c0_252 = arith.constant 0 : index
    %442 = vector.load %arg26[%c0_251, %c0_252] : memref<16x96xbf16, #tpu.memory_space<vmem>>, vector<16x96xbf16>
    %cst_253 = arith.constant dense<0.000000e+00> : vector<4x96xf32>
    %443 = tpu.matmul %441, %442, %cst_253 {dimension_numbers = #tpu.dot_dimension_numbers<[1], [0], [0], [1], [0, 0, 1, 1], [], []>} : vector<4x16xbf16>, vector<16x96xbf16>, vector<4x96xf32> -> vector<4x96xf32>
    %c0_254 = arith.constant 0 : index
    %c0_255 = arith.constant 0 : index
    %444 = vector.load %arg28[%c0_254, %c0_255] : memref<1x96xf32, #tpu.memory_space<vmem>>, vector<1x96xf32>
    %445 = vector.broadcast %444 : vector<1x96xf32> to vector<4x96xf32>
    %446 = arith.addf %443, %445 : vector<4x96xf32>
    %c0_256 = arith.constant 0 : index
    %c0_257 = arith.constant 0 : index
    %447 = vector.load %arg30[%c0_256, %c0_257] : memref<16x4xf32, #tpu.memory_space<vmem>>, vector<16x4xf32>
    %cst_258 = arith.constant dense<0.000000e+00> : vector<16x96xf32>
    %448 = tpu.matmul %447, %446, %cst_258 {dimension_numbers = #tpu.dot_dimension_numbers<[1], [0], [0], [1], [0, 0, 1, 1], [], []>} : vector<16x4xf32>, vector<4x96xf32>, vector<16x96xf32> -> vector<16x96xf32>
    %c0_259 = arith.constant 0 : index
    %c0_260 = arith.constant 0 : index
    %449 = vector.load %arg27[%c0_259, %c0_260] : memref<32x96xbf16, #tpu.memory_space<vmem>>, vector<32x96xbf16>
    %c0_261 = arith.constant 0 : index
    %c0_262 = arith.constant 0 : index
    %450 = vector.load %arg29[%c0_261, %c0_262] : memref<1x96xf32, #tpu.memory_space<vmem>>, vector<1x96xf32>
    %cst_263 = arith.constant 0.000000e+00 : f32
    %451 = vector.broadcast %cst_263 : f32 to vector<8x32xf32>
    %452 = vector.extract_strided_slice %448 {offsets = [0, 0], sizes = [8, 96], strides = [1, 1]} : vector<16x96xf32> to vector<8x96xf32>
    %453 = arith.truncf %451 : vector<8x32xf32> to vector<8x32xbf16>
    %cst_264 = arith.constant dense<0.000000e+00> : vector<8x96xf32>
    %454 = tpu.matmul %453, %449, %cst_264 {dimension_numbers = #tpu.dot_dimension_numbers<[1], [0], [0], [1], [0, 0, 1, 1], [], []>} : vector<8x32xbf16>, vector<32x96xbf16>, vector<8x96xf32> -> vector<8x96xf32>
    %455 = vector.broadcast %450 : vector<1x96xf32> to vector<8x96xf32>
    %456 = arith.addf %454, %455 : vector<8x96xf32>
    %457 = vector.extract_strided_slice %452 {offsets = [0, 0], sizes = [8, 32], strides = [1, 1]} : vector<8x96xf32> to vector<8x32xf32>
    %458 = vector.extract_strided_slice %456 {offsets = [0, 0], sizes = [8, 32], strides = [1, 1]} : vector<8x96xf32> to vector<8x32xf32>
    %459 = arith.addf %457, %458 : vector<8x32xf32>
    %460 = arith.negf %459 : vector<8x32xf32>
    %461 = math.exp %460 : vector<8x32xf32>
    %cst_265 = arith.constant 1.000000e+00 : f32
    %462 = vector.broadcast %cst_265 : f32 to vector<8x32xf32>
    %463 = arith.addf %462, %461 : vector<8x32xf32>
    %464 = arith.divf %462, %463 : vector<8x32xf32>
    %465 = vector.extract_strided_slice %452 {offsets = [0, 32], sizes = [8, 32], strides = [1, 1]} : vector<8x96xf32> to vector<8x32xf32>
    %466 = vector.extract_strided_slice %456 {offsets = [0, 32], sizes = [8, 32], strides = [1, 1]} : vector<8x96xf32> to vector<8x32xf32>
    %467 = arith.addf %465, %466 : vector<8x32xf32>
    %468 = arith.negf %467 : vector<8x32xf32>
    %469 = math.exp %468 : vector<8x32xf32>
    %cst_266 = arith.constant 1.000000e+00 : f32
    %470 = vector.broadcast %cst_266 : f32 to vector<8x32xf32>
    %471 = arith.addf %470, %469 : vector<8x32xf32>
    %472 = arith.divf %470, %471 : vector<8x32xf32>
    %473 = vector.extract_strided_slice %452 {offsets = [0, 64], sizes = [8, 32], strides = [1, 1]} : vector<8x96xf32> to vector<8x32xf32>
    %474 = vector.extract_strided_slice %456 {offsets = [0, 64], sizes = [8, 32], strides = [1, 1]} : vector<8x96xf32> to vector<8x32xf32>
    %475 = arith.mulf %464, %474 : vector<8x32xf32>
    %476 = arith.addf %473, %475 : vector<8x32xf32>
    %477 = math.tanh %476 : vector<8x32xf32>
    %cst_267 = arith.constant 1.000000e+00 : f32
    %478 = vector.broadcast %cst_267 : f32 to vector<8x32xf32>
    %479 = arith.subf %478, %472 : vector<8x32xf32>
    %480 = arith.mulf %479, %477 : vector<8x32xf32>
    %481 = arith.mulf %472, %451 : vector<8x32xf32>
    %482 = arith.addf %480, %481 : vector<8x32xf32>
    %483 = vector.extract_strided_slice %448 {offsets = [8, 0], sizes = [8, 96], strides = [1, 1]} : vector<16x96xf32> to vector<8x96xf32>
    %484 = arith.truncf %482 : vector<8x32xf32> to vector<8x32xbf16>
    %cst_268 = arith.constant dense<0.000000e+00> : vector<8x96xf32>
    %485 = tpu.matmul %484, %449, %cst_268 {dimension_numbers = #tpu.dot_dimension_numbers<[1], [0], [0], [1], [0, 0, 1, 1], [], []>} : vector<8x32xbf16>, vector<32x96xbf16>, vector<8x96xf32> -> vector<8x96xf32>
    %486 = vector.broadcast %450 : vector<1x96xf32> to vector<8x96xf32>
    %487 = arith.addf %485, %486 : vector<8x96xf32>
    %488 = vector.extract_strided_slice %483 {offsets = [0, 0], sizes = [8, 32], strides = [1, 1]} : vector<8x96xf32> to vector<8x32xf32>
    %489 = vector.extract_strided_slice %487 {offsets = [0, 0], sizes = [8, 32], strides = [1, 1]} : vector<8x96xf32> to vector<8x32xf32>
    %490 = arith.addf %488, %489 : vector<8x32xf32>
    %491 = arith.negf %490 : vector<8x32xf32>
    %492 = math.exp %491 : vector<8x32xf32>
    %cst_269 = arith.constant 1.000000e+00 : f32
    %493 = vector.broadcast %cst_269 : f32 to vector<8x32xf32>
    %494 = arith.addf %493, %492 : vector<8x32xf32>
    %495 = arith.divf %493, %494 : vector<8x32xf32>
    %496 = vector.extract_strided_slice %483 {offsets = [0, 32], sizes = [8, 32], strides = [1, 1]} : vector<8x96xf32> to vector<8x32xf32>
    %497 = vector.extract_strided_slice %487 {offsets = [0, 32], sizes = [8, 32], strides = [1, 1]} : vector<8x96xf32> to vector<8x32xf32>
    %498 = arith.addf %496, %497 : vector<8x32xf32>
    %499 = arith.negf %498 : vector<8x32xf32>
    %500 = math.exp %499 : vector<8x32xf32>
    %cst_270 = arith.constant 1.000000e+00 : f32
    %501 = vector.broadcast %cst_270 : f32 to vector<8x32xf32>
    %502 = arith.addf %501, %500 : vector<8x32xf32>
    %503 = arith.divf %501, %502 : vector<8x32xf32>
    %504 = vector.extract_strided_slice %483 {offsets = [0, 64], sizes = [8, 32], strides = [1, 1]} : vector<8x96xf32> to vector<8x32xf32>
    %505 = vector.extract_strided_slice %487 {offsets = [0, 64], sizes = [8, 32], strides = [1, 1]} : vector<8x96xf32> to vector<8x32xf32>
    %506 = arith.mulf %495, %505 : vector<8x32xf32>
    %507 = arith.addf %504, %506 : vector<8x32xf32>
    %508 = math.tanh %507 : vector<8x32xf32>
    %cst_271 = arith.constant 1.000000e+00 : f32
    %509 = vector.broadcast %cst_271 : f32 to vector<8x32xf32>
    %510 = arith.subf %509, %503 : vector<8x32xf32>
    %511 = arith.mulf %510, %508 : vector<8x32xf32>
    %512 = arith.mulf %503, %482 : vector<8x32xf32>
    %513 = arith.addf %511, %512 : vector<8x32xf32>
    %514 = arith.truncf %513 : vector<8x32xf32> to vector<8x32xbf16>
    %c0_272 = arith.constant 0 : index
    %c0_273 = arith.constant 0 : index
    %515 = vector.load %arg31[%c0_272, %c0_273] : memref<32x32xbf16, #tpu.memory_space<vmem>>, vector<32x32xbf16>
    %cst_274 = arith.constant dense<0.000000e+00> : vector<8x32xf32>
    %516 = tpu.matmul %514, %515, %cst_274 {dimension_numbers = #tpu.dot_dimension_numbers<[1], [0], [0], [1], [0, 0, 1, 1], [], []>} : vector<8x32xbf16>, vector<32x32xbf16>, vector<8x32xf32> -> vector<8x32xf32>
    %c0_275 = arith.constant 0 : index
    %c0_276 = arith.constant 0 : index
    %517 = vector.load %arg32[%c0_275, %c0_276] : memref<1x32xf32, #tpu.memory_space<vmem>>, vector<1x32xf32>
    %518 = vector.broadcast %517 : vector<1x32xf32> to vector<8x32xf32>
    %519 = arith.addf %516, %518 : vector<8x32xf32>
    %cst_277 = arith.constant 0.353553385 : f32
    %520 = vector.broadcast %cst_277 : f32 to vector<8x32xf32>
    %521 = arith.mulf %519, %520 : vector<8x32xf32>
    %522 = arith.truncf %521 : vector<8x32xf32> to vector<8x32xbf16>
    %c0_278 = arith.constant 0 : index
    %c0_279 = arith.constant 0 : index
    %523 = vector.load %arg33[%c0_278, %c0_279] : memref<32x32xbf16, #tpu.memory_space<vmem>>, vector<32x32xbf16>
    %cst_280 = arith.constant dense<0.000000e+00> : vector<8x32xf32>
    %524 = tpu.matmul %522, %523, %cst_280 {dimension_numbers = #tpu.dot_dimension_numbers<[1], [0], [0], [1], [0, 0, 1, 1], [], []>} : vector<8x32xbf16>, vector<32x32xbf16>, vector<8x32xf32> -> vector<8x32xf32>
    %cst_281 = arith.constant dense<0xFF800000> : vector<8xf32>
    %525 = vector.multi_reduction <maximumf>, %524, %cst_281 [1] : vector<8x32xf32> to vector<8xf32>
    %526 = vector.shape_cast %525 : vector<8xf32> to vector<8x1xf32>
    %527 = vector.broadcast %526 : vector<8x1xf32> to vector<8x32xf32>
    %528 = arith.subf %524, %527 : vector<8x32xf32>
    %529 = math.exp %528 : vector<8x32xf32>
    %c0_282 = arith.constant 0 : index
    %c0_283 = arith.constant 0 : index
    %530 = vector.load %arg35[%c0_282, %c0_283] : memref<32x32xf32, #tpu.memory_space<vmem>>, vector<32x32xf32>
    %cst_284 = arith.constant dense<0.000000e+00> : vector<8x32xf32>
    %531 = tpu.matmul %529, %530, %cst_284 {dimension_numbers = #tpu.dot_dimension_numbers<[1], [0], [0], [1], [0, 0, 1, 1], [], []>} : vector<8x32xf32>, vector<32x32xf32>, vector<8x32xf32> -> vector<8x32xf32>
    %532 = arith.divf %529, %531 : vector<8x32xf32>
    %533 = arith.truncf %532 : vector<8x32xf32> to vector<8x32xbf16>
    %c0_285 = arith.constant 0 : index
    %c0_286 = arith.constant 0 : index
    %534 = vector.load %arg34[%c0_285, %c0_286] : memref<32x32xbf16, #tpu.memory_space<vmem>>, vector<32x32xbf16>
    %cst_287 = arith.constant dense<0.000000e+00> : vector<8x32xf32>
    %535 = tpu.matmul %533, %534, %cst_287 {dimension_numbers = #tpu.dot_dimension_numbers<[1], [0], [0], [1], [0, 0, 1, 1], [], []>} : vector<8x32xbf16>, vector<32x32xbf16>, vector<8x32xf32> -> vector<8x32xf32>
    %536 = arith.truncf %535 : vector<8x32xf32> to vector<8x32xbf16>
    %c0_288 = arith.constant 0 : index
    %c0_289 = arith.constant 0 : index
    %537 = vector.load %arg36[%c0_288, %c0_289] : memref<32x32xbf16, #tpu.memory_space<vmem>>, vector<32x32xbf16>
    %cst_290 = arith.constant dense<0.000000e+00> : vector<8x32xf32>
    %538 = tpu.matmul %536, %537, %cst_290 {dimension_numbers = #tpu.dot_dimension_numbers<[1], [0], [0], [1], [0, 0, 1, 1], [], []>} : vector<8x32xbf16>, vector<32x32xbf16>, vector<8x32xf32> -> vector<8x32xf32>
    %c0_291 = arith.constant 0 : index
    %c0_292 = arith.constant 0 : index
    %539 = vector.load %arg37[%c0_291, %c0_292] : memref<1x32xf32, #tpu.memory_space<vmem>>, vector<1x32xf32>
    %540 = vector.broadcast %539 : vector<1x32xf32> to vector<8x32xf32>
    %541 = arith.addf %538, %540 : vector<8x32xf32>
    %542 = vector.extract_strided_slice %541 {offsets = [0, 0], sizes = [2, 32], strides = [1, 1]} : vector<8x32xf32> to vector<2x32xf32>
    %c0_293 = arith.constant 0 : index
    %c0_294 = arith.constant 0 : index
    %543 = vector.load %arg38[%c0_293, %c0_294] : memref<2x32xf32, #tpu.memory_space<vmem>>, vector<2x32xf32>
    tpu.vector_store %arg38[%c0_293, %c0_294], %542 {strides = array<i32>} : memref<2x32xf32, #tpu.memory_space<vmem>>, vector<2x32xf32>,
    return
  }
  func.func @transform_0(%arg0: i32) -> (i32, i32) {
    %c0_i32 = arith.constant 0 : i32
    %c0_i32_0 = arith.constant 0 : i32
    %c0_i32_1 = arith.constant 0 : i32
    return %c0_i32, %c0_i32_0 : i32, i32
  }
  func.func @transform_1(%arg0: i32) -> (i32, i32, i32) {
    %c0_i32 = arith.constant 0 : i32
    %c0_i32_0 = arith.constant 0 : i32
    %c0_i32_1 = arith.constant 0 : i32
    %c0_i32_2 = arith.constant 0 : i32
    return %c0_i32, %c0_i32_0, %c0_i32_1 : i32, i32, i32
  }
  func.func @transform_2(%arg0: i32) -> (i32, i32, i32) {
    %c0_i32 = arith.constant 0 : i32
    %c0_i32_0 = arith.constant 0 : i32
    %c0_i32_1 = arith.constant 0 : i32
    %c0_i32_2 = arith.constant 0 : i32
    return %c0_i32, %c0_i32_0, %c0_i32_1 : i32, i32, i32
  }
  func.func @transform_3(%arg0: i32) -> (i32, i32) {
    %c0_i32 = arith.constant 0 : i32
    %c0_i32_0 = arith.constant 0 : i32
    %c0_i32_1 = arith.constant 0 : i32
    return %c0_i32, %c0_i32_0 : i32, i32
  }
  func.func @transform_4(%arg0: i32) -> (i32, i32) {
    %c0_i32 = arith.constant 0 : i32
    %c0_i32_0 = arith.constant 0 : i32
    %c0_i32_1 = arith.constant 0 : i32
    return %c0_i32, %c0_i32_0 : i32, i32
  }
  func.func @transform_5(%arg0: i32) -> (i32, i32, i32) {
    %c0_i32 = arith.constant 0 : i32
    %c0_i32_0 = arith.constant 0 : i32
    %c0_i32_1 = arith.constant 0 : i32
    %c0_i32_2 = arith.constant 0 : i32
    return %c0_i32, %c0_i32_0, %c0_i32_1 : i32, i32, i32
  }
  func.func @transform_6(%arg0: i32) -> (i32, i32, i32) {
    %c0_i32 = arith.constant 0 : i32
    %c0_i32_0 = arith.constant 0 : i32
    %c0_i32_1 = arith.constant 0 : i32
    %c0_i32_2 = arith.constant 0 : i32
    return %c0_i32, %c0_i32_0, %c0_i32_1 : i32, i32, i32
  }
  func.func @transform_7(%arg0: i32) -> (i32, i32) {
    %c0_i32 = arith.constant 0 : i32
    %c0_i32_0 = arith.constant 0 : i32
    %c0_i32_1 = arith.constant 0 : i32
    return %c0_i32, %c0_i32_0 : i32, i32
  }
  func.func @transform_8(%arg0: i32) -> (i32, i32) {
    %c0_i32 = arith.constant 0 : i32
    %c0_i32_0 = arith.constant 0 : i32
    %c0_i32_1 = arith.constant 0 : i32
    return %c0_i32, %c0_i32_0 : i32, i32
  }
  func.func @transform_9(%arg0: i32) -> (i32, i32, i32) {
    %c0_i32 = arith.constant 0 : i32
    %c0_i32_0 = arith.constant 0 : i32
    %c0_i32_1 = arith.constant 0 : i32
    %c0_i32_2 = arith.constant 0 : i32
    return %c0_i32, %c0_i32_0, %c0_i32_1 : i32, i32, i32
  }
  func.func @transform_10(%arg0: i32) -> (i32, i32, i32) {
    %c0_i32 = arith.constant 0 : i32
    %c0_i32_0 = arith.constant 0 : i32
    %c0_i32_1 = arith.constant 0 : i32
    %c0_i32_2 = arith.constant 0 : i32
    return %c0_i32, %c0_i32_0, %c0_i32_1 : i32, i32, i32
  }
  func.func @transform_11(%arg0: i32) -> (i32, i32) {
    %c0_i32 = arith.constant 0 : i32
    %c0_i32_0 = arith.constant 0 : i32
    %c0_i32_1 = arith.constant 0 : i32
    return %c0_i32, %c0_i32_0 : i32, i32
  }
  func.func @transform_12(%arg0: i32) -> (i32, i32) {
    %c0_i32 = arith.constant 0 : i32
    %c0_i32_0 = arith.constant 0 : i32
    %c0_i32_1 = arith.constant 0 : i32
    return %c0_i32, %c0_i32_0 : i32, i32
  }
  func.func @transform_13(%arg0: i32) -> (i32, i32, i32) {
    %c0_i32 = arith.constant 0 : i32
    %c0_i32_0 = arith.constant 0 : i32
    %c0_i32_1 = arith.constant 0 : i32
    %c0_i32_2 = arith.constant 0 : i32
    return %c0_i32, %c0_i32_0, %c0_i32_1 : i32, i32, i32
  }
  func.func @transform_14(%arg0: i32) -> (i32, i32, i32) {
    %c0_i32 = arith.constant 0 : i32
    %c0_i32_0 = arith.constant 0 : i32
    %c0_i32_1 = arith.constant 0 : i32
    %c0_i32_2 = arith.constant 0 : i32
    return %c0_i32, %c0_i32_0, %c0_i32_1 : i32, i32, i32
  }
  func.func @transform_15(%arg0: i32) -> (i32, i32) {
    %c0_i32 = arith.constant 0 : i32
    %c0_i32_0 = arith.constant 0 : i32
    %c0_i32_1 = arith.constant 0 : i32
    return %c0_i32, %c0_i32_0 : i32, i32
  }
  func.func @transform_16(%arg0: i32) -> (i32, i32) {
    %c0_i32 = arith.constant 0 : i32
    %c0_i32_0 = arith.constant 0 : i32
    %c0_i32_1 = arith.constant 0 : i32
    return %c0_i32, %c0_i32_0 : i32, i32
  }
  func.func @transform_17(%arg0: i32) -> (i32, i32, i32) {
    %c0_i32 = arith.constant 0 : i32
    %c0_i32_0 = arith.constant 0 : i32
    %c0_i32_1 = arith.constant 0 : i32
    %c0_i32_2 = arith.constant 0 : i32
    return %c0_i32, %c0_i32_0, %c0_i32_1 : i32, i32, i32
  }
  func.func @transform_18(%arg0: i32) -> (i32, i32, i32) {
    %c0_i32 = arith.constant 0 : i32
    %c0_i32_0 = arith.constant 0 : i32
    %c0_i32_1 = arith.constant 0 : i32
    %c0_i32_2 = arith.constant 0 : i32
    return %c0_i32, %c0_i32_0, %c0_i32_1 : i32, i32, i32
  }
  func.func @transform_19(%arg0: i32) -> (i32, i32) {
    %c0_i32 = arith.constant 0 : i32
    %c0_i32_0 = arith.constant 0 : i32
    %c0_i32_1 = arith.constant 0 : i32
    return %c0_i32, %c0_i32_0 : i32, i32
  }
  func.func @transform_20(%arg0: i32) -> (i32, i32) {
    %c0_i32 = arith.constant 0 : i32
    %c0_i32_0 = arith.constant 0 : i32
    %c0_i32_1 = arith.constant 0 : i32
    return %c0_i32, %c0_i32_0 : i32, i32
  }
  func.func @transform_21(%arg0: i32) -> (i32, i32, i32) {
    %c0_i32 = arith.constant 0 : i32
    %c0_i32_0 = arith.constant 0 : i32
    %c0_i32_1 = arith.constant 0 : i32
    %c0_i32_2 = arith.constant 0 : i32
    return %c0_i32, %c0_i32_0, %c0_i32_1 : i32, i32, i32
  }
  func.func @transform_22(%arg0: i32) -> (i32, i32, i32) {
    %c0_i32 = arith.constant 0 : i32
    %c0_i32_0 = arith.constant 0 : i32
    %c0_i32_1 = arith.constant 0 : i32
    %c0_i32_2 = arith.constant 0 : i32
    return %c0_i32, %c0_i32_0, %c0_i32_1 : i32, i32, i32
  }
  func.func @transform_23(%arg0: i32) -> (i32, i32) {
    %c0_i32 = arith.constant 0 : i32
    %c0_i32_0 = arith.constant 0 : i32
    %c0_i32_1 = arith.constant 0 : i32
    return %c0_i32, %c0_i32_0 : i32, i32
  }
  func.func @transform_24(%arg0: i32) -> (i32, i32) {
    %c0_i32 = arith.constant 0 : i32
    %c0_i32_0 = arith.constant 0 : i32
    %c0_i32_1 = arith.constant 0 : i32
    return %c0_i32, %c0_i32_0 : i32, i32
  }
  func.func @transform_25(%arg0: i32) -> (i32, i32) {
    %c0_i32 = arith.constant 0 : i32
    %c0_i32_0 = arith.constant 0 : i32
    %c0_i32_1 = arith.constant 0 : i32
    return %c0_i32, %c0_i32_0 : i32, i32
  }
  func.func @transform_26(%arg0: i32) -> (i32, i32) {
    %c0_i32 = arith.constant 0 : i32
    %c0_i32_0 = arith.constant 0 : i32
    %c0_i32_1 = arith.constant 0 : i32
    return %c0_i32, %c0_i32_0 : i32, i32
  }
  func.func @transform_27(%arg0: i32) -> (i32, i32) {
    %c0_i32 = arith.constant 0 : i32
    %c0_i32_0 = arith.constant 0 : i32
    %c0_i32_1 = arith.constant 0 : i32
    return %c0_i32, %c0_i32_0 : i32, i32
  }
  func.func @transform_28(%arg0: i32) -> (i32, i32) {
    %c0_i32 = arith.constant 0 : i32
    %c0_i32_0 = arith.constant 0 : i32
    %c0_i32_1 = arith.constant 0 : i32
    return %c0_i32, %c0_i32_0 : i32, i32
  }
  func.func @transform_29(%arg0: i32) -> (i32, i32) {
    %c0_i32 = arith.constant 0 : i32
    %c0_i32_0 = arith.constant 0 : i32
    %c0_i32_1 = arith.constant 0 : i32
    return %c0_i32, %c0_i32_0 : i32, i32
  }
  func.func @transform_30(%arg0: i32) -> (i32, i32) {
    %c0_i32 = arith.constant 0 : i32
    %c0_i32_0 = arith.constant 0 : i32
    %c0_i32_1 = arith.constant 0 : i32
    return %c0_i32, %c0_i32_0 : i32, i32
  }
  func.func @transform_31(%arg0: i32) -> (i32, i32) {
    %c0_i32 = arith.constant 0 : i32
    %c0_i32_0 = arith.constant 0 : i32
    %c0_i32_1 = arith.constant 0 : i32
    return %c0_i32, %c0_i32_0 : i32, i32
  }
  func.func @transform_32(%arg0: i32) -> (i32, i32) {
    %c0_i32 = arith.constant 0 : i32
    %c0_i32_0 = arith.constant 0 : i32
    %c0_i32_1 = arith.constant 0 : i32
    return %c0_i32, %c0_i32_0 : i32, i32
  }
  func.func @transform_33(%arg0: i32) -> (i32, i32) {
    %c0_i32 = arith.constant 0 : i32
    %c0_i32_0 = arith.constant 0 : i32
    %c0_i32_1 = arith.constant 0 : i32
    return %c0_i32, %c0_i32_0 : i32, i32
  }
  func.func @transform_34(%arg0: i32) -> (i32, i32) {
    %c0_i32 = arith.constant 0 : i32
    %c0_i32_0 = arith.constant 0 : i32
    %c0_i32_1 = arith.constant 0 : i32
    return %c0_i32, %c0_i32_0 : i32, i32
  }
  func.func @transform_35(%arg0: i32) -> (i32, i32) {
    %c0_i32 = arith.constant 0 : i32
    %c0_i32_0 = arith.constant 0 : i32
    %c0_i32_1 = arith.constant 0 : i32
    return %c0_i32, %c0_i32_0 : i32, i32
  }
  func.func @transform_36(%arg0: i32) -> (i32, i32) {
    %c0_i32 = arith.constant 0 : i32
    %c0_i32_0 = arith.constant 0 : i32
    %c0_i32_1 = arith.constant 0 : i32
    return %c0_i32, %c0_i32_0 : i32, i32
  }
  func.func @transform_37(%arg0: i32) -> (i32, i32) {
    %c0_i32 = arith.constant 0 : i32
    %c0_i32_0 = arith.constant 0 : i32
    %c0_i32_1 = arith.constant 0 : i32
    return %c0_i32, %c0_i32_0 : i32, i32
  }
}

</mosaic_0001>

<llo_original>
// kernel: global_style_token_encoder.1
$region0: #{global_style_token_encoder.1}
  #allocation0 [shape = 'u32[]', space=smem, size = 0x4, offset = 0x4, fixed_abs, tag = 'smem constant byte address 0x4 - core index']
  #allocation1 [shape = 'u32[144,128]{1,0:T(1,128)}', space=vmem, size = 0x12000, scoped, tag = 'internal scratch']
  %s0 = inlined_call_operand.smem [shape: u32[38], index: -1, kind: input, shape index: {}]
  %s1 = sld [smem:[%s0]]
  %s2 = scalar_lea.smem %s0, 1
  %s3 = sld [smem:[%s2]]
  %s4 = scalar_lea.smem %s0, 2
  %s5 = sld [smem:[%s4]]
  %s6 = scalar_lea.smem %s0, 3
  %s7 = sld [smem:[%s6]]
  %s8 = scalar_lea.smem %s0, 4
  %s9 = sld [smem:[%s8]]
  %s10 = scalar_lea.smem %s0, 5
  %s11 = sld [smem:[%s10]]
  %s12 = scalar_lea.smem %s0, 6
  %s13 = sld [smem:[%s12]]
  %s14 = scalar_lea.smem %s0, 7
  %s15 = sld [smem:[%s14]]
  %s16 = scalar_lea.smem %s0, 8
  %s17 = sld [smem:[%s16]]
  %s18 = scalar_lea.smem %s0, 9
  %s19 = sld [smem:[%s18]]
  %s20 = scalar_lea.smem %s0, 10
  %s21 = sld [smem:[%s20]]
  %s22 = scalar_lea.smem %s0, 11
  %s23 = sld [smem:[%s22]]
  %s24 = scalar_lea.smem %s0, 12
  %s25 = sld [smem:[%s24]]
  %s26 = scalar_lea.smem %s0, 13
  %s27 = sld [smem:[%s26]]
  %s28 = scalar_lea.smem %s0, 14
  %s29 = sld [smem:[%s28]]
  %s30 = scalar_lea.smem %s0, 15
  %s31 = sld [smem:[%s30]]
  %s32 = scalar_lea.smem %s0, 16
  %s33 = sld [smem:[%s32]]
  %s34 = scalar_lea.smem %s0, 17
  %s35 = sld [smem:[%s34]]
  %s36 = scalar_lea.smem %s0, 18
  %s37 = sld [smem:[%s36]]
  %s38 = scalar_lea.smem %s0, 19
  %s39 = sld [smem:[%s38]]
  %s40 = scalar_lea.smem %s0, 20
  %s41 = sld [smem:[%s40]]
  %s42 = scalar_lea.smem %s0, 21
  %s43 = sld [smem:[%s42]]
  %s44 = scalar_lea.smem %s0, 22
  %s45 = sld [smem:[%s44]]
  %s46 = scalar_lea.smem %s0, 23
  %s47 = sld [smem:[%s46]]
  %s48 = scalar_lea.smem %s0, 24
  %s49 = sld [smem:[%s48]]
  %s50 = scalar_lea.smem %s0, 25
  %s51 = sld [smem:[%s50]]
  %s52 = scalar_lea.smem %s0, 26
  %s53 = sld [smem:[%s52]]
  %s54 = scalar_lea.smem %s0, 27
  %s55 = sld [smem:[%s54]]
  %s56 = scalar_lea.smem %s0, 28
  %s57 = sld [smem:[%s56]]
  %s58 = scalar_lea.smem %s0, 29
  %s59 = sld [smem:[%s58]]
  %s60 = scalar_lea.smem %s0, 30
  %s61 = sld [smem:[%s60]]
  %s62 = scalar_lea.smem %s0, 31
  %s63 = sld [smem:[%s62]]
  %s64 = scalar_lea.smem %s0, 32
  %s65 = sld [smem:[%s64]]
  %s66 = scalar_lea.smem %s0, 33
  %s67 = sld [smem:[%s66]]
  %s68 = scalar_lea.smem %s0, 34
  %s69 = sld [smem:[%s68]]
  %s70 = scalar_lea.smem %s0, 35
  %s71 = sld [smem:[%s70]]
  %s72 = scalar_lea.smem %s0, 36
  %s73 = sld [smem:[%s72]]
  %s74 = scalar_lea.smem %s0, 37
  %s75 = sld [smem:[%s74]]
  %s76 = sld [smem:[#allocation0]]
  $region158: #{global_style_token_encoder.1} parent=0
    _
  %s78 = ssub.s32 1, %s76
  %s79 = scalar_select 0, %s78, %s76
  $region1: #{global_style_token_encoder.1} parent=0
    #allocation2 [shape = 'u8[1024]{0}', space=vmem, size = 0x400, scoped, tag = 'output window, operand 0, single buffered']
    #allocation3 [shape = 's32[1]{0}', space=sflag, size = 0x4, scoped, tag = 'scoped memory for global_style_token_encoder.1']
    %80 = vsyncpa [#allocation3], 0
    // Predicated region
    $region2: #{global_style_token_encoder.1} parent=1 // pred_check
      _
    $region3: #{global_style_token_encoder.1} parent=1 // pred_check_branch
      %82 = sbr.rel (0) target = $region5
    $region4: #{global_style_token_encoder.1} parent=1 // pred_region
      _
    $region5: #{global_style_token_encoder.1} parent=1 // pred_fallthru
      _
    // Predicated region
    $region6: #{global_style_token_encoder.1} parent=1 // pred_check
      _
    $region7: #{global_style_token_encoder.1} parent=1 // pred_check_branch
      %84 = sbr.rel (0) target = $region9
    $region8: #{global_style_token_encoder.1} parent=1 // pred_region
      _
    $region9: #{global_style_token_encoder.1} parent=1 // pred_fallthru
      _
    // Predicated region
    $region10: #{global_style_token_encoder.1} parent=1 // pred_check
      _
    $region11: #{global_style_token_encoder.1} parent=1 // pred_check_branch
      %86 = sbr.rel (0) target = $region13
    $region12: #{global_style_token_encoder.1} parent=1 // pred_region
      _
    $region13: #{global_style_token_encoder.1} parent=1 // pred_fallthru
      _
    // Predicated region
    $region14: #{global_style_token_encoder.1} parent=1 // pred_check
      _
    $region15: #{global_style_token_encoder.1} parent=1 // pred_check_branch
      %88 = sbr.rel (0) target = $region17
    $region16: #{global_style_token_encoder.1} parent=1 // pred_region
      _
    $region17: #{global_style_token_encoder.1} parent=1 // pred_fallthru
      _
    // Predicated region
    $region18: #{global_style_token_encoder.1} parent=1 // pred_check
      _
    $region19: #{global_style_token_encoder.1} parent=1 // pred_check_branch
      %90 = sbr.rel (0) target = $region21
    $region20: #{global_style_token_encoder.1} parent=1 // pred_region
      _
    $region21: #{global_style_token_encoder.1} parent=1 // pred_fallthru
      _
    // Predicated region
    $region22: #{global_style_token_encoder.1} parent=1 // pred_check
      _
    $region23: #{global_style_token_encoder.1} parent=1 // pred_check_branch
      %92 = sbr.rel (0) target = $region25
    $region24: #{global_style_token_encoder.1} parent=1 // pred_region
      _
    $region25: #{global_style_token_encoder.1} parent=1 // pred_fallthru
      _
    // Predicated region
    $region26: #{global_style_token_encoder.1} parent=1 // pred_check
      _
    $region27: #{global_style_token_encoder.1} parent=1 // pred_check_branch
      %94 = sbr.rel (0) target = $region29
    $region28: #{global_style_token_encoder.1} parent=1 // pred_region
      _
    $region29: #{global_style_token_encoder.1} parent=1 // pred_fallthru
      _
    // Predicated region
    $region30: #{global_style_token_encoder.1} parent=1 // pred_check
      _
    $region31: #{global_style_token_encoder.1} parent=1 // pred_check_branch
      %96 = sbr.rel (0) target = $region33
    $region32: #{global_style_token_encoder.1} parent=1 // pred_region
      _
    $region33: #{global_style_token_encoder.1} parent=1 // pred_fallthru
      _
    // Predicated region
    $region34: #{global_style_token_encoder.1} parent=1 // pred_check
      _
    $region35: #{global_style_token_encoder.1} parent=1 // pred_check_branch
      %98 = sbr.rel (0) target = $region37
    $region36: #{global_style_token_encoder.1} parent=1 // pred_region
      _
    $region37: #{global_style_token_encoder.1} parent=1 // pred_fallthru
      _
    // Predicated region
    $region38: #{global_style_token_encoder.1} parent=1 // pred_check
      _
    $region39: #{global_style_token_encoder.1} parent=1 // pred_check_branch
      %100 = sbr.rel (0) target = $region41
    $region40: #{global_style_token_encoder.1} parent=1 // pred_region
      _
    $region41: #{global_style_token_encoder.1} parent=1 // pred_fallthru
      _
    // Predicated region
    $region42: #{global_style_token_encoder.1} parent=1 // pred_check
      _
    $region43: #{global_style_token_encoder.1} parent=1 // pred_check_branch
      %102 = sbr.rel (0) target = $region45
    $region44: #{global_style_token_encoder.1} parent=1 // pred_region
      _
    $region45: #{global_style_token_encoder.1} parent=1 // pred_fallthru
      _
    // Predicated region
    $region46: #{global_style_token_encoder.1} parent=1 // pred_check
      _
    $region47: #{global_style_token_encoder.1} parent=1 // pred_check_branch
      %104 = sbr.rel (0) target = $region49
    $region48: #{global_style_token_encoder.1} parent=1 // pred_region
      _
    $region49: #{global_style_token_encoder.1} parent=1 // pred_fallthru
      _
    // Predicated region
    $region50: #{global_style_token_encoder.1} parent=1 // pred_check
      _
    $region51: #{global_style_token_encoder.1} parent=1 // pred_check_branch
      %106 = sbr.rel (0) target = $region53
    $region52: #{global_style_token_encoder.1} parent=1 // pred_region
      _
    $region53: #{global_style_token_encoder.1} parent=1 // pred_fallthru
      _
    // Predicated region
    $region54: #{global_style_token_encoder.1} parent=1 // pred_check
      _
    $region55: #{global_style_token_encoder.1} parent=1 // pred_check_branch
      %108 = sbr.rel (0) target = $region57
    $region56: #{global_style_token_encoder.1} parent=1 // pred_region
      _
    $region57: #{global_style_token_encoder.1} parent=1 // pred_fallthru
      _
    // Predicated region
    $region58: #{global_style_token_encoder.1} parent=1 // pred_check
      _
    $region59: #{global_style_token_encoder.1} parent=1 // pred_check_branch
      %110 = sbr.rel (0) target = $region61
    $region60: #{global_style_token_encoder.1} parent=1 // pred_region
      _
    $region61: #{global_style_token_encoder.1} parent=1 // pred_fallthru
      _
    // Predicated region
    $region62: #{global_style_token_encoder.1} parent=1 // pred_check
      _
    $region63: #{global_style_token_encoder.1} parent=1 // pred_check_branch
      %112 = sbr.rel (0) target = $region65
    $region64: #{global_style_token_encoder.1} parent=1 // pred_region
      _
    $region65: #{global_style_token_encoder.1} parent=1 // pred_fallthru
      _
    // Predicated region
    $region66: #{global_style_token_encoder.1} parent=1 // pred_check
      _
    $region67: #{global_style_token_encoder.1} parent=1 // pred_check_branch
      %114 = sbr.rel (0) target = $region69
    $region68: #{global_style_token_encoder.1} parent=1 // pred_region
      _
    $region69: #{global_style_token_encoder.1} parent=1 // pred_fallthru
      _
    // Predicated region
    $region70: #{global_style_token_encoder.1} parent=1 // pred_check
      _
    $region71: #{global_style_token_encoder.1} parent=1 // pred_check_branch
      %116 = sbr.rel (0) target = $region73
    $region72: #{global_style_token_encoder.1} parent=1 // pred_region
      _
    $region73: #{global_style_token_encoder.1} parent=1 // pred_fallthru
      _
    // Predicated region
    $region74: #{global_style_token_encoder.1} parent=1 // pred_check
      _
    $region75: #{global_style_token_encoder.1} parent=1 // pred_check_branch
      %118 = sbr.rel (0) target = $region77
    $region76: #{global_style_token_encoder.1} parent=1 // pred_region
      _
    $region77: #{global_style_token_encoder.1} parent=1 // pred_fallthru
      _
    // Predicated region
    $region78: #{global_style_token_encoder.1} parent=1 // pred_check
      _
    $region79: #{global_style_token_encoder.1} parent=1 // pred_check_branch
      %120 = sbr.rel (0) target = $region81
    $region80: #{global_style_token_encoder.1} parent=1 // pred_region
      _
    $region81: #{global_style_token_encoder.1} parent=1 // pred_fallthru
      _
    // Predicated region
    $region82: #{global_style_token_encoder.1} parent=1 // pred_check
      _
    $region83: #{global_style_token_encoder.1} parent=1 // pred_check_branch
      %122 = sbr.rel (0) target = $region85
    $region84: #{global_style_token_encoder.1} parent=1 // pred_region
      _
    $region85: #{global_style_token_encoder.1} parent=1 // pred_fallthru
      _
    // Predicated region
    $region86: #{global_style_token_encoder.1} parent=1 // pred_check
      _
    $region87: #{global_style_token_encoder.1} parent=1 // pred_check_branch
      %124 = sbr.rel (0) target = $region89
    $region88: #{global_style_token_encoder.1} parent=1 // pred_region
      _
    $region89: #{global_style_token_encoder.1} parent=1 // pred_fallthru
      _
    // Predicated region
    $region90: #{global_style_token_encoder.1} parent=1 // pred_check
      _
    $region91: #{global_style_token_encoder.1} parent=1 // pred_check_branch
      %126 = sbr.rel (0) target = $region93
    $region92: #{global_style_token_encoder.1} parent=1 // pred_region
      _
    $region93: #{global_style_token_encoder.1} parent=1 // pred_fallthru
      _
    // Predicated region
    $region94: #{global_style_token_encoder.1} parent=1 // pred_check
      _
    $region95: #{global_style_token_encoder.1} parent=1 // pred_check_branch
      %128 = sbr.rel (0) target = $region97
    $region96: #{global_style_token_encoder.1} parent=1 // pred_region
      _
    $region97: #{global_style_token_encoder.1} parent=1 // pred_fallthru
      _
    // Predicated region
    $region98: #{global_style_token_encoder.1} parent=1 // pred_check
      _
    $region99: #{global_style_token_encoder.1} parent=1 // pred_check_branch
      %130 = sbr.rel (0) target = $region101
    $region100: #{global_style_token_encoder.1} parent=1 // pred_region
      _
    $region101: #{global_style_token_encoder.1} parent=1 // pred_fallthru
      _
    // Predicated region
    $region102: #{global_style_token_encoder.1} parent=1 // pred_check
      _
    $region103: #{global_style_token_encoder.1} parent=1 // pred_check_branch
      %132 = sbr.rel (0) target = $region105
    $region104: #{global_style_token_encoder.1} parent=1 // pred_region
      _
    $region105: #{global_style_token_encoder.1} parent=1 // pred_fallthru
      _
    // Predicated region
    $region106: #{global_style_token_encoder.1} parent=1 // pred_check
      _
    $region107: #{global_style_token_encoder.1} parent=1 // pred_check_branch
      %134 = sbr.rel (0) target = $region109
    $region108: #{global_style_token_encoder.1} parent=1 // pred_region
      _
    $region109: #{global_style_token_encoder.1} parent=1 // pred_fallthru
      _
    // Predicated region
    $region110: #{global_style_token_encoder.1} parent=1 // pred_check
      _
    $region111: #{global_style_token_encoder.1} parent=1 // pred_check_branch
      %136 = sbr.rel (0) target = $region113
    $region112: #{global_style_token_encoder.1} parent=1 // pred_region
      _
    $region113: #{global_style_token_encoder.1} parent=1 // pred_fallthru
      _
    // Predicated region
    $region114: #{global_style_token_encoder.1} parent=1 // pred_check
      _
    $region115: #{global_style_token_encoder.1} parent=1 // pred_check_branch
      %138 = sbr.rel (0) target = $region117
    $region116: #{global_style_token_encoder.1} parent=1 // pred_region
      _
    $region117: #{global_style_token_encoder.1} parent=1 // pred_fallthru
      _
    // Predicated region
    $region118: #{global_style_token_encoder.1} parent=1 // pred_check
      _
    $region119: #{global_style_token_encoder.1} parent=1 // pred_check_branch
      %140 = sbr.rel (0) target = $region121
    $region120: #{global_style_token_encoder.1} parent=1 // pred_region
      _
    $region121: #{global_style_token_encoder.1} parent=1 // pred_fallthru
      _
    // Predicated region
    $region122: #{global_style_token_encoder.1} parent=1 // pred_check
      _
    $region123: #{global_style_token_encoder.1} parent=1 // pred_check_branch
      %142 = sbr.rel (0) target = $region125
    $region124: #{global_style_token_encoder.1} parent=1 // pred_region
      _
    $region125: #{global_style_token_encoder.1} parent=1 // pred_fallthru
      _
    // Predicated region
    $region126: #{global_style_token_encoder.1} parent=1 // pred_check
      _
    $region127: #{global_style_token_encoder.1} parent=1 // pred_check_branch
      %144 = sbr.rel (0) target = $region129
    $region128: #{global_style_token_encoder.1} parent=1 // pred_region
      _
    $region129: #{global_style_token_encoder.1} parent=1 // pred_fallthru
      _
    // Predicated region
    $region130: #{global_style_token_encoder.1} parent=1 // pred_check
      _
    $region131: #{global_style_token_encoder.1} parent=1 // pred_check_branch
      %146 = sbr.rel (0) target = $region133
    $region132: #{global_style_token_encoder.1} parent=1 // pred_region
      _
    $region133: #{global_style_token_encoder.1} parent=1 // pred_fallthru
      _
    // Predicated region
    $region134: #{global_style_token_encoder.1} parent=1 // pred_check
      _
    $region135: #{global_style_token_encoder.1} parent=1 // pred_check_branch
      %148 = sbr.rel (0) target = $region137
    $region136: #{global_style_token_encoder.1} parent=1 // pred_region
      _
    $region137: #{global_style_token_encoder.1} parent=1 // pred_fallthru
      _
    // Predicated region
    $region138: #{global_style_token_encoder.1} parent=1 // pred_check
      _
    $region139: #{global_style_token_encoder.1} parent=1 // pred_check_branch
      %150 = sbr.rel (0) target = $region141
    $region140: #{global_style_token_encoder.1} parent=1 // pred_region
      _
    $region141: #{global_style_token_encoder.1} parent=1 // pred_fallthru
      _
    // Predicated region
    $region142: #{global_style_token_encoder.1} parent=1 // pred_check
      _
    $region143: #{global_style_token_encoder.1} parent=1 // pred_check_branch
      %152 = sbr.rel (0) target = $region145
    $region144: #{global_style_token_encoder.1} parent=1 // pred_region
      _
    $region145: #{global_style_token_encoder.1} parent=1 // pred_fallthru
      _
    // Predicated region
    $region146: #{global_style_token_encoder.1} parent=1 // pred_check
      _
    $region147: #{global_style_token_encoder.1} parent=1 // pred_check_branch
      %154 = sbr.rel (0) target = $region149
    $region148: #{global_style_token_encoder.1} parent=1 // pred_region
      _
    $region149: #{global_style_token_encoder.1} parent=1 // pred_fallthru
      _
    %v156 = vld [vmem:[%s1] sm:$0xf]
    %v157 = vld [vmem:[%s1 + $0x4] sm:$0xf]
    %v158 = vld [vmem:[%s1 + $0x8] sm:$0xf]
    %v159 = vld [vmem:[%s1 + $0xc] sm:$0xf]
    %v160 = vld [vmem:[%s1 + $0x10] sm:$0xf]
    %v161 = vld [vmem:[%s1 + $0x14] sm:$0xf]
    %v162 = vld [vmem:[%s1 + $0x18] sm:$0xf]
    %v163 = vld [vmem:[%s1 + $0x1c] sm:$0xf]
    %v164 = vld [vmem:[%s1 + $0x20] sm:$0xf]
    %v165 = vld [vmem:[%s1 + $0x24] sm:$0xf]
    %v166 = vld [vmem:[%s1 + $0x28] sm:$0xf]
    %v167 = vld [vmem:[%s1 + $0x2c] sm:$0xf]
    %v168 = vld [vmem:[%s1 + $0x30] sm:$0xf]
    %v169 = vld [vmem:[%s1 + $0x34] sm:$0xf]
    %v170 = vld [vmem:[%s1 + $0x38] sm:$0xf]
    %v171 = vld [vmem:[%s1 + $0x3c] sm:$0xf]
    %v172 = vld [vmem:[%s1 + $0x40] sm:$0xf]
    %v173 = vld [vmem:[%s1 + $0x44] sm:$0xf]
    %v174 = vld [vmem:[%s1 + $0x48] sm:$0xf]
    %v175 = vld [vmem:[%s1 + $0x4c] sm:$0xf]
    %v176 = vld [vmem:[%s1 + $0x50] sm:$0xf]
    %v177 = vld [vmem:[%s1 + $0x54] sm:$0xf]
    %v178 = vld [vmem:[%s1 + $0x58] sm:$0xf]
    %v179 = vld [vmem:[%s1 + $0x5c] sm:$0xf]
    %v180 = vld [vmem:[%s1 + $0x60] sm:$0xf]
    %v181 = vld [vmem:[%s1 + $0x64] sm:$0xf]
    %v182 = vld [vmem:[%s1 + $0x68] sm:$0xf]
    %v183 = vld [vmem:[%s1 + $0x6c] sm:$0xf]
    %v184 = vld [vmem:[%s1 + $0x70] sm:$0xf]
    %v185 = vld [vmem:[%s1 + $0x74] sm:$0xf]
    %v186 = vld [vmem:[%s1 + $0x78] sm:$0xf]
    %v187 = vld [vmem:[%s1 + $0x7c] sm:$0xf]
    %v188 = vld [vmem:[%s3] sm:$0xff]
    %v189 = vld [vmem:[%s3 + $0x8] sm:$0xff]
    %v190 = vld [vmem:[%s3 + $0x10] sm:$0xff]
    %v191 = vld [vmem:[%s3 + $0x18] sm:$0xff]
    %v192 = vld [vmem:[%s3 + $0x20] sm:$0xff]
    %v193 = vld [vmem:[%s3 + $0x28] sm:$0xff]
    %v194 = vld [vmem:[%s3 + $0x30] sm:$0xff]
    %v195 = vld [vmem:[%s3 + $0x38] sm:$0xff]
    %v196 = vld [vmem:[%s3 + $0x40] sm:$0xff]
    %v197 = vld [vmem:[%s3 + $0x48] sm:$0xff]
    %v198 = vld [vmem:[%s3 + $0x50] sm:$0xff]
    %v199 = vld [vmem:[%s3 + $0x58] sm:$0xff]
    %v200 = vld [vmem:[%s3 + $0x60] sm:$0xff]
    %v201 = vld [vmem:[%s3 + $0x68] sm:$0xff]
    %v202 = vld [vmem:[%s3 + $0x70] sm:$0xff]
    %v203 = vld [vmem:[%s3 + $0x78] sm:$0xff]
    %v220 = vunpack.c.l.b16 %v188
    %v221 = vunpack.c.h.b16 %v188
    %v222 = vunpack.c.l.b16 %v189
    %v223 = vunpack.c.h.b16 %v189
    %v224 = vunpack.c.l.b16 %v190
    %v225 = vunpack.c.h.b16 %v190
    %v226 = vunpack.c.l.b16 %v191
    %v227 = vunpack.c.h.b16 %v191
    %v228 = vunpack.c.l.b16 %v192
    %v229 = vunpack.c.h.b16 %v192
    %v230 = vunpack.c.l.b16 %v193
    %v231 = vunpack.c.h.b16 %v193
    %v232 = vunpack.c.l.b16 %v194
    %v233 = vunpack.c.h.b16 %v194
    %v234 = vunpack.c.l.b16 %v195
    %v235 = vunpack.c.h.b16 %v195
    %v236 = vunpack.c.l.b16 %v196
    %v237 = vunpack.c.h.b16 %v196
    %v238 = vunpack.c.l.b16 %v197
    %v239 = vunpack.c.h.b16 %v197
    %v240 = vunpack.c.l.b16 %v198
    %v241 = vunpack.c.h.b16 %v198
    %v242 = vunpack.c.l.b16 %v199
    %v243 = vunpack.c.h.b16 %v199
    %v244 = vunpack.c.l.b16 %v200
    %v245 = vunpack.c.h.b16 %v200
    %v246 = vunpack.c.l.b16 %v201
    %v247 = vunpack.c.h.b16 %v201
    %v248 = vunpack.c.l.b16 %v202
    %v249 = vunpack.c.h.b16 %v202
    %v250 = vunpack.c.l.b16 %v203
    %v251 = vunpack.c.h.b16 %v203
    %v252 = vpack.c.b16 %v222, %v220
    %v253 = vpack.c.b16 %v223, %v221
    %v254 = vpack.c.b16 %v226, %v224
    %v255 = vpack.c.b16 %v227, %v225
    %v256 = vpack.c.b16 %v230, %v228
    %v257 = vpack.c.b16 %v231, %v229
    %v258 = vpack.c.b16 %v234, %v232
    %v259 = vpack.c.b16 %v235, %v233
    %v260 = vpack.c.b16 %v238, %v236
    %v261 = vpack.c.b16 %v239, %v237
    %v262 = vpack.c.b16 %v242, %v240
    %v263 = vpack.c.b16 %v243, %v241
    %v264 = vpack.c.b16 %v246, %v244
    %v265 = vpack.c.b16 %v247, %v245
    %v266 = vpack.c.b16 %v250, %v248
    %v267 = vpack.c.b16 %v251, %v249
    %v316 = vunpack.c.l.b16 %v156
    %v317 = vunpack.c.l.b16 %v157
    %v318 = vunpack.c.l.b16 %v158
    %v319 = vunpack.c.l.b16 %v159
    %v320 = vunpack.c.l.b16 %v160
    %v321 = vunpack.c.l.b16 %v161
    %v322 = vunpack.c.l.b16 %v162
    %v323 = vunpack.c.l.b16 %v163
    %v324 = vunpack.c.l.b16 %v164
    %v325 = vunpack.c.l.b16 %v165
    %v326 = vunpack.c.l.b16 %v166
    %v327 = vunpack.c.l.b16 %v167
    %v328 = vunpack.c.l.b16 %v168
    %v329 = vunpack.c.l.b16 %v169
    %v330 = vunpack.c.l.b16 %v170
    %v331 = vunpack.c.l.b16 %v171
    %v332 = vunpack.c.l.b16 %v172
    %v333 = vunpack.c.l.b16 %v173
    %v334 = vunpack.c.l.b16 %v174
    %v335 = vunpack.c.l.b16 %v175
    %v336 = vunpack.c.l.b16 %v176
    %v337 = vunpack.c.l.b16 %v177
    %v338 = vunpack.c.l.b16 %v178
    %v339 = vunpack.c.l.b16 %v179
    %v340 = vunpack.c.l.b16 %v180
    %v341 = vunpack.c.l.b16 %v181
    %v342 = vunpack.c.l.b16 %v182
    %v343 = vunpack.c.l.b16 %v183
    %v344 = vunpack.c.l.b16 %v184
    %v345 = vunpack.c.l.b16 %v185
    %v346 = vunpack.c.l.b16 %v186
    %v347 = vunpack.c.l.b16 %v187
    %v348 = vpack.c.b16 %v317, %v316
    %v349 = vpack.c.b16 %v319, %v318
    %v350 = vpack.c.b16 %v321, %v320
    %v351 = vpack.c.b16 %v323, %v322
    %v352 = vpack.c.b16 %v325, %v324
    %v353 = vpack.c.b16 %v327, %v326
    %v354 = vpack.c.b16 %v329, %v328
    %v355 = vpack.c.b16 %v331, %v330
    %v356 = vpack.c.b16 %v333, %v332
    %v357 = vpack.c.b16 %v335, %v334
    %v358 = vpack.c.b16 %v337, %v336
    %v359 = vpack.c.b16 %v339, %v338
    %v360 = vpack.c.b16 %v341, %v340
    %v361 = vpack.c.b16 %v343, %v342
    %v362 = vpack.c.b16 %v345, %v344
    %v363 = vpack.c.b16 %v347, %v346
    %380 = vmatprep.subr.bf16.mxu0 0
    %381 = vmatpush1.bf16.msra.mxu0 %v348
    %382 = vmatprep.subr.bf16.mxu0 0
    %383 = vmatpush1.bf16.msra.mxu0 %v349
    %384 = vmatprep.subr.bf16.mxu0 0
    %385 = vmatpush1.bf16.msra.mxu0 %v350
    %386 = vmatprep.subr.bf16.mxu0 0
    %387 = vmatpush1.bf16.msra.mxu0 %v351
    %388 = vmatprep.subr.bf16.mxu0 0
    %389 = vmatpush1.bf16.msra.mxu0 %v352
    %390 = vmatprep.subr.bf16.mxu0 0
    %391 = vmatpush1.bf16.msra.mxu0 %v353
    %392 = vmatprep.subr.bf16.mxu0 0
    %393 = vmatpush1.bf16.msra.mxu0 %v354
    %394 = vmatprep.subr.bf16.mxu0 0
    %395 = vmatpush1.bf16.msra.mxu0 %v355
    %396 = vmatprep.subr.bf16.mxu0 0
    %397 = vmatpush1.bf16.msra.mxu0 %v356
    %398 = vmatprep.subr.bf16.mxu0 0
    %399 = vmatpush1.bf16.msra.mxu0 %v357
    %400 = vmatprep.subr.bf16.mxu0 0
    %401 = vmatpush1.bf16.msra.mxu0 %v358
    %402 = vmatprep.subr.bf16.mxu0 0
    %403 = vmatpush1.bf16.msra.mxu0 %v359
    %404 = vmatprep.subr.bf16.mxu0 0
    %405 = vmatpush1.bf16.msra.mxu0 %v360
    %406 = vmatprep.subr.bf16.mxu0 0
    %407 = vmatpush1.bf16.msra.mxu0 %v361
    %408 = vmatprep.subr.bf16.mxu0 0
    %409 = vmatpush1.bf16.msra.mxu0 %v362
    %410 = vmatprep.subr.bf16.mxu0 0
    %411 = vmatpush1.bf16.msra.mxu0 %v363
    %412 = vmatprep.mubr.bf16.mxu0 %v253
    %413 = vmatmul.mubr.bf16.gmra.mrb[0].mxu0 %v252
    %v414 = vpop.f32.mrb[0].mxu0
    %v415 = vadd.f32 0.0, %v414
    %v416 = vpop.f32.mrb[0].mxu0
    %v417 = vpop.f32.mrb[0].mxu0
    %v418 = vadd.f32 0.0, %v417
    %v419 = vpop.f32.mrb[0].mxu0
    %420 = vmatprep.mubr.bf16.mxu0 %v255
    %421 = vmatmul.mubr.bf16.gmra.mrb[0].mxu0 %v254
    %v422 = vpop.f32.mrb[0].mxu0
    %v423 = vadd.f32 0.0, %v422
    %v424 = vpop.f32.mrb[0].mxu0
    %v425 = vpop.f32.mrb[0].mxu0
    %v426 = vadd.f32 0.0, %v425
    %v427 = vpop.f32.mrb[0].mxu0
    %428 = vmatprep.mubr.bf16.mxu0 %v257
    %429 = vmatmul.mubr.bf16.gmra.mrb[0].mxu0 %v256
    %v430 = vpop.f32.mrb[0].mxu0
    %v431 = vadd.f32 0.0, %v430
    %v432 = vpop.f32.mrb[0].mxu0
    %v433 = vpop.f32.mrb[0].mxu0
    %v434 = vadd.f32 0.0, %v433
    %v435 = vpop.f32.mrb[0].mxu0
    %436 = vmatprep.mubr.bf16.mxu0 %v259
    %437 = vmatmul.mubr.bf16.gmra.mrb[0].mxu0 %v258
    %v438 = vpop.f32.mrb[0].mxu0
    %v439 = vadd.f32 0.0, %v438
    %v440 = vpop.f32.mrb[0].mxu0
    %v441 = vpop.f32.mrb[0].mxu0
    %v442 = vadd.f32 0.0, %v441
    %v443 = vpop.f32.mrb[0].mxu0
    %444 = vmatprep.mubr.bf16.mxu0 %v261
    %445 = vmatmul.mubr.bf16.gmra.mrb[0].mxu0 %v260
    %v446 = vpop.f32.mrb[0].mxu0
    %v447 = vadd.f32 0.0, %v446
    %v448 = vpop.f32.mrb[0].mxu0
    %v449 = vpop.f32.mrb[0].mxu0
    %v450 = vadd.f32 0.0, %v449
    %v451 = vpop.f32.mrb[0].mxu0
    %452 = vmatprep.mubr.bf16.mxu0 %v263
    %453 = vmatmul.mubr.bf16.gmra.mrb[0].mxu0 %v262
    %v454 = vpop.f32.mrb[0].mxu0
    %v455 = vadd.f32 0.0, %v454
    %v456 = vpop.f32.mrb[0].mxu0
    %v457 = vpop.f32.mrb[0].mxu0
    %v458 = vadd.f32 0.0, %v457
    %v459 = vpop.f32.mrb[0].mxu0
    %460 = vmatprep.mubr.bf16.mxu0 %v265
    %461 = vmatmul.mubr.bf16.gmra.mrb[0].mxu0 %v264
    %v462 = vpop.f32.mrb[0].mxu0
    %v463 = vadd.f32 0.0, %v462
    %v464 = vpop.f32.mrb[0].mxu0
    %v465 = vpop.f32.mrb[0].mxu0
    %v466 = vadd.f32 0.0, %v465
    %v467 = vpop.f32.mrb[0].mxu0
    %468 = vmatprep.mubr.bf16.mxu0 %v267
    %469 = vmatmul.mubr.bf16.gmra.mrb[0].mxu0 %v266
    %v470 = vpop.f32.mrb[0].mxu0
    %v471 = vadd.f32 0.0, %v470
    %v472 = vpop.f32.mrb[0].mxu0
    %v473 = vpop.f32.mrb[0].mxu0
    %v474 = vadd.f32 0.0, %v473
    %v475 = vpop.f32.mrb[0].mxu0
    %476 = vdwg.mxu0
    %v477 = vpack.c.bf16 %v418, %v415
    %v478 = vpack.c.bf16 %v426, %v423
    %v479 = vpack.c.bf16 %v434, %v431
    %v480 = vpack.c.bf16 %v442, %v439
    %v481 = vpack.c.bf16 %v450, %v447
    %v482 = vpack.c.bf16 %v458, %v455
    %v483 = vpack.c.bf16 %v466, %v463
    %v484 = vpack.c.bf16 %v474, %v471
    %v485 = vld [vmem:[%s5] sm:$0xf]
    %v486 = vld [vmem:[%s5 + $0x4] sm:$0xf]
    %s487 = scalar_lea.vmem %s3, 128
    %v488 = vld [vmem:[%s487] sm:$0xff]
    %v489 = vld [vmem:[%s487 + $0x8] sm:$0xff]
    %v490 = vld [vmem:[%s487 + $0x10] sm:$0xff]
    %v491 = vld [vmem:[%s487 + $0x18] sm:$0xff]
    %v492 = vld [vmem:[%s487 + $0x20] sm:$0xff]
    %v493 = vld [vmem:[%s487 + $0x28] sm:$0xff]
    %v494 = vld [vmem:[%s487 + $0x30] sm:$0xff]
    %v495 = vld [vmem:[%s487 + $0x38] sm:$0xff]
    %v496 = vld [vmem:[%s487 + $0x40] sm:$0xff]
    %v497 = vld [vmem:[%s487 + $0x48] sm:$0xff]
    %v498 = vld [vmem:[%s487 + $0x50] sm:$0xff]
    %v499 = vld [vmem:[%s487 + $0x58] sm:$0xff]
    %v500 = vld [vmem:[%s487 + $0x60] sm:$0xff]
    %v501 = vld [vmem:[%s487 + $0x68] sm:$0xff]
    %v502 = vld [vmem:[%s487 + $0x70] sm:$0xff]
    %v503 = vld [vmem:[%s487 + $0x78] sm:$0xff]
    %v520 = vunpack.c.l.b16 %v488
    %v521 = vunpack.c.h.b16 %v488
    %v522 = vunpack.c.l.b16 %v489
    %v523 = vunpack.c.h.b16 %v489
    %v524 = vunpack.c.l.b16 %v490
    %v525 = vunpack.c.h.b16 %v490
    %v526 = vunpack.c.l.b16 %v491
    %v527 = vunpack.c.h.b16 %v491
    %v528 = vunpack.c.l.b16 %v492
    %v529 = vunpack.c.h.b16 %v492
    %v530 = vunpack.c.l.b16 %v493
    %v531 = vunpack.c.h.b16 %v493
    %v532 = vunpack.c.l.b16 %v494
    %v533 = vunpack.c.h.b16 %v494
    %v534 = vunpack.c.l.b16 %v495
    %v535 = vunpack.c.h.b16 %v495
    %v536 = vunpack.c.l.b16 %v496
    %v537 = vunpack.c.h.b16 %v496
    %v538 = vunpack.c.l.b16 %v497
    %v539 = vunpack.c.h.b16 %v497
    %v540 = vunpack.c.l.b16 %v498
    %v541 = vunpack.c.h.b16 %v498
    %v542 = vunpack.c.l.b16 %v499
    %v543 = vunpack.c.h.b16 %v499
    %v544 = vunpack.c.l.b16 %v500
    %v545 = vunpack.c.h.b16 %v500
    %v546 = vunpack.c.l.b16 %v501
    %v547 = vunpack.c.h.b16 %v501
    %v548 = vunpack.c.l.b16 %v502
    %v549 = vunpack.c.h.b16 %v502
    %v550 = vunpack.c.l.b16 %v503
    %v551 = vunpack.c.h.b16 %v503
    %v552 = vpack.c.b16 %v522, %v520
    %v553 = vpack.c.b16 %v523, %v521
    %v554 = vpack.c.b16 %v526, %v524
    %v555 = vpack.c.b16 %v527, %v525
    %v556 = vpack.c.b16 %v530, %v528
    %v557 = vpack.c.b16 %v531, %v529
    %v558 = vpack.c.b16 %v534, %v532
    %v559 = vpack.c.b16 %v535, %v533
    %v560 = vpack.c.b16 %v538, %v536
    %v561 = vpack.c.b16 %v539, %v537
    %v562 = vpack.c.b16 %v542, %v540
    %v563 = vpack.c.b16 %v543, %v541
    %v564 = vpack.c.b16 %v546, %v544
    %v565 = vpack.c.b16 %v547, %v545
    %v566 = vpack.c.b16 %v550, %v548
    %v567 = vpack.c.b16 %v551, %v549
    %584 = vmatprep.subr.bf16.mxu0 0
    %585 = vmatpush1.bf16.msra.mxu0 %v348
    %586 = vmatprep.subr.bf16.mxu0 0
    %587 = vmatpush1.bf16.msra.mxu0 %v349
    %588 = vmatprep.subr.bf16.mxu0 0
    %589 = vmatpush1.bf16.msra.mxu0 %v350
    %590 = vmatprep.subr.bf16.mxu0 0
    %591 = vmatpush1.bf16.msra.mxu0 %v351
    %592 = vmatprep.subr.bf16.mxu0 0
    %593 = vmatpush1.bf16.msra.mxu0 %v352
    %594 = vmatprep.subr.bf16.mxu0 0
    %595 = vmatpush1.bf16.msra.mxu0 %v353
    %596 = vmatprep.subr.bf16.mxu0 0
    %597 = vmatpush1.bf16.msra.mxu0 %v354
    %598 = vmatprep.subr.bf16.mxu0 0
    %599 = vmatpush1.bf16.msra.mxu0 %v355
    %600 = vmatprep.subr.bf16.mxu0 0
    %601 = vmatpush1.bf16.msra.mxu0 %v356
    %602 = vmatprep.subr.bf16.mxu0 0
    %603 = vmatpush1.bf16.msra.mxu0 %v357
    %604 = vmatprep.subr.bf16.mxu0 0
    %605 = vmatpush1.bf16.msra.mxu0 %v358
    %606 = vmatprep.subr.bf16.mxu0 0
    %607 = vmatpush1.bf16.msra.mxu0 %v359
    %608 = vmatprep.subr.bf16.mxu0 0
    %609 = vmatpush1.bf16.msra.mxu0 %v360
    %610 = vmatprep.subr.bf16.mxu0 0
    %611 = vmatpush1.bf16.msra.mxu0 %v361
    %612 = vmatprep.subr.bf16.mxu0 0
    %613 = vmatpush1.bf16.msra.mxu0 %v362
    %614 = vmatprep.subr.bf16.mxu0 0
    %615 = vmatpush1.bf16.msra.mxu0 %v363
    %616 = vmatprep.mubr.bf16.mxu0 %v553
    %617 = vmatmul.mubr.bf16.gmra.mrb[0].mxu0 %v552
    %v618 = vpop.f32.mrb[0].mxu0
    %v619 = vadd.f32 0.0, %v618
    %v620 = vpop.f32.mrb[0].mxu0
    %v621 = vpop.f32.mrb[0].mxu0
    %v622 = vadd.f32 0.0, %v621
    %v623 = vpop.f32.mrb[0].mxu0
    %624 = vmatprep.mubr.bf16.mxu0 %v555
    %625 = vmatmul.mubr.bf16.gmra.mrb[0].mxu0 %v554
    %v626 = vpop.f32.mrb[0].mxu0
    %v627 = vadd.f32 0.0, %v626
    %v628 = vpop.f32.mrb[0].mxu0
    %v629 = vpop.f32.mrb[0].mxu0
    %v630 = vadd.f32 0.0, %v629
    %v631 = vpop.f32.mrb[0].mxu0
    %632 = vmatprep.mubr.bf16.mxu0 %v557
    %633 = vmatmul.mubr.bf16.gmra.mrb[0].mxu0 %v556
    %v634 = vpop.f32.mrb[0].mxu0
    %v635 = vadd.f32 0.0, %v634
    %v636 = vpop.f32.mrb[0].mxu0
    %v637 = vpop.f32.mrb[0].mxu0
    %v638 = vadd.f32 0.0, %v637
    %v639 = vpop.f32.mrb[0].mxu0
    %640 = vmatprep.mubr.bf16.mxu0 %v559
    %641 = vmatmul.mubr.bf16.gmra.mrb[0].mxu0 %v558
    %v642 = vpop.f32.mrb[0].mxu0
    %v643 = vadd.f32 0.0, %v642
    %v644 = vpop.f32.mrb[0].mxu0
    %v645 = vpop.f32.mrb[0].mxu0
    %v646 = vadd.f32 0.0, %v645
    %v647 = vpop.f32.mrb[0].mxu0
    %648 = vmatprep.mubr.bf16.mxu0 %v561
    %649 = vmatmul.mubr.bf16.gmra.mrb[0].mxu0 %v560
    %v650 = vpop.f32.mrb[0].mxu0
    %v651 = vadd.f32 0.0, %v650
    %v652 = vpop.f32.mrb[0].mxu0
    %v653 = vpop.f32.mrb[0].mxu0
    %v654 = vadd.f32 0.0, %v653
    %v655 = vpop.f32.mrb[0].mxu0
    %656 = vmatprep.mubr.bf16.mxu0 %v563
    %657 = vmatmul.mubr.bf16.gmra.mrb[0].mxu0 %v562
    %v658 = vpop.f32.mrb[0].mxu0
    %v659 = vadd.f32 0.0, %v658
    %v660 = vpop.f32.mrb[0].mxu0
    %v661 = vpop.f32.mrb[0].mxu0
    %v662 = vadd.f32 0.0, %v661
    %v663 = vpop.f32.mrb[0].mxu0
    %664 = vmatprep.mubr.bf16.mxu0 %v565
    %665 = vmatmul.mubr.bf16.gmra.mrb[0].mxu0 %v564
    %v666 = vpop.f32.mrb[0].mxu0
    %v667 = vadd.f32 0.0, %v666
    %v668 = vpop.f32.mrb[0].mxu0
    %v669 = vpop.f32.mrb[0].mxu0
    %v670 = vadd.f32 0.0, %v669
    %v671 = vpop.f32.mrb[0].mxu0
    %672 = vmatprep.mubr.bf16.mxu0 %v567
    %673 = vmatmul.mubr.bf16.gmra.mrb[0].mxu0 %v566
    %v674 = vpop.f32.mrb[0].mxu0
    %v675 = vadd.f32 0.0, %v674
    %v676 = vpop.f32.mrb[0].mxu0
    %v677 = vpop.f32.mrb[0].mxu0
    %v678 = vadd.f32 0.0, %v677
    %v679 = vpop.f32.mrb[0].mxu0
    %680 = vdwg.mxu0
    %v681 = vpack.c.bf16 %v622, %v619
    %v682 = vpack.c.bf16 %v630, %v627
    %v683 = vpack.c.bf16 %v638, %v635
    %v684 = vpack.c.bf16 %v646, %v643
    %v685 = vpack.c.bf16 %v654, %v651
    %v686 = vpack.c.bf16 %v662, %v659
    %v687 = vpack.c.bf16 %v670, %v667
    %v688 = vpack.c.bf16 %v678, %v675
    %s689 = scalar_lea.vmem %s5, 8
    %v690 = vld [vmem:[%s689] sm:$0xf]
    %v691 = vld [vmem:[%s689 + $0x4] sm:$0xf]
    %v694 = vunpack.c.l.b16 %v690
    %v695 = vunpack.c.l.b16 %v691
    %v696 = vpack.c.b16 %v695, %v694
    %vm698 = vcmask 130048
    %v700 = vsel %vm698, %v681, 0
    %v703 = vsel %vm698, %v682, 0
    %v706 = vsel %vm698, %v683, 0
    %v709 = vsel %vm698, %v684, 0
    %v712 = vsel %vm698, %v685, 0
    %v715 = vsel %vm698, %v686, 0
    %v718 = vsel %vm698, %v687, 0
    %v721 = vsel %vm698, %v688, 0
    %723 = vmatprep.subr.bf16.mxu0 0
    %724 = vmatpush1.bf16.msra.mxu0 %v696
    %725 = vmatprep.subr.bf16.mxu0 0
    %726 = vmatpush1.bf16.msra.mxu0 0
    %727 = vmatprep.subr.bf16.mxu0 0
    %728 = vmatpush1.bf16.msra.mxu0 0
    %729 = vmatprep.subr.bf16.mxu0 0
    %730 = vmatpush1.bf16.msra.mxu0 0
    %731 = vmatprep.subr.bf16.mxu0 0
    %732 = vmatpush1.bf16.msra.mxu0 0
    %733 = vmatprep.subr.bf16.mxu0 0
    %734 = vmatpush1.bf16.msra.mxu0 0
    %735 = vmatprep.subr.bf16.mxu0 0
    %736 = vmatpush1.bf16.msra.mxu0 0
    %737 = vmatprep.subr.bf16.mxu0 0
    %738 = vmatpush1.bf16.msra.mxu0 0
    %739 = vmatprep.subr.bf16.mxu0 0
    %740 = vmatpush1.bf16.msra.mxu0 0
    %741 = vmatprep.subr.bf16.mxu0 0
    %742 = vmatpush1.bf16.msra.mxu0 0
    %743 = vmatprep.subr.bf16.mxu0 0
    %744 = vmatpush1.bf16.msra.mxu0 0
    %745 = vmatprep.subr.bf16.mxu0 0
    %746 = vmatpush1.bf16.msra.mxu0 0
    %747 = vmatprep.subr.bf16.mxu0 0
    %748 = vmatpush1.bf16.msra.mxu0 0
    %749 = vmatprep.subr.bf16.mxu0 0
    %750 = vmatpush1.bf16.msra.mxu0 0
    %751 = vmatprep.subr.bf16.mxu0 0
    %752 = vmatpush1.bf16.msra.mxu0 0
    %753 = vmatprep.subr.bf16.mxu0 0
    %754 = vmatpush1.bf16.msra.mxu0 0
    %755 = vmatprep.mubr.bf16.mxu0 0
    %756 = vmatmul.mubr.bf16.gmra.mrb[0].mxu0 %v700
    %v757 = vpop.f32.mrb[0].mxu0
    %v758 = vadd.f32 0.0, %v757
    %v759 = vpop.f32.mrb[0].mxu0
    %v760 = vpop.f32.mrb[0].mxu0
    %v761 = vadd.f32 0.0, %v760
    %v762 = vpop.f32.mrb[0].mxu0
    %763 = vmatprep.mubr.bf16.mxu0 0
    %764 = vmatmul.mubr.bf16.gmra.mrb[0].mxu0 %v703
    %v765 = vpop.f32.mrb[0].mxu0
    %v766 = vadd.f32 0.0, %v765
    %v767 = vpop.f32.mrb[0].mxu0
    %v768 = vpop.f32.mrb[0].mxu0
    %v769 = vadd.f32 0.0, %v768
    %v770 = vpop.f32.mrb[0].mxu0
    %771 = vmatprep.mubr.bf16.mxu0 0
    %772 = vmatmul.mubr.bf16.gmra.mrb[0].mxu0 %v706
    %v773 = vpop.f32.mrb[0].mxu0
    %v774 = vadd.f32 0.0, %v773
    %v775 = vpop.f32.mrb[0].mxu0
    %v776 = vpop.f32.mrb[0].mxu0
    %v777 = vadd.f32 0.0, %v776
    %v778 = vpop.f32.mrb[0].mxu0
    %779 = vmatprep.mubr.bf16.mxu0 0
    %780 = vmatmul.mubr.bf16.gmra.mrb[0].mxu0 %v709
    %v781 = vpop.f32.mrb[0].mxu0
    %v782 = vadd.f32 0.0, %v781
    %v783 = vpop.f32.mrb[0].mxu0
    %v784 = vpop.f32.mrb[0].mxu0
    %v785 = vadd.f32 0.0, %v784
    %v786 = vpop.f32.mrb[0].mxu0
    %787 = vmatprep.mubr.bf16.mxu0 0
    %788 = vmatmul.mubr.bf16.gmra.mrb[0].mxu0 %v712
    %v789 = vpop.f32.mrb[0].mxu0
    %v790 = vadd.f32 0.0, %v789
    %v791 = vpop.f32.mrb[0].mxu0
    %v792 = vpop.f32.mrb[0].mxu0
    %v793 = vadd.f32 0.0, %v792
    %v794 = vpop.f32.mrb[0].mxu0
    %795 = vmatprep.mubr.bf16.mxu0 0
    %796 = vmatmul.mubr.bf16.gmra.mrb[0].mxu0 %v715
    %v797 = vpop.f32.mrb[0].mxu0
    %v798 = vadd.f32 0.0, %v797
    %v799 = vpop.f32.mrb[0].mxu0
    %v800 = vpop.f32.mrb[0].mxu0
    %v801 = vadd.f32 0.0, %v800
    %v802 = vpop.f32.mrb[0].mxu0
    %803 = vmatprep.mubr.bf16.mxu0 0
    %804 = vmatmul.mubr.bf16.gmra.mrb[0].mxu0 %v718
    %v805 = vpop.f32.mrb[0].mxu0
    %v806 = vadd.f32 0.0, %v805
    %v807 = vpop.f32.mrb[0].mxu0
    %v808 = vpop.f32.mrb[0].mxu0
    %v809 = vadd.f32 0.0, %v808
    %v810 = vpop.f32.mrb[0].mxu0
    %811 = vmatprep.mubr.bf16.mxu0 0
    %812 = vmatmul.mubr.bf16.gmra.mrb[0].mxu0 %v721
    %v813 = vpop.f32.mrb[0].mxu0
    %v814 = vadd.f32 0.0, %v813
    %v815 = vpop.f32.mrb[0].mxu0
    %v816 = vpop.f32.mrb[0].mxu0
    %v817 = vadd.f32 0.0, %v816
    %v818 = vpop.f32.mrb[0].mxu0
    %819 = vdwg.mxu0
    %v822 = vunpack.c.l.b16 %v485
    %v823 = vunpack.c.l.b16 %v486
    %v824 = vpack.c.b16 %v823, %v822
    %v827 = vsel %vm698, %v477, 0
    %v830 = vsel %vm698, %v478, 0
    %v833 = vsel %vm698, %v479, 0
    %v836 = vsel %vm698, %v480, 0
    %v839 = vsel %vm698, %v481, 0
    %v842 = vsel %vm698, %v482, 0
    %v845 = vsel %vm698, %v483, 0
    %v848 = vsel %vm698, %v484, 0
    %850 = vmatprep.subr.bf16.mxu0 0
    %851 = vmatpush1.bf16.msra.mxu0 %v824
    %852 = vmatprep.subr.bf16.mxu0 0
    %853 = vmatpush1.bf16.msra.mxu0 0
    %854 = vmatprep.subr.bf16.mxu0 0
    %855 = vmatpush1.bf16.msra.mxu0 0
    %856 = vmatprep.subr.bf16.mxu0 0
    %857 = vmatpush1.bf16.msra.mxu0 0
    %858 = vmatprep.subr.bf16.mxu0 0
    %859 = vmatpush1.bf16.msra.mxu0 0
    %860 = vmatprep.subr.bf16.mxu0 0
    %861 = vmatpush1.bf16.msra.mxu0 0
    %862 = vmatprep.subr.bf16.mxu0 0
    %863 = vmatpush1.bf16.msra.mxu0 0
    %864 = vmatprep.subr.bf16.mxu0 0
    %865 = vmatpush1.bf16.msra.mxu0 0
    %866 = vmatprep.subr.bf16.mxu0 0
    %867 = vmatpush1.bf16.msra.mxu0 0
    %868 = vmatprep.subr.bf16.mxu0 0
    %869 = vmatpush1.bf16.msra.mxu0 0
    %870 = vmatprep.subr.bf16.mxu0 0
    %871 = vmatpush1.bf16.msra.mxu0 0
    %872 = vmatprep.subr.bf16.mxu0 0
    %873 = vmatpush1.bf16.msra.mxu0 0
    %874 = vmatprep.subr.bf16.mxu0 0
    %875 = vmatpush1.bf16.msra.mxu0 0
    %876 = vmatprep.subr.bf16.mxu0 0
    %877 = vmatpush1.bf16.msra.mxu0 0
    %878 = vmatprep.subr.bf16.mxu0 0
    %879 = vmatpush1.bf16.msra.mxu0 0
    %880 = vmatprep.subr.bf16.mxu0 0
    %881 = vmatpush1.bf16.msra.mxu0 0
    %882 = vmatprep.mubr.bf16.mxu0 0
    %883 = vmatmul.mubr.bf16.gmra.mrb[0].mxu0 %v827
    %v884 = vpop.f32.mrb[0].mxu0
    %v885 = vadd.f32 %v758, %v884
    %v886 = vpop.f32.mrb[0].mxu0
    %v887 = vpop.f32.mrb[0].mxu0
    %v888 = vadd.f32 %v761, %v887
    %v889 = vpop.f32.mrb[0].mxu0
    %890 = vmatprep.mubr.bf16.mxu0 0
    %891 = vmatmul.mubr.bf16.gmra.mrb[0].mxu0 %v830
    %v892 = vpop.f32.mrb[0].mxu0
    %v893 = vadd.f32 %v766, %v892
    %v894 = vpop.f32.mrb[0].mxu0
    %v895 = vpop.f32.mrb[0].mxu0
    %v896 = vadd.f32 %v769, %v895
    %v897 = vpop.f32.mrb[0].mxu0
    %898 = vmatprep.mubr.bf16.mxu0 0
    %899 = vmatmul.mubr.bf16.gmra.mrb[0].mxu0 %v833
    %v900 = vpop.f32.mrb[0].mxu0
    %v901 = vadd.f32 %v774, %v900
    %v902 = vpop.f32.mrb[0].mxu0
    %v903 = vpop.f32.mrb[0].mxu0
    %v904 = vadd.f32 %v777, %v903
    %v905 = vpop.f32.mrb[0].mxu0
    %906 = vmatprep.mubr.bf16.mxu0 0
    %907 = vmatmul.mubr.bf16.gmra.mrb[0].mxu0 %v836
    %v908 = vpop.f32.mrb[0].mxu0
    %v909 = vadd.f32 %v782, %v908
    %v910 = vpop.f32.mrb[0].mxu0
    %v911 = vpop.f32.mrb[0].mxu0
    %v912 = vadd.f32 %v785, %v911
    %v913 = vpop.f32.mrb[0].mxu0
    %914 = vmatprep.mubr.bf16.mxu0 0
    %915 = vmatmul.mubr.bf16.gmra.mrb[0].mxu0 %v839
    %v916 = vpop.f32.mrb[0].mxu0
    %v917 = vadd.f32 %v790, %v916
    %v918 = vpop.f32.mrb[0].mxu0
    %v919 = vpop.f32.mrb[0].mxu0
    %v920 = vadd.f32 %v793, %v919
    %v921 = vpop.f32.mrb[0].mxu0
    %922 = vmatprep.mubr.bf16.mxu0 0
    %923 = vmatmul.mubr.bf16.gmra.mrb[0].mxu0 %v842
    %v924 = vpop.f32.mrb[0].mxu0
    %v925 = vadd.f32 %v798, %v924
    %v926 = vpop.f32.mrb[0].mxu0
    %v927 = vpop.f32.mrb[0].mxu0
    %v928 = vadd.f32 %v801, %v927
    %v929 = vpop.f32.mrb[0].mxu0
    %930 = vmatprep.mubr.bf16.mxu0 0
    %931 = vmatmul.mubr.bf16.gmra.mrb[0].mxu0 %v845
    %v932 = vpop.f32.mrb[0].mxu0
    %v933 = vadd.f32 %v806, %v932
    %v934 = vpop.f32.mrb[0].mxu0
    %v935 = vpop.f32.mrb[0].mxu0
    %v936 = vadd.f32 %v809, %v935
    %v937 = vpop.f32.mrb[0].mxu0
    %938 = vmatprep.mubr.bf16.mxu0 0
    %939 = vmatmul.mubr.bf16.gmra.mrb[0].mxu0 %v848
    %v940 = vpop.f32.mrb[0].mxu0
    %v941 = vadd.f32 %v814, %v940
    %v942 = vpop.f32.mrb[0].mxu0
    %v943 = vpop.f32.mrb[0].mxu0
    %v944 = vadd.f32 %v817, %v943
    %v945 = vpop.f32.mrb[0].mxu0
    %946 = vdwg.mxu0
    %s947 = scalar_lea.vmem %s3, 256
    %v948 = vld [vmem:[%s947] sm:$0xff]
    %v949 = vld [vmem:[%s947 + $0x8] sm:$0xff]
    %v950 = vld [vmem:[%s947 + $0x10] sm:$0xff]
    %v951 = vld [vmem:[%s947 + $0x18] sm:$0xff]
    %v952 = vld [vmem:[%s947 + $0x20] sm:$0xff]
    %v953 = vld [vmem:[%s947 + $0x28] sm:$0xff]
    %v954 = vld [vmem:[%s947 + $0x30] sm:$0xff]
    %v955 = vld [vmem:[%s947 + $0x38] sm:$0xff]
    %v956 = vld [vmem:[%s947 + $0x40] sm:$0xff]
    %v957 = vld [vmem:[%s947 + $0x48] sm:$0xff]
    %v958 = vld [vmem:[%s947 + $0x50] sm:$0xff]
    %v959 = vld [vmem:[%s947 + $0x58] sm:$0xff]
    %v960 = vld [vmem:[%s947 + $0x60] sm:$0xff]
    %v961 = vld [vmem:[%s947 + $0x68] sm:$0xff]
    %v962 = vld [vmem:[%s947 + $0x70] sm:$0xff]
    %v963 = vld [vmem:[%s947 + $0x78] sm:$0xff]
    %v980 = vunpack.c.l.b16 %v948
    %v981 = vunpack.c.h.b16 %v948
    %v982 = vunpack.c.l.b16 %v949
    %v983 = vunpack.c.h.b16 %v949
    %v984 = vunpack.c.l.b16 %v950
    %v985 = vunpack.c.h.b16 %v950
    %v986 = vunpack.c.l.b16 %v951
    %v987 = vunpack.c.h.b16 %v951
    %v988 = vunpack.c.l.b16 %v952
    %v989 = vunpack.c.h.b16 %v952
    %v990 = vunpack.c.l.b16 %v953
    %v991 = vunpack.c.h.b16 %v953
    %v992 = vunpack.c.l.b16 %v954
    %v993 = vunpack.c.h.b16 %v954
    %v994 = vunpack.c.l.b16 %v955
    %v995 = vunpack.c.h.b16 %v955
    %v996 = vunpack.c.l.b16 %v956
    %v997 = vunpack.c.h.b16 %v956
    %v998 = vunpack.c.l.b16 %v957
    %v999 = vunpack.c.h.b16 %v957
    %v1000 = vunpack.c.l.b16 %v958
    %v1001 = vunpack.c.h.b16 %v958
    %v1002 = vunpack.c.l.b16 %v959
    %v1003 = vunpack.c.h.b16 %v959
    %v1004 = vunpack.c.l.b16 %v960
    %v1005 = vunpack.c.h.b16 %v960
    %v1006 = vunpack.c.l.b16 %v961
    %v1007 = vunpack.c.h.b16 %v961
    %v1008 = vunpack.c.l.b16 %v962
    %v1009 = vunpack.c.h.b16 %v962
    %v1010 = vunpack.c.l.b16 %v963
    %v1011 = vunpack.c.h.b16 %v963
    %v1012 = vpack.c.b16 %v982, %v980
    %v1013 = vpack.c.b16 %v983, %v981
    %v1014 = vpack.c.b16 %v986, %v984
    %v1015 = vpack.c.b16 %v987, %v985
    %v1016 = vpack.c.b16 %v990, %v988
    %v1017 = vpack.c.b16 %v991, %v989
    %v1018 = vpack.c.b16 %v994, %v992
    %v1019 = vpack.c.b16 %v995, %v993
    %v1020 = vpack.c.b16 %v998, %v996
    %v1021 = vpack.c.b16 %v999, %v997
    %v1022 = vpack.c.b16 %v1002, %v1000
    %v1023 = vpack.c.b16 %v1003, %v1001
    %v1024 = vpack.c.b16 %v1006, %v1004
    %v1025 = vpack.c.b16 %v1007, %v1005
    %v1026 = vpack.c.b16 %v1010, %v1008
    %v1027 = vpack.c.b16 %v1011, %v1009
    %1044 = vmatprep.subr.bf16.mxu0 0
    %1045 = vmatpush1.bf16.msra.mxu0 %v348
    %1046 = vmatprep.subr.bf16.mxu0 0
    %1047 = vmatpush1.bf16.msra.mxu0 %v349
    %1048 = vmatprep.subr.bf16.mxu0 0
    %1049 = vmatpush1.bf16.msra.mxu0 %v350
    %1050 = vmatprep.subr.bf16.mxu0 0
    %1051 = vmatpush1.bf16.msra.mxu0 %v351
    %1052 = vmatprep.subr.bf16.mxu0 0
    %1053 = vmatpush1.bf16.msra.mxu0 %v352
    %1054 = vmatprep.subr.bf16.mxu0 0
    %1055 = vmatpush1.bf16.msra.mxu0 %v353
    %1056 = vmatprep.subr.bf16.mxu0 0
    %1057 = vmatpush1.bf16.msra.mxu0 %v354
    %1058 = vmatprep.subr.bf16.mxu0 0
    %1059 = vmatpush1.bf16.msra.mxu0 %v355
    %1060 = vmatprep.subr.bf16.mxu0 0
    %1061 = vmatpush1.bf16.msra.mxu0 %v356
    %1062 = vmatprep.subr.bf16.mxu0 0
    %1063 = vmatpush1.bf16.msra.mxu0 %v357
    %1064 = vmatprep.subr.bf16.mxu0 0
    %1065 = vmatpush1.bf16.msra.mxu0 %v358
    %1066 = vmatprep.subr.bf16.mxu0 0
    %1067 = vmatpush1.bf16.msra.mxu0 %v359
    %1068 = vmatprep.subr.bf16.mxu0 0
    %1069 = vmatpush1.bf16.msra.mxu0 %v360
    %1070 = vmatprep.subr.bf16.mxu0 0
    %1071 = vmatpush1.bf16.msra.mxu0 %v361
    %1072 = vmatprep.subr.bf16.mxu0 0
    %1073 = vmatpush1.bf16.msra.mxu0 %v362
    %1074 = vmatprep.subr.bf16.mxu0 0
    %1075 = vmatpush1.bf16.msra.mxu0 %v363
    %1076 = vmatprep.mubr.bf16.mxu0 %v1013
    %1077 = vmatmul.mubr.bf16.gmra.mrb[0].mxu0 %v1012
    %v1078 = vpop.f32.mrb[0].mxu0
    %v1079 = vadd.f32 0.0, %v1078
    %v1080 = vpop.f32.mrb[0].mxu0
    %v1081 = vpop.f32.mrb[0].mxu0
    %v1082 = vadd.f32 0.0, %v1081
    %v1083 = vpop.f32.mrb[0].mxu0
    %1084 = vmatprep.mubr.bf16.mxu0 %v1015
    %1085 = vmatmul.mubr.bf16.gmra.mrb[0].mxu0 %v1014
    %v1086 = vpop.f32.mrb[0].mxu0
    %v1087 = vadd.f32 0.0, %v1086
    %v1088 = vpop.f32.mrb[0].mxu0
    %v1089 = vpop.f32.mrb[0].mxu0
    %v1090 = vadd.f32 0.0, %v1089
    %v1091 = vpop.f32.mrb[0].mxu0
    %1092 = vmatprep.mubr.bf16.mxu0 %v1017
    %1093 = vmatmul.mubr.bf16.gmra.mrb[0].mxu0 %v1016
    %v1094 = vpop.f32.mrb[0].mxu0
    %v1095 = vadd.f32 0.0, %v1094
    %v1096 = vpop.f32.mrb[0].mxu0
    %v1097 = vpop.f32.mrb[0].mxu0
    %v1098 = vadd.f32 0.0, %v1097
    %v1099 = vpop.f32.mrb[0].mxu0
    %1100 = vmatprep.mubr.bf16.mxu0 %v1019
    %1101 = vmatmul.mubr.bf16.gmra.mrb[0].mxu0 %v1018
    %v1102 = vpop.f32.mrb[0].mxu0
    %v1103 = vadd.f32 0.0, %v1102
    %v1104 = vpop.f32.mrb[0].mxu0
    %v1105 = vpop.f32.mrb[0].mxu0
    %v1106 = vadd.f32 0.0, %v1105
    %v1107 = vpop.f32.mrb[0].mxu0
    %1108 = vmatprep.mubr.bf16.mxu0 %v1021
    %1109 = vmatmul.mubr.bf16.gmra.mrb[0].mxu0 %v1020
    %v1110 = vpop.f32.mrb[0].mxu0
    %v1111 = vadd.f32 0.0, %v1110
    %v1112 = vpop.f32.mrb[0].mxu0
    %v1113 = vpop.f32.mrb[0].mxu0
    %v1114 = vadd.f32 0.0, %v1113
    %v1115 = vpop.f32.mrb[0].mxu0
    %1116 = vmatprep.mubr.bf16.mxu0 %v1023
    %1117 = vmatmul.mubr.bf16.gmra.mrb[0].mxu0 %v1022
    %v1118 = vpop.f32.mrb[0].mxu0
    %v1119 = vadd.f32 0.0, %v1118
    %v1120 = vpop.f32.mrb[0].mxu0
    %v1121 = vpop.f32.mrb[0].mxu0
    %v1122 = vadd.f32 0.0, %v1121
    %v1123 = vpop.f32.mrb[0].mxu0
    %1124 = vmatprep.mubr.bf16.mxu0 %v1025
    %1125 = vmatmul.mubr.bf16.gmra.mrb[0].mxu0 %v1024
    %v1126 = vpop.f32.mrb[0].mxu0
    %v1127 = vadd.f32 0.0, %v1126
    %v1128 = vpop.f32.mrb[0].mxu0
    %v1129 = vpop.f32.mrb[0].mxu0
    %v1130 = vadd.f32 0.0, %v1129
    %v1131 = vpop.f32.mrb[0].mxu0
    %1132 = vmatprep.mubr.bf16.mxu0 %v1027
    %1133 = vmatmul.mubr.bf16.gmra.mrb[0].mxu0 %v1026
    %v1134 = vpop.f32.mrb[0].mxu0
    %v1135 = vadd.f32 0.0, %v1134
    %v1136 = vpop.f32.mrb[0].mxu0
    %v1137 = vpop.f32.mrb[0].mxu0
    %v1138 = vadd.f32 0.0, %v1137
    %v1139 = vpop.f32.mrb[0].mxu0
    %1140 = vdwg.mxu0
    %v1141 = vpack.c.bf16 %v1082, %v1079
    %v1142 = vpack.c.bf16 %v1090, %v1087
    %v1143 = vpack.c.bf16 %v1098, %v1095
    %v1144 = vpack.c.bf16 %v1106, %v1103
    %v1145 = vpack.c.bf16 %v1114, %v1111
    %v1146 = vpack.c.bf16 %v1122, %v1119
    %v1147 = vpack.c.bf16 %v1130, %v1127
    %v1148 = vpack.c.bf16 %v1138, %v1135
    %s1149 = scalar_lea.vmem %s5, 16
    %v1150 = vld [vmem:[%s1149] sm:$0xf]
    %v1151 = vld [vmem:[%s1149 + $0x4] sm:$0xf]
    %v1154 = vunpack.c.l.b16 %v1150
    %v1155 = vunpack.c.l.b16 %v1151
    %v1156 = vpack.c.b16 %v1155, %v1154
    %v1159 = vsel %vm698, %v1141, 0
    %v1162 = vsel %vm698, %v1142, 0
    %v1165 = vsel %vm698, %v1143, 0
    %v1168 = vsel %vm698, %v1144, 0
    %v1171 = vsel %vm698, %v1145, 0
    %v1174 = vsel %vm698, %v1146, 0
    %v1177 = vsel %vm698, %v1147, 0
    %v1180 = vsel %vm698, %v1148, 0
    %1182 = vmatprep.subr.bf16.mxu0 0
    %1183 = vmatpush1.bf16.msra.mxu0 %v1156
    %1184 = vmatprep.subr.bf16.mxu0 0
    %1185 = vmatpush1.bf16.msra.mxu0 0
    %1186 = vmatprep.subr.bf16.mxu0 0
    %1187 = vmatpush1.bf16.msra.mxu0 0
    %1188 = vmatprep.subr.bf16.mxu0 0
    %1189 = vmatpush1.bf16.msra.mxu0 0
    %1190 = vmatprep.subr.bf16.mxu0 0
    %1191 = vmatpush1.bf16.msra.mxu0 0
    %1192 = vmatprep.subr.bf16.mxu0 0
    %1193 = vmatpush1.bf16.msra.mxu0 0
    %1194 = vmatprep.subr.bf16.mxu0 0
    %1195 = vmatpush1.bf16.msra.mxu0 0
    %1196 = vmatprep.subr.bf16.mxu0 0
    %1197 = vmatpush1.bf16.msra.mxu0 0
    %1198 = vmatprep.subr.bf16.mxu0 0
    %1199 = vmatpush1.bf16.msra.mxu0 0
    %1200 = vmatprep.subr.bf16.mxu0 0
    %1201 = vmatpush1.bf16.msra.mxu0 0
    %1202 = vmatprep.subr.bf16.mxu0 0
    %1203 = vmatpush1.bf16.msra.mxu0 0
    %1204 = vmatprep.subr.bf16.mxu0 0
    %1205 = vmatpush1.bf16.msra.mxu0 0
    %1206 = vmatprep.subr.bf16.mxu0 0
    %1207 = vmatpush1.bf16.msra.mxu0 0
    %1208 = vmatprep.subr.bf16.mxu0 0
    %1209 = vmatpush1.bf16.msra.mxu0 0
    %1210 = vmatprep.subr.bf16.mxu0 0
    %1211 = vmatpush1.bf16.msra.mxu0 0
    %1212 = vmatprep.subr.bf16.mxu0 0
    %1213 = vmatpush1.bf16.msra.mxu0 0
    %1214 = vmatprep.mubr.bf16.mxu0 0
    %1215 = vmatmul.mubr.bf16.gmra.mrb[0].mxu0 %v1159
    %v1216 = vpop.f32.mrb[0].mxu0
    %v1217 = vadd.f32 0.0, %v1216
    %v1218 = vpop.f32.mrb[0].mxu0
    %v1219 = vpop.f32.mrb[0].mxu0
    %v1220 = vadd.f32 0.0, %v1219
    %v1221 = vpop.f32.mrb[0].mxu0
    %1222 = vmatprep.mubr.bf16.mxu0 0
    %1223 = vmatmul.mubr.bf16.gmra.mrb[0].mxu0 %v1162
    %v1224 = vpop.f32.mrb[0].mxu0
    %v1225 = vadd.f32 0.0, %v1224
    %v1226 = vpop.f32.mrb[0].mxu0
    %v1227 = vpop.f32.mrb[0].mxu0
    %v1228 = vadd.f32 0.0, %v1227
    %v1229 = vpop.f32.mrb[0].mxu0
    %1230 = vmatprep.mubr.bf16.mxu0 0
    %1231 = vmatmul.mubr.bf16.gmra.mrb[0].mxu0 %v1165
    %v1232 = vpop.f32.mrb[0].mxu0
    %v1233 = vadd.f32 0.0, %v1232
    %v1234 = vpop.f32.mrb[0].mxu0
    %v1235 = vpop.f32.mrb[0].mxu0
    %v1236 = vadd.f32 0.0, %v1235
    %v1237 = vpop.f32.mrb[0].mxu0
    %1238 = vmatprep.mubr.bf16.mxu0 0
    %1239 = vmatmul.mubr.bf16.gmra.mrb[0].mxu0 %v1168
    %v1240 = vpop.f32.mrb[0].mxu0
    %v1241 = vadd.f32 0.0, %v1240
    %v1242 = vpop.f32.mrb[0].mxu0
    %v1243 = vpop.f32.mrb[0].mxu0
    %v1244 = vadd.f32 0.0, %v1243
    %v1245 = vpop.f32.mrb[0].mxu0
    %1246 = vmatprep.mubr.bf16.mxu0 0
    %1247 = vmatmul.mubr.bf16.gmra.mrb[0].mxu0 %v1171
    %v1248 = vpop.f32.mrb[0].mxu0
    %v1249 = vadd.f32 0.0, %v1248
    %v1250 = vpop.f32.mrb[0].mxu0
    %v1251 = vpop.f32.mrb[0].mxu0
    %v1252 = vadd.f32 0.0, %v1251
    %v1253 = vpop.f32.mrb[0].mxu0
    %1254 = vmatprep.mubr.bf16.mxu0 0
    %1255 = vmatmul.mubr.bf16.gmra.mrb[0].mxu0 %v1174
    %v1256 = vpop.f32.mrb[0].mxu0
    %v1257 = vadd.f32 0.0, %v1256
    %v1258 = vpop.f32.mrb[0].mxu0
    %v1259 = vpop.f32.mrb[0].mxu0
    %v1260 = vadd.f32 0.0, %v1259
    %v1261 = vpop.f32.mrb[0].mxu0
    %1262 = vmatprep.mubr.bf16.mxu0 0
    %1263 = vmatmul.mubr.bf16.gmra.mrb[0].mxu0 %v1177
    %v1264 = vpop.f32.mrb[0].mxu0
    %v1265 = vadd.f32 0.0, %v1264
    %v1266 = vpop.f32.mrb[0].mxu0
    %v1267 = vpop.f32.mrb[0].mxu0
    %v1268 = vadd.f32 0.0, %v1267
    %v1269 = vpop.f32.mrb[0].mxu0
    %1270 = vmatprep.mubr.bf16.mxu0 0
    %1271 = vmatmul.mubr.bf16.gmra.mrb[0].mxu0 %v1180
    %v1272 = vpop.f32.mrb[0].mxu0
    %v1273 = vadd.f32 0.0, %v1272
    %v1274 = vpop.f32.mrb[0].mxu0
    %v1275 = vpop.f32.mrb[0].mxu0
    %v1276 = vadd.f32 0.0, %v1275
    %v1277 = vpop.f32.mrb[0].mxu0
    %1278 = vdwg.mxu0
    %v1279 = vadd.f32 %v885, %v1217
    %v1280 = vadd.f32 %v888, %v1220
    %v1281 = vadd.f32 %v893, %v1225
    %v1282 = vadd.f32 %v896, %v1228
    %v1283 = vadd.f32 %v901, %v1233
    %v1284 = vadd.f32 %v904, %v1236
    %v1285 = vadd.f32 %v909, %v1241
    %v1286 = vadd.f32 %v912, %v1244
    %v1287 = vadd.f32 %v917, %v1249
    %v1288 = vadd.f32 %v920, %v1252
    %v1289 = vadd.f32 %v925, %v1257
    %v1290 = vadd.f32 %v928, %v1260
    %v1291 = vadd.f32 %v933, %v1265
    %v1292 = vadd.f32 %v936, %v1268
    %v1293 = vadd.f32 %v941, %v1273
    %v1294 = vadd.f32 %v944, %v1276
    %v1295 = vlaneseq
    %v1296 = vshrl.u32 %v1295, 7
    %v1297 = vadd.s32 %v1296, 8
    %v1298 = vadd.s32 %v1296, 16
    %v1299 = vadd.s32 %v1296, 24
    %v1300 = vlaneseq
    %v1301 = vand.u32 %v1300, 127
    %vm1302 = vcmp.lt.s32.totalorder %v1296, 0
    %v1303 = vsub.s32 0, %v1296
    %v1304 = vsel %vm1302, %v1303, %v1296
    %v1305 = vshrl.u32 %v1304, 2
    %v1306 = vand.u32 %v1304, 3
    %v1307 = vsub.s32 0, %v1306
    %v1308 = vsel %vm1302, %v1307, %v1306
    %vm1309 = vcmp.lt.s32.totalorder %v1297, 0
    %v1310 = vsub.s32 0, %v1297
    %v1311 = vsel %vm1309, %v1310, %v1297
    %v1312 = vshrl.u32 %v1311, 2
    %v1313 = vand.u32 %v1311, 3
    %v1314 = vsub.s32 0, %v1313
    %v1315 = vsel %vm1309, %v1314, %v1313
    %vm1316 = vcmp.lt.s32.totalorder %v1298, 0
    %v1317 = vsub.s32 0, %v1298
    %v1318 = vsel %vm1316, %v1317, %v1298
    %v1319 = vshrl.u32 %v1318, 2
    %v1320 = vand.u32 %v1318, 3
    %v1321 = vsub.s32 0, %v1320
    %v1322 = vsel %vm1316, %v1321, %v1320
    %vm1323 = vcmp.lt.s32.totalorder %v1299, 0
    %v1324 = vsub.s32 0, %v1299
    %v1325 = vsel %vm1323, %v1324, %v1299
    %v1326 = vshrl.u32 %v1325, 2
    %v1327 = vand.u32 %v1325, 3
    %v1328 = vsub.s32 0, %v1327
    %v1329 = vsel %vm1323, %v1328, %v1327
    %vm1330 = vcmp.ne.s32.totalorder %v1308, 0
    %vm1331 = vcmp.ne.s32.totalorder %v1315, 0
    %vm1332 = vcmp.ne.s32.totalorder %v1322, 0
    %vm1333 = vcmp.ne.s32.totalorder %v1329, 0
    %vm1334 = vcmp.lt.s32.totalorder %v1308, 0
    %vm1335 = vcmp.lt.s32.totalorder %v1315, 0
    %vm1336 = vcmp.lt.s32.totalorder %v1322, 0
    %vm1337 = vcmp.lt.s32.totalorder %v1329, 0
    %vm1338 = vmand %vm1334, %vm1330
    %vm1339 = vmand %vm1335, %vm1331
    %vm1340 = vmand %vm1336, %vm1332
    %vm1341 = vmand %vm1337, %vm1333
    %v1342 = vadd.s32 %v1308, 4
    %v1343 = vadd.s32 %v1315, 4
    %v1344 = vadd.s32 %v1322, 4
    %v1345 = vadd.s32 %v1329, 4
    %v1346 = vsel %vm1338, %v1342, %v1308
    %v1347 = vsel %vm1339, %v1343, %v1315
    %v1348 = vsel %vm1340, %v1344, %v1322
    %v1349 = vsel %vm1341, %v1345, %v1329
    %vm1350 = vcmp.eq.s32.totalorder %v1346, %v1301
    %vm1351 = vcmp.eq.s32.totalorder %v1347, %v1301
    %vm1352 = vcmp.eq.s32.totalorder %v1348, %v1301
    %vm1353 = vcmp.eq.s32.totalorder %v1349, %v1301
    %v1354 = vsel %vm1350, 1, 0
    %v1355 = vsel %vm1351, 1, 0
    %v1356 = vsel %vm1352, 1, 0
    %v1357 = vsel %vm1353, 1, 0
    %v1358 = vcvt.s32.f32 %v1354
    %v1359 = vcvt.s32.f32 %v1355
    %v1360 = vcvt.s32.f32 %v1356
    %v1361 = vcvt.s32.f32 %v1357
    %vm1362 = vcmask 261120
    %v1363 = vsel %vm1362, %v1279, 0.0
    %v1364 = vsel %vm1362, %v1280, 0.0
    %v1365 = vadd.f32 %v1363, %v1364
    %v1366 = vsel %vm1362, %v1281, 0.0
    %v1367 = vadd.f32 %v1365, %v1366
    %v1368 = vsel %vm1362, %v1282, 0.0
    %v1369 = vadd.f32 %v1367, %v1368
    %v1370 = vsel %vm1362, %v1283, 0.0
    %v1371 = vadd.f32 %v1369, %v1370
    %v1372 = vsel %vm1362, %v1284, 0.0
    %v1373 = vadd.f32 %v1371, %v1372
    %v1374 = vsel %vm1362, %v1285, 0.0
    %v1375 = vadd.f32 %v1373, %v1374
    %v1376 = vsel %vm1362, %v1286, 0.0
    %v1377 = vadd.f32 %v1375, %v1376
    %v1378 = vsel %vm1362, %v1287, 0.0
    %v1379 = vadd.f32 %v1377, %v1378
    %v1380 = vsel %vm1362, %v1288, 0.0
    %v1381 = vadd.f32 %v1379, %v1380
    %v1382 = vsel %vm1362, %v1289, 0.0
    %v1383 = vadd.f32 %v1381, %v1382
    %v1384 = vsel %vm1362, %v1290, 0.0
    %v1385 = vadd.f32 %v1383, %v1384
    %v1386 = vsel %vm1362, %v1291, 0.0
    %v1387 = vadd.f32 %v1385, %v1386
    %v1388 = vsel %vm1362, %v1292, 0.0
    %v1389 = vadd.f32 %v1387, %v1388
    %v1390 = vsel %vm1362, %v1293, 0.0
    %v1391 = vadd.f32 %v1389, %v1390
    %v1392 = vsel %vm1362, %v1294, 0.0
    %v1393 = vadd.f32 %v1391, %v1392
    %v1394 = vrot.slane %v1393, 4
    %v1395 = vadd.f32 %v1393, %v1394
    %v1396 = vrot.slane %v1395, 2
    %v1397 = vadd.f32 %v1395, %v1396
    %v1398 = vrot.slane %v1397, 1
    %v1399 = vadd.f32 %v1397, %v1398
    %v1401 = vsel %vm1362, %v1399, 0
    %1403 = vmatprep.subr.mxu0 0.0
    %1404 = vmatpush1.msra.mxu0 %v1358
    %1405 = vmatprep.subr.mxu0 0.0
    %1406 = vmatpush1.msra.mxu0 %v1359
    %1407 = vmatprep.subr.mxu0 0.0
    %1408 = vmatpush1.msra.mxu0 %v1360
    %1409 = vmatprep.subr.mxu0 0.0
    %1410 = vmatpush1.msra.mxu0 %v1361
    %1411 = vmatprep.subr.mxu0 0.0
    %1412 = vmatpush1.msra.mxu0 0.0
    %1413 = vmatprep.subr.mxu0 0.0
    %1414 = vmatpush1.msra.mxu0 0.0
    %1415 = vmatprep.subr.mxu0 0.0
    %1416 = vmatpush1.msra.mxu0 0.0
    %1417 = vmatprep.subr.mxu0 0.0
    %1418 = vmatpush1.msra.mxu0 0.0
    %1419 = vmatprep.subr.mxu0 0.0
    %1420 = vmatpush1.msra.mxu0 0.0
    %1421 = vmatprep.subr.mxu0 0.0
    %1422 = vmatpush1.msra.mxu0 0.0
    %1423 = vmatprep.subr.mxu0 0.0
    %1424 = vmatpush1.msra.mxu0 0.0
    %1425 = vmatprep.subr.mxu0 0.0
    %1426 = vmatpush1.msra.mxu0 0.0
    %1427 = vmatprep.subr.mxu0 0.0
    %1428 = vmatpush1.msra.mxu0 0.0
    %1429 = vmatprep.subr.mxu0 0.0
    %1430 = vmatpush1.msra.mxu0 0.0
    %1431 = vmatprep.subr.mxu0 0.0
    %1432 = vmatpush1.msra.mxu0 0.0
    %1433 = vmatprep.subr.mxu0 0.0
    %1434 = vmatpush1.msra.mxu0 0.0
    %1435 = vmatprep.subr.mxu0 0.0
    %1436 = vmatpush1.msra.mxu0 0.0
    %1437 = vmatprep.subr.mxu0 0.0
    %1438 = vmatpush1.msra.mxu0 0.0
    %1439 = vmatprep.subr.mxu0 0.0
    %1440 = vmatpush1.msra.mxu0 0.0
    %1441 = vmatprep.subr.mxu0 0.0
    %1442 = vmatpush1.msra.mxu0 0.0
    %1443 = vmatprep.subr.mxu0 0.0
    %1444 = vmatpush1.msra.mxu0 0.0
    %1445 = vmatprep.subr.mxu0 0.0
    %1446 = vmatpush1.msra.mxu0 0.0
    %1447 = vmatprep.subr.mxu0 0.0
    %1448 = vmatpush1.msra.mxu0 0.0
    %1449 = vmatprep.subr.mxu0 0.0
    %1450 = vmatpush1.msra.mxu0 0.0
    %1451 = vmatprep.subr.mxu0 0.0
    %1452 = vmatpush1.msra.mxu0 0.0
    %1453 = vmatprep.subr.mxu0 0.0
    %1454 = vmatpush1.msra.mxu0 0.0
    %1455 = vmatprep.subr.mxu0 0.0
    %1456 = vmatpush1.msra.mxu0 0.0
    %1457 = vmatprep.subr.mxu0 0.0
    %1458 = vmatpush1.msra.mxu0 0.0
    %1459 = vmatprep.subr.mxu0 0.0
    %1460 = vmatpush1.msra.mxu0 0.0
    %1461 = vmatprep.subr.mxu0 0.0
    %1462 = vmatpush1.msra.mxu0 0.0
    %1463 = vmatprep.subr.mxu0 0.0
    %1464 = vmatpush1.msra.mxu0 0.0
    %1465 = vmatprep.subr.mxu0 0.0
    %1466 = vmatpush1.msra.mxu0 0.0
    %1467 = vmatprep.mubr.f32.mxu0 0.0
    %1468 = vmatmul.mubr.f32.gmra.mrb[0].mxu0 %v1401
    %v1469 = vpop.f32.mrb[0].mxu0
    %v1470 = vadd.f32 0.0, %v1469
    %v1471 = vpop.f32.mrb[0].mxu0
    %1472 = vdwg.mxu0
    %v1473 = vmul.f32 %v1470, 0.0009765625
    %1475 = vrot.lane.b32.xlu0 %v1473, 4
    %v1476 = vpop.permute.xlu0 %1475
    %1478 = vrot.lane.b32.xlu0 %v1473, 8
    %v1479 = vpop.permute.xlu0 %1478
    %1481 = vrot.lane.b32.xlu0 %v1473, 12
    %v1482 = vpop.permute.xlu0 %1481
    %1484 = vrot.lane.b32.xlu0 %v1473, 16
    %v1485 = vpop.permute.xlu0 %1484
    %1487 = vrot.lane.b32.xlu0 %v1473, 20
    %v1488 = vpop.permute.xlu0 %1487
    %1490 = vrot.lane.b32.xlu0 %v1473, 24
    %v1491 = vpop.permute.xlu0 %1490
    %1493 = vrot.lane.b32.xlu0 %v1473, 28
    %v1494 = vpop.permute.xlu0 %1493
    %vm1496 = vcmask 31744
    %v1497 = vsel %vm1496, %v1473, %v1476
    %vm1498 = vcmask 64512
    %v1499 = vsel %vm1498, %v1497, %v1479
    %vm1500 = vcmask 97280
    %v1501 = vsel %vm1500, %v1499, %v1482
    %v1502 = vsel %vm698, %v1501, %v1485
    %vm1503 = vcmask 162816
    %v1504 = vsel %vm1503, %v1502, %v1488
    %vm1505 = vcmask 195584
    %v1506 = vsel %vm1505, %v1504, %v1491
    %vm1507 = vcmask 228352
    %v1508 = vsel %vm1507, %v1506, %v1494
    %v1509 = vlaneseq
    %v1510 = vshrl.u32 %v1509, 7
    %v1511 = vsub.s32 0, %v1510
    %v1512 = vrot.slane %v1508, %v1511
    %v1513 = vsub.f32 %v1279, %v1512
    %v1514 = vsub.f32 %v1280, %v1512
    %v1515 = vsub.f32 %v1281, %v1512
    %v1516 = vsub.f32 %v1282, %v1512
    %v1517 = vsub.f32 %v1283, %v1512
    %v1518 = vsub.f32 %v1284, %v1512
    %v1519 = vsub.f32 %v1285, %v1512
    %v1520 = vsub.f32 %v1286, %v1512
    %v1521 = vsub.f32 %v1287, %v1512
    %v1522 = vsub.f32 %v1288, %v1512
    %v1523 = vsub.f32 %v1289, %v1512
    %v1524 = vsub.f32 %v1290, %v1512
    %v1525 = vsub.f32 %v1291, %v1512
    %v1526 = vsub.f32 %v1292, %v1512
    %v1527 = vsub.f32 %v1293, %v1512
    %v1528 = vsub.f32 %v1294, %v1512
    %v1529 = vmul.f32 %v1513, %v1513
    %v1530 = vmul.f32 %v1514, %v1514
    %v1531 = vmul.f32 %v1515, %v1515
    %v1532 = vmul.f32 %v1516, %v1516
    %v1533 = vmul.f32 %v1517, %v1517
    %v1534 = vmul.f32 %v1518, %v1518
    %v1535 = vmul.f32 %v1519, %v1519
    %v1536 = vmul.f32 %v1520, %v1520
    %v1537 = vmul.f32 %v1521, %v1521
    %v1538 = vmul.f32 %v1522, %v1522
    %v1539 = vmul.f32 %v1523, %v1523
    %v1540 = vmul.f32 %v1524, %v1524
    %v1541 = vmul.f32 %v1525, %v1525
    %v1542 = vmul.f32 %v1526, %v1526
    %v1543 = vmul.f32 %v1527, %v1527
    %v1544 = vmul.f32 %v1528, %v1528
    %v1545 = vsel %vm1362, %v1529, 0.0
    %v1546 = vsel %vm1362, %v1530, 0.0
    %v1547 = vadd.f32 %v1545, %v1546
    %v1548 = vsel %vm1362, %v1531, 0.0
    %v1549 = vadd.f32 %v1547, %v1548
    %v1550 = vsel %vm1362, %v1532, 0.0
    %v1551 = vadd.f32 %v1549, %v1550
    %v1552 = vsel %vm1362, %v1533, 0.0
    %v1553 = vadd.f32 %v1551, %v1552
    %v1554 = vsel %vm1362, %v1534, 0.0
    %v1555 = vadd.f32 %v1553, %v1554
    %v1556 = vsel %vm1362, %v1535, 0.0
    %v1557 = vadd.f32 %v1555, %v1556
    %v1558 = vsel %vm1362, %v1536, 0.0
    %v1559 = vadd.f32 %v1557, %v1558
    %v1560 = vsel %vm1362, %v1537, 0.0
    %v1561 = vadd.f32 %v1559, %v1560
    %v1562 = vsel %vm1362, %v1538, 0.0
    %v1563 = vadd.f32 %v1561, %v1562
    %v1564 = vsel %vm1362, %v1539, 0.0
    %v1565 = vadd.f32 %v1563, %v1564
    %v1566 = vsel %vm1362, %v1540, 0.0
    %v1567 = vadd.f32 %v1565, %v1566
    %v1568 = vsel %vm1362, %v1541, 0.0
    %v1569 = vadd.f32 %v1567, %v1568
    %v1570 = vsel %vm1362, %v1542, 0.0
    %v1571 = vadd.f32 %v1569, %v1570
    %v1572 = vsel %vm1362, %v1543, 0.0
    %v1573 = vadd.f32 %v1571, %v1572
    %v1574 = vsel %vm1362, %v1544, 0.0
    %v1575 = vadd.f32 %v1573, %v1574
    %v1576 = vrot.slane %v1575, 4
    %v1577 = vadd.f32 %v1575, %v1576
    %v1578 = vrot.slane %v1577, 2
    %v1579 = vadd.f32 %v1577, %v1578
    %v1580 = vrot.slane %v1579, 1
    %v1581 = vadd.f32 %v1579, %v1580
    %v1583 = vsel %vm1362, %v1581, 0
    %1585 = vmatprep.subr.mxu0 0.0
    %1586 = vmatpush1.msra.mxu0 %v1358
    %1587 = vmatprep.subr.mxu0 0.0
    %1588 = vmatpush1.msra.mxu0 %v1359
    %1589 = vmatprep.subr.mxu0 0.0
    %1590 = vmatpush1.msra.mxu0 %v1360
    %1591 = vmatprep.subr.mxu0 0.0
    %1592 = vmatpush1.msra.mxu0 %v1361
    %1593 = vmatprep.subr.mxu0 0.0
    %1594 = vmatpush1.msra.mxu0 0.0
    %1595 = vmatprep.subr.mxu0 0.0
    %1596 = vmatpush1.msra.mxu0 0.0
    %1597 = vmatprep.subr.mxu0 0.0
    %1598 = vmatpush1.msra.mxu0 0.0
    %1599 = vmatprep.subr.mxu0 0.0
    %1600 = vmatpush1.msra.mxu0 0.0
    %1601 = vmatprep.subr.mxu0 0.0
    %1602 = vmatpush1.msra.mxu0 0.0
    %1603 = vmatprep.subr.mxu0 0.0
    %1604 = vmatpush1.msra.mxu0 0.0
    %1605 = vmatprep.subr.mxu0 0.0
    %1606 = vmatpush1.msra.mxu0 0.0
    %1607 = vmatprep.subr.mxu0 0.0
    %1608 = vmatpush1.msra.mxu0 0.0
    %1609 = vmatprep.subr.mxu0 0.0
    %1610 = vmatpush1.msra.mxu0 0.0
    %1611 = vmatprep.subr.mxu0 0.0
    %1612 = vmatpush1.msra.mxu0 0.0
    %1613 = vmatprep.subr.mxu0 0.0
    %1614 = vmatpush1.msra.mxu0 0.0
    %1615 = vmatprep.subr.mxu0 0.0
    %1616 = vmatpush1.msra.mxu0 0.0
    %1617 = vmatprep.subr.mxu0 0.0
    %1618 = vmatpush1.msra.mxu0 0.0
    %1619 = vmatprep.subr.mxu0 0.0
    %1620 = vmatpush1.msra.mxu0 0.0
    %1621 = vmatprep.subr.mxu0 0.0
    %1622 = vmatpush1.msra.mxu0 0.0
    %1623 = vmatprep.subr.mxu0 0.0
    %1624 = vmatpush1.msra.mxu0 0.0
    %1625 = vmatprep.subr.mxu0 0.0
    %1626 = vmatpush1.msra.mxu0 0.0
    %1627 = vmatprep.subr.mxu0 0.0
    %1628 = vmatpush1.msra.mxu0 0.0
    %1629 = vmatprep.subr.mxu0 0.0
    %1630 = vmatpush1.msra.mxu0 0.0
    %1631 = vmatprep.subr.mxu0 0.0
    %1632 = vmatpush1.msra.mxu0 0.0
    %1633 = vmatprep.subr.mxu0 0.0
    %1634 = vmatpush1.msra.mxu0 0.0
    %1635 = vmatprep.subr.mxu0 0.0
    %1636 = vmatpush1.msra.mxu0 0.0
    %1637 = vmatprep.subr.mxu0 0.0
    %1638 = vmatpush1.msra.mxu0 0.0
    %1639 = vmatprep.subr.mxu0 0.0
    %1640 = vmatpush1.msra.mxu0 0.0
    %1641 = vmatprep.subr.mxu0 0.0
    %1642 = vmatpush1.msra.mxu0 0.0
    %1643 = vmatprep.subr.mxu0 0.0
    %1644 = vmatpush1.msra.mxu0 0.0
    %1645 = vmatprep.subr.mxu0 0.0
    %1646 = vmatpush1.msra.mxu0 0.0
    %1647 = vmatprep.subr.mxu0 0.0
    %1648 = vmatpush1.msra.mxu0 0.0
    %1649 = vmatprep.mubr.f32.mxu0 0.0
    %1650 = vmatmul.mubr.f32.gmra.mrb[0].mxu0 %v1583
    %v1651 = vpop.f32.mrb[0].mxu0
    %v1652 = vadd.f32 0.0, %v1651
    %v1653 = vpop.f32.mrb[0].mxu0
    %1654 = vdwg.mxu0
    %v1655 = vmul.f32 %v1652, 0.0009765625
    %v1656 = vld [vmem:[%s7] sm:$0x1]
    %v1657 = vadd.f32 %v1655, 1e-05
    %v1658 = vrsqrt.pop %v1657
    %v1659 = vmul.f32 %v1656, %v1658
    %v1661 = vlaneseq
    %v1662 = vshrl.u32 %v1661, 7
    %v1663 = vsub.s32 0, %v1662
    %v1664 = vrot.slane %v1659, %v1663
    %1665 = vrot.lane.b32.xlu0 %v1664, 4
    %v1666 = vpop.permute.xlu0 %1665
    %1668 = vrot.lane.b32.xlu0 %v1664, 8
    %v1669 = vpop.permute.xlu0 %1668
    %1671 = vrot.lane.b32.xlu0 %v1664, 12
    %v1672 = vpop.permute.xlu0 %1671
    %1674 = vrot.lane.b32.xlu0 %v1664, 16
    %v1675 = vpop.permute.xlu0 %1674
    %1677 = vrot.lane.b32.xlu0 %v1664, 20
    %v1678 = vpop.permute.xlu0 %1677
    %1680 = vrot.lane.b32.xlu0 %v1664, 24
    %v1681 = vpop.permute.xlu0 %1680
    %1683 = vrot.lane.b32.xlu0 %v1664, 28
    %v1684 = vpop.permute.xlu0 %1683
    %v1686 = vsel %vm1496, %v1659, %v1666
    %v1687 = vsel %vm1498, %v1686, %v1669
    %v1688 = vsel %vm1500, %v1687, %v1672
    %v1689 = vsel %vm698, %v1688, %v1675
    %v1690 = vsel %vm1503, %v1689, %v1678
    %v1691 = vsel %vm1505, %v1690, %v1681
    %v1692 = vsel %vm1507, %v1691, %v1684
    %v1693 = vlaneseq
    %v1694 = vshrl.u32 %v1693, 7
    %v1695 = vsub.s32 0, %v1694
    %v1696 = vrot.slane %v1692, %v1695
    %v1697 = vmul.f32 %v1513, %v1696
    %v1698 = vmul.f32 %v1514, %v1696
    %v1699 = vmul.f32 %v1515, %v1696
    %v1700 = vmul.f32 %v1516, %v1696
    %v1701 = vmul.f32 %v1517, %v1696
    %v1702 = vmul.f32 %v1518, %v1696
    %v1703 = vmul.f32 %v1519, %v1696
    %v1704 = vmul.f32 %v1520, %v1696
    %v1705 = vmul.f32 %v1521, %v1696
    %v1706 = vmul.f32 %v1522, %v1696
    %v1707 = vmul.f32 %v1523, %v1696
    %v1708 = vmul.f32 %v1524, %v1696
    %v1709 = vmul.f32 %v1525, %v1696
    %v1710 = vmul.f32 %v1526, %v1696
    %v1711 = vmul.f32 %v1527, %v1696
    %v1712 = vmul.f32 %v1528, %v1696
    %v1713 = vld [vmem:[%s9] sm:$0x1]
    %v1715 = vlaneseq
    %v1716 = vshrl.u32 %v1715, 7
    %v1717 = vsub.s32 0, %v1716
    %v1718 = vrot.slane %v1713, %v1717
    %1719 = vrot.lane.b32.xlu0 %v1718, 4
    %v1720 = vpop.permute.xlu0 %1719
    %1722 = vrot.lane.b32.xlu0 %v1718, 8
    %v1723 = vpop.permute.xlu0 %1722
    %1725 = vrot.lane.b32.xlu0 %v1718, 12
    %v1726 = vpop.permute.xlu0 %1725
    %1728 = vrot.lane.b32.xlu0 %v1718, 16
    %v1729 = vpop.permute.xlu0 %1728
    %1731 = vrot.lane.b32.xlu0 %v1718, 20
    %v1732 = vpop.permute.xlu0 %1731
    %1734 = vrot.lane.b32.xlu0 %v1718, 24
    %v1735 = vpop.permute.xlu0 %1734
    %1737 = vrot.lane.b32.xlu0 %v1718, 28
    %v1738 = vpop.permute.xlu0 %1737
    %v1740 = vsel %vm1496, %v1713, %v1720
    %v1741 = vsel %vm1498, %v1740, %v1723
    %v1742 = vsel %vm1500, %v1741, %v1726
    %v1743 = vsel %vm698, %v1742, %v1729
    %v1744 = vsel %vm1503, %v1743, %v1732
    %v1745 = vsel %vm1505, %v1744, %v1735
    %v1746 = vsel %vm1507, %v1745, %v1738
    %v1747 = vlaneseq
    %v1748 = vshrl.u32 %v1747, 7
    %v1749 = vsub.s32 0, %v1748
    %v1750 = vrot.slane %v1746, %v1749
    %v1751 = vadd.f32 %v1697, %v1750
    %v1752 = vadd.f32 %v1698, %v1750
    %v1753 = vadd.f32 %v1699, %v1750
    %v1754 = vadd.f32 %v1700, %v1750
    %v1755 = vadd.f32 %v1701, %v1750
    %v1756 = vadd.f32 %v1702, %v1750
    %v1757 = vadd.f32 %v1703, %v1750
    %v1758 = vadd.f32 %v1704, %v1750
    %v1759 = vadd.f32 %v1705, %v1750
    %v1760 = vadd.f32 %v1706, %v1750
    %v1761 = vadd.f32 %v1707, %v1750
    %v1762 = vadd.f32 %v1708, %v1750
    %v1763 = vadd.f32 %v1709, %v1750
    %v1764 = vadd.f32 %v1710, %v1750
    %v1765 = vadd.f32 %v1711, %v1750
    %v1766 = vadd.f32 %v1712, %v1750
    %v1767 = vmax.f32 %v1751, 0.0
    %v1768 = vmax.f32 %v1752, 0.0
    %v1769 = vmax.f32 %v1753, 0.0
    %v1770 = vmax.f32 %v1754, 0.0
    %v1771 = vmax.f32 %v1755, 0.0
    %v1772 = vmax.f32 %v1756, 0.0
    %v1773 = vmax.f32 %v1757, 0.0
    %v1774 = vmax.f32 %v1758, 0.0
    %v1775 = vmax.f32 %v1759, 0.0
    %v1776 = vmax.f32 %v1760, 0.0
    %v1777 = vmax.f32 %v1761, 0.0
    %v1778 = vmax.f32 %v1762, 0.0
    %v1779 = vmax.f32 %v1763, 0.0
    %v1780 = vmax.f32 %v1764, 0.0
    %v1781 = vmax.f32 %v1765, 0.0
    %v1782 = vmax.f32 %v1766, 0.0
    %v1783 = vpack.c.bf16 %v1768, %v1767
    %v1784 = vpack.c.bf16 %v1770, %v1769
    %v1785 = vpack.c.bf16 %v1772, %v1771
    %v1786 = vpack.c.bf16 %v1774, %v1773
    %v1787 = vpack.c.bf16 %v1776, %v1775
    %v1788 = vpack.c.bf16 %v1778, %v1777
    %v1789 = vpack.c.bf16 %v1780, %v1779
    %v1790 = vpack.c.bf16 %v1782, %v1781
    %v1791 = vld [vmem:[%s11] sm:$0xf]
    %v1792 = vld [vmem:[%s11 + $0x4] sm:$0xf]
    %v1793 = vld [vmem:[%s11 + $0x8] sm:$0xf]
    %v1794 = vld [vmem:[%s11 + $0xc] sm:$0xf]
    %v1795 = vld [vmem:[%s11 + $0x10] sm:$0xf]
    %v1796 = vld [vmem:[%s11 + $0x14] sm:$0xf]
    %v1797 = vld [vmem:[%s11 + $0x18] sm:$0xf]
    %v1798 = vld [vmem:[%s11 + $0x1c] sm:$0xf]
    %v1807 = vunpack.c.l.b16 %v1791
    %v1808 = vunpack.c.l.b16 %v1792
    %v1809 = vunpack.c.l.b16 %v1793
    %v1810 = vunpack.c.l.b16 %v1794
    %v1811 = vunpack.c.l.b16 %v1795
    %v1812 = vunpack.c.l.b16 %v1796
    %v1813 = vunpack.c.l.b16 %v1797
    %v1814 = vunpack.c.l.b16 %v1798
    %v1815 = vpack.c.b16 %v1808, %v1807
    %v1816 = vpack.c.b16 %v1810, %v1809
    %v1817 = vpack.c.b16 %v1812, %v1811
    %v1818 = vpack.c.b16 %v1814, %v1813
    %1823 = vmatprep.subr.bf16.mxu0 0
    %1824 = vmatpush1.bf16.msra.mxu0 %v1783
    %1825 = vmatprep.subr.bf16.mxu0 0
    %1826 = vmatpush1.bf16.msra.mxu0 %v1784
    %1827 = vmatprep.subr.bf16.mxu0 0
    %1828 = vmatpush1.bf16.msra.mxu0 %v1785
    %1829 = vmatprep.subr.bf16.mxu0 0
    %1830 = vmatpush1.bf16.msra.mxu0 %v1786
    %1831 = vmatprep.subr.bf16.mxu0 0
    %1832 = vmatpush1.bf16.msra.mxu0 %v1787
    %1833 = vmatprep.subr.bf16.mxu0 0
    %1834 = vmatpush1.bf16.msra.mxu0 %v1788
    %1835 = vmatprep.subr.bf16.mxu0 0
    %1836 = vmatpush1.bf16.msra.mxu0 %v1789
    %1837 = vmatprep.subr.bf16.mxu0 0
    %1838 = vmatpush1.bf16.msra.mxu0 %v1790
    %1839 = vmatprep.subr.bf16.mxu0 0
    %1840 = vmatpush1.bf16.msra.mxu0 0
    %1841 = vmatprep.subr.bf16.mxu0 0
    %1842 = vmatpush1.bf16.msra.mxu0 0
    %1843 = vmatprep.subr.bf16.mxu0 0
    %1844 = vmatpush1.bf16.msra.mxu0 0
    %1845 = vmatprep.subr.bf16.mxu0 0
    %1846 = vmatpush1.bf16.msra.mxu0 0
    %1847 = vmatprep.subr.bf16.mxu0 0
    %1848 = vmatpush1.bf16.msra.mxu0 0
    %1849 = vmatprep.subr.bf16.mxu0 0
    %1850 = vmatpush1.bf16.msra.mxu0 0
    %1851 = vmatprep.subr.bf16.mxu0 0
    %1852 = vmatpush1.bf16.msra.mxu0 0
    %1853 = vmatprep.subr.bf16.mxu0 0
    %1854 = vmatpush1.bf16.msra.mxu0 0
    %1855 = vmatprep.mubr.bf16.mxu0 0
    %1856 = vmatmul.mubr.bf16.gmra.mrb[0].mxu0 %v1815
    %v1857 = vpop.f32.mrb[0].mxu0
    %v1858 = vadd.f32 0.0, %v1857
    %v1859 = vpop.f32.mrb[0].mxu0
    %v1860 = vpop.f32.mrb[0].mxu0
    %v1861 = vadd.f32 0.0, %v1860
    %v1862 = vpop.f32.mrb[0].mxu0
    %1863 = vmatprep.mubr.bf16.mxu0 0
    %1864 = vmatmul.mubr.bf16.gmra.mrb[0].mxu0 %v1816
    %v1865 = vpop.f32.mrb[0].mxu0
    %v1866 = vadd.f32 0.0, %v1865
    %v1867 = vpop.f32.mrb[0].mxu0
    %v1868 = vpop.f32.mrb[0].mxu0
    %v1869 = vadd.f32 0.0, %v1868
    %v1870 = vpop.f32.mrb[0].mxu0
    %1871 = vmatprep.mubr.bf16.mxu0 0
    %1872 = vmatmul.mubr.bf16.gmra.mrb[0].mxu0 %v1817
    %v1873 = vpop.f32.mrb[0].mxu0
    %v1874 = vadd.f32 0.0, %v1873
    %v1875 = vpop.f32.mrb[0].mxu0
    %v1876 = vpop.f32.mrb[0].mxu0
    %v1877 = vadd.f32 0.0, %v1876
    %v1878 = vpop.f32.mrb[0].mxu0
    %1879 = vmatprep.mubr.bf16.mxu0 0
    %1880 = vmatmul.mubr.bf16.gmra.mrb[0].mxu0 %v1818
    %v1881 = vpop.f32.mrb[0].mxu0
    %v1882 = vadd.f32 0.0, %v1881
    %v1883 = vpop.f32.mrb[0].mxu0
    %v1884 = vpop.f32.mrb[0].mxu0
    %v1885 = vadd.f32 0.0, %v1884
    %v1886 = vpop.f32.mrb[0].mxu0
    %1887 = vdwg.mxu0
    %v1888 = vpack.c.bf16 %v1861, %v1858
    %v1889 = vpack.c.bf16 %v1869, %v1866
    %v1890 = vpack.c.bf16 %v1877, %v1874
    %v1891 = vpack.c.bf16 %v1885, %v1882
    %v1892 = vld [vmem:[%s13] sm:$0xf]
    %v1893 = vld [vmem:[%s13 + $0x4] sm:$0xf]
    %v1894 = vld [vmem:[%s13 + $0x8] sm:$0xf]
    %v1895 = vld [vmem:[%s13 + $0xc] sm:$0xf]
    %s1896 = scalar_lea.vmem %s11, 32
    %v1897 = vld [vmem:[%s1896] sm:$0xf]
    %v1898 = vld [vmem:[%s1896 + $0x4] sm:$0xf]
    %v1899 = vld [vmem:[%s1896 + $0x8] sm:$0xf]
    %v1900 = vld [vmem:[%s1896 + $0xc] sm:$0xf]
    %v1901 = vld [vmem:[%s1896 + $0x10] sm:$0xf]
    %v1902 = vld [vmem:[%s1896 + $0x14] sm:$0xf]
    %v1903 = vld [vmem:[%s1896 + $0x18] sm:$0xf]
    %v1904 = vld [vmem:[%s1896 + $0x1c] sm:$0xf]
    %v1913 = vunpack.c.l.b16 %v1897
    %v1914 = vunpack.c.l.b16 %v1898
    %v1915 = vunpack.c.l.b16 %v1899
    %v1916 = vunpack.c.l.b16 %v1900
    %v1917 = vunpack.c.l.b16 %v1901
    %v1918 = vunpack.c.l.b16 %v1902
    %v1919 = vunpack.c.l.b16 %v1903
    %v1920 = vunpack.c.l.b16 %v1904
    %v1921 = vpack.c.b16 %v1914, %v1913
    %v1922 = vpack.c.b16 %v1916, %v1915
    %v1923 = vpack.c.b16 %v1918, %v1917
    %v1924 = vpack.c.b16 %v1920, %v1919
    %1929 = vmatprep.subr.bf16.mxu0 0
    %1930 = vmatpush1.bf16.msra.mxu0 %v1783
    %1931 = vmatprep.subr.bf16.mxu0 0
    %1932 = vmatpush1.bf16.msra.mxu0 %v1784
    %1933 = vmatprep.subr.bf16.mxu0 0
    %1934 = vmatpush1.bf16.msra.mxu0 %v1785
    %1935 = vmatprep.subr.bf16.mxu0 0
    %1936 = vmatpush1.bf16.msra.mxu0 %v1786
    %1937 = vmatprep.subr.bf16.mxu0 0
    %1938 = vmatpush1.bf16.msra.mxu0 %v1787
    %1939 = vmatprep.subr.bf16.mxu0 0
    %1940 = vmatpush1.bf16.msra.mxu0 %v1788
    %1941 = vmatprep.subr.bf16.mxu0 0
    %1942 = vmatpush1.bf16.msra.mxu0 %v1789
    %1943 = vmatprep.subr.bf16.mxu0 0
    %1944 = vmatpush1.bf16.msra.mxu0 %v1790
    %1945 = vmatprep.subr.bf16.mxu0 0
    %1946 = vmatpush1.bf16.msra.mxu0 0
    %1947 = vmatprep.subr.bf16.mxu0 0
    %1948 = vmatpush1.bf16.msra.mxu0 0
    %1949 = vmatprep.subr.bf16.mxu0 0
    %1950 = vmatpush1.bf16.msra.mxu0 0
    %1951 = vmatprep.subr.bf16.mxu0 0
    %1952 = vmatpush1.bf16.msra.mxu0 0
    %1953 = vmatprep.subr.bf16.mxu0 0
    %1954 = vmatpush1.bf16.msra.mxu0 0
    %1955 = vmatprep.subr.bf16.mxu0 0
    %1956 = vmatpush1.bf16.msra.mxu0 0
    %1957 = vmatprep.subr.bf16.mxu0 0
    %1958 = vmatpush1.bf16.msra.mxu0 0
    %1959 = vmatprep.subr.bf16.mxu0 0
    %1960 = vmatpush1.bf16.msra.mxu0 0
    %1961 = vmatprep.mubr.bf16.mxu0 0
    %1962 = vmatmul.mubr.bf16.gmra.mrb[0].mxu0 %v1921
    %v1963 = vpop.f32.mrb[0].mxu0
    %v1964 = vadd.f32 0.0, %v1963
    %v1965 = vpop.f32.mrb[0].mxu0
    %v1966 = vpop.f32.mrb[0].mxu0
    %v1967 = vadd.f32 0.0, %v1966
    %v1968 = vpop.f32.mrb[0].mxu0
    %1969 = vmatprep.mubr.bf16.mxu0 0
    %1970 = vmatmul.mubr.bf16.gmra.mrb[0].mxu0 %v1922
    %v1971 = vpop.f32.mrb[0].mxu0
    %v1972 = vadd.f32 0.0, %v1971
    %v1973 = vpop.f32.mrb[0].mxu0
    %v1974 = vpop.f32.mrb[0].mxu0
    %v1975 = vadd.f32 0.0, %v1974
    %v1976 = vpop.f32.mrb[0].mxu0
    %1977 = vmatprep.mubr.bf16.mxu0 0
    %1978 = vmatmul.mubr.bf16.gmra.mrb[0].mxu0 %v1923
    %v1979 = vpop.f32.mrb[0].mxu0
    %v1980 = vadd.f32 0.0, %v1979
    %v1981 = vpop.f32.mrb[0].mxu0
    %v1982 = vpop.f32.mrb[0].mxu0
    %v1983 = vadd.f32 0.0, %v1982
    %v1984 = vpop.f32.mrb[0].mxu0
    %1985 = vmatprep.mubr.bf16.mxu0 0
    %1986 = vmatmul.mubr.bf16.gmra.mrb[0].mxu0 %v1924
    %v1987 = vpop.f32.mrb[0].mxu0
    %v1988 = vadd.f32 0.0, %v1987
    %v1989 = vpop.f32.mrb[0].mxu0
    %v1990 = vpop.f32.mrb[0].mxu0
    %v1991 = vadd.f32 0.0, %v1990
    %v1992 = vpop.f32.mrb[0].mxu0
    %1993 = vdwg.mxu0
    %v1994 = vpack.c.bf16 %v1967, %v1964
    %v1995 = vpack.c.bf16 %v1975, %v1972
    %v1996 = vpack.c.bf16 %v1983, %v1980
    %v1997 = vpack.c.bf16 %v1991, %v1988
    %s1998 = scalar_lea.vmem %s13, 16
    %v1999 = vld [vmem:[%s1998] sm:$0xf]
    %v2000 = vld [vmem:[%s1998 + $0x4] sm:$0xf]
    %v2001 = vld [vmem:[%s1998 + $0x8] sm:$0xf]
    %v2002 = vld [vmem:[%s1998 + $0xc] sm:$0xf]
    %v2007 = vunpack.c.l.b16 %v1999
    %v2008 = vunpack.c.l.b16 %v2000
    %v2009 = vunpack.c.l.b16 %v2001
    %v2010 = vunpack.c.l.b16 %v2002
    %v2011 = vpack.c.b16 %v2008, %v2007
    %v2012 = vpack.c.b16 %v2010, %v2009
    %v2016 = vsel %vm1362, %v1994, 0
    %v2019 = vsel %vm1362, %v1995, 0
    %v2022 = vsel %vm1362, %v1996, 0
    %v2025 = vsel %vm1362, %v1997, 0
    %2027 = vmatprep.subr.bf16.mxu0 0
    %2028 = vmatpush1.bf16.msra.mxu0 %v2011
    %2029 = vmatprep.subr.bf16.mxu0 0
    %2030 = vmatpush1.bf16.msra.mxu0 %v2012
    %2031 = vmatprep.subr.bf16.mxu0 0
    %2032 = vmatpush1.bf16.msra.mxu0 0
    %2033 = vmatprep.subr.bf16.mxu0 0
    %2034 = vmatpush1.bf16.msra.mxu0 0
    %2035 = vmatprep.subr.bf16.mxu0 0
    %2036 = vmatpush1.bf16.msra.mxu0 0
    %2037 = vmatprep.subr.bf16.mxu0 0
    %2038 = vmatpush1.bf16.msra.mxu0 0
    %2039 = vmatprep.subr.bf16.mxu0 0
    %2040 = vmatpush1.bf16.msra.mxu0 0
    %2041 = vmatprep.subr.bf16.mxu0 0
    %2042 = vmatpush1.bf16.msra.mxu0 0
    %2043 = vmatprep.subr.bf16.mxu0 0
    %2044 = vmatpush1.bf16.msra.mxu0 0
    %2045 = vmatprep.subr.bf16.mxu0 0
    %2046 = vmatpush1.bf16.msra.mxu0 0
    %2047 = vmatprep.subr.bf16.mxu0 0
    %2048 = vmatpush1.bf16.msra.mxu0 0
    %2049 = vmatprep.subr.bf16.mxu0 0
    %2050 = vmatpush1.bf16.msra.mxu0 0
    %2051 = vmatprep.subr.bf16.mxu0 0
    %2052 = vmatpush1.bf16.msra.mxu0 0
    %2053 = vmatprep.subr.bf16.mxu0 0
    %2054 = vmatpush1.bf16.msra.mxu0 0
    %2055 = vmatprep.subr.bf16.mxu0 0
    %2056 = vmatpush1.bf16.msra.mxu0 0
    %2057 = vmatprep.subr.bf16.mxu0 0
    %2058 = vmatpush1.bf16.msra.mxu0 0
    %2059 = vmatprep.mubr.bf16.mxu0 0
    %2060 = vmatmul.mubr.bf16.gmra.mrb[0].mxu0 %v2016
    %v2061 = vpop.f32.mrb[0].mxu0
    %v2062 = vadd.f32 0.0, %v2061
    %v2063 = vpop.f32.mrb[0].mxu0
    %v2064 = vpop.f32.mrb[0].mxu0
    %v2065 = vadd.f32 0.0, %v2064
    %v2066 = vpop.f32.mrb[0].mxu0
    %2067 = vmatprep.mubr.bf16.mxu0 0
    %2068 = vmatmul.mubr.bf16.gmra.mrb[0].mxu0 %v2019
    %v2069 = vpop.f32.mrb[0].mxu0
    %v2070 = vadd.f32 0.0, %v2069
    %v2071 = vpop.f32.mrb[0].mxu0
    %v2072 = vpop.f32.mrb[0].mxu0
    %v2073 = vadd.f32 0.0, %v2072
    %v2074 = vpop.f32.mrb[0].mxu0
    %2075 = vmatprep.mubr.bf16.mxu0 0
    %2076 = vmatmul.mubr.bf16.gmra.mrb[0].mxu0 %v2022
    %v2077 = vpop.f32.mrb[0].mxu0
    %v2078 = vadd.f32 0.0, %v2077
    %v2079 = vpop.f32.mrb[0].mxu0
    %v2080 = vpop.f32.mrb[0].mxu0
    %v2081 = vadd.f32 0.0, %v2080
    %v2082 = vpop.f32.mrb[0].mxu0
    %2083 = vmatprep.mubr.bf16.mxu0 0
    %2084 = vmatmul.mubr.bf16.gmra.mrb[0].mxu0 %v2025
    %v2085 = vpop.f32.mrb[0].mxu0
    %v2086 = vadd.f32 0.0, %v2085
    %v2087 = vpop.f32.mrb[0].mxu0
    %v2088 = vpop.f32.mrb[0].mxu0
    %v2089 = vadd.f32 0.0, %v2088
    %v2090 = vpop.f32.mrb[0].mxu0
    %2091 = vdwg.mxu0
    %v2096 = vunpack.c.l.b16 %v1892
    %v2097 = vunpack.c.l.b16 %v1893
    %v2098 = vunpack.c.l.b16 %v1894
    %v2099 = vunpack.c.l.b16 %v1895
    %v2100 = vpack.c.b16 %v2097, %v2096
    %v2101 = vpack.c.b16 %v2099, %v2098
    %v2105 = vsel %vm1362, %v1888, 0
    %v2108 = vsel %vm1362, %v1889, 0
    %v2111 = vsel %vm1362, %v1890, 0
    %v2114 = vsel %vm1362, %v1891, 0
    %2116 = vmatprep.subr.bf16.mxu0 0
    %2117 = vmatpush1.bf16.msra.mxu0 %v2100
    %2118 = vmatprep.subr.bf16.mxu0 0
    %2119 = vmatpush1.bf16.msra.mxu0 %v2101
    %2120 = vmatprep.subr.bf16.mxu0 0
    %2121 = vmatpush1.bf16.msra.mxu0 0
    %2122 = vmatprep.subr.bf16.mxu0 0
    %2123 = vmatpush1.bf16.msra.mxu0 0
    %2124 = vmatprep.subr.bf16.mxu0 0
    %2125 = vmatpush1.bf16.msra.mxu0 0
    %2126 = vmatprep.subr.bf16.mxu0 0
    %2127 = vmatpush1.bf16.msra.mxu0 0
    %2128 = vmatprep.subr.bf16.mxu0 0
    %2129 = vmatpush1.bf16.msra.mxu0 0
    %2130 = vmatprep.subr.bf16.mxu0 0
    %2131 = vmatpush1.bf16.msra.mxu0 0
    %2132 = vmatprep.subr.bf16.mxu0 0
    %2133 = vmatpush1.bf16.msra.mxu0 0
    %2134 = vmatprep.subr.bf16.mxu0 0
    %2135 = vmatpush1.bf16.msra.mxu0 0
    %2136 = vmatprep.subr.bf16.mxu0 0
    %2137 = vmatpush1.bf16.msra.mxu0 0
    %2138 = vmatprep.subr.bf16.mxu0 0
    %2139 = vmatpush1.bf16.msra.mxu0 0
    %2140 = vmatprep.subr.bf16.mxu0 0
    %2141 = vmatpush1.bf16.msra.mxu0 0
    %2142 = vmatprep.subr.bf16.mxu0 0
    %2143 = vmatpush1.bf16.msra.mxu0 0
    %2144 = vmatprep.subr.bf16.mxu0 0
    %2145 = vmatpush1.bf16.msra.mxu0 0
    %2146 = vmatprep.subr.bf16.mxu0 0
    %2147 = vmatpush1.bf16.msra.mxu0 0
    %2148 = vmatprep.mubr.bf16.mxu0 0
    %2149 = vmatmul.mubr.bf16.gmra.mrb[0].mxu0 %v2105
    %v2150 = vpop.f32.mrb[0].mxu0
    %v2151 = vadd.f32 %v2062, %v2150
    %v2152 = vpop.f32.mrb[0].mxu0
    %v2153 = vpop.f32.mrb[0].mxu0
    %v2154 = vadd.f32 %v2065, %v2153
    %v2155 = vpop.f32.mrb[0].mxu0
    %2156 = vmatprep.mubr.bf16.mxu0 0
    %2157 = vmatmul.mubr.bf16.gmra.mrb[0].mxu0 %v2108
    %v2158 = vpop.f32.mrb[0].mxu0
    %v2159 = vadd.f32 %v2070, %v2158
    %v2160 = vpop.f32.mrb[0].mxu0
    %v2161 = vpop.f32.mrb[0].mxu0
    %v2162 = vadd.f32 %v2073, %v2161
    %v2163 = vpop.f32.mrb[0].mxu0
    %2164 = vmatprep.mubr.bf16.mxu0 0
    %2165 = vmatmul.mubr.bf16.gmra.mrb[0].mxu0 %v2111
    %v2166 = vpop.f32.mrb[0].mxu0
    %v2167 = vadd.f32 %v2078, %v2166
    %v2168 = vpop.f32.mrb[0].mxu0
    %v2169 = vpop.f32.mrb[0].mxu0
    %v2170 = vadd.f32 %v2081, %v2169
    %v2171 = vpop.f32.mrb[0].mxu0
    %2172 = vmatprep.mubr.bf16.mxu0 0
    %2173 = vmatmul.mubr.bf16.gmra.mrb[0].mxu0 %v2114
    %v2174 = vpop.f32.mrb[0].mxu0
    %v2175 = vadd.f32 %v2086, %v2174
    %v2176 = vpop.f32.mrb[0].mxu0
    %v2177 = vpop.f32.mrb[0].mxu0
    %v2178 = vadd.f32 %v2089, %v2177
    %v2179 = vpop.f32.mrb[0].mxu0
    %2180 = vdwg.mxu0
    %s2181 = scalar_lea.vmem %s11, 64
    %v2182 = vld [vmem:[%s2181] sm:$0xf]
    %v2183 = vld [vmem:[%s2181 + $0x4] sm:$0xf]
    %v2184 = vld [vmem:[%s2181 + $0x8] sm:$0xf]
    %v2185 = vld [vmem:[%s2181 + $0xc] sm:$0xf]
    %v2186 = vld [vmem:[%s2181 + $0x10] sm:$0xf]
    %v2187 = vld [vmem:[%s2181 + $0x14] sm:$0xf]
    %v2188 = vld [vmem:[%s2181 + $0x18] sm:$0xf]
    %v2189 = vld [vmem:[%s2181 + $0x1c] sm:$0xf]
    %v2198 = vunpack.c.l.b16 %v2182
    %v2199 = vunpack.c.l.b16 %v2183
    %v2200 = vunpack.c.l.b16 %v2184
    %v2201 = vunpack.c.l.b16 %v2185
    %v2202 = vunpack.c.l.b16 %v2186
    %v2203 = vunpack.c.l.b16 %v2187
    %v2204 = vunpack.c.l.b16 %v2188
    %v2205 = vunpack.c.l.b16 %v2189
    %v2206 = vpack.c.b16 %v2199, %v2198
    %v2207 = vpack.c.b16 %v2201, %v2200
    %v2208 = vpack.c.b16 %v2203, %v2202
    %v2209 = vpack.c.b16 %v2205, %v2204
    %2214 = vmatprep.subr.bf16.mxu0 0
    %2215 = vmatpush1.bf16.msra.mxu0 %v1783
    %2216 = vmatprep.subr.bf16.mxu0 0
    %2217 = vmatpush1.bf16.msra.mxu0 %v1784
    %2218 = vmatprep.subr.bf16.mxu0 0
    %2219 = vmatpush1.bf16.msra.mxu0 %v1785
    %2220 = vmatprep.subr.bf16.mxu0 0
    %2221 = vmatpush1.bf16.msra.mxu0 %v1786
    %2222 = vmatprep.subr.bf16.mxu0 0
    %2223 = vmatpush1.bf16.msra.mxu0 %v1787
    %2224 = vmatprep.subr.bf16.mxu0 0
    %2225 = vmatpush1.bf16.msra.mxu0 %v1788
    %2226 = vmatprep.subr.bf16.mxu0 0
    %2227 = vmatpush1.bf16.msra.mxu0 %v1789
    %2228 = vmatprep.subr.bf16.mxu0 0
    %2229 = vmatpush1.bf16.msra.mxu0 %v1790
    %2230 = vmatprep.subr.bf16.mxu0 0
    %2231 = vmatpush1.bf16.msra.mxu0 0
    %2232 = vmatprep.subr.bf16.mxu0 0
    %2233 = vmatpush1.bf16.msra.mxu0 0
    %2234 = vmatprep.subr.bf16.mxu0 0
    %2235 = vmatpush1.bf16.msra.mxu0 0
    %2236 = vmatprep.subr.bf16.mxu0 0
    %2237 = vmatpush1.bf16.msra.mxu0 0
    %2238 = vmatprep.subr.bf16.mxu0 0
    %2239 = vmatpush1.bf16.msra.mxu0 0
    %2240 = vmatprep.subr.bf16.mxu0 0
    %2241 = vmatpush1.bf16.msra.mxu0 0
    %2242 = vmatprep.subr.bf16.mxu0 0
    %2243 = vmatpush1.bf16.msra.mxu0 0
    %2244 = vmatprep.subr.bf16.mxu0 0
    %2245 = vmatpush1.bf16.msra.mxu0 0
    %2246 = vmatprep.mubr.bf16.mxu0 0
    %2247 = vmatmul.mubr.bf16.gmra.mrb[0].mxu0 %v2206
    %v2248 = vpop.f32.mrb[0].mxu0
    %v2249 = vadd.f32 0.0, %v2248
    %v2250 = vpop.f32.mrb[0].mxu0
    %v2251 = vpop.f32.mrb[0].mxu0
    %v2252 = vadd.f32 0.0, %v2251
    %v2253 = vpop.f32.mrb[0].mxu0
    %2254 = vmatprep.mubr.bf16.mxu0 0
    %2255 = vmatmul.mubr.bf16.gmra.mrb[0].mxu0 %v2207
    %v2256 = vpop.f32.mrb[0].mxu0
    %v2257 = vadd.f32 0.0, %v2256
    %v2258 = vpop.f32.mrb[0].mxu0
    %v2259 = vpop.f32.mrb[0].mxu0
    %v2260 = vadd.f32 0.0, %v2259
    %v2261 = vpop.f32.mrb[0].mxu0
    %2262 = vmatprep.mubr.bf16.mxu0 0
    %2263 = vmatmul.mubr.bf16.gmra.mrb[0].mxu0 %v2208
    %v2264 = vpop.f32.mrb[0].mxu0
    %v2265 = vadd.f32 0.0, %v2264
    %v2266 = vpop.f32.mrb[0].mxu0
    %v2267 = vpop.f32.mrb[0].mxu0
    %v2268 = vadd.f32 0.0, %v2267
    %v2269 = vpop.f32.mrb[0].mxu0
    %2270 = vmatprep.mubr.bf16.mxu0 0
    %2271 = vmatmul.mubr.bf16.gmra.mrb[0].mxu0 %v2209
    %v2272 = vpop.f32.mrb[0].mxu0
    %v2273 = vadd.f32 0.0, %v2272
    %v2274 = vpop.f32.mrb[0].mxu0
    %v2275 = vpop.f32.mrb[0].mxu0
    %v2276 = vadd.f32 0.0, %v2275
    %v2277 = vpop.f32.mrb[0].mxu0
    %2278 = vdwg.mxu0
    %v2279 = vpack.c.bf16 %v2252, %v2249
    %v2280 = vpack.c.bf16 %v2260, %v2257
    %v2281 = vpack.c.bf16 %v2268, %v2265
    %v2282 = vpack.c.bf16 %v2276, %v2273
    %s2283 = scalar_lea.vmem %s13, 32
    %v2284 = vld [vmem:[%s2283] sm:$0xf]
    %v2285 = vld [vmem:[%s2283 + $0x4] sm:$0xf]
    %v2286 = vld [vmem:[%s2283 + $0x8] sm:$0xf]
    %v2287 = vld [vmem:[%s2283 + $0xc] sm:$0xf]
    %v2292 = vunpack.c.l.b16 %v2284
    %v2293 = vunpack.c.l.b16 %v2285
    %v2294 = vunpack.c.l.b16 %v2286
    %v2295 = vunpack.c.l.b16 %v2287
    %v2296 = vpack.c.b16 %v2293, %v2292
    %v2297 = vpack.c.b16 %v2295, %v2294
    %v2301 = vsel %vm1362, %v2279, 0
    %v2304 = vsel %vm1362, %v2280, 0
    %v2307 = vsel %vm1362, %v2281, 0
    %v2310 = vsel %vm1362, %v2282, 0
    %2312 = vmatprep.subr.bf16.mxu0 0
    %2313 = vmatpush1.bf16.msra.mxu0 %v2296
    %2314 = vmatprep.subr.bf16.mxu0 0
    %2315 = vmatpush1.bf16.msra.mxu0 %v2297
    %2316 = vmatprep.subr.bf16.mxu0 0
    %2317 = vmatpush1.bf16.msra.mxu0 0
    %2318 = vmatprep.subr.bf16.mxu0 0
    %2319 = vmatpush1.bf16.msra.mxu0 0
    %2320 = vmatprep.subr.bf16.mxu0 0
    %2321 = vmatpush1.bf16.msra.mxu0 0
    %2322 = vmatprep.subr.bf16.mxu0 0
    %2323 = vmatpush1.bf16.msra.mxu0 0
    %2324 = vmatprep.subr.bf16.mxu0 0
    %2325 = vmatpush1.bf16.msra.mxu0 0
    %2326 = vmatprep.subr.bf16.mxu0 0
    %2327 = vmatpush1.bf16.msra.mxu0 0
    %2328 = vmatprep.subr.bf16.mxu0 0
    %2329 = vmatpush1.bf16.msra.mxu0 0
    %2330 = vmatprep.subr.bf16.mxu0 0
    %2331 = vmatpush1.bf16.msra.mxu0 0
    %2332 = vmatprep.subr.bf16.mxu0 0
    %2333 = vmatpush1.bf16.msra.mxu0 0
    %2334 = vmatprep.subr.bf16.mxu0 0
    %2335 = vmatpush1.bf16.msra.mxu0 0
    %2336 = vmatprep.subr.bf16.mxu0 0
    %2337 = vmatpush1.bf16.msra.mxu0 0
    %2338 = vmatprep.subr.bf16.mxu0 0
    %2339 = vmatpush1.bf16.msra.mxu0 0
    %2340 = vmatprep.subr.bf16.mxu0 0
    %2341 = vmatpush1.bf16.msra.mxu0 0
    %2342 = vmatprep.subr.bf16.mxu0 0
    %2343 = vmatpush1.bf16.msra.mxu0 0
    %2344 = vmatprep.mubr.bf16.mxu0 0
    %2345 = vmatmul.mubr.bf16.gmra.mrb[0].mxu0 %v2301
    %v2346 = vpop.f32.mrb[0].mxu0
    %v2347 = vadd.f32 0.0, %v2346
    %v2348 = vpop.f32.mrb[0].mxu0
    %v2349 = vpop.f32.mrb[0].mxu0
    %v2350 = vadd.f32 0.0, %v2349
    %v2351 = vpop.f32.mrb[0].mxu0
    %2352 = vmatprep.mubr.bf16.mxu0 0
    %2353 = vmatmul.mubr.bf16.gmra.mrb[0].mxu0 %v2304
    %v2354 = vpop.f32.mrb[0].mxu0
    %v2355 = vadd.f32 0.0, %v2354
    %v2356 = vpop.f32.mrb[0].mxu0
    %v2357 = vpop.f32.mrb[0].mxu0
    %v2358 = vadd.f32 0.0, %v2357
    %v2359 = vpop.f32.mrb[0].mxu0
    %2360 = vmatprep.mubr.bf16.mxu0 0
    %2361 = vmatmul.mubr.bf16.gmra.mrb[0].mxu0 %v2307
    %v2362 = vpop.f32.mrb[0].mxu0
    %v2363 = vadd.f32 0.0, %v2362
    %v2364 = vpop.f32.mrb[0].mxu0
    %v2365 = vpop.f32.mrb[0].mxu0
    %v2366 = vadd.f32 0.0, %v2365
    %v2367 = vpop.f32.mrb[0].mxu0
    %2368 = vmatprep.mubr.bf16.mxu0 0
    %2369 = vmatmul.mubr.bf16.gmra.mrb[0].mxu0 %v2310
    %v2370 = vpop.f32.mrb[0].mxu0
    %v2371 = vadd.f32 0.0, %v2370
    %v2372 = vpop.f32.mrb[0].mxu0
    %v2373 = vpop.f32.mrb[0].mxu0
    %v2374 = vadd.f32 0.0, %v2373
    %v2375 = vpop.f32.mrb[0].mxu0
    %2376 = vdwg.mxu0
    %v2377 = vadd.f32 %v2151, %v2347
    %v2378 = vadd.f32 %v2154, %v2350
    %v2379 = vadd.f32 %v2159, %v2355
    %v2380 = vadd.f32 %v2162, %v2358
    %v2381 = vadd.f32 %v2167, %v2363
    %v2382 = vadd.f32 %v2170, %v2366
    %v2383 = vadd.f32 %v2175, %v2371
    %v2384 = vadd.f32 %v2178, %v2374
    %v2385 = vsel %vm698, %v2377, 0.0
    %v2386 = vsel %vm698, %v2378, 0.0
    %v2387 = vadd.f32 %v2385, %v2386
    %v2388 = vsel %vm698, %v2379, 0.0
    %v2389 = vadd.f32 %v2387, %v2388
    %v2390 = vsel %vm698, %v2380, 0.0
    %v2391 = vadd.f32 %v2389, %v2390
    %v2392 = vsel %vm698, %v2381, 0.0
    %v2393 = vadd.f32 %v2391, %v2392
    %v2394 = vsel %vm698, %v2382, 0.0
    %v2395 = vadd.f32 %v2393, %v2394
    %v2396 = vsel %vm698, %v2383, 0.0
    %v2397 = vadd.f32 %v2395, %v2396
    %v2398 = vsel %vm698, %v2384, 0.0
    %v2399 = vadd.f32 %v2397, %v2398
    %v2400 = vrot.slane %v2399, 4
    %v2401 = vadd.f32 %v2399, %v2400
    %v2402 = vrot.slane %v2401, 2
    %v2403 = vadd.f32 %v2401, %v2402
    %v2404 = vrot.slane %v2403, 1
    %v2405 = vadd.f32 %v2403, %v2404
    %v2407 = vsel %vm698, %v2405, 0
    %2409 = vmatprep.subr.mxu0 0.0
    %2410 = vmatpush1.msra.mxu0 %v1358
    %2411 = vmatprep.subr.mxu0 0.0
    %2412 = vmatpush1.msra.mxu0 %v1359
    %2413 = vmatprep.subr.mxu0 0.0
    %2414 = vmatpush1.msra.mxu0 0.0
    %2415 = vmatprep.subr.mxu0 0.0
    %2416 = vmatpush1.msra.mxu0 0.0
    %2417 = vmatprep.subr.mxu0 0.0
    %2418 = vmatpush1.msra.mxu0 0.0
    %2419 = vmatprep.subr.mxu0 0.0
    %2420 = vmatpush1.msra.mxu0 0.0
    %2421 = vmatprep.subr.mxu0 0.0
    %2422 = vmatpush1.msra.mxu0 0.0
    %2423 = vmatprep.subr.mxu0 0.0
    %2424 = vmatpush1.msra.mxu0 0.0
    %2425 = vmatprep.subr.mxu0 0.0
    %2426 = vmatpush1.msra.mxu0 0.0
    %2427 = vmatprep.subr.mxu0 0.0
    %2428 = vmatpush1.msra.mxu0 0.0
    %2429 = vmatprep.subr.mxu0 0.0
    %2430 = vmatpush1.msra.mxu0 0.0
    %2431 = vmatprep.subr.mxu0 0.0
    %2432 = vmatpush1.msra.mxu0 0.0
    %2433 = vmatprep.subr.mxu0 0.0
    %2434 = vmatpush1.msra.mxu0 0.0
    %2435 = vmatprep.subr.mxu0 0.0
    %2436 = vmatpush1.msra.mxu0 0.0
    %2437 = vmatprep.subr.mxu0 0.0
    %2438 = vmatpush1.msra.mxu0 0.0
    %2439 = vmatprep.subr.mxu0 0.0
    %2440 = vmatpush1.msra.mxu0 0.0
    %2441 = vmatprep.subr.mxu0 0.0
    %2442 = vmatpush1.msra.mxu0 0.0
    %2443 = vmatprep.subr.mxu0 0.0
    %2444 = vmatpush1.msra.mxu0 0.0
    %2445 = vmatprep.subr.mxu0 0.0
    %2446 = vmatpush1.msra.mxu0 0.0
    %2447 = vmatprep.subr.mxu0 0.0
    %2448 = vmatpush1.msra.mxu0 0.0
    %2449 = vmatprep.subr.mxu0 0.0
    %2450 = vmatpush1.msra.mxu0 0.0
    %2451 = vmatprep.subr.mxu0 0.0
    %2452 = vmatpush1.msra.mxu0 0.0
    %2453 = vmatprep.subr.mxu0 0.0
    %2454 = vmatpush1.msra.mxu0 0.0
    %2455 = vmatprep.subr.mxu0 0.0
    %2456 = vmatpush1.msra.mxu0 0.0
    %2457 = vmatprep.subr.mxu0 0.0
    %2458 = vmatpush1.msra.mxu0 0.0
    %2459 = vmatprep.subr.mxu0 0.0
    %2460 = vmatpush1.msra.mxu0 0.0
    %2461 = vmatprep.subr.mxu0 0.0
    %2462 = vmatpush1.msra.mxu0 0.0
    %2463 = vmatprep.subr.mxu0 0.0
    %2464 = vmatpush1.msra.mxu0 0.0
    %2465 = vmatprep.subr.mxu0 0.0
    %2466 = vmatpush1.msra.mxu0 0.0
    %2467 = vmatprep.subr.mxu0 0.0
    %2468 = vmatpush1.msra.mxu0 0.0
    %2469 = vmatprep.subr.mxu0 0.0
    %2470 = vmatpush1.msra.mxu0 0.0
    %2471 = vmatprep.subr.mxu0 0.0
    %2472 = vmatpush1.msra.mxu0 0.0
    %2473 = vmatprep.mubr.f32.mxu0 0.0
    %2474 = vmatmul.mubr.f32.gmra.mrb[0].mxu0 %v2407
    %v2475 = vpop.f32.mrb[0].mxu0
    %v2476 = vadd.f32 0.0, %v2475
    %v2477 = vpop.f32.mrb[0].mxu0
    %2478 = vdwg.mxu0
    %v2479 = vmul.f32 %v2476, 0.00390625
    %2481 = vrot.lane.b32.xlu0 %v2479, 4
    %v2482 = vpop.permute.xlu0 %2481
    %2484 = vrot.lane.b32.xlu0 %v2479, 8
    %v2485 = vpop.permute.xlu0 %2484
    %2487 = vrot.lane.b32.xlu0 %v2479, 12
    %v2488 = vpop.permute.xlu0 %2487
    %v2490 = vsel %vm1496, %v2479, %v2482
    %v2491 = vsel %vm1498, %v2490, %v2485
    %v2492 = vsel %vm1500, %v2491, %v2488
    %v2493 = vlaneseq
    %v2494 = vshrl.u32 %v2493, 7
    %v2495 = vsub.s32 0, %v2494
    %v2496 = vrot.slane %v2492, %v2495
    %v2497 = vsub.f32 %v2377, %v2496
    %v2498 = vsub.f32 %v2378, %v2496
    %v2499 = vsub.f32 %v2379, %v2496
    %v2500 = vsub.f32 %v2380, %v2496
    %v2501 = vsub.f32 %v2381, %v2496
    %v2502 = vsub.f32 %v2382, %v2496
    %v2503 = vsub.f32 %v2383, %v2496
    %v2504 = vsub.f32 %v2384, %v2496
    %v2505 = vmul.f32 %v2497, %v2497
    %v2506 = vmul.f32 %v2498, %v2498
    %v2507 = vmul.f32 %v2499, %v2499
    %v2508 = vmul.f32 %v2500, %v2500
    %v2509 = vmul.f32 %v2501, %v2501
    %v2510 = vmul.f32 %v2502, %v2502
    %v2511 = vmul.f32 %v2503, %v2503
    %v2512 = vmul.f32 %v2504, %v2504
    %v2513 = vsel %vm698, %v2505, 0.0
    %v2514 = vsel %vm698, %v2506, 0.0
    %v2515 = vadd.f32 %v2513, %v2514
    %v2516 = vsel %vm698, %v2507, 0.0
    %v2517 = vadd.f32 %v2515, %v2516
    %v2518 = vsel %vm698, %v2508, 0.0
    %v2519 = vadd.f32 %v2517, %v2518
    %v2520 = vsel %vm698, %v2509, 0.0
    %v2521 = vadd.f32 %v2519, %v2520
    %v2522 = vsel %vm698, %v2510, 0.0
    %v2523 = vadd.f32 %v2521, %v2522
    %v2524 = vsel %vm698, %v2511, 0.0
    %v2525 = vadd.f32 %v2523, %v2524
    %v2526 = vsel %vm698, %v2512, 0.0
    %v2527 = vadd.f32 %v2525, %v2526
    %v2528 = vrot.slane %v2527, 4
    %v2529 = vadd.f32 %v2527, %v2528
    %v2530 = vrot.slane %v2529, 2
    %v2531 = vadd.f32 %v2529, %v2530
    %v2532 = vrot.slane %v2531, 1
    %v2533 = vadd.f32 %v2531, %v2532
    %v2535 = vsel %vm698, %v2533, 0
    %2537 = vmatprep.subr.mxu0 0.0
    %2538 = vmatpush1.msra.mxu0 %v1358
    %2539 = vmatprep.subr.mxu0 0.0
    %2540 = vmatpush1.msra.mxu0 %v1359
    %2541 = vmatprep.subr.mxu0 0.0
    %2542 = vmatpush1.msra.mxu0 0.0
    %2543 = vmatprep.subr.mxu0 0.0
    %2544 = vmatpush1.msra.mxu0 0.0
    %2545 = vmatprep.subr.mxu0 0.0
    %2546 = vmatpush1.msra.mxu0 0.0
    %2547 = vmatprep.subr.mxu0 0.0
    %2548 = vmatpush1.msra.mxu0 0.0
    %2549 = vmatprep.subr.mxu0 0.0
    %2550 = vmatpush1.msra.mxu0 0.0
    %2551 = vmatprep.subr.mxu0 0.0
    %2552 = vmatpush1.msra.mxu0 0.0
    %2553 = vmatprep.subr.mxu0 0.0
    %2554 = vmatpush1.msra.mxu0 0.0
    %2555 = vmatprep.subr.mxu0 0.0
    %2556 = vmatpush1.msra.mxu0 0.0
    %2557 = vmatprep.subr.mxu0 0.0
    %2558 = vmatpush1.msra.mxu0 0.0
    %2559 = vmatprep.subr.mxu0 0.0
    %2560 = vmatpush1.msra.mxu0 0.0
    %2561 = vmatprep.subr.mxu0 0.0
    %2562 = vmatpush1.msra.mxu0 0.0
    %2563 = vmatprep.subr.mxu0 0.0
    %2564 = vmatpush1.msra.mxu0 0.0
    %2565 = vmatprep.subr.mxu0 0.0
    %2566 = vmatpush1.msra.mxu0 0.0
    %2567 = vmatprep.subr.mxu0 0.0
    %2568 = vmatpush1.msra.mxu0 0.0
    %2569 = vmatprep.subr.mxu0 0.0
    %2570 = vmatpush1.msra.mxu0 0.0
    %2571 = vmatprep.subr.mxu0 0.0
    %2572 = vmatpush1.msra.mxu0 0.0
    %2573 = vmatprep.subr.mxu0 0.0
    %2574 = vmatpush1.msra.mxu0 0.0
    %2575 = vmatprep.subr.mxu0 0.0
    %2576 = vmatpush1.msra.mxu0 0.0
    %2577 = vmatprep.subr.mxu0 0.0
    %2578 = vmatpush1.msra.mxu0 0.0
    %2579 = vmatprep.subr.mxu0 0.0
    %2580 = vmatpush1.msra.mxu0 0.0
    %2581 = vmatprep.subr.mxu0 0.0
    %2582 = vmatpush1.msra.mxu0 0.0
    %2583 = vmatprep.subr.mxu0 0.0
    %2584 = vmatpush1.msra.mxu0 0.0
    %2585 = vmatprep.subr.mxu0 0.0
    %2586 = vmatpush1.msra.mxu0 0.0
    %2587 = vmatprep.subr.mxu0 0.0
    %2588 = vmatpush1.msra.mxu0 0.0
    %2589 = vmatprep.subr.mxu0 0.0
    %2590 = vmatpush1.msra.mxu0 0.0
    %2591 = vmatprep.subr.mxu0 0.0
    %2592 = vmatpush1.msra.mxu0 0.0
    %2593 = vmatprep.subr.mxu0 0.0
    %2594 = vmatpush1.msra.mxu0 0.0
    %2595 = vmatprep.subr.mxu0 0.0
    %2596 = vmatpush1.msra.mxu0 0.0
    %2597 = vmatprep.subr.mxu0 0.0
    %2598 = vmatpush1.msra.mxu0 0.0
    %2599 = vmatprep.subr.mxu0 0.0
    %2600 = vmatpush1.msra.mxu0 0.0
    %2601 = vmatprep.mubr.f32.mxu0 0.0
    %2602 = vmatmul.mubr.f32.gmra.mrb[0].mxu0 %v2535
    %v2603 = vpop.f32.mrb[0].mxu0
    %v2604 = vadd.f32 0.0, %v2603
    %v2605 = vpop.f32.mrb[0].mxu0
    %2606 = vdwg.mxu0
    %v2607 = vmul.f32 %v2604, 0.00390625
    %v2608 = vld [vmem:[%s15] sm:$0x1]
    %v2609 = vadd.f32 %v2607, 1e-05
    %v2610 = vrsqrt.pop %v2609
    %v2611 = vmul.f32 %v2608, %v2610
    %v2613 = vlaneseq
    %v2614 = vshrl.u32 %v2613, 7
    %v2615 = vsub.s32 0, %v2614
    %v2616 = vrot.slane %v2611, %v2615
    %2617 = vrot.lane.b32.xlu0 %v2616, 4
    %v2618 = vpop.permute.xlu0 %2617
    %2620 = vrot.lane.b32.xlu0 %v2616, 8
    %v2621 = vpop.permute.xlu0 %2620
    %2623 = vrot.lane.b32.xlu0 %v2616, 12
    %v2624 = vpop.permute.xlu0 %2623
    %v2626 = vsel %vm1496, %v2611, %v2618
    %v2627 = vsel %vm1498, %v2626, %v2621
    %v2628 = vsel %vm1500, %v2627, %v2624
    %v2629 = vlaneseq
    %v2630 = vshrl.u32 %v2629, 7
    %v2631 = vsub.s32 0, %v2630
    %v2632 = vrot.slane %v2628, %v2631
    %v2633 = vmul.f32 %v2497, %v2632
    %v2634 = vmul.f32 %v2498, %v2632
    %v2635 = vmul.f32 %v2499, %v2632
    %v2636 = vmul.f32 %v2500, %v2632
    %v2637 = vmul.f32 %v2501, %v2632
    %v2638 = vmul.f32 %v2502, %v2632
    %v2639 = vmul.f32 %v2503, %v2632
    %v2640 = vmul.f32 %v2504, %v2632
    %v2641 = vld [vmem:[%s17] sm:$0x1]
    %v2643 = vlaneseq
    %v2644 = vshrl.u32 %v2643, 7
    %v2645 = vsub.s32 0, %v2644
    %v2646 = vrot.slane %v2641, %v2645
    %2647 = vrot.lane.b32.xlu0 %v2646, 4
    %v2648 = vpop.permute.xlu0 %2647
    %2650 = vrot.lane.b32.xlu0 %v2646, 8
    %v2651 = vpop.permute.xlu0 %2650
    %2653 = vrot.lane.b32.xlu0 %v2646, 12
    %v2654 = vpop.permute.xlu0 %2653
    %v2656 = vsel %vm1496, %v2641, %v2648
    %v2657 = vsel %vm1498, %v2656, %v2651
    %v2658 = vsel %vm1500, %v2657, %v2654
    %v2659 = vlaneseq
    %v2660 = vshrl.u32 %v2659, 7
    %v2661 = vsub.s32 0, %v2660
    %v2662 = vrot.slane %v2658, %v2661
    %v2663 = vadd.f32 %v2633, %v2662
    %v2664 = vadd.f32 %v2634, %v2662
    %v2665 = vadd.f32 %v2635, %v2662
    %v2666 = vadd.f32 %v2636, %v2662
    %v2667 = vadd.f32 %v2637, %v2662
    %v2668 = vadd.f32 %v2638, %v2662
    %v2669 = vadd.f32 %v2639, %v2662
    %v2670 = vadd.f32 %v2640, %v2662
    %v2671 = vmax.f32 %v2663, 0.0
    %v2672 = vmax.f32 %v2664, 0.0
    %v2673 = vmax.f32 %v2665, 0.0
    %v2674 = vmax.f32 %v2666, 0.0
    %v2675 = vmax.f32 %v2667, 0.0
    %v2676 = vmax.f32 %v2668, 0.0
    %v2677 = vmax.f32 %v2669, 0.0
    %v2678 = vmax.f32 %v2670, 0.0
    %v2679 = vpack.c.bf16 %v2672, %v2671
    %v2680 = vpack.c.bf16 %v2674, %v2673
    %v2681 = vpack.c.bf16 %v2676, %v2675
    %v2682 = vpack.c.bf16 %v2678, %v2677
    %v2683 = vld [vmem:[%s19] sm:$0xf]
    %v2684 = vld [vmem:[%s19 + $0x4] sm:$0xf]
    %v2685 = vld [vmem:[%s19 + $0x8] sm:$0xf]
    %v2686 = vld [vmem:[%s19 + $0xc] sm:$0xf]
    %v2691 = vunpack.c.l.b16 %v2683
    %v2692 = vunpack.c.l.b16 %v2684
    %v2693 = vunpack.c.l.b16 %v2685
    %v2694 = vunpack.c.l.b16 %v2686
    %v2695 = vpack.c.b16 %v2692, %v2691
    %v2696 = vpack.c.b16 %v2694, %v2693
    %vm2697 = vcmask 523264
    %v2699 = vsel %vm2697, %v2695, 0
    %v2702 = vsel %vm2697, %v2696, 0
    %2704 = vmatprep.subr.bf16.mxu0 0
    %2705 = vmatpush1.bf16.msra.mxu0 %v2679
    %2706 = vmatprep.subr.bf16.mxu0 0
    %2707 = vmatpush1.bf16.msra.mxu0 %v2680
    %2708 = vmatprep.subr.bf16.mxu0 0
    %2709 = vmatpush1.bf16.msra.mxu0 %v2681
    %2710 = vmatprep.subr.bf16.mxu0 0
    %2711 = vmatpush1.bf16.msra.mxu0 %v2682
    %2712 = vmatprep.subr.bf16.mxu0 0
    %2713 = vmatpush1.bf16.msra.mxu0 0
    %2714 = vmatprep.subr.bf16.mxu0 0
    %2715 = vmatpush1.bf16.msra.mxu0 0
    %2716 = vmatprep.subr.bf16.mxu0 0
    %2717 = vmatpush1.bf16.msra.mxu0 0
    %2718 = vmatprep.subr.bf16.mxu0 0
    %2719 = vmatpush1.bf16.msra.mxu0 0
    %2720 = vmatprep.subr.bf16.mxu0 0
    %2721 = vmatpush1.bf16.msra.mxu0 0
    %2722 = vmatprep.subr.bf16.mxu0 0
    %2723 = vmatpush1.bf16.msra.mxu0 0
    %2724 = vmatprep.subr.bf16.mxu0 0
    %2725 = vmatpush1.bf16.msra.mxu0 0
    %2726 = vmatprep.subr.bf16.mxu0 0
    %2727 = vmatpush1.bf16.msra.mxu0 0
    %2728 = vmatprep.subr.bf16.mxu0 0
    %2729 = vmatpush1.bf16.msra.mxu0 0
    %2730 = vmatprep.subr.bf16.mxu0 0
    %2731 = vmatpush1.bf16.msra.mxu0 0
    %2732 = vmatprep.subr.bf16.mxu0 0
    %2733 = vmatpush1.bf16.msra.mxu0 0
    %2734 = vmatprep.subr.bf16.mxu0 0
    %2735 = vmatpush1.bf16.msra.mxu0 0
    %2736 = vmatprep.mubr.bf16.mxu0 0
    %2737 = vmatmul.mubr.bf16.gmra.mrb[0].mxu0 %v2699
    %v2738 = vpop.f32.mrb[0].mxu0
    %v2739 = vadd.f32 0.0, %v2738
    %v2740 = vpop.f32.mrb[0].mxu0
    %v2741 = vpop.f32.mrb[0].mxu0
    %v2742 = vadd.f32 0.0, %v2741
    %v2743 = vpop.f32.mrb[0].mxu0
    %2744 = vmatprep.mubr.bf16.mxu0 0
    %2745 = vmatmul.mubr.bf16.gmra.mrb[0].mxu0 %v2702
    %v2746 = vpop.f32.mrb[0].mxu0
    %v2747 = vadd.f32 0.0, %v2746
    %v2748 = vpop.f32.mrb[0].mxu0
    %v2749 = vpop.f32.mrb[0].mxu0
    %v2750 = vadd.f32 0.0, %v2749
    %v2751 = vpop.f32.mrb[0].mxu0
    %2752 = vdwg.mxu0
    %v2753 = vpack.c.bf16 %v2742, %v2739
    %v2754 = vpack.c.bf16 %v2750, %v2747
    %v2755 = vld [vmem:[%s21] sm:$0xf]
    %v2756 = vld [vmem:[%s21 + $0x4] sm:$0xf]
    %s2757 = scalar_lea.vmem %s19, 16
    %v2758 = vld [vmem:[%s2757] sm:$0xf]
    %v2759 = vld [vmem:[%s2757 + $0x4] sm:$0xf]
    %v2760 = vld [vmem:[%s2757 + $0x8] sm:$0xf]
    %v2761 = vld [vmem:[%s2757 + $0xc] sm:$0xf]
    %v2766 = vunpack.c.l.b16 %v2758
    %v2767 = vunpack.c.l.b16 %v2759
    %v2768 = vunpack.c.l.b16 %v2760
    %v2769 = vunpack.c.l.b16 %v2761
    %v2770 = vpack.c.b16 %v2767, %v2766
    %v2771 = vpack.c.b16 %v2769, %v2768
    %v2773 = vsel %vm2697, %v2770, 0
    %v2776 = vsel %vm2697, %v2771, 0
    %2778 = vmatprep.subr.bf16.mxu0 0
    %2779 = vmatpush1.bf16.msra.mxu0 %v2679
    %2780 = vmatprep.subr.bf16.mxu0 0
    %2781 = vmatpush1.bf16.msra.mxu0 %v2680
    %2782 = vmatprep.subr.bf16.mxu0 0
    %2783 = vmatpush1.bf16.msra.mxu0 %v2681
    %2784 = vmatprep.subr.bf16.mxu0 0
    %2785 = vmatpush1.bf16.msra.mxu0 %v2682
    %2786 = vmatprep.subr.bf16.mxu0 0
    %2787 = vmatpush1.bf16.msra.mxu0 0
    %2788 = vmatprep.subr.bf16.mxu0 0
    %2789 = vmatpush1.bf16.msra.mxu0 0
    %2790 = vmatprep.subr.bf16.mxu0 0
    %2791 = vmatpush1.bf16.msra.mxu0 0
    %2792 = vmatprep.subr.bf16.mxu0 0
    %2793 = vmatpush1.bf16.msra.mxu0 0
    %2794 = vmatprep.subr.bf16.mxu0 0
    %2795 = vmatpush1.bf16.msra.mxu0 0
    %2796 = vmatprep.subr.bf16.mxu0 0
    %2797 = vmatpush1.bf16.msra.mxu0 0
    %2798 = vmatprep.subr.bf16.mxu0 0
    %2799 = vmatpush1.bf16.msra.mxu0 0
    %2800 = vmatprep.subr.bf16.mxu0 0
    %2801 = vmatpush1.bf16.msra.mxu0 0
    %2802 = vmatprep.subr.bf16.mxu0 0
    %2803 = vmatpush1.bf16.msra.mxu0 0
    %2804 = vmatprep.subr.bf16.mxu0 0
    %2805 = vmatpush1.bf16.msra.mxu0 0
    %2806 = vmatprep.subr.bf16.mxu0 0
    %2807 = vmatpush1.bf16.msra.mxu0 0
    %2808 = vmatprep.subr.bf16.mxu0 0
    %2809 = vmatpush1.bf16.msra.mxu0 0
    %2810 = vmatprep.mubr.bf16.mxu0 0
    %2811 = vmatmul.mubr.bf16.gmra.mrb[0].mxu0 %v2773
    %v2812 = vpop.f32.mrb[0].mxu0
    %v2813 = vadd.f32 0.0, %v2812
    %v2814 = vpop.f32.mrb[0].mxu0
    %v2815 = vpop.f32.mrb[0].mxu0
    %v2816 = vadd.f32 0.0, %v2815
    %v2817 = vpop.f32.mrb[0].mxu0
    %2818 = vmatprep.mubr.bf16.mxu0 0
    %2819 = vmatmul.mubr.bf16.gmra.mrb[0].mxu0 %v2776
    %v2820 = vpop.f32.mrb[0].mxu0
    %v2821 = vadd.f32 0.0, %v2820
    %v2822 = vpop.f32.mrb[0].mxu0
    %v2823 = vpop.f32.mrb[0].mxu0
    %v2824 = vadd.f32 0.0, %v2823
    %v2825 = vpop.f32.mrb[0].mxu0
    %2826 = vdwg.mxu0
    %v2827 = vpack.c.bf16 %v2816, %v2813
    %v2828 = vpack.c.bf16 %v2824, %v2821
    %s2829 = scalar_lea.vmem %s21, 8
    %v2830 = vld [vmem:[%s2829] sm:$0xf]
    %v2831 = vld [vmem:[%s2829 + $0x4] sm:$0xf]
    %v2834 = vunpack.c.l.b16 %v2830
    %v2835 = vunpack.c.l.b16 %v2831
    %v2836 = vpack.c.b16 %v2835, %v2834
    %v2839 = vsel %vm698, %v2827, 0
    %v2842 = vsel %vm698, %v2828, 0
    %2844 = vmatprep.subr.bf16.mxu0 0
    %2845 = vmatpush1.bf16.msra.mxu0 %v2836
    %2846 = vmatprep.subr.bf16.mxu0 0
    %2847 = vmatpush1.bf16.msra.mxu0 0
    %2848 = vmatprep.subr.bf16.mxu0 0
    %2849 = vmatpush1.bf16.msra.mxu0 0
    %2850 = vmatprep.subr.bf16.mxu0 0
    %2851 = vmatpush1.bf16.msra.mxu0 0
    %2852 = vmatprep.subr.bf16.mxu0 0
    %2853 = vmatpush1.bf16.msra.mxu0 0
    %2854 = vmatprep.subr.bf16.mxu0 0
    %2855 = vmatpush1.bf16.msra.mxu0 0
    %2856 = vmatprep.subr.bf16.mxu0 0
    %2857 = vmatpush1.bf16.msra.mxu0 0
    %2858 = vmatprep.subr.bf16.mxu0 0
    %2859 = vmatpush1.bf16.msra.mxu0 0
    %2860 = vmatprep.subr.bf16.mxu0 0
    %2861 = vmatpush1.bf16.msra.mxu0 0
    %2862 = vmatprep.subr.bf16.mxu0 0
    %2863 = vmatpush1.bf16.msra.mxu0 0
    %2864 = vmatprep.subr.bf16.mxu0 0
    %2865 = vmatpush1.bf16.msra.mxu0 0
    %2866 = vmatprep.subr.bf16.mxu0 0
    %2867 = vmatpush1.bf16.msra.mxu0 0
    %2868 = vmatprep.subr.bf16.mxu0 0
    %2869 = vmatpush1.bf16.msra.mxu0 0
    %2870 = vmatprep.subr.bf16.mxu0 0
    %2871 = vmatpush1.bf16.msra.mxu0 0
    %2872 = vmatprep.subr.bf16.mxu0 0
    %2873 = vmatpush1.bf16.msra.mxu0 0
    %2874 = vmatprep.subr.bf16.mxu0 0
    %2875 = vmatpush1.bf16.msra.mxu0 0
    %2876 = vmatprep.mubr.bf16.mxu0 0
    %2877 = vmatmul.mubr.bf16.gmra.mrb[0].mxu0 %v2839
    %v2878 = vpop.f32.mrb[0].mxu0
    %v2879 = vadd.f32 0.0, %v2878
    %v2880 = vpop.f32.mrb[0].mxu0
    %v2881 = vpop.f32.mrb[0].mxu0
    %v2882 = vadd.f32 0.0, %v2881
    %v2883 = vpop.f32.mrb[0].mxu0
    %2884 = vmatprep.mubr.bf16.mxu0 0
    %2885 = vmatmul.mubr.bf16.gmra.mrb[0].mxu0 %v2842
    %v2886 = vpop.f32.mrb[0].mxu0
    %v2887 = vadd.f32 0.0, %v2886
    %v2888 = vpop.f32.mrb[0].mxu0
    %v2889 = vpop.f32.mrb[0].mxu0
    %v2890 = vadd.f32 0.0, %v2889
    %v2891 = vpop.f32.mrb[0].mxu0
    %2892 = vdwg.mxu0
    %v2895 = vunpack.c.l.b16 %v2755
    %v2896 = vunpack.c.l.b16 %v2756
    %v2897 = vpack.c.b16 %v2896, %v2895
    %v2900 = vsel %vm698, %v2753, 0
    %v2903 = vsel %vm698, %v2754, 0
    %2905 = vmatprep.subr.bf16.mxu0 0
    %2906 = vmatpush1.bf16.msra.mxu0 %v2897
    %2907 = vmatprep.subr.bf16.mxu0 0
    %2908 = vmatpush1.bf16.msra.mxu0 0
    %2909 = vmatprep.subr.bf16.mxu0 0
    %2910 = vmatpush1.bf16.msra.mxu0 0
    %2911 = vmatprep.subr.bf16.mxu0 0
    %2912 = vmatpush1.bf16.msra.mxu0 0
    %2913 = vmatprep.subr.bf16.mxu0 0
    %2914 = vmatpush1.bf16.msra.mxu0 0
    %2915 = vmatprep.subr.bf16.mxu0 0
    %2916 = vmatpush1.bf16.msra.mxu0 0
    %2917 = vmatprep.subr.bf16.mxu0 0
    %2918 = vmatpush1.bf16.msra.mxu0 0
    %2919 = vmatprep.subr.bf16.mxu0 0
    %2920 = vmatpush1.bf16.msra.mxu0 0
    %2921 = vmatprep.subr.bf16.mxu0 0
    %2922 = vmatpush1.bf16.msra.mxu0 0
    %2923 = vmatprep.subr.bf16.mxu0 0
    %2924 = vmatpush1.bf16.msra.mxu0 0
    %2925 = vmatprep.subr.bf16.mxu0 0
    %2926 = vmatpush1.bf16.msra.mxu0 0
    %2927 = vmatprep.subr.bf16.mxu0 0
    %2928 = vmatpush1.bf16.msra.mxu0 0
    %2929 = vmatprep.subr.bf16.mxu0 0
    %2930 = vmatpush1.bf16.msra.mxu0 0
    %2931 = vmatprep.subr.bf16.mxu0 0
    %2932 = vmatpush1.bf16.msra.mxu0 0
    %2933 = vmatprep.subr.bf16.mxu0 0
    %2934 = vmatpush1.bf16.msra.mxu0 0
    %2935 = vmatprep.subr.bf16.mxu0 0
    %2936 = vmatpush1.bf16.msra.mxu0 0
    %2937 = vmatprep.mubr.bf16.mxu0 0
    %2938 = vmatmul.mubr.bf16.gmra.mrb[0].mxu0 %v2900
    %v2939 = vpop.f32.mrb[0].mxu0
    %v2940 = vadd.f32 %v2879, %v2939
    %v2941 = vpop.f32.mrb[0].mxu0
    %v2942 = vpop.f32.mrb[0].mxu0
    %v2943 = vadd.f32 %v2882, %v2942
    %v2944 = vpop.f32.mrb[0].mxu0
    %2945 = vmatprep.mubr.bf16.mxu0 0
    %2946 = vmatmul.mubr.bf16.gmra.mrb[0].mxu0 %v2903
    %v2947 = vpop.f32.mrb[0].mxu0
    %v2948 = vadd.f32 %v2887, %v2947
    %v2949 = vpop.f32.mrb[0].mxu0
    %v2950 = vpop.f32.mrb[0].mxu0
    %v2951 = vadd.f32 %v2890, %v2950
    %v2952 = vpop.f32.mrb[0].mxu0
    %2953 = vdwg.mxu0
    %s2954 = scalar_lea.vmem %s19, 32
    %v2955 = vld [vmem:[%s2954] sm:$0xf]
    %v2956 = vld [vmem:[%s2954 + $0x4] sm:$0xf]
    %v2957 = vld [vmem:[%s2954 + $0x8] sm:$0xf]
    %v2958 = vld [vmem:[%s2954 + $0xc] sm:$0xf]
    %v2963 = vunpack.c.l.b16 %v2955
    %v2964 = vunpack.c.l.b16 %v2956
    %v2965 = vunpack.c.l.b16 %v2957
    %v2966 = vunpack.c.l.b16 %v2958
    %v2967 = vpack.c.b16 %v2964, %v2963
    %v2968 = vpack.c.b16 %v2966, %v2965
    %v2970 = vsel %vm2697, %v2967, 0
    %v2973 = vsel %vm2697, %v2968, 0
    %2975 = vmatprep.subr.bf16.mxu0 0
    %2976 = vmatpush1.bf16.msra.mxu0 %v2679
    %2977 = vmatprep.subr.bf16.mxu0 0
    %2978 = vmatpush1.bf16.msra.mxu0 %v2680
    %2979 = vmatprep.subr.bf16.mxu0 0
    %2980 = vmatpush1.bf16.msra.mxu0 %v2681
    %2981 = vmatprep.subr.bf16.mxu0 0
    %2982 = vmatpush1.bf16.msra.mxu0 %v2682
    %2983 = vmatprep.subr.bf16.mxu0 0
    %2984 = vmatpush1.bf16.msra.mxu0 0
    %2985 = vmatprep.subr.bf16.mxu0 0
    %2986 = vmatpush1.bf16.msra.mxu0 0
    %2987 = vmatprep.subr.bf16.mxu0 0
    %2988 = vmatpush1.bf16.msra.mxu0 0
    %2989 = vmatprep.subr.bf16.mxu0 0
    %2990 = vmatpush1.bf16.msra.mxu0 0
    %2991 = vmatprep.subr.bf16.mxu0 0
    %2992 = vmatpush1.bf16.msra.mxu0 0
    %2993 = vmatprep.subr.bf16.mxu0 0
    %2994 = vmatpush1.bf16.msra.mxu0 0
    %2995 = vmatprep.subr.bf16.mxu0 0
    %2996 = vmatpush1.bf16.msra.mxu0 0
    %2997 = vmatprep.subr.bf16.mxu0 0
    %2998 = vmatpush1.bf16.msra.mxu0 0
    %2999 = vmatprep.subr.bf16.mxu0 0
    %3000 = vmatpush1.bf16.msra.mxu0 0
    %3001 = vmatprep.subr.bf16.mxu0 0
    %3002 = vmatpush1.bf16.msra.mxu0 0
    %3003 = vmatprep.subr.bf16.mxu0 0
    %3004 = vmatpush1.bf16.msra.mxu0 0
    %3005 = vmatprep.subr.bf16.mxu0 0
    %3006 = vmatpush1.bf16.msra.mxu0 0
    %3007 = vmatprep.mubr.bf16.mxu0 0
    %3008 = vmatmul.mubr.bf16.gmra.mrb[0].mxu0 %v2970
    %v3009 = vpop.f32.mrb[0].mxu0
    %v3010 = vadd.f32 0.0, %v3009
    %v3011 = vpop.f32.mrb[0].mxu0
    %v3012 = vpop.f32.mrb[0].mxu0
    %v3013 = vadd.f32 0.0, %v3012
    %v3014 = vpop.f32.mrb[0].mxu0
    %3015 = vmatprep.mubr.bf16.mxu0 0
    %3016 = vmatmul.mubr.bf16.gmra.mrb[0].mxu0 %v2973
    %v3017 = vpop.f32.mrb[0].mxu0
    %v3018 = vadd.f32 0.0, %v3017
    %v3019 = vpop.f32.mrb[0].mxu0
    %v3020 = vpop.f32.mrb[0].mxu0
    %v3021 = vadd.f32 0.0, %v3020
    %v3022 = vpop.f32.mrb[0].mxu0
    %3023 = vdwg.mxu0
    %v3024 = vpack.c.bf16 %v3013, %v3010
    %v3025 = vpack.c.bf16 %v3021, %v3018
    %s3026 = scalar_lea.vmem %s21, 16
    %v3027 = vld [vmem:[%s3026] sm:$0xf]
    %v3028 = vld [vmem:[%s3026 + $0x4] sm:$0xf]
    %v3031 = vunpack.c.l.b16 %v3027
    %v3032 = vunpack.c.l.b16 %v3028
    %v3033 = vpack.c.b16 %v3032, %v3031
    %v3036 = vsel %vm698, %v3024, 0
    %v3039 = vsel %vm698, %v3025, 0
    %3041 = vmatprep.subr.bf16.mxu0 0
    %3042 = vmatpush1.bf16.msra.mxu0 %v3033
    %3043 = vmatprep.subr.bf16.mxu0 0
    %3044 = vmatpush1.bf16.msra.mxu0 0
    %3045 = vmatprep.subr.bf16.mxu0 0
    %3046 = vmatpush1.bf16.msra.mxu0 0
    %3047 = vmatprep.subr.bf16.mxu0 0
    %3048 = vmatpush1.bf16.msra.mxu0 0
    %3049 = vmatprep.subr.bf16.mxu0 0
    %3050 = vmatpush1.bf16.msra.mxu0 0
    %3051 = vmatprep.subr.bf16.mxu0 0
    %3052 = vmatpush1.bf16.msra.mxu0 0
    %3053 = vmatprep.subr.bf16.mxu0 0
    %3054 = vmatpush1.bf16.msra.mxu0 0
    %3055 = vmatprep.subr.bf16.mxu0 0
    %3056 = vmatpush1.bf16.msra.mxu0 0
    %3057 = vmatprep.subr.bf16.mxu0 0
    %3058 = vmatpush1.bf16.msra.mxu0 0
    %3059 = vmatprep.subr.bf16.mxu0 0
    %3060 = vmatpush1.bf16.msra.mxu0 0
    %3061 = vmatprep.subr.bf16.mxu0 0
    %3062 = vmatpush1.bf16.msra.mxu0 0
    %3063 = vmatprep.subr.bf16.mxu0 0
    %3064 = vmatpush1.bf16.msra.mxu0 0
    %3065 = vmatprep.subr.bf16.mxu0 0
    %3066 = vmatpush1.bf16.msra.mxu0 0
    %3067 = vmatprep.subr.bf16.mxu0 0
    %3068 = vmatpush1.bf16.msra.mxu0 0
    %3069 = vmatprep.subr.bf16.mxu0 0
    %3070 = vmatpush1.bf16.msra.mxu0 0
    %3071 = vmatprep.subr.bf16.mxu0 0
    %3072 = vmatpush1.bf16.msra.mxu0 0
    %3073 = vmatprep.mubr.bf16.mxu0 0
    %3074 = vmatmul.mubr.bf16.gmra.mrb[0].mxu0 %v3036
    %v3075 = vpop.f32.mrb[0].mxu0
    %v3076 = vadd.f32 0.0, %v3075
    %v3077 = vpop.f32.mrb[0].mxu0
    %v3078 = vpop.f32.mrb[0].mxu0
    %v3079 = vadd.f32 0.0, %v3078
    %v3080 = vpop.f32.mrb[0].mxu0
    %3081 = vmatprep.mubr.bf16.mxu0 0
    %3082 = vmatmul.mubr.bf16.gmra.mrb[0].mxu0 %v3039
    %v3083 = vpop.f32.mrb[0].mxu0
    %v3084 = vadd.f32 0.0, %v3083
    %v3085 = vpop.f32.mrb[0].mxu0
    %v3086 = vpop.f32.mrb[0].mxu0
    %v3087 = vadd.f32 0.0, %v3086
    %v3088 = vpop.f32.mrb[0].mxu0
    %3089 = vdwg.mxu0
    %v3090 = vadd.f32 %v2940, %v3076
    %v3091 = vadd.f32 %v2943, %v3079
    %v3092 = vadd.f32 %v2948, %v3084
    %v3093 = vadd.f32 %v2951, %v3087
    %vm3094 = vcmp.lt.s32.totalorder %v1296, 0
    %v3095 = vsub.s32 0, %v1296
    %v3096 = vsel %vm3094, %v3095, %v1296
    %v3097 = vshrl.u32 %v3096, 3
    %v3098 = vand.u32 %v3096, 7
    %v3099 = vsub.s32 0, %v3098
    %v3100 = vsel %vm3094, %v3099, %v3098
    %vm3101 = vcmp.lt.s32.totalorder %v1297, 0
    %v3102 = vsub.s32 0, %v1297
    %v3103 = vsel %vm3101, %v3102, %v1297
    %v3104 = vshrl.u32 %v3103, 3
    %v3105 = vand.u32 %v3103, 7
    %v3106 = vsub.s32 0, %v3105
    %v3107 = vsel %vm3101, %v3106, %v3105
    %vm3108 = vcmp.ne.s32.totalorder %v3100, 0
    %vm3109 = vcmp.ne.s32.totalorder %v3107, 0
    %vm3110 = vcmp.lt.s32.totalorder %v3100, 0
    %vm3111 = vcmp.lt.s32.totalorder %v3107, 0
    %vm3112 = vmand %vm3110, %vm3108
    %vm3113 = vmand %vm3111, %vm3109
    %v3114 = vadd.s32 %v3100, 8
    %v3115 = vadd.s32 %v3107, 8
    %v3116 = vsel %vm3112, %v3114, %v3100
    %v3117 = vsel %vm3113, %v3115, %v3107
    %vm3118 = vcmp.eq.s32.totalorder %v3116, %v1301
    %vm3119 = vcmp.eq.s32.totalorder %v3117, %v1301
    %v3120 = vsel %vm3118, 1, 0
    %v3121 = vsel %vm3119, 1, 0
    %v3122 = vcvt.s32.f32 %v3120
    %v3123 = vcvt.s32.f32 %v3121
    %v3124 = vsel %vm698, %v3090, 0.0
    %v3125 = vsel %vm698, %v3091, 0.0
    %v3126 = vadd.f32 %v3124, %v3125
    %v3127 = vsel %vm698, %v3092, 0.0
    %v3128 = vadd.f32 %v3126, %v3127
    %v3129 = vsel %vm698, %v3093, 0.0
    %v3130 = vadd.f32 %v3128, %v3129
    %v3131 = vrot.slane %v3130, 4
    %v3132 = vadd.f32 %v3130, %v3131
    %v3133 = vrot.slane %v3132, 2
    %v3134 = vadd.f32 %v3132, %v3133
    %v3135 = vrot.slane %v3134, 1
    %v3136 = vadd.f32 %v3134, %v3135
    %v3138 = vsel %vm698, %v3136, 0
    %3140 = vmatprep.subr.mxu0 0.0
    %3141 = vmatpush1.msra.mxu0 %v3122
    %3142 = vmatprep.subr.mxu0 0.0
    %3143 = vmatpush1.msra.mxu0 %v3123
    %3144 = vmatprep.subr.mxu0 0.0
    %3145 = vmatpush1.msra.mxu0 0.0
    %3146 = vmatprep.subr.mxu0 0.0
    %3147 = vmatpush1.msra.mxu0 0.0
    %3148 = vmatprep.subr.mxu0 0.0
    %3149 = vmatpush1.msra.mxu0 0.0
    %3150 = vmatprep.subr.mxu0 0.0
    %3151 = vmatpush1.msra.mxu0 0.0
    %3152 = vmatprep.subr.mxu0 0.0
    %3153 = vmatpush1.msra.mxu0 0.0
    %3154 = vmatprep.subr.mxu0 0.0
    %3155 = vmatpush1.msra.mxu0 0.0
    %3156 = vmatprep.subr.mxu0 0.0
    %3157 = vmatpush1.msra.mxu0 0.0
    %3158 = vmatprep.subr.mxu0 0.0
    %3159 = vmatpush1.msra.mxu0 0.0
    %3160 = vmatprep.subr.mxu0 0.0
    %3161 = vmatpush1.msra.mxu0 0.0
    %3162 = vmatprep.subr.mxu0 0.0
    %3163 = vmatpush1.msra.mxu0 0.0
    %3164 = vmatprep.subr.mxu0 0.0
    %3165 = vmatpush1.msra.mxu0 0.0
    %3166 = vmatprep.subr.mxu0 0.0
    %3167 = vmatpush1.msra.mxu0 0.0
    %3168 = vmatprep.subr.mxu0 0.0
    %3169 = vmatpush1.msra.mxu0 0.0
    %3170 = vmatprep.subr.mxu0 0.0
    %3171 = vmatpush1.msra.mxu0 0.0
    %3172 = vmatprep.subr.mxu0 0.0
    %3173 = vmatpush1.msra.mxu0 0.0
    %3174 = vmatprep.subr.mxu0 0.0
    %3175 = vmatpush1.msra.mxu0 0.0
    %3176 = vmatprep.subr.mxu0 0.0
    %3177 = vmatpush1.msra.mxu0 0.0
    %3178 = vmatprep.subr.mxu0 0.0
    %3179 = vmatpush1.msra.mxu0 0.0
    %3180 = vmatprep.subr.mxu0 0.0
    %3181 = vmatpush1.msra.mxu0 0.0
    %3182 = vmatprep.subr.mxu0 0.0
    %3183 = vmatpush1.msra.mxu0 0.0
    %3184 = vmatprep.subr.mxu0 0.0
    %3185 = vmatpush1.msra.mxu0 0.0
    %3186 = vmatprep.subr.mxu0 0.0
    %3187 = vmatpush1.msra.mxu0 0.0
    %3188 = vmatprep.subr.mxu0 0.0
    %3189 = vmatpush1.msra.mxu0 0.0
    %3190 = vmatprep.subr.mxu0 0.0
    %3191 = vmatpush1.msra.mxu0 0.0
    %3192 = vmatprep.subr.mxu0 0.0
    %3193 = vmatpush1.msra.mxu0 0.0
    %3194 = vmatprep.subr.mxu0 0.0
    %3195 = vmatpush1.msra.mxu0 0.0
    %3196 = vmatprep.subr.mxu0 0.0
    %3197 = vmatpush1.msra.mxu0 0.0
    %3198 = vmatprep.subr.mxu0 0.0
    %3199 = vmatpush1.msra.mxu0 0.0
    %3200 = vmatprep.subr.mxu0 0.0
    %3201 = vmatpush1.msra.mxu0 0.0
    %3202 = vmatprep.subr.mxu0 0.0
    %3203 = vmatpush1.msra.mxu0 0.0
    %3204 = vmatprep.mubr.f32.mxu0 0.0
    %3205 = vmatmul.mubr.f32.gmra.mrb[0].mxu0 %v3138
    %v3206 = vpop.f32.mrb[0].mxu0
    %v3207 = vadd.f32 0.0, %v3206
    %v3208 = vpop.f32.mrb[0].mxu0
    %3209 = vdwg.mxu0
    %v3210 = vmul.f32 %v3207, 0.015625
    %3212 = vrot.lane.b32.xlu0 %v3210, 8
    %v3213 = vpop.permute.xlu0 %3212
    %v3215 = vsel %vm1498, %v3210, %v3213
    %v3216 = vlaneseq
    %v3217 = vshrl.u32 %v3216, 7
    %v3218 = vsub.s32 0, %v3217
    %v3219 = vrot.slane %v3215, %v3218
    %v3220 = vsub.f32 %v3090, %v3219
    %v3221 = vsub.f32 %v3091, %v3219
    %v3222 = vsub.f32 %v3092, %v3219
    %v3223 = vsub.f32 %v3093, %v3219
    %v3224 = vmul.f32 %v3220, %v3220
    %v3225 = vmul.f32 %v3221, %v3221
    %v3226 = vmul.f32 %v3222, %v3222
    %v3227 = vmul.f32 %v3223, %v3223
    %v3228 = vsel %vm698, %v3224, 0.0
    %v3229 = vsel %vm698, %v3225, 0.0
    %v3230 = vadd.f32 %v3228, %v3229
    %v3231 = vsel %vm698, %v3226, 0.0
    %v3232 = vadd.f32 %v3230, %v3231
    %v3233 = vsel %vm698, %v3227, 0.0
    %v3234 = vadd.f32 %v3232, %v3233
    %v3235 = vrot.slane %v3234, 4
    %v3236 = vadd.f32 %v3234, %v3235
    %v3237 = vrot.slane %v3236, 2
    %v3238 = vadd.f32 %v3236, %v3237
    %v3239 = vrot.slane %v3238, 1
    %v3240 = vadd.f32 %v3238, %v3239
    %v3242 = vsel %vm698, %v3240, 0
    %3244 = vmatprep.subr.mxu0 0.0
    %3245 = vmatpush1.msra.mxu0 %v3122
    %3246 = vmatprep.subr.mxu0 0.0
    %3247 = vmatpush1.msra.mxu0 %v3123
    %3248 = vmatprep.subr.mxu0 0.0
    %3249 = vmatpush1.msra.mxu0 0.0
    %3250 = vmatprep.subr.mxu0 0.0
    %3251 = vmatpush1.msra.mxu0 0.0
    %3252 = vmatprep.subr.mxu0 0.0
    %3253 = vmatpush1.msra.mxu0 0.0
    %3254 = vmatprep.subr.mxu0 0.0
    %3255 = vmatpush1.msra.mxu0 0.0
    %3256 = vmatprep.subr.mxu0 0.0
    %3257 = vmatpush1.msra.mxu0 0.0
    %3258 = vmatprep.subr.mxu0 0.0
    %3259 = vmatpush1.msra.mxu0 0.0
    %3260 = vmatprep.subr.mxu0 0.0
    %3261 = vmatpush1.msra.mxu0 0.0
    %3262 = vmatprep.subr.mxu0 0.0
    %3263 = vmatpush1.msra.mxu0 0.0
    %3264 = vmatprep.subr.mxu0 0.0
    %3265 = vmatpush1.msra.mxu0 0.0
    %3266 = vmatprep.subr.mxu0 0.0
    %3267 = vmatpush1.msra.mxu0 0.0
    %3268 = vmatprep.subr.mxu0 0.0
    %3269 = vmatpush1.msra.mxu0 0.0
    %3270 = vmatprep.subr.mxu0 0.0
    %3271 = vmatpush1.msra.mxu0 0.0
    %3272 = vmatprep.subr.mxu0 0.0
    %3273 = vmatpush1.msra.mxu0 0.0
    %3274 = vmatprep.subr.mxu0 0.0
    %3275 = vmatpush1.msra.mxu0 0.0
    %3276 = vmatprep.subr.mxu0 0.0
    %3277 = vmatpush1.msra.mxu0 0.0
    %3278 = vmatprep.subr.mxu0 0.0
    %3279 = vmatpush1.msra.mxu0 0.0
    %3280 = vmatprep.subr.mxu0 0.0
    %3281 = vmatpush1.msra.mxu0 0.0
    %3282 = vmatprep.subr.mxu0 0.0
    %3283 = vmatpush1.msra.mxu0 0.0
    %3284 = vmatprep.subr.mxu0 0.0
    %3285 = vmatpush1.msra.mxu0 0.0
    %3286 = vmatprep.subr.mxu0 0.0
    %3287 = vmatpush1.msra.mxu0 0.0
    %3288 = vmatprep.subr.mxu0 0.0
    %3289 = vmatpush1.msra.mxu0 0.0
    %3290 = vmatprep.subr.mxu0 0.0
    %3291 = vmatpush1.msra.mxu0 0.0
    %3292 = vmatprep.subr.mxu0 0.0
    %3293 = vmatpush1.msra.mxu0 0.0
    %3294 = vmatprep.subr.mxu0 0.0
    %3295 = vmatpush1.msra.mxu0 0.0
    %3296 = vmatprep.subr.mxu0 0.0
    %3297 = vmatpush1.msra.mxu0 0.0
    %3298 = vmatprep.subr.mxu0 0.0
    %3299 = vmatpush1.msra.mxu0 0.0
    %3300 = vmatprep.subr.mxu0 0.0
    %3301 = vmatpush1.msra.mxu0 0.0
    %3302 = vmatprep.subr.mxu0 0.0
    %3303 = vmatpush1.msra.mxu0 0.0
    %3304 = vmatprep.subr.mxu0 0.0
    %3305 = vmatpush1.msra.mxu0 0.0
    %3306 = vmatprep.subr.mxu0 0.0
    %3307 = vmatpush1.msra.mxu0 0.0
    %3308 = vmatprep.mubr.f32.mxu0 0.0
    %3309 = vmatmul.mubr.f32.gmra.mrb[0].mxu0 %v3242
    %v3310 = vpop.f32.mrb[0].mxu0
    %v3311 = vadd.f32 0.0, %v3310
    %v3312 = vpop.f32.mrb[0].mxu0
    %3313 = vdwg.mxu0
    %v3314 = vmul.f32 %v3311, 0.015625
    %v3315 = vld [vmem:[%s23] sm:$0x1]
    %v3316 = vadd.f32 %v3314, 1e-05
    %v3317 = vrsqrt.pop %v3316
    %v3318 = vmul.f32 %v3315, %v3317
    %v3320 = vlaneseq
    %v3321 = vshrl.u32 %v3320, 7
    %v3322 = vsub.s32 0, %v3321
    %v3323 = vrot.slane %v3318, %v3322
    %3324 = vrot.lane.b32.xlu0 %v3323, 8
    %v3325 = vpop.permute.xlu0 %3324
    %v3327 = vsel %vm1498, %v3318, %v3325
    %v3328 = vlaneseq
    %v3329 = vshrl.u32 %v3328, 7
    %v3330 = vsub.s32 0, %v3329
    %v3331 = vrot.slane %v3327, %v3330
    %v3332 = vmul.f32 %v3220, %v3331
    %v3333 = vmul.f32 %v3221, %v3331
    %v3334 = vmul.f32 %v3222, %v3331
    %v3335 = vmul.f32 %v3223, %v3331
    %v3336 = vld [vmem:[%s25] sm:$0x1]
    %v3338 = vlaneseq
    %v3339 = vshrl.u32 %v3338, 7
    %v3340 = vsub.s32 0, %v3339
    %v3341 = vrot.slane %v3336, %v3340
    %3342 = vrot.lane.b32.xlu0 %v3341, 8
    %v3343 = vpop.permute.xlu0 %3342
    %v3345 = vsel %vm1498, %v3336, %v3343
    %v3346 = vlaneseq
    %v3347 = vshrl.u32 %v3346, 7
    %v3348 = vsub.s32 0, %v3347
    %v3349 = vrot.slane %v3345, %v3348
    %v3350 = vadd.f32 %v3332, %v3349
    %v3351 = vadd.f32 %v3333, %v3349
    %v3352 = vadd.f32 %v3334, %v3349
    %v3353 = vadd.f32 %v3335, %v3349
    %v3354 = vmax.f32 %v3350, 0.0
    %v3355 = vmax.f32 %v3351, 0.0
    %v3356 = vmax.f32 %v3352, 0.0
    %v3357 = vmax.f32 %v3353, 0.0
    %v3358 = vpack.c.bf16 %v3355, %v3354
    %v3359 = vpack.c.bf16 %v3357, %v3356
    %v3360 = vld [vmem:[%s27] sm:$0xf]
    %v3361 = vld [vmem:[%s27 + $0x4] sm:$0xf]
    %v3364 = vunpack.c.l.b16 %v3360
    %v3365 = vunpack.c.l.b16 %v3361
    %v3366 = vpack.c.b16 %v3365, %v3364
    %v3368 = vsel %vm1362, %v3366, 0
    %3370 = vmatprep.subr.bf16.mxu0 0
    %3371 = vmatpush1.bf16.msra.mxu0 %v3358
    %3372 = vmatprep.subr.bf16.mxu0 0
    %3373 = vmatpush1.bf16.msra.mxu0 %v3359
    %3374 = vmatprep.subr.bf16.mxu0 0
    %3375 = vmatpush1.bf16.msra.mxu0 0
    %3376 = vmatprep.subr.bf16.mxu0 0
    %3377 = vmatpush1.bf16.msra.mxu0 0
    %3378 = vmatprep.subr.bf16.mxu0 0
    %3379 = vmatpush1.bf16.msra.mxu0 0
    %3380 = vmatprep.subr.bf16.mxu0 0
    %3381 = vmatpush1.bf16.msra.mxu0 0
    %3382 = vmatprep.subr.bf16.mxu0 0
    %3383 = vmatpush1.bf16.msra.mxu0 0
    %3384 = vmatprep.subr.bf16.mxu0 0
    %3385 = vmatpush1.bf16.msra.mxu0 0
    %3386 = vmatprep.subr.bf16.mxu0 0
    %3387 = vmatpush1.bf16.msra.mxu0 0
    %3388 = vmatprep.subr.bf16.mxu0 0
    %3389 = vmatpush1.bf16.msra.mxu0 0
    %3390 = vmatprep.subr.bf16.mxu0 0
    %3391 = vmatpush1.bf16.msra.mxu0 0
    %3392 = vmatprep.subr.bf16.mxu0 0
    %3393 = vmatpush1.bf16.msra.mxu0 0
    %3394 = vmatprep.subr.bf16.mxu0 0
    %3395 = vmatpush1.bf16.msra.mxu0 0
    %3396 = vmatprep.subr.bf16.mxu0 0
    %3397 = vmatpush1.bf16.msra.mxu0 0
    %3398 = vmatprep.subr.bf16.mxu0 0
    %3399 = vmatpush1.bf16.msra.mxu0 0
    %3400 = vmatprep.subr.bf16.mxu0 0
    %3401 = vmatpush1.bf16.msra.mxu0 0
    %3402 = vmatprep.mubr.bf16.mxu0 0
    %3403 = vmatmul.mubr.bf16.gmra.mrb[0].mxu0 %v3368
    %v3404 = vpop.f32.mrb[0].mxu0
    %v3405 = vadd.f32 0.0, %v3404
    %v3406 = vpop.f32.mrb[0].mxu0
    %v3407 = vpop.f32.mrb[0].mxu0
    %v3408 = vadd.f32 0.0, %v3407
    %v3409 = vpop.f32.mrb[0].mxu0
    %3410 = vdwg.mxu0
    %v3411 = vpack.c.bf16 %v3408, %v3405
    %v3412 = vld [vmem:[%s29] sm:$0xf]
    %v3413 = vld [vmem:[%s29 + $0x4] sm:$0xf]
    %s3414 = scalar_lea.vmem %s27, 8
    %v3415 = vld [vmem:[%s3414] sm:$0xf]
    %v3416 = vld [vmem:[%s3414 + $0x4] sm:$0xf]
    %v3419 = vunpack.c.l.b16 %v3415
    %v3420 = vunpack.c.l.b16 %v3416
    %v3421 = vpack.c.b16 %v3420, %v3419
    %v3423 = vsel %vm1362, %v3421, 0
    %3425 = vmatprep.subr.bf16.mxu0 0
    %3426 = vmatpush1.bf16.msra.mxu0 %v3358
    %3427 = vmatprep.subr.bf16.mxu0 0
    %3428 = vmatpush1.bf16.msra.mxu0 %v3359
    %3429 = vmatprep.subr.bf16.mxu0 0
    %3430 = vmatpush1.bf16.msra.mxu0 0
    %3431 = vmatprep.subr.bf16.mxu0 0
    %3432 = vmatpush1.bf16.msra.mxu0 0
    %3433 = vmatprep.subr.bf16.mxu0 0
    %3434 = vmatpush1.bf16.msra.mxu0 0
    %3435 = vmatprep.subr.bf16.mxu0 0
    %3436 = vmatpush1.bf16.msra.mxu0 0
    %3437 = vmatprep.subr.bf16.mxu0 0
    %3438 = vmatpush1.bf16.msra.mxu0 0
    %3439 = vmatprep.subr.bf16.mxu0 0
    %3440 = vmatpush1.bf16.msra.mxu0 0
    %3441 = vmatprep.subr.bf16.mxu0 0
    %3442 = vmatpush1.bf16.msra.mxu0 0
    %3443 = vmatprep.subr.bf16.mxu0 0
    %3444 = vmatpush1.bf16.msra.mxu0 0
    %3445 = vmatprep.subr.bf16.mxu0 0
    %3446 = vmatpush1.bf16.msra.mxu0 0
    %3447 = vmatprep.subr.bf16.mxu0 0
    %3448 = vmatpush1.bf16.msra.mxu0 0
    %3449 = vmatprep.subr.bf16.mxu0 0
    %3450 = vmatpush1.bf16.msra.mxu0 0
    %3451 = vmatprep.subr.bf16.mxu0 0
    %3452 = vmatpush1.bf16.msra.mxu0 0
    %3453 = vmatprep.subr.bf16.mxu0 0
    %3454 = vmatpush1.bf16.msra.mxu0 0
    %3455 = vmatprep.subr.bf16.mxu0 0
    %3456 = vmatpush1.bf16.msra.mxu0 0
    %3457 = vmatprep.mubr.bf16.mxu0 0
    %3458 = vmatmul.mubr.bf16.gmra.mrb[0].mxu0 %v3423
    %v3459 = vpop.f32.mrb[0].mxu0
    %v3460 = vadd.f32 0.0, %v3459
    %v3461 = vpop.f32.mrb[0].mxu0
    %v3462 = vpop.f32.mrb[0].mxu0
    %v3463 = vadd.f32 0.0, %v3462
    %v3464 = vpop.f32.mrb[0].mxu0
    %3465 = vdwg.mxu0
    %v3466 = vpack.c.bf16 %v3463, %v3460
    %s3467 = scalar_lea.vmem %s29, 8
    %v3468 = vld [vmem:[%s3467] sm:$0xf]
    %v3469 = vld [vmem:[%s3467 + $0x4] sm:$0xf]
    %v3472 = vunpack.c.l.b16 %v3468
    %v3473 = vunpack.c.l.b16 %v3469
    %v3474 = vpack.c.b16 %v3473, %v3472
    %v3477 = vsel %vm698, %v3466, 0
    %3479 = vmatprep.subr.bf16.mxu0 0
    %3480 = vmatpush1.bf16.msra.mxu0 %v3474
    %3481 = vmatprep.subr.bf16.mxu0 0
    %3482 = vmatpush1.bf16.msra.mxu0 0
    %3483 = vmatprep.subr.bf16.mxu0 0
    %3484 = vmatpush1.bf16.msra.mxu0 0
    %3485 = vmatprep.subr.bf16.mxu0 0
    %3486 = vmatpush1.bf16.msra.mxu0 0
    %3487 = vmatprep.subr.bf16.mxu0 0
    %3488 = vmatpush1.bf16.msra.mxu0 0
    %3489 = vmatprep.subr.bf16.mxu0 0
    %3490 = vmatpush1.bf16.msra.mxu0 0
    %3491 = vmatprep.subr.bf16.mxu0 0
    %3492 = vmatpush1.bf16.msra.mxu0 0
    %3493 = vmatprep.subr.bf16.mxu0 0
    %3494 = vmatpush1.bf16.msra.mxu0 0
    %3495 = vmatprep.subr.bf16.mxu0 0
    %3496 = vmatpush1.bf16.msra.mxu0 0
    %3497 = vmatprep.subr.bf16.mxu0 0
    %3498 = vmatpush1.bf16.msra.mxu0 0
    %3499 = vmatprep.subr.bf16.mxu0 0
    %3500 = vmatpush1.bf16.msra.mxu0 0
    %3501 = vmatprep.subr.bf16.mxu0 0
    %3502 = vmatpush1.bf16.msra.mxu0 0
    %3503 = vmatprep.subr.bf16.mxu0 0
    %3504 = vmatpush1.bf16.msra.mxu0 0
    %3505 = vmatprep.subr.bf16.mxu0 0
    %3506 = vmatpush1.bf16.msra.mxu0 0
    %3507 = vmatprep.subr.bf16.mxu0 0
    %3508 = vmatpush1.bf16.msra.mxu0 0
    %3509 = vmatprep.subr.bf16.mxu0 0
    %3510 = vmatpush1.bf16.msra.mxu0 0
    %3511 = vmatprep.mubr.bf16.mxu0 0
    %3512 = vmatmul.mubr.bf16.gmra.mrb[0].mxu0 %v3477
    %v3513 = vpop.f32.mrb[0].mxu0
    %v3514 = vadd.f32 0.0, %v3513
    %v3515 = vpop.f32.mrb[0].mxu0
    %v3516 = vpop.f32.mrb[0].mxu0
    %v3517 = vadd.f32 0.0, %v3516
    %v3518 = vpop.f32.mrb[0].mxu0
    %3519 = vdwg.mxu0
    %v3522 = vunpack.c.l.b16 %v3412
    %v3523 = vunpack.c.l.b16 %v3413
    %v3524 = vpack.c.b16 %v3523, %v3522
    %v3527 = vsel %vm698, %v3411, 0
    %3529 = vmatprep.subr.bf16.mxu0 0
    %3530 = vmatpush1.bf16.msra.mxu0 %v3524
    %3531 = vmatprep.subr.bf16.mxu0 0
    %3532 = vmatpush1.bf16.msra.mxu0 0
    %3533 = vmatprep.subr.bf16.mxu0 0
    %3534 = vmatpush1.bf16.msra.mxu0 0
    %3535 = vmatprep.subr.bf16.mxu0 0
    %3536 = vmatpush1.bf16.msra.mxu0 0
    %3537 = vmatprep.subr.bf16.mxu0 0
    %3538 = vmatpush1.bf16.msra.mxu0 0
    %3539 = vmatprep.subr.bf16.mxu0 0
    %3540 = vmatpush1.bf16.msra.mxu0 0
    %3541 = vmatprep.subr.bf16.mxu0 0
    %3542 = vmatpush1.bf16.msra.mxu0 0
    %3543 = vmatprep.subr.bf16.mxu0 0
    %3544 = vmatpush1.bf16.msra.mxu0 0
    %3545 = vmatprep.subr.bf16.mxu0 0
    %3546 = vmatpush1.bf16.msra.mxu0 0
    %3547 = vmatprep.subr.bf16.mxu0 0
    %3548 = vmatpush1.bf16.msra.mxu0 0
    %3549 = vmatprep.subr.bf16.mxu0 0
    %3550 = vmatpush1.bf16.msra.mxu0 0
    %3551 = vmatprep.subr.bf16.mxu0 0
    %3552 = vmatpush1.bf16.msra.mxu0 0
    %3553 = vmatprep.subr.bf16.mxu0 0
    %3554 = vmatpush1.bf16.msra.mxu0 0
    %3555 = vmatprep.subr.bf16.mxu0 0
    %3556 = vmatpush1.bf16.msra.mxu0 0
    %3557 = vmatprep.subr.bf16.mxu0 0
    %3558 = vmatpush1.bf16.msra.mxu0 0
    %3559 = vmatprep.subr.bf16.mxu0 0
    %3560 = vmatpush1.bf16.msra.mxu0 0
    %3561 = vmatprep.mubr.bf16.mxu0 0
    %3562 = vmatmul.mubr.bf16.gmra.mrb[0].mxu0 %v3527
    %v3563 = vpop.f32.mrb[0].mxu0
    %v3564 = vadd.f32 %v3514, %v3563
    %v3565 = vpop.f32.mrb[0].mxu0
    %v3566 = vpop.f32.mrb[0].mxu0
    %v3567 = vadd.f32 %v3517, %v3566
    %v3568 = vpop.f32.mrb[0].mxu0
    %3569 = vdwg.mxu0
    %s3570 = scalar_lea.vmem %s27, 16
    %v3571 = vld [vmem:[%s3570] sm:$0xf]
    %v3572 = vld [vmem:[%s3570 + $0x4] sm:$0xf]
    %v3575 = vunpack.c.l.b16 %v3571
    %v3576 = vunpack.c.l.b16 %v3572
    %v3577 = vpack.c.b16 %v3576, %v3575
    %v3579 = vsel %vm1362, %v3577, 0
    %3581 = vmatprep.subr.bf16.mxu0 0
    %3582 = vmatpush1.bf16.msra.mxu0 %v3358
    %3583 = vmatprep.subr.bf16.mxu0 0
    %3584 = vmatpush1.bf16.msra.mxu0 %v3359
    %3585 = vmatprep.subr.bf16.mxu0 0
    %3586 = vmatpush1.bf16.msra.mxu0 0
    %3587 = vmatprep.subr.bf16.mxu0 0
    %3588 = vmatpush1.bf16.msra.mxu0 0
    %3589 = vmatprep.subr.bf16.mxu0 0
    %3590 = vmatpush1.bf16.msra.mxu0 0
    %3591 = vmatprep.subr.bf16.mxu0 0
    %3592 = vmatpush1.bf16.msra.mxu0 0
    %3593 = vmatprep.subr.bf16.mxu0 0
    %3594 = vmatpush1.bf16.msra.mxu0 0
    %3595 = vmatprep.subr.bf16.mxu0 0
    %3596 = vmatpush1.bf16.msra.mxu0 0
    %3597 = vmatprep.subr.bf16.mxu0 0
    %3598 = vmatpush1.bf16.msra.mxu0 0
    %3599 = vmatprep.subr.bf16.mxu0 0
    %3600 = vmatpush1.bf16.msra.mxu0 0
    %3601 = vmatprep.subr.bf16.mxu0 0
    %3602 = vmatpush1.bf16.msra.mxu0 0
    %3603 = vmatprep.subr.bf16.mxu0 0
    %3604 = vmatpush1.bf16.msra.mxu0 0
    %3605 = vmatprep.subr.bf16.mxu0 0
    %3606 = vmatpush1.bf16.msra.mxu0 0
    %3607 = vmatprep.subr.bf16.mxu0 0
    %3608 = vmatpush1.bf16.msra.mxu0 0
    %3609 = vmatprep.subr.bf16.mxu0 0
    %3610 = vmatpush1.bf16.msra.mxu0 0
    %3611 = vmatprep.subr.bf16.mxu0 0
    %3612 = vmatpush1.bf16.msra.mxu0 0
    %3613 = vmatprep.mubr.bf16.mxu0 0
    %3614 = vmatmul.mubr.bf16.gmra.mrb[0].mxu0 %v3579
    %v3615 = vpop.f32.mrb[0].mxu0
    %v3616 = vadd.f32 0.0, %v3615
    %v3617 = vpop.f32.mrb[0].mxu0
    %v3618 = vpop.f32.mrb[0].mxu0
    %v3619 = vadd.f32 0.0, %v3618
    %v3620 = vpop.f32.mrb[0].mxu0
    %3621 = vdwg.mxu0
    %v3622 = vpack.c.bf16 %v3619, %v3616
    %s3623 = scalar_lea.vmem %s29, 16
    %v3624 = vld [vmem:[%s3623] sm:$0xf]
    %v3625 = vld [vmem:[%s3623 + $0x4] sm:$0xf]
    %v3628 = vunpack.c.l.b16 %v3624
    %v3629 = vunpack.c.l.b16 %v3625
    %v3630 = vpack.c.b16 %v3629, %v3628
    %v3633 = vsel %vm698, %v3622, 0
    %3635 = vmatprep.subr.bf16.mxu0 0
    %3636 = vmatpush1.bf16.msra.mxu0 %v3630
    %3637 = vmatprep.subr.bf16.mxu0 0
    %3638 = vmatpush1.bf16.msra.mxu0 0
    %3639 = vmatprep.subr.bf16.mxu0 0
    %3640 = vmatpush1.bf16.msra.mxu0 0
    %3641 = vmatprep.subr.bf16.mxu0 0
    %3642 = vmatpush1.bf16.msra.mxu0 0
    %3643 = vmatprep.subr.bf16.mxu0 0
    %3644 = vmatpush1.bf16.msra.mxu0 0
    %3645 = vmatprep.subr.bf16.mxu0 0
    %3646 = vmatpush1.bf16.msra.mxu0 0
    %3647 = vmatprep.subr.bf16.mxu0 0
    %3648 = vmatpush1.bf16.msra.mxu0 0
    %3649 = vmatprep.subr.bf16.mxu0 0
    %3650 = vmatpush1.bf16.msra.mxu0 0
    %3651 = vmatprep.subr.bf16.mxu0 0
    %3652 = vmatpush1.bf16.msra.mxu0 0
    %3653 = vmatprep.subr.bf16.mxu0 0
    %3654 = vmatpush1.bf16.msra.mxu0 0
    %3655 = vmatprep.subr.bf16.mxu0 0
    %3656 = vmatpush1.bf16.msra.mxu0 0
    %3657 = vmatprep.subr.bf16.mxu0 0
    %3658 = vmatpush1.bf16.msra.mxu0 0
    %3659 = vmatprep.subr.bf16.mxu0 0
    %3660 = vmatpush1.bf16.msra.mxu0 0
    %3661 = vmatprep.subr.bf16.mxu0 0
    %3662 = vmatpush1.bf16.msra.mxu0 0
    %3663 = vmatprep.subr.bf16.mxu0 0
    %3664 = vmatpush1.bf16.msra.mxu0 0
    %3665 = vmatprep.subr.bf16.mxu0 0
    %3666 = vmatpush1.bf16.msra.mxu0 0
    %3667 = vmatprep.mubr.bf16.mxu0 0
    %3668 = vmatmul.mubr.bf16.gmra.mrb[0].mxu0 %v3633
    %v3669 = vpop.f32.mrb[0].mxu0
    %v3670 = vadd.f32 0.0, %v3669
    %v3671 = vpop.f32.mrb[0].mxu0
    %v3672 = vpop.f32.mrb[0].mxu0
    %v3673 = vadd.f32 0.0, %v3672
    %v3674 = vpop.f32.mrb[0].mxu0
    %3675 = vdwg.mxu0
    %v3676 = vadd.f32 %v3564, %v3670
    %v3677 = vadd.f32 %v3567, %v3673
    %v3678 = vsel %vm1498, %v3676, 0.0
    %v3679 = vsel %vm1498, %v3677, 0.0
    %v3680 = vadd.f32 %v3678, %v3679
    %v3681 = vrot.slane %v3680, 4
    %v3682 = vadd.f32 %v3680, %v3681
    %v3683 = vrot.slane %v3682, 2
    %v3684 = vadd.f32 %v3682, %v3683
    %v3685 = vrot.slane %v3684, 1
    %v3686 = vadd.f32 %v3684, %v3685
    %v3688 = vsel %vm1498, %v3686, 0
    %3690 = vmatprep.subr.mxu0 0.0
    %3691 = vmatpush1.msra.mxu0 %v3122
    %3692 = vmatprep.subr.mxu0 0.0
    %3693 = vmatpush1.msra.mxu0 0.0
    %3694 = vmatprep.subr.mxu0 0.0
    %3695 = vmatpush1.msra.mxu0 0.0
    %3696 = vmatprep.subr.mxu0 0.0
    %3697 = vmatpush1.msra.mxu0 0.0
    %3698 = vmatprep.subr.mxu0 0.0
    %3699 = vmatpush1.msra.mxu0 0.0
    %3700 = vmatprep.subr.mxu0 0.0
    %3701 = vmatpush1.msra.mxu0 0.0
    %3702 = vmatprep.subr.mxu0 0.0
    %3703 = vmatpush1.msra.mxu0 0.0
    %3704 = vmatprep.subr.mxu0 0.0
    %3705 = vmatpush1.msra.mxu0 0.0
    %3706 = vmatprep.subr.mxu0 0.0
    %3707 = vmatpush1.msra.mxu0 0.0
    %3708 = vmatprep.subr.mxu0 0.0
    %3709 = vmatpush1.msra.mxu0 0.0
    %3710 = vmatprep.subr.mxu0 0.0
    %3711 = vmatpush1.msra.mxu0 0.0
    %3712 = vmatprep.subr.mxu0 0.0
    %3713 = vmatpush1.msra.mxu0 0.0
    %3714 = vmatprep.subr.mxu0 0.0
    %3715 = vmatpush1.msra.mxu0 0.0
    %3716 = vmatprep.subr.mxu0 0.0
    %3717 = vmatpush1.msra.mxu0 0.0
    %3718 = vmatprep.subr.mxu0 0.0
    %3719 = vmatpush1.msra.mxu0 0.0
    %3720 = vmatprep.subr.mxu0 0.0
    %3721 = vmatpush1.msra.mxu0 0.0
    %3722 = vmatprep.subr.mxu0 0.0
    %3723 = vmatpush1.msra.mxu0 0.0
    %3724 = vmatprep.subr.mxu0 0.0
    %3725 = vmatpush1.msra.mxu0 0.0
    %3726 = vmatprep.subr.mxu0 0.0
    %3727 = vmatpush1.msra.mxu0 0.0
    %3728 = vmatprep.subr.mxu0 0.0
    %3729 = vmatpush1.msra.mxu0 0.0
    %3730 = vmatprep.subr.mxu0 0.0
    %3731 = vmatpush1.msra.mxu0 0.0
    %3732 = vmatprep.subr.mxu0 0.0
    %3733 = vmatpush1.msra.mxu0 0.0
    %3734 = vmatprep.subr.mxu0 0.0
    %3735 = vmatpush1.msra.mxu0 0.0
    %3736 = vmatprep.subr.mxu0 0.0
    %3737 = vmatpush1.msra.mxu0 0.0
    %3738 = vmatprep.subr.mxu0 0.0
    %3739 = vmatpush1.msra.mxu0 0.0
    %3740 = vmatprep.subr.mxu0 0.0
    %3741 = vmatpush1.msra.mxu0 0.0
    %3742 = vmatprep.subr.mxu0 0.0
    %3743 = vmatpush1.msra.mxu0 0.0
    %3744 = vmatprep.subr.mxu0 0.0
    %3745 = vmatpush1.msra.mxu0 0.0
    %3746 = vmatprep.subr.mxu0 0.0
    %3747 = vmatpush1.msra.mxu0 0.0
    %3748 = vmatprep.subr.mxu0 0.0
    %3749 = vmatpush1.msra.mxu0 0.0
    %3750 = vmatprep.subr.mxu0 0.0
    %3751 = vmatpush1.msra.mxu0 0.0
    %3752 = vmatprep.subr.mxu0 0.0
    %3753 = vmatpush1.msra.mxu0 0.0
    %3754 = vmatprep.mubr.f32.mxu0 0.0
    %3755 = vmatmul.mubr.f32.gmra.mrb[0].mxu0 %v3688
    %v3756 = vpop.f32.mrb[0].mxu0
    %v3757 = vadd.f32 0.0, %v3756
    %v3758 = vpop.f32.mrb[0].mxu0
    %3759 = vdwg.mxu0
    %v3760 = vmul.f32 %v3757, 0.0625
    %v3761 = vlaneseq
    %v3762 = vshrl.u32 %v3761, 7
    %v3763 = vsub.s32 0, %v3762
    %v3764 = vrot.slane %v3760, %v3763
    %v3765 = vsub.f32 %v3676, %v3764
    %v3766 = vsub.f32 %v3677, %v3764
    %v3767 = vmul.f32 %v3765, %v3765
    %v3768 = vmul.f32 %v3766, %v3766
    %v3769 = vsel %vm1498, %v3767, 0.0
    %v3770 = vsel %vm1498, %v3768, 0.0
    %v3771 = vadd.f32 %v3769, %v3770
    %v3772 = vrot.slane %v3771, 4
    %v3773 = vadd.f32 %v3771, %v3772
    %v3774 = vrot.slane %v3773, 2
    %v3775 = vadd.f32 %v3773, %v3774
    %v3776 = vrot.slane %v3775, 1
    %v3777 = vadd.f32 %v3775, %v3776
    %v3779 = vsel %vm1498, %v3777, 0
    %3781 = vmatprep.subr.mxu0 0.0
    %3782 = vmatpush1.msra.mxu0 %v3122
    %3783 = vmatprep.subr.mxu0 0.0
    %3784 = vmatpush1.msra.mxu0 0.0
    %3785 = vmatprep.subr.mxu0 0.0
    %3786 = vmatpush1.msra.mxu0 0.0
    %3787 = vmatprep.subr.mxu0 0.0
    %3788 = vmatpush1.msra.mxu0 0.0
    %3789 = vmatprep.subr.mxu0 0.0
    %3790 = vmatpush1.msra.mxu0 0.0
    %3791 = vmatprep.subr.mxu0 0.0
    %3792 = vmatpush1.msra.mxu0 0.0
    %3793 = vmatprep.subr.mxu0 0.0
    %3794 = vmatpush1.msra.mxu0 0.0
    %3795 = vmatprep.subr.mxu0 0.0
    %3796 = vmatpush1.msra.mxu0 0.0
    %3797 = vmatprep.subr.mxu0 0.0
    %3798 = vmatpush1.msra.mxu0 0.0
    %3799 = vmatprep.subr.mxu0 0.0
    %3800 = vmatpush1.msra.mxu0 0.0
    %3801 = vmatprep.subr.mxu0 0.0
    %3802 = vmatpush1.msra.mxu0 0.0
    %3803 = vmatprep.subr.mxu0 0.0
    %3804 = vmatpush1.msra.mxu0 0.0
    %3805 = vmatprep.subr.mxu0 0.0
    %3806 = vmatpush1.msra.mxu0 0.0
    %3807 = vmatprep.subr.mxu0 0.0
    %3808 = vmatpush1.msra.mxu0 0.0
    %3809 = vmatprep.subr.mxu0 0.0
    %3810 = vmatpush1.msra.mxu0 0.0
    %3811 = vmatprep.subr.mxu0 0.0
    %3812 = vmatpush1.msra.mxu0 0.0
    %3813 = vmatprep.subr.mxu0 0.0
    %3814 = vmatpush1.msra.mxu0 0.0
    %3815 = vmatprep.subr.mxu0 0.0
    %3816 = vmatpush1.msra.mxu0 0.0
    %3817 = vmatprep.subr.mxu0 0.0
    %3818 = vmatpush1.msra.mxu0 0.0
    %3819 = vmatprep.subr.mxu0 0.0
    %3820 = vmatpush1.msra.mxu0 0.0
    %3821 = vmatprep.subr.mxu0 0.0
    %3822 = vmatpush1.msra.mxu0 0.0
    %3823 = vmatprep.subr.mxu0 0.0
    %3824 = vmatpush1.msra.mxu0 0.0
    %3825 = vmatprep.subr.mxu0 0.0
    %3826 = vmatpush1.msra.mxu0 0.0
    %3827 = vmatprep.subr.mxu0 0.0
    %3828 = vmatpush1.msra.mxu0 0.0
    %3829 = vmatprep.subr.mxu0 0.0
    %3830 = vmatpush1.msra.mxu0 0.0
    %3831 = vmatprep.subr.mxu0 0.0
    %3832 = vmatpush1.msra.mxu0 0.0
    %3833 = vmatprep.subr.mxu0 0.0
    %3834 = vmatpush1.msra.mxu0 0.0
    %3835 = vmatprep.subr.mxu0 0.0
    %3836 = vmatpush1.msra.mxu0 0.0
    %3837 = vmatprep.subr.mxu0 0.0
    %3838 = vmatpush1.msra.mxu0 0.0
    %3839 = vmatprep.subr.mxu0 0.0
    %3840 = vmatpush1.msra.mxu0 0.0
    %3841 = vmatprep.subr.mxu0 0.0
    %3842 = vmatpush1.msra.mxu0 0.0
    %3843 = vmatprep.subr.mxu0 0.0
    %3844 = vmatpush1.msra.mxu0 0.0
    %3845 = vmatprep.mubr.f32.mxu0 0.0
    %3846 = vmatmul.mubr.f32.gmra.mrb[0].mxu0 %v3779
    %v3847 = vpop.f32.mrb[0].mxu0
    %v3848 = vadd.f32 0.0, %v3847
    %v3849 = vpop.f32.mrb[0].mxu0
    %3850 = vdwg.mxu0
    %v3851 = vmul.f32 %v3848, 0.0625
    %v3852 = vld [vmem:[%s31] sm:$0x1]
    %v3853 = vadd.f32 %v3851, 1e-05
    %v3854 = vrsqrt.pop %v3853
    %v3855 = vmul.f32 %v3852, %v3854
    %v3857 = vlaneseq
    %v3858 = vshrl.u32 %v3857, 7
    %v3859 = vsub.s32 0, %v3858
    %v3860 = vrot.slane %v3855, %v3859
    %v3862 = vmul.f32 %v3765, %v3860
    %v3863 = vmul.f32 %v3766, %v3860
    %v3864 = vld [vmem:[%s33] sm:$0x1]
    %v3866 = vlaneseq
    %v3867 = vshrl.u32 %v3866, 7
    %v3868 = vsub.s32 0, %v3867
    %v3869 = vrot.slane %v3864, %v3868
    %v3871 = vadd.f32 %v3862, %v3869
    %v3872 = vadd.f32 %v3863, %v3869
    %v3873 = vmax.f32 %v3871, 0.0
    %v3874 = vmax.f32 %v3872, 0.0
    %v3875 = vpack.c.bf16 %v3874, %v3873
    %v3876 = vld [vmem:[%s35] sm:$0xf]
    %v3878 = vsel %vm698, %v3876, 0
    %3880 = vmatprep.subr.bf16.mxu0 0
    %3881 = vmatpush1.bf16.msra.mxu0 %v3875
    %3882 = vmatprep.subr.bf16.mxu0 0
    %3883 = vmatpush1.bf16.msra.mxu0 0
    %3884 = vmatprep.subr.bf16.mxu0 0
    %3885 = vmatpush1.bf16.msra.mxu0 0
    %3886 = vmatprep.subr.bf16.mxu0 0
    %3887 = vmatpush1.bf16.msra.mxu0 0
    %3888 = vmatprep.subr.bf16.mxu0 0
    %3889 = vmatpush1.bf16.msra.mxu0 0
    %3890 = vmatprep.subr.bf16.mxu0 0
    %3891 = vmatpush1.bf16.msra.mxu0 0
    %3892 = vmatprep.subr.bf16.mxu0 0
    %3893 = vmatpush1.bf16.msra.mxu0 0
    %3894 = vmatprep.subr.bf16.mxu0 0
    %3895 = vmatpush1.bf16.msra.mxu0 0
    %3896 = vmatprep.subr.bf16.mxu0 0
    %3897 = vmatpush1.bf16.msra.mxu0 0
    %3898 = vmatprep.subr.bf16.mxu0 0
    %3899 = vmatpush1.bf16.msra.mxu0 0
    %3900 = vmatprep.subr.bf16.mxu0 0
    %3901 = vmatpush1.bf16.msra.mxu0 0
    %3902 = vmatprep.subr.bf16.mxu0 0
    %3903 = vmatpush1.bf16.msra.mxu0 0
    %3904 = vmatprep.subr.bf16.mxu0 0
    %3905 = vmatpush1.bf16.msra.mxu0 0
    %3906 = vmatprep.subr.bf16.mxu0 0
    %3907 = vmatpush1.bf16.msra.mxu0 0
    %3908 = vmatprep.subr.bf16.mxu0 0
    %3909 = vmatpush1.bf16.msra.mxu0 0
    %3910 = vmatprep.subr.bf16.mxu0 0
    %3911 = vmatpush1.bf16.msra.mxu0 0
    %3912 = vmatprep.mubr.bf16.mxu0 0
    %3913 = vmatmul.mubr.bf16.gmra.mrb[0].mxu0 %v3878
    %v3914 = vpop.f32.mrb[0].mxu0
    %v3915 = vadd.f32 0.0, %v3914
    %v3916 = vpop.f32.mrb[0].mxu0
    %v3917 = vpop.f32.mrb[0].mxu0
    %v3918 = vpop.f32.mrb[0].mxu0
    %3919 = vdwg.mxu0
    %v3920 = vpack.c.bf16 %v3915, %v3915
    %v3921 = vld [vmem:[%s37] sm:$0xf]
    %s3922 = scalar_lea.vmem %s35, 4
    %v3923 = vld [vmem:[%s3922] sm:$0xf]
    %v3925 = vsel %vm698, %v3923, 0
    %3927 = vmatprep.subr.bf16.mxu0 0
    %3928 = vmatpush1.bf16.msra.mxu0 %v3875
    %3929 = vmatprep.subr.bf16.mxu0 0
    %3930 = vmatpush1.bf16.msra.mxu0 0
    %3931 = vmatprep.subr.bf16.mxu0 0
    %3932 = vmatpush1.bf16.msra.mxu0 0
    %3933 = vmatprep.subr.bf16.mxu0 0
    %3934 = vmatpush1.bf16.msra.mxu0 0
    %3935 = vmatprep.subr.bf16.mxu0 0
    %3936 = vmatpush1.bf16.msra.mxu0 0
    %3937 = vmatprep.subr.bf16.mxu0 0
    %3938 = vmatpush1.bf16.msra.mxu0 0
    %3939 = vmatprep.subr.bf16.mxu0 0
    %3940 = vmatpush1.bf16.msra.mxu0 0
    %3941 = vmatprep.subr.bf16.mxu0 0
    %3942 = vmatpush1.bf16.msra.mxu0 0
    %3943 = vmatprep.subr.bf16.mxu0 0
    %3944 = vmatpush1.bf16.msra.mxu0 0
    %3945 = vmatprep.subr.bf16.mxu0 0
    %3946 = vmatpush1.bf16.msra.mxu0 0
    %3947 = vmatprep.subr.bf16.mxu0 0
    %3948 = vmatpush1.bf16.msra.mxu0 0
    %3949 = vmatprep.subr.bf16.mxu0 0
    %3950 = vmatpush1.bf16.msra.mxu0 0
    %3951 = vmatprep.subr.bf16.mxu0 0
    %3952 = vmatpush1.bf16.msra.mxu0 0
    %3953 = vmatprep.subr.bf16.mxu0 0
    %3954 = vmatpush1.bf16.msra.mxu0 0
    %3955 = vmatprep.subr.bf16.mxu0 0
    %3956 = vmatpush1.bf16.msra.mxu0 0
    %3957 = vmatprep.subr.bf16.mxu0 0
    %3958 = vmatpush1.bf16.msra.mxu0 0
    %3959 = vmatprep.mubr.bf16.mxu0 0
    %3960 = vmatmul.mubr.bf16.gmra.mrb[0].mxu0 %v3925
    %v3961 = vpop.f32.mrb[0].mxu0
    %v3962 = vadd.f32 0.0, %v3961
    %v3963 = vpop.f32.mrb[0].mxu0
    %v3964 = vpop.f32.mrb[0].mxu0
    %v3965 = vpop.f32.mrb[0].mxu0
    %3966 = vdwg.mxu0
    %v3967 = vpack.c.bf16 %v3962, %v3962
    %s3968 = scalar_lea.vmem %s37, 4
    %v3969 = vld [vmem:[%s3968] sm:$0xf]
    %v3971 = vsel %vm1498, %v3967, 0
    %vm3973 = vcmask 1043456
    %v3975 = vsel %vm3973, %v3969, 0
    %3977 = vmatprep.subr.bf16.mxu0 0
    %3978 = vmatpush1.bf16.msra.mxu0 %v3975
    %3979 = vmatprep.subr.bf16.mxu0 0
    %3980 = vmatpush1.bf16.msra.mxu0 0
    %3981 = vmatprep.subr.bf16.mxu0 0
    %3982 = vmatpush1.bf16.msra.mxu0 0
    %3983 = vmatprep.subr.bf16.mxu0 0
    %3984 = vmatpush1.bf16.msra.mxu0 0
    %3985 = vmatprep.subr.bf16.mxu0 0
    %3986 = vmatpush1.bf16.msra.mxu0 0
    %3987 = vmatprep.subr.bf16.mxu0 0
    %3988 = vmatpush1.bf16.msra.mxu0 0
    %3989 = vmatprep.subr.bf16.mxu0 0
    %3990 = vmatpush1.bf16.msra.mxu0 0
    %3991 = vmatprep.subr.bf16.mxu0 0
    %3992 = vmatpush1.bf16.msra.mxu0 0
    %3993 = vmatprep.subr.bf16.mxu0 0
    %3994 = vmatpush1.bf16.msra.mxu0 0
    %3995 = vmatprep.subr.bf16.mxu0 0
    %3996 = vmatpush1.bf16.msra.mxu0 0
    %3997 = vmatprep.subr.bf16.mxu0 0
    %3998 = vmatpush1.bf16.msra.mxu0 0
    %3999 = vmatprep.subr.bf16.mxu0 0
    %4000 = vmatpush1.bf16.msra.mxu0 0
    %4001 = vmatprep.subr.bf16.mxu0 0
    %4002 = vmatpush1.bf16.msra.mxu0 0
    %4003 = vmatprep.subr.bf16.mxu0 0
    %4004 = vmatpush1.bf16.msra.mxu0 0
    %4005 = vmatprep.subr.bf16.mxu0 0
    %4006 = vmatpush1.bf16.msra.mxu0 0
    %4007 = vmatprep.subr.bf16.mxu0 0
    %4008 = vmatpush1.bf16.msra.mxu0 0
    %4009 = vmatprep.mubr.bf16.mxu0 0
    %4010 = vmatmul.mubr.bf16.gmra.mrb[0].mxu0 %v3971
    %v4011 = vpop.f32.mrb[0].mxu0
    %v4012 = vadd.f32 0.0, %v4011
    %v4013 = vpop.f32.mrb[0].mxu0
    %v4014 = vpop.f32.mrb[0].mxu0
    %v4015 = vpop.f32.mrb[0].mxu0
    %4016 = vdwg.mxu0
    %v4018 = vsel %vm1498, %v3920, 0
    %v4021 = vsel %vm3973, %v3921, 0
    %4023 = vmatprep.subr.bf16.mxu0 0
    %4024 = vmatpush1.bf16.msra.mxu0 %v4021
    %4025 = vmatprep.subr.bf16.mxu0 0
    %4026 = vmatpush1.bf16.msra.mxu0 0
    %4027 = vmatprep.subr.bf16.mxu0 0
    %4028 = vmatpush1.bf16.msra.mxu0 0
    %4029 = vmatprep.subr.bf16.mxu0 0
    %4030 = vmatpush1.bf16.msra.mxu0 0
    %4031 = vmatprep.subr.bf16.mxu0 0
    %4032 = vmatpush1.bf16.msra.mxu0 0
    %4033 = vmatprep.subr.bf16.mxu0 0
    %4034 = vmatpush1.bf16.msra.mxu0 0
    %4035 = vmatprep.subr.bf16.mxu0 0
    %4036 = vmatpush1.bf16.msra.mxu0 0
    %4037 = vmatprep.subr.bf16.mxu0 0
    %4038 = vmatpush1.bf16.msra.mxu0 0
    %4039 = vmatprep.subr.bf16.mxu0 0
    %4040 = vmatpush1.bf16.msra.mxu0 0
    %4041 = vmatprep.subr.bf16.mxu0 0
    %4042 = vmatpush1.bf16.msra.mxu0 0
    %4043 = vmatprep.subr.bf16.mxu0 0
    %4044 = vmatpush1.bf16.msra.mxu0 0
    %4045 = vmatprep.subr.bf16.mxu0 0
    %4046 = vmatpush1.bf16.msra.mxu0 0
    %4047 = vmatprep.subr.bf16.mxu0 0
    %4048 = vmatpush1.bf16.msra.mxu0 0
    %4049 = vmatprep.subr.bf16.mxu0 0
    %4050 = vmatpush1.bf16.msra.mxu0 0
    %4051 = vmatprep.subr.bf16.mxu0 0
    %4052 = vmatpush1.bf16.msra.mxu0 0
    %4053 = vmatprep.subr.bf16.mxu0 0
    %4054 = vmatpush1.bf16.msra.mxu0 0
    %4055 = vmatprep.mubr.bf16.mxu0 0
    %4056 = vmatmul.mubr.bf16.gmra.mrb[0].mxu0 %v4018
    %v4057 = vpop.f32.mrb[0].mxu0
    %v4058 = vadd.f32 %v4012, %v4057
    %v4059 = vpop.f32.mrb[0].mxu0
    %v4060 = vpop.f32.mrb[0].mxu0
    %v4061 = vpop.f32.mrb[0].mxu0
    %4062 = vdwg.mxu0
    %s4063 = scalar_lea.vmem %s35, 8
    %v4064 = vld [vmem:[%s4063] sm:$0xf]
    %v4066 = vsel %vm698, %v4064, 0
    %4068 = vmatprep.subr.bf16.mxu0 0
    %4069 = vmatpush1.bf16.msra.mxu0 %v3875
    %4070 = vmatprep.subr.bf16.mxu0 0
    %4071 = vmatpush1.bf16.msra.mxu0 0
    %4072 = vmatprep.subr.bf16.mxu0 0
    %4073 = vmatpush1.bf16.msra.mxu0 0
    %4074 = vmatprep.subr.bf16.mxu0 0
    %4075 = vmatpush1.bf16.msra.mxu0 0
    %4076 = vmatprep.subr.bf16.mxu0 0
    %4077 = vmatpush1.bf16.msra.mxu0 0
    %4078 = vmatprep.subr.bf16.mxu0 0
    %4079 = vmatpush1.bf16.msra.mxu0 0
    %4080 = vmatprep.subr.bf16.mxu0 0
    %4081 = vmatpush1.bf16.msra.mxu0 0
    %4082 = vmatprep.subr.bf16.mxu0 0
    %4083 = vmatpush1.bf16.msra.mxu0 0
    %4084 = vmatprep.subr.bf16.mxu0 0
    %4085 = vmatpush1.bf16.msra.mxu0 0
    %4086 = vmatprep.subr.bf16.mxu0 0
    %4087 = vmatpush1.bf16.msra.mxu0 0
    %4088 = vmatprep.subr.bf16.mxu0 0
    %4089 = vmatpush1.bf16.msra.mxu0 0
    %4090 = vmatprep.subr.bf16.mxu0 0
    %4091 = vmatpush1.bf16.msra.mxu0 0
    %4092 = vmatprep.subr.bf16.mxu0 0
    %4093 = vmatpush1.bf16.msra.mxu0 0
    %4094 = vmatprep.subr.bf16.mxu0 0
    %4095 = vmatpush1.bf16.msra.mxu0 0
    %4096 = vmatprep.subr.bf16.mxu0 0
    %4097 = vmatpush1.bf16.msra.mxu0 0
    %4098 = vmatprep.subr.bf16.mxu0 0
    %4099 = vmatpush1.bf16.msra.mxu0 0
    %4100 = vmatprep.mubr.bf16.mxu0 0
    %4101 = vmatmul.mubr.bf16.gmra.mrb[0].mxu0 %v4066
    %v4102 = vpop.f32.mrb[0].mxu0
    %v4103 = vadd.f32 0.0, %v4102
    %v4104 = vpop.f32.mrb[0].mxu0
    %v4105 = vpop.f32.mrb[0].mxu0
    %v4106 = vpop.f32.mrb[0].mxu0
    %4107 = vdwg.mxu0
    %v4108 = vpack.c.bf16 %v4103, %v4103
    %s4109 = scalar_lea.vmem %s37, 8
    %v4110 = vld [vmem:[%s4109] sm:$0xf]
    %v4112 = vsel %vm1498, %v4108, 0
    %v4115 = vsel %vm3973, %v4110, 0
    %4117 = vmatprep.subr.bf16.mxu0 0
    %4118 = vmatpush1.bf16.msra.mxu0 %v4115
    %4119 = vmatprep.subr.bf16.mxu0 0
    %4120 = vmatpush1.bf16.msra.mxu0 0
    %4121 = vmatprep.subr.bf16.mxu0 0
    %4122 = vmatpush1.bf16.msra.mxu0 0
    %4123 = vmatprep.subr.bf16.mxu0 0
    %4124 = vmatpush1.bf16.msra.mxu0 0
    %4125 = vmatprep.subr.bf16.mxu0 0
    %4126 = vmatpush1.bf16.msra.mxu0 0
    %4127 = vmatprep.subr.bf16.mxu0 0
    %4128 = vmatpush1.bf16.msra.mxu0 0
    %4129 = vmatprep.subr.bf16.mxu0 0
    %4130 = vmatpush1.bf16.msra.mxu0 0
    %4131 = vmatprep.subr.bf16.mxu0 0
    %4132 = vmatpush1.bf16.msra.mxu0 0
    %4133 = vmatprep.subr.bf16.mxu0 0
    %4134 = vmatpush1.bf16.msra.mxu0 0
    %4135 = vmatprep.subr.bf16.mxu0 0
    %4136 = vmatpush1.bf16.msra.mxu0 0
    %4137 = vmatprep.subr.bf16.mxu0 0
    %4138 = vmatpush1.bf16.msra.mxu0 0
    %4139 = vmatprep.subr.bf16.mxu0 0
    %4140 = vmatpush1.bf16.msra.mxu0 0
    %4141 = vmatprep.subr.bf16.mxu0 0
    %4142 = vmatpush1.bf16.msra.mxu0 0
    %4143 = vmatprep.subr.bf16.mxu0 0
    %4144 = vmatpush1.bf16.msra.mxu0 0
    %4145 = vmatprep.subr.bf16.mxu0 0
    %4146 = vmatpush1.bf16.msra.mxu0 0
    %4147 = vmatprep.subr.bf16.mxu0 0
    %4148 = vmatpush1.bf16.msra.mxu0 0
    %4149 = vmatprep.mubr.bf16.mxu0 0
    %4150 = vmatmul.mubr.bf16.gmra.mrb[0].mxu0 %v4112
    %v4151 = vpop.f32.mrb[0].mxu0
    %v4152 = vadd.f32 0.0, %v4151
    %v4153 = vpop.f32.mrb[0].mxu0
    %v4154 = vpop.f32.mrb[0].mxu0
    %v4155 = vpop.f32.mrb[0].mxu0
    %4156 = vdwg.mxu0
    %v4157 = vadd.f32 %v4058, %v4152
    %vm4158 = vcmp.lt.s32.totalorder %v1296, 0
    %v4159 = vsub.s32 0, %v1296
    %v4160 = vsel %vm4158, %v4159, %v1296
    %v4161 = vshrl.u32 %v4160, 4
    %v4162 = vand.u32 %v4160, 15
    %v4163 = vsub.s32 0, %v4162
    %v4164 = vsel %vm4158, %v4163, %v4162
    %vm4165 = vcmp.lt.s32.totalorder %v1297, 0
    %v4166 = vsub.s32 0, %v1297
    %v4167 = vsel %vm4165, %v4166, %v1297
    %v4168 = vshrl.u32 %v4167, 4
    %v4169 = vand.u32 %v4167, 15
    %v4170 = vsub.s32 0, %v4169
    %v4171 = vsel %vm4165, %v4170, %v4169
    %vm4172 = vcmp.ne.s32.totalorder %v4164, 0
    %vm4173 = vcmp.ne.s32.totalorder %v4171, 0
    %vm4174 = vcmp.lt.s32.totalorder %v4164, 0
    %vm4175 = vcmp.lt.s32.totalorder %v4171, 0
    %vm4176 = vmand %vm4174, %vm4172
    %vm4177 = vmand %vm4175, %vm4173
    %v4178 = vadd.s32 %v4164, 16
    %v4179 = vadd.s32 %v4171, 16
    %v4180 = vsel %vm4176, %v4178, %v4164
    %v4181 = vsel %vm4177, %v4179, %v4171
    %vm4182 = vcmp.eq.s32.totalorder %v4180, %v1301
    %vm4183 = vcmp.eq.s32.totalorder %v4181, %v1301
    %v4184 = vsel %vm4182, 1, 0
    %v4185 = vsel %vm4183, 1, 0
    %v4186 = vcvt.s32.f32 %v4184
    %v4187 = vcvt.s32.f32 %v4185
    %v4188 = vsel %vm698, %v4157, 0.0
    %v4189 = vrot.slane %v4188, 4
    %v4190 = vadd.f32 %v4188, %v4189
    %v4191 = vrot.slane %v4190, 2
    %v4192 = vadd.f32 %v4190, %v4191
    %v4193 = vrot.slane %v4192, 1
    %v4194 = vadd.f32 %v4192, %v4193
    %v4196 = vsel %vm698, %v4194, 0
    %4198 = vmatprep.subr.mxu0 0.0
    %4199 = vmatpush1.msra.mxu0 %v4186
    %4200 = vmatprep.subr.mxu0 0.0
    %4201 = vmatpush1.msra.mxu0 %v4187
    %4202 = vmatprep.subr.mxu0 0.0
    %4203 = vmatpush1.msra.mxu0 0.0
    %4204 = vmatprep.subr.mxu0 0.0
    %4205 = vmatpush1.msra.mxu0 0.0
    %4206 = vmatprep.subr.mxu0 0.0
    %4207 = vmatpush1.msra.mxu0 0.0
    %4208 = vmatprep.subr.mxu0 0.0
    %4209 = vmatpush1.msra.mxu0 0.0
    %4210 = vmatprep.subr.mxu0 0.0
    %4211 = vmatpush1.msra.mxu0 0.0
    %4212 = vmatprep.subr.mxu0 0.0
    %4213 = vmatpush1.msra.mxu0 0.0
    %4214 = vmatprep.subr.mxu0 0.0
    %4215 = vmatpush1.msra.mxu0 0.0
    %4216 = vmatprep.subr.mxu0 0.0
    %4217 = vmatpush1.msra.mxu0 0.0
    %4218 = vmatprep.subr.mxu0 0.0
    %4219 = vmatpush1.msra.mxu0 0.0
    %4220 = vmatprep.subr.mxu0 0.0
    %4221 = vmatpush1.msra.mxu0 0.0
    %4222 = vmatprep.subr.mxu0 0.0
    %4223 = vmatpush1.msra.mxu0 0.0
    %4224 = vmatprep.subr.mxu0 0.0
    %4225 = vmatpush1.msra.mxu0 0.0
    %4226 = vmatprep.subr.mxu0 0.0
    %4227 = vmatpush1.msra.mxu0 0.0
    %4228 = vmatprep.subr.mxu0 0.0
    %4229 = vmatpush1.msra.mxu0 0.0
    %4230 = vmatprep.subr.mxu0 0.0
    %4231 = vmatpush1.msra.mxu0 0.0
    %4232 = vmatprep.subr.mxu0 0.0
    %4233 = vmatpush1.msra.mxu0 0.0
    %4234 = vmatprep.subr.mxu0 0.0
    %4235 = vmatpush1.msra.mxu0 0.0
    %4236 = vmatprep.subr.mxu0 0.0
    %4237 = vmatpush1.msra.mxu0 0.0
    %4238 = vmatprep.subr.mxu0 0.0
    %4239 = vmatpush1.msra.mxu0 0.0
    %4240 = vmatprep.subr.mxu0 0.0
    %4241 = vmatpush1.msra.mxu0 0.0
    %4242 = vmatprep.subr.mxu0 0.0
    %4243 = vmatpush1.msra.mxu0 0.0
    %4244 = vmatprep.subr.mxu0 0.0
    %4245 = vmatpush1.msra.mxu0 0.0
    %4246 = vmatprep.subr.mxu0 0.0
    %4247 = vmatpush1.msra.mxu0 0.0
    %4248 = vmatprep.subr.mxu0 0.0
    %4249 = vmatpush1.msra.mxu0 0.0
    %4250 = vmatprep.subr.mxu0 0.0
    %4251 = vmatpush1.msra.mxu0 0.0
    %4252 = vmatprep.subr.mxu0 0.0
    %4253 = vmatpush1.msra.mxu0 0.0
    %4254 = vmatprep.subr.mxu0 0.0
    %4255 = vmatpush1.msra.mxu0 0.0
    %4256 = vmatprep.subr.mxu0 0.0
    %4257 = vmatpush1.msra.mxu0 0.0
    %4258 = vmatprep.subr.mxu0 0.0
    %4259 = vmatpush1.msra.mxu0 0.0
    %4260 = vmatprep.subr.mxu0 0.0
    %4261 = vmatpush1.msra.mxu0 0.0
    %4262 = vmatprep.mubr.f32.mxu0 0.0
    %4263 = vmatmul.mubr.f32.gmra.mrb[0].mxu0 %v4196
    %v4264 = vpop.f32.mrb[0].mxu0
    %v4265 = vadd.f32 0.0, %v4264
    %v4266 = vpop.f32.mrb[0].mxu0
    %4267 = vdwg.mxu0
    %v4268 = vmul.f32 %v4265, 0.125
    %v4269 = vlaneseq
    %v4270 = vshrl.u32 %v4269, 7
    %v4271 = vsub.s32 0, %v4270
    %v4272 = vrot.slane %v4268, %v4271
    %v4273 = vsub.f32 %v4157, %v4272
    %v4274 = vmul.f32 %v4273, %v4273
    %v4275 = vsel %vm698, %v4274, 0.0
    %v4276 = vrot.slane %v4275, 4
    %v4277 = vadd.f32 %v4275, %v4276
    %v4278 = vrot.slane %v4277, 2
    %v4279 = vadd.f32 %v4277, %v4278
    %v4280 = vrot.slane %v4279, 1
    %v4281 = vadd.f32 %v4279, %v4280
    %v4283 = vsel %vm698, %v4281, 0
    %4285 = vmatprep.subr.mxu0 0.0
    %4286 = vmatpush1.msra.mxu0 %v4186
    %4287 = vmatprep.subr.mxu0 0.0
    %4288 = vmatpush1.msra.mxu0 %v4187
    %4289 = vmatprep.subr.mxu0 0.0
    %4290 = vmatpush1.msra.mxu0 0.0
    %4291 = vmatprep.subr.mxu0 0.0
    %4292 = vmatpush1.msra.mxu0 0.0
    %4293 = vmatprep.subr.mxu0 0.0
    %4294 = vmatpush1.msra.mxu0 0.0
    %4295 = vmatprep.subr.mxu0 0.0
    %4296 = vmatpush1.msra.mxu0 0.0
    %4297 = vmatprep.subr.mxu0 0.0
    %4298 = vmatpush1.msra.mxu0 0.0
    %4299 = vmatprep.subr.mxu0 0.0
    %4300 = vmatpush1.msra.mxu0 0.0
    %4301 = vmatprep.subr.mxu0 0.0
    %4302 = vmatpush1.msra.mxu0 0.0
    %4303 = vmatprep.subr.mxu0 0.0
    %4304 = vmatpush1.msra.mxu0 0.0
    %4305 = vmatprep.subr.mxu0 0.0
    %4306 = vmatpush1.msra.mxu0 0.0
    %4307 = vmatprep.subr.mxu0 0.0
    %4308 = vmatpush1.msra.mxu0 0.0
    %4309 = vmatprep.subr.mxu0 0.0
    %4310 = vmatpush1.msra.mxu0 0.0
    %4311 = vmatprep.subr.mxu0 0.0
    %4312 = vmatpush1.msra.mxu0 0.0
    %4313 = vmatprep.subr.mxu0 0.0
    %4314 = vmatpush1.msra.mxu0 0.0
    %4315 = vmatprep.subr.mxu0 0.0
    %4316 = vmatpush1.msra.mxu0 0.0
    %4317 = vmatprep.subr.mxu0 0.0
    %4318 = vmatpush1.msra.mxu0 0.0
    %4319 = vmatprep.subr.mxu0 0.0
    %4320 = vmatpush1.msra.mxu0 0.0
    %4321 = vmatprep.subr.mxu0 0.0
    %4322 = vmatpush1.msra.mxu0 0.0
    %4323 = vmatprep.subr.mxu0 0.0
    %4324 = vmatpush1.msra.mxu0 0.0
    %4325 = vmatprep.subr.mxu0 0.0
    %4326 = vmatpush1.msra.mxu0 0.0
    %4327 = vmatprep.subr.mxu0 0.0
    %4328 = vmatpush1.msra.mxu0 0.0
    %4329 = vmatprep.subr.mxu0 0.0
    %4330 = vmatpush1.msra.mxu0 0.0
    %4331 = vmatprep.subr.mxu0 0.0
    %4332 = vmatpush1.msra.mxu0 0.0
    %4333 = vmatprep.subr.mxu0 0.0
    %4334 = vmatpush1.msra.mxu0 0.0
    %4335 = vmatprep.subr.mxu0 0.0
    %4336 = vmatpush1.msra.mxu0 0.0
    %4337 = vmatprep.subr.mxu0 0.0
    %4338 = vmatpush1.msra.mxu0 0.0
    %4339 = vmatprep.subr.mxu0 0.0
    %4340 = vmatpush1.msra.mxu0 0.0
    %4341 = vmatprep.subr.mxu0 0.0
    %4342 = vmatpush1.msra.mxu0 0.0
    %4343 = vmatprep.subr.mxu0 0.0
    %4344 = vmatpush1.msra.mxu0 0.0
    %4345 = vmatprep.subr.mxu0 0.0
    %4346 = vmatpush1.msra.mxu0 0.0
    %4347 = vmatprep.subr.mxu0 0.0
    %4348 = vmatpush1.msra.mxu0 0.0
    %4349 = vmatprep.mubr.f32.mxu0 0.0
    %4350 = vmatmul.mubr.f32.gmra.mrb[0].mxu0 %v4283
    %v4351 = vpop.f32.mrb[0].mxu0
    %v4352 = vadd.f32 0.0, %v4351
    %v4353 = vpop.f32.mrb[0].mxu0
    %4354 = vdwg.mxu0
    %v4355 = vmul.f32 %v4352, 0.125
    %v4356 = vld [vmem:[%s39] sm:$0x1]
    %v4357 = vadd.f32 %v4355, 1e-05
    %v4358 = vrsqrt.pop %v4357
    %v4359 = vmul.f32 %v4356, %v4358
    %v4361 = vlaneseq
    %v4362 = vshrl.u32 %v4361, 7
    %v4363 = vsub.s32 0, %v4362
    %v4364 = vrot.slane %v4359, %v4363
    %v4366 = vmul.f32 %v4273, %v4364
    %v4367 = vld [vmem:[%s41] sm:$0x1]
    %v4369 = vlaneseq
    %v4370 = vshrl.u32 %v4369, 7
    %v4371 = vsub.s32 0, %v4370
    %v4372 = vrot.slane %v4367, %v4371
    %v4374 = vadd.f32 %v4366, %v4372
    %v4375 = vmax.f32 %v4374, 0.0
    %v4376 = vpack.c.bf16 %v4375, %v4375
    %v4377 = vld [vmem:[%s43] sm:$0x3]
    %v4379 = vsel %vm1498, %v4377, 0
    %v4382 = vsel %vm3973, %v4376, 0
    %4384 = vmatprep.subr.bf16.mxu0 0
    %4385 = vmatpush1.bf16.msra.mxu0 %v4382
    %4386 = vmatprep.subr.bf16.mxu0 0
    %4387 = vmatpush1.bf16.msra.mxu0 0
    %4388 = vmatprep.subr.bf16.mxu0 0
    %4389 = vmatpush1.bf16.msra.mxu0 0
    %4390 = vmatprep.subr.bf16.mxu0 0
    %4391 = vmatpush1.bf16.msra.mxu0 0
    %4392 = vmatprep.subr.bf16.mxu0 0
    %4393 = vmatpush1.bf16.msra.mxu0 0
    %4394 = vmatprep.subr.bf16.mxu0 0
    %4395 = vmatpush1.bf16.msra.mxu0 0
    %4396 = vmatprep.subr.bf16.mxu0 0
    %4397 = vmatpush1.bf16.msra.mxu0 0
    %4398 = vmatprep.subr.bf16.mxu0 0
    %4399 = vmatpush1.bf16.msra.mxu0 0
    %4400 = vmatprep.subr.bf16.mxu0 0
    %4401 = vmatpush1.bf16.msra.mxu0 0
    %4402 = vmatprep.subr.bf16.mxu0 0
    %4403 = vmatpush1.bf16.msra.mxu0 0
    %4404 = vmatprep.subr.bf16.mxu0 0
    %4405 = vmatpush1.bf16.msra.mxu0 0
    %4406 = vmatprep.subr.bf16.mxu0 0
    %4407 = vmatpush1.bf16.msra.mxu0 0
    %4408 = vmatprep.subr.bf16.mxu0 0
    %4409 = vmatpush1.bf16.msra.mxu0 0
    %4410 = vmatprep.subr.bf16.mxu0 0
    %4411 = vmatpush1.bf16.msra.mxu0 0
    %4412 = vmatprep.subr.bf16.mxu0 0
    %4413 = vmatpush1.bf16.msra.mxu0 0
    %4414 = vmatprep.subr.bf16.mxu0 0
    %4415 = vmatpush1.bf16.msra.mxu0 0
    %4416 = vmatprep.mubr.bf16.mxu0 0
    %4417 = vmatmul.mubr.bf16.gmra.mrb[0].mxu0 %v4379
    %v4418 = vpop.f32.mrb[0].mxu0
    %v4419 = vadd.f32 0.0, %v4418
    %v4420 = vpop.f32.mrb[0].mxu0
    %v4421 = vpop.f32.mrb[0].mxu0
    %v4422 = vpop.f32.mrb[0].mxu0
    %4423 = vdwg.mxu0
    %v4424 = vpack.c.bf16 %v4419, %v4419
    %v4425 = vld [vmem:[%s45] sm:$0xf]
    %v4426 = vld [vmem:[%s45 + $0x4] sm:$0xf]
    %s4427 = scalar_lea.vmem %s43, 2
    %v4428 = vld [vmem:[%s4427] sm:$0x3]
    %v4430 = vsel %vm1498, %v4428, 0
    %4432 = vmatprep.subr.bf16.mxu0 0
    %4433 = vmatpush1.bf16.msra.mxu0 %v4382
    %4434 = vmatprep.subr.bf16.mxu0 0
    %4435 = vmatpush1.bf16.msra.mxu0 0
    %4436 = vmatprep.subr.bf16.mxu0 0
    %4437 = vmatpush1.bf16.msra.mxu0 0
    %4438 = vmatprep.subr.bf16.mxu0 0
    %4439 = vmatpush1.bf16.msra.mxu0 0
    %4440 = vmatprep.subr.bf16.mxu0 0
    %4441 = vmatpush1.bf16.msra.mxu0 0
    %4442 = vmatprep.subr.bf16.mxu0 0
    %4443 = vmatpush1.bf16.msra.mxu0 0
    %4444 = vmatprep.subr.bf16.mxu0 0
    %4445 = vmatpush1.bf16.msra.mxu0 0
    %4446 = vmatprep.subr.bf16.mxu0 0
    %4447 = vmatpush1.bf16.msra.mxu0 0
    %4448 = vmatprep.subr.bf16.mxu0 0
    %4449 = vmatpush1.bf16.msra.mxu0 0
    %4450 = vmatprep.subr.bf16.mxu0 0
    %4451 = vmatpush1.bf16.msra.mxu0 0
    %4452 = vmatprep.subr.bf16.mxu0 0
    %4453 = vmatpush1.bf16.msra.mxu0 0
    %4454 = vmatprep.subr.bf16.mxu0 0
    %4455 = vmatpush1.bf16.msra.mxu0 0
    %4456 = vmatprep.subr.bf16.mxu0 0
    %4457 = vmatpush1.bf16.msra.mxu0 0
    %4458 = vmatprep.subr.bf16.mxu0 0
    %4459 = vmatpush1.bf16.msra.mxu0 0
    %4460 = vmatprep.subr.bf16.mxu0 0
    %4461 = vmatpush1.bf16.msra.mxu0 0
    %4462 = vmatprep.subr.bf16.mxu0 0
    %4463 = vmatpush1.bf16.msra.mxu0 0
    %4464 = vmatprep.mubr.bf16.mxu0 0
    %4465 = vmatmul.mubr.bf16.gmra.mrb[0].mxu0 %v4430
    %v4466 = vpop.f32.mrb[0].mxu0
    %v4467 = vadd.f32 0.0, %v4466
    %v4468 = vpop.f32.mrb[0].mxu0
    %v4469 = vpop.f32.mrb[0].mxu0
    %v4470 = vpop.f32.mrb[0].mxu0
    %4471 = vdwg.mxu0
    %v4472 = vpack.c.bf16 %v4467, %v4467
    %s4473 = scalar_lea.vmem %s45, 8
    %v4474 = vld [vmem:[%s4473] sm:$0xf]
    %v4475 = vld [vmem:[%s4473 + $0x4] sm:$0xf]
    %v4478 = vunpack.c.l.b16 %v4474
    %v4479 = vunpack.c.l.b16 %v4475
    %v4480 = vpack.c.b16 %v4479, %v4478
    %v4483 = vsel %vm698, %v4472, 0
    %4485 = vmatprep.subr.bf16.mxu0 0
    %4486 = vmatpush1.bf16.msra.mxu0 %v4480
    %4487 = vmatprep.subr.bf16.mxu0 0
    %4488 = vmatpush1.bf16.msra.mxu0 0
    %4489 = vmatprep.subr.bf16.mxu0 0
    %4490 = vmatpush1.bf16.msra.mxu0 0
    %4491 = vmatprep.subr.bf16.mxu0 0
    %4492 = vmatpush1.bf16.msra.mxu0 0
    %4493 = vmatprep.subr.bf16.mxu0 0
    %4494 = vmatpush1.bf16.msra.mxu0 0
    %4495 = vmatprep.subr.bf16.mxu0 0
    %4496 = vmatpush1.bf16.msra.mxu0 0
    %4497 = vmatprep.subr.bf16.mxu0 0
    %4498 = vmatpush1.bf16.msra.mxu0 0
    %4499 = vmatprep.subr.bf16.mxu0 0
    %4500 = vmatpush1.bf16.msra.mxu0 0
    %4501 = vmatprep.subr.bf16.mxu0 0
    %4502 = vmatpush1.bf16.msra.mxu0 0
    %4503 = vmatprep.subr.bf16.mxu0 0
    %4504 = vmatpush1.bf16.msra.mxu0 0
    %4505 = vmatprep.subr.bf16.mxu0 0
    %4506 = vmatpush1.bf16.msra.mxu0 0
    %4507 = vmatprep.subr.bf16.mxu0 0
    %4508 = vmatpush1.bf16.msra.mxu0 0
    %4509 = vmatprep.subr.bf16.mxu0 0
    %4510 = vmatpush1.bf16.msra.mxu0 0
    %4511 = vmatprep.subr.bf16.mxu0 0
    %4512 = vmatpush1.bf16.msra.mxu0 0
    %4513 = vmatprep.subr.bf16.mxu0 0
    %4514 = vmatpush1.bf16.msra.mxu0 0
    %4515 = vmatprep.subr.bf16.mxu0 0
    %4516 = vmatpush1.bf16.msra.mxu0 0
    %4517 = vmatprep.mubr.bf16.mxu0 0
    %4518 = vmatmul.mubr.bf16.gmra.mrb[0].mxu0 %v4483
    %v4519 = vpop.f32.mrb[0].mxu0
    %v4520 = vadd.f32 0.0, %v4519
    %v4521 = vpop.f32.mrb[0].mxu0
    %v4522 = vpop.f32.mrb[0].mxu0
    %v4523 = vpop.f32.mrb[0].mxu0
    %4524 = vdwg.mxu0
    %v4527 = vunpack.c.l.b16 %v4425
    %v4528 = vunpack.c.l.b16 %v4426
    %v4529 = vpack.c.b16 %v4528, %v4527
    %v4532 = vsel %vm698, %v4424, 0
    %4534 = vmatprep.subr.bf16.mxu0 0
    %4535 = vmatpush1.bf16.msra.mxu0 %v4529
    %4536 = vmatprep.subr.bf16.mxu0 0
    %4537 = vmatpush1.bf16.msra.mxu0 0
    %4538 = vmatprep.subr.bf16.mxu0 0
    %4539 = vmatpush1.bf16.msra.mxu0 0
    %4540 = vmatprep.subr.bf16.mxu0 0
    %4541 = vmatpush1.bf16.msra.mxu0 0
    %4542 = vmatprep.subr.bf16.mxu0 0
    %4543 = vmatpush1.bf16.msra.mxu0 0
    %4544 = vmatprep.subr.bf16.mxu0 0
    %4545 = vmatpush1.bf16.msra.mxu0 0
    %4546 = vmatprep.subr.bf16.mxu0 0
    %4547 = vmatpush1.bf16.msra.mxu0 0
    %4548 = vmatprep.subr.bf16.mxu0 0
    %4549 = vmatpush1.bf16.msra.mxu0 0
    %4550 = vmatprep.subr.bf16.mxu0 0
    %4551 = vmatpush1.bf16.msra.mxu0 0
    %4552 = vmatprep.subr.bf16.mxu0 0
    %4553 = vmatpush1.bf16.msra.mxu0 0
    %4554 = vmatprep.subr.bf16.mxu0 0
    %4555 = vmatpush1.bf16.msra.mxu0 0
    %4556 = vmatprep.subr.bf16.mxu0 0
    %4557 = vmatpush1.bf16.msra.mxu0 0
    %4558 = vmatprep.subr.bf16.mxu0 0
    %4559 = vmatpush1.bf16.msra.mxu0 0
    %4560 = vmatprep.subr.bf16.mxu0 0
    %4561 = vmatpush1.bf16.msra.mxu0 0
    %4562 = vmatprep.subr.bf16.mxu0 0
    %4563 = vmatpush1.bf16.msra.mxu0 0
    %4564 = vmatprep.subr.bf16.mxu0 0
    %4565 = vmatpush1.bf16.msra.mxu0 0
    %4566 = vmatprep.mubr.bf16.mxu0 0
    %4567 = vmatmul.mubr.bf16.gmra.mrb[0].mxu0 %v4532
    %v4568 = vpop.f32.mrb[0].mxu0
    %v4569 = vadd.f32 %v4520, %v4568
    %v4570 = vpop.f32.mrb[0].mxu0
    %v4571 = vpop.f32.mrb[0].mxu0
    %v4572 = vpop.f32.mrb[0].mxu0
    %4573 = vdwg.mxu0
    %s4574 = scalar_lea.vmem %s43, 4
    %v4575 = vld [vmem:[%s4574] sm:$0x3]
    %v4577 = vsel %vm1498, %v4575, 0
    %4579 = vmatprep.subr.bf16.mxu0 0
    %4580 = vmatpush1.bf16.msra.mxu0 %v4382
    %4581 = vmatprep.subr.bf16.mxu0 0
    %4582 = vmatpush1.bf16.msra.mxu0 0
    %4583 = vmatprep.subr.bf16.mxu0 0
    %4584 = vmatpush1.bf16.msra.mxu0 0
    %4585 = vmatprep.subr.bf16.mxu0 0
    %4586 = vmatpush1.bf16.msra.mxu0 0
    %4587 = vmatprep.subr.bf16.mxu0 0
    %4588 = vmatpush1.bf16.msra.mxu0 0
    %4589 = vmatprep.subr.bf16.mxu0 0
    %4590 = vmatpush1.bf16.msra.mxu0 0
    %4591 = vmatprep.subr.bf16.mxu0 0
    %4592 = vmatpush1.bf16.msra.mxu0 0
    %4593 = vmatprep.subr.bf16.mxu0 0
    %4594 = vmatpush1.bf16.msra.mxu0 0
    %4595 = vmatprep.subr.bf16.mxu0 0
    %4596 = vmatpush1.bf16.msra.mxu0 0
    %4597 = vmatprep.subr.bf16.mxu0 0
    %4598 = vmatpush1.bf16.msra.mxu0 0
    %4599 = vmatprep.subr.bf16.mxu0 0
    %4600 = vmatpush1.bf16.msra.mxu0 0
    %4601 = vmatprep.subr.bf16.mxu0 0
    %4602 = vmatpush1.bf16.msra.mxu0 0
    %4603 = vmatprep.subr.bf16.mxu0 0
    %4604 = vmatpush1.bf16.msra.mxu0 0
    %4605 = vmatprep.subr.bf16.mxu0 0
    %4606 = vmatpush1.bf16.msra.mxu0 0
    %4607 = vmatprep.subr.bf16.mxu0 0
    %4608 = vmatpush1.bf16.msra.mxu0 0
    %4609 = vmatprep.subr.bf16.mxu0 0
    %4610 = vmatpush1.bf16.msra.mxu0 0
    %4611 = vmatprep.mubr.bf16.mxu0 0
    %4612 = vmatmul.mubr.bf16.gmra.mrb[0].mxu0 %v4577
    %v4613 = vpop.f32.mrb[0].mxu0
    %v4614 = vadd.f32 0.0, %v4613
    %v4615 = vpop.f32.mrb[0].mxu0
    %v4616 = vpop.f32.mrb[0].mxu0
    %v4617 = vpop.f32.mrb[0].mxu0
    %4618 = vdwg.mxu0
    %v4619 = vpack.c.bf16 %v4614, %v4614
    %s4620 = scalar_lea.vmem %s45, 16
    %v4621 = vld [vmem:[%s4620] sm:$0xf]
    %v4622 = vld [vmem:[%s4620 + $0x4] sm:$0xf]
    %v4625 = vunpack.c.l.b16 %v4621
    %v4626 = vunpack.c.l.b16 %v4622
    %v4627 = vpack.c.b16 %v4626, %v4625
    %v4630 = vsel %vm698, %v4619, 0
    %4632 = vmatprep.subr.bf16.mxu0 0
    %4633 = vmatpush1.bf16.msra.mxu0 %v4627
    %4634 = vmatprep.subr.bf16.mxu0 0
    %4635 = vmatpush1.bf16.msra.mxu0 0
    %4636 = vmatprep.subr.bf16.mxu0 0
    %4637 = vmatpush1.bf16.msra.mxu0 0
    %4638 = vmatprep.subr.bf16.mxu0 0
    %4639 = vmatpush1.bf16.msra.mxu0 0
    %4640 = vmatprep.subr.bf16.mxu0 0
    %4641 = vmatpush1.bf16.msra.mxu0 0
    %4642 = vmatprep.subr.bf16.mxu0 0
    %4643 = vmatpush1.bf16.msra.mxu0 0
    %4644 = vmatprep.subr.bf16.mxu0 0
    %4645 = vmatpush1.bf16.msra.mxu0 0
    %4646 = vmatprep.subr.bf16.mxu0 0
    %4647 = vmatpush1.bf16.msra.mxu0 0
    %4648 = vmatprep.subr.bf16.mxu0 0
    %4649 = vmatpush1.bf16.msra.mxu0 0
    %4650 = vmatprep.subr.bf16.mxu0 0
    %4651 = vmatpush1.bf16.msra.mxu0 0
    %4652 = vmatprep.subr.bf16.mxu0 0
    %4653 = vmatpush1.bf16.msra.mxu0 0
    %4654 = vmatprep.subr.bf16.mxu0 0
    %4655 = vmatpush1.bf16.msra.mxu0 0
    %4656 = vmatprep.subr.bf16.mxu0 0
    %4657 = vmatpush1.bf16.msra.mxu0 0
    %4658 = vmatprep.subr.bf16.mxu0 0
    %4659 = vmatpush1.bf16.msra.mxu0 0
    %4660 = vmatprep.subr.bf16.mxu0 0
    %4661 = vmatpush1.bf16.msra.mxu0 0
    %4662 = vmatprep.subr.bf16.mxu0 0
    %4663 = vmatpush1.bf16.msra.mxu0 0
    %4664 = vmatprep.mubr.bf16.mxu0 0
    %4665 = vmatmul.mubr.bf16.gmra.mrb[0].mxu0 %v4630
    %v4666 = vpop.f32.mrb[0].mxu0
    %v4667 = vadd.f32 0.0, %v4666
    %v4668 = vpop.f32.mrb[0].mxu0
    %v4669 = vpop.f32.mrb[0].mxu0
    %v4670 = vpop.f32.mrb[0].mxu0
    %4671 = vdwg.mxu0
    %v4672 = vadd.f32 %v4569, %v4667
    %vm4673 = vcmask 125952
    %v4674 = vsel %vm4673, %v4672, 0.0
    %v4675 = vrot.slane %v4674, 4
    %v4676 = vadd.f32 %v4674, %v4675
    %v4677 = vrot.slane %v4676, 2
    %v4678 = vadd.f32 %v4676, %v4677
    %v4679 = vrot.slane %v4678, 1
    %v4680 = vadd.f32 %v4678, %v4679
    %v4682 = vsel %vm698, %v4680, 0
    %4684 = vmatprep.subr.mxu0 0.0
    %4685 = vmatpush1.msra.mxu0 %v4186
    %4686 = vmatprep.subr.mxu0 0.0
    %4687 = vmatpush1.msra.mxu0 %v4187
    %4688 = vmatprep.subr.mxu0 0.0
    %4689 = vmatpush1.msra.mxu0 0.0
    %4690 = vmatprep.subr.mxu0 0.0
    %4691 = vmatpush1.msra.mxu0 0.0
    %4692 = vmatprep.subr.mxu0 0.0
    %4693 = vmatpush1.msra.mxu0 0.0
    %4694 = vmatprep.subr.mxu0 0.0
    %4695 = vmatpush1.msra.mxu0 0.0
    %4696 = vmatprep.subr.mxu0 0.0
    %4697 = vmatpush1.msra.mxu0 0.0
    %4698 = vmatprep.subr.mxu0 0.0
    %4699 = vmatpush1.msra.mxu0 0.0
    %4700 = vmatprep.subr.mxu0 0.0
    %4701 = vmatpush1.msra.mxu0 0.0
    %4702 = vmatprep.subr.mxu0 0.0
    %4703 = vmatpush1.msra.mxu0 0.0
    %4704 = vmatprep.subr.mxu0 0.0
    %4705 = vmatpush1.msra.mxu0 0.0
    %4706 = vmatprep.subr.mxu0 0.0
    %4707 = vmatpush1.msra.mxu0 0.0
    %4708 = vmatprep.subr.mxu0 0.0
    %4709 = vmatpush1.msra.mxu0 0.0
    %4710 = vmatprep.subr.mxu0 0.0
    %4711 = vmatpush1.msra.mxu0 0.0
    %4712 = vmatprep.subr.mxu0 0.0
    %4713 = vmatpush1.msra.mxu0 0.0
    %4714 = vmatprep.subr.mxu0 0.0
    %4715 = vmatpush1.msra.mxu0 0.0
    %4716 = vmatprep.subr.mxu0 0.0
    %4717 = vmatpush1.msra.mxu0 0.0
    %4718 = vmatprep.subr.mxu0 0.0
    %4719 = vmatpush1.msra.mxu0 0.0
    %4720 = vmatprep.subr.mxu0 0.0
    %4721 = vmatpush1.msra.mxu0 0.0
    %4722 = vmatprep.subr.mxu0 0.0
    %4723 = vmatpush1.msra.mxu0 0.0
    %4724 = vmatprep.subr.mxu0 0.0
    %4725 = vmatpush1.msra.mxu0 0.0
    %4726 = vmatprep.subr.mxu0 0.0
    %4727 = vmatpush1.msra.mxu0 0.0
    %4728 = vmatprep.subr.mxu0 0.0
    %4729 = vmatpush1.msra.mxu0 0.0
    %4730 = vmatprep.subr.mxu0 0.0
    %4731 = vmatpush1.msra.mxu0 0.0
    %4732 = vmatprep.subr.mxu0 0.0
    %4733 = vmatpush1.msra.mxu0 0.0
    %4734 = vmatprep.subr.mxu0 0.0
    %4735 = vmatpush1.msra.mxu0 0.0
    %4736 = vmatprep.subr.mxu0 0.0
    %4737 = vmatpush1.msra.mxu0 0.0
    %4738 = vmatprep.subr.mxu0 0.0
    %4739 = vmatpush1.msra.mxu0 0.0
    %4740 = vmatprep.subr.mxu0 0.0
    %4741 = vmatpush1.msra.mxu0 0.0
    %4742 = vmatprep.subr.mxu0 0.0
    %4743 = vmatpush1.msra.mxu0 0.0
    %4744 = vmatprep.subr.mxu0 0.0
    %4745 = vmatpush1.msra.mxu0 0.0
    %4746 = vmatprep.subr.mxu0 0.0
    %4747 = vmatpush1.msra.mxu0 0.0
    %4748 = vmatprep.mubr.f32.mxu0 0.0
    %4749 = vmatmul.mubr.f32.gmra.mrb[0].mxu0 %v4682
    %v4750 = vpop.f32.mrb[0].mxu0
    %v4751 = vadd.f32 0.0, %v4750
    %v4752 = vpop.f32.mrb[0].mxu0
    %4753 = vdwg.mxu0
    %v4754 = vmul.f32 %v4751, 0.25
    %v4755 = vlaneseq
    %v4756 = vshrl.u32 %v4755, 7
    %v4757 = vsub.s32 0, %v4756
    %v4758 = vrot.slane %v4754, %v4757
    %v4759 = vsub.f32 %v4672, %v4758
    %v4760 = vmul.f32 %v4759, %v4759
    %v4761 = vsel %vm4673, %v4760, 0.0
    %v4762 = vrot.slane %v4761, 4
    %v4763 = vadd.f32 %v4761, %v4762
    %v4764 = vrot.slane %v4763, 2
    %v4765 = vadd.f32 %v4763, %v4764
    %v4766 = vrot.slane %v4765, 1
    %v4767 = vadd.f32 %v4765, %v4766
    %v4769 = vsel %vm698, %v4767, 0
    %4771 = vmatprep.subr.mxu0 0.0
    %4772 = vmatpush1.msra.mxu0 %v4186
    %4773 = vmatprep.subr.mxu0 0.0
    %4774 = vmatpush1.msra.mxu0 %v4187
    %4775 = vmatprep.subr.mxu0 0.0
    %4776 = vmatpush1.msra.mxu0 0.0
    %4777 = vmatprep.subr.mxu0 0.0
    %4778 = vmatpush1.msra.mxu0 0.0
    %4779 = vmatprep.subr.mxu0 0.0
    %4780 = vmatpush1.msra.mxu0 0.0
    %4781 = vmatprep.subr.mxu0 0.0
    %4782 = vmatpush1.msra.mxu0 0.0
    %4783 = vmatprep.subr.mxu0 0.0
    %4784 = vmatpush1.msra.mxu0 0.0
    %4785 = vmatprep.subr.mxu0 0.0
    %4786 = vmatpush1.msra.mxu0 0.0
    %4787 = vmatprep.subr.mxu0 0.0
    %4788 = vmatpush1.msra.mxu0 0.0
    %4789 = vmatprep.subr.mxu0 0.0
    %4790 = vmatpush1.msra.mxu0 0.0
    %4791 = vmatprep.subr.mxu0 0.0
    %4792 = vmatpush1.msra.mxu0 0.0
    %4793 = vmatprep.subr.mxu0 0.0
    %4794 = vmatpush1.msra.mxu0 0.0
    %4795 = vmatprep.subr.mxu0 0.0
    %4796 = vmatpush1.msra.mxu0 0.0
    %4797 = vmatprep.subr.mxu0 0.0
    %4798 = vmatpush1.msra.mxu0 0.0
    %4799 = vmatprep.subr.mxu0 0.0
    %4800 = vmatpush1.msra.mxu0 0.0
    %4801 = vmatprep.subr.mxu0 0.0
    %4802 = vmatpush1.msra.mxu0 0.0
    %4803 = vmatprep.subr.mxu0 0.0
    %4804 = vmatpush1.msra.mxu0 0.0
    %4805 = vmatprep.subr.mxu0 0.0
    %4806 = vmatpush1.msra.mxu0 0.0
    %4807 = vmatprep.subr.mxu0 0.0
    %4808 = vmatpush1.msra.mxu0 0.0
    %4809 = vmatprep.subr.mxu0 0.0
    %4810 = vmatpush1.msra.mxu0 0.0
    %4811 = vmatprep.subr.mxu0 0.0
    %4812 = vmatpush1.msra.mxu0 0.0
    %4813 = vmatprep.subr.mxu0 0.0
    %4814 = vmatpush1.msra.mxu0 0.0
    %4815 = vmatprep.subr.mxu0 0.0
    %4816 = vmatpush1.msra.mxu0 0.0
    %4817 = vmatprep.subr.mxu0 0.0
    %4818 = vmatpush1.msra.mxu0 0.0
    %4819 = vmatprep.subr.mxu0 0.0
    %4820 = vmatpush1.msra.mxu0 0.0
    %4821 = vmatprep.subr.mxu0 0.0
    %4822 = vmatpush1.msra.mxu0 0.0
    %4823 = vmatprep.subr.mxu0 0.0
    %4824 = vmatpush1.msra.mxu0 0.0
    %4825 = vmatprep.subr.mxu0 0.0
    %4826 = vmatpush1.msra.mxu0 0.0
    %4827 = vmatprep.subr.mxu0 0.0
    %4828 = vmatpush1.msra.mxu0 0.0
    %4829 = vmatprep.subr.mxu0 0.0
    %4830 = vmatpush1.msra.mxu0 0.0
    %4831 = vmatprep.subr.mxu0 0.0
    %4832 = vmatpush1.msra.mxu0 0.0
    %4833 = vmatprep.subr.mxu0 0.0
    %4834 = vmatpush1.msra.mxu0 0.0
    %4835 = vmatprep.mubr.f32.mxu0 0.0
    %4836 = vmatmul.mubr.f32.gmra.mrb[0].mxu0 %v4769
    %v4837 = vpop.f32.mrb[0].mxu0
    %v4838 = vadd.f32 0.0, %v4837
    %v4839 = vpop.f32.mrb[0].mxu0
    %4840 = vdwg.mxu0
    %v4841 = vmul.f32 %v4838, 0.25
    %v4842 = vld [vmem:[%s47] sm:$0x1]
    %v4843 = vadd.f32 %v4841, 1e-05
    %v4844 = vrsqrt.pop %v4843
    %v4845 = vmul.f32 %v4842, %v4844
    %v4847 = vlaneseq
    %v4848 = vshrl.u32 %v4847, 7
    %v4849 = vsub.s32 0, %v4848
    %v4850 = vrot.slane %v4845, %v4849
    %v4852 = vmul.f32 %v4759, %v4850
    %v4853 = vld [vmem:[%s49] sm:$0x1]
    %v4855 = vlaneseq
    %v4856 = vshrl.u32 %v4855, 7
    %v4857 = vsub.s32 0, %v4856
    %v4858 = vrot.slane %v4853, %v4857
    %v4860 = vadd.f32 %v4852, %v4858
    %v4861 = vmax.f32 %v4860, 0.0
    %v4862 = vpack.c.bf16 %v4861, %v4861
    %v4863 = vld [vmem:[%s51] sm:$0xf]
    %v4864 = vld [vmem:[%s51 + $0x4] sm:$0xf]
    %v4865 = vld [vmem:[%s55] sm:$0x1]
    %v4867 = vlaneseq
    %v4868 = vshrl.u32 %v4867, 7
    %v4869 = vsub.s32 0, %v4868
    %v4870 = vrot.slane %v4865, %v4869
    %v4874 = vunpack.c.l.b16 %v4863
    %v4875 = vunpack.c.l.b16 %v4864
    %v4876 = vpack.c.b16 %v4875, %v4874
    %v4879 = vsel %vm698, %v4862, 0
    %4881 = vmatprep.subr.bf16.mxu0 0
    %4882 = vmatpush1.bf16.msra.mxu0 %v4876
    %4883 = vmatprep.subr.bf16.mxu0 0
    %4884 = vmatpush1.bf16.msra.mxu0 0
    %4885 = vmatprep.subr.bf16.mxu0 0
    %4886 = vmatpush1.bf16.msra.mxu0 0
    %4887 = vmatprep.subr.bf16.mxu0 0
    %4888 = vmatpush1.bf16.msra.mxu0 0
    %4889 = vmatprep.subr.bf16.mxu0 0
    %4890 = vmatpush1.bf16.msra.mxu0 0
    %4891 = vmatprep.subr.bf16.mxu0 0
    %4892 = vmatpush1.bf16.msra.mxu0 0
    %4893 = vmatprep.subr.bf16.mxu0 0
    %4894 = vmatpush1.bf16.msra.mxu0 0
    %4895 = vmatprep.subr.bf16.mxu0 0
    %4896 = vmatpush1.bf16.msra.mxu0 0
    %4897 = vmatprep.subr.bf16.mxu0 0
    %4898 = vmatpush1.bf16.msra.mxu0 0
    %4899 = vmatprep.subr.bf16.mxu0 0
    %4900 = vmatpush1.bf16.msra.mxu0 0
    %4901 = vmatprep.subr.bf16.mxu0 0
    %4902 = vmatpush1.bf16.msra.mxu0 0
    %4903 = vmatprep.subr.bf16.mxu0 0
    %4904 = vmatpush1.bf16.msra.mxu0 0
    %4905 = vmatprep.subr.bf16.mxu0 0
    %4906 = vmatpush1.bf16.msra.mxu0 0
    %4907 = vmatprep.subr.bf16.mxu0 0
    %4908 = vmatpush1.bf16.msra.mxu0 0
    %4909 = vmatprep.subr.bf16.mxu0 0
    %4910 = vmatpush1.bf16.msra.mxu0 0
    %4911 = vmatprep.subr.bf16.mxu0 0
    %4912 = vmatpush1.bf16.msra.mxu0 0
    %4913 = vmatprep.mubr.bf16.mxu0 0
    %4914 = vmatmul.mubr.bf16.gmra.mrb[0].mxu0 %v4879
    %v4915 = vpop.f32.mrb[0].mxu0
    %v4916 = vadd.f32 %v4870, %v4915
    %v4917 = vpop.f32.mrb[0].mxu0
    %v4918 = vpop.f32.mrb[0].mxu0
    %v4919 = vpop.f32.mrb[0].mxu0
    %4920 = vdwg.mxu0
    %v4921 = vld [vmem:[%s59] sm:$0xff]
    %v4922 = vld [vmem:[%s59 + $0x8] sm:$0xff]
    %v4924 = vsel %vm1496, %v4921, 0
    %v4927 = vsel %vm1496, %v4922, 0
    %v4930 = vsel %vm3973, %v4916, 0
    %4932 = vmatprep.subr.mxu0 0.0
    %4933 = vmatpush1.msra.mxu0 %v4930
    %4934 = vmatprep.subr.mxu0 0.0
    %4935 = vmatpush1.msra.mxu0 0.0
    %4936 = vmatprep.subr.mxu0 0.0
    %4937 = vmatpush1.msra.mxu0 0.0
    %4938 = vmatprep.subr.mxu0 0.0
    %4939 = vmatpush1.msra.mxu0 0.0
    %4940 = vmatprep.subr.mxu0 0.0
    %4941 = vmatpush1.msra.mxu0 0.0
    %4942 = vmatprep.subr.mxu0 0.0
    %4943 = vmatpush1.msra.mxu0 0.0
    %4944 = vmatprep.subr.mxu0 0.0
    %4945 = vmatpush1.msra.mxu0 0.0
    %4946 = vmatprep.subr.mxu0 0.0
    %4947 = vmatpush1.msra.mxu0 0.0
    %4948 = vmatprep.subr.mxu0 0.0
    %4949 = vmatpush1.msra.mxu0 0.0
    %4950 = vmatprep.subr.mxu0 0.0
    %4951 = vmatpush1.msra.mxu0 0.0
    %4952 = vmatprep.subr.mxu0 0.0
    %4953 = vmatpush1.msra.mxu0 0.0
    %4954 = vmatprep.subr.mxu0 0.0
    %4955 = vmatpush1.msra.mxu0 0.0
    %4956 = vmatprep.subr.mxu0 0.0
    %4957 = vmatpush1.msra.mxu0 0.0
    %4958 = vmatprep.subr.mxu0 0.0
    %4959 = vmatpush1.msra.mxu0 0.0
    %4960 = vmatprep.subr.mxu0 0.0
    %4961 = vmatpush1.msra.mxu0 0.0
    %4962 = vmatprep.subr.mxu0 0.0
    %4963 = vmatpush1.msra.mxu0 0.0
    %4964 = vmatprep.subr.mxu0 0.0
    %4965 = vmatpush1.msra.mxu0 0.0
    %4966 = vmatprep.subr.mxu0 0.0
    %4967 = vmatpush1.msra.mxu0 0.0
    %4968 = vmatprep.subr.mxu0 0.0
    %4969 = vmatpush1.msra.mxu0 0.0
    %4970 = vmatprep.subr.mxu0 0.0
    %4971 = vmatpush1.msra.mxu0 0.0
    %4972 = vmatprep.subr.mxu0 0.0
    %4973 = vmatpush1.msra.mxu0 0.0
    %4974 = vmatprep.subr.mxu0 0.0
    %4975 = vmatpush1.msra.mxu0 0.0
    %4976 = vmatprep.subr.mxu0 0.0
    %4977 = vmatpush1.msra.mxu0 0.0
    %4978 = vmatprep.subr.mxu0 0.0
    %4979 = vmatpush1.msra.mxu0 0.0
    %4980 = vmatprep.subr.mxu0 0.0
    %4981 = vmatpush1.msra.mxu0 0.0
    %4982 = vmatprep.subr.mxu0 0.0
    %4983 = vmatpush1.msra.mxu0 0.0
    %4984 = vmatprep.subr.mxu0 0.0
    %4985 = vmatpush1.msra.mxu0 0.0
    %4986 = vmatprep.subr.mxu0 0.0
    %4987 = vmatpush1.msra.mxu0 0.0
    %4988 = vmatprep.subr.mxu0 0.0
    %4989 = vmatpush1.msra.mxu0 0.0
    %4990 = vmatprep.subr.mxu0 0.0
    %4991 = vmatpush1.msra.mxu0 0.0
    %4992 = vmatprep.subr.mxu0 0.0
    %4993 = vmatpush1.msra.mxu0 0.0
    %4994 = vmatprep.subr.mxu0 0.0
    %4995 = vmatpush1.msra.mxu0 0.0
    %4996 = vmatprep.mubr.f32.mxu0 0.0
    %4997 = vmatmul.mubr.f32.gmra.mrb[0].mxu0 %v4924
    %v4998 = vpop.f32.mrb[0].mxu0
    %v4999 = vadd.f32 0.0, %v4998
    %v5000 = vpop.f32.mrb[0].mxu0
    %5001 = vmatprep.mubr.f32.mxu0 0.0
    %5002 = vmatmul.mubr.f32.gmra.mrb[0].mxu0 %v4927
    %v5003 = vpop.f32.mrb[0].mxu0
    %v5004 = vadd.f32 0.0, %v5003
    %v5005 = vpop.f32.mrb[0].mxu0
    %5006 = vdwg.mxu0
    %v5007 = vld [vmem:[%s53] sm:$0xf]
    %v5008 = vld [vmem:[%s53 + $0x4] sm:$0xf]
    %v5009 = vld [vmem:[%s53 + $0x8] sm:$0xf]
    %v5010 = vld [vmem:[%s53 + $0xc] sm:$0xf]
    %v5011 = vld [vmem:[%s57] sm:$0x1]
    %v5013 = vlaneseq
    %v5014 = vshrl.u32 %v5013, 7
    %v5015 = vsub.s32 0, %v5014
    %v5016 = vrot.slane %v5011, %v5015
    %v5022 = vunpack.c.l.b16 %v5007
    %v5023 = vunpack.c.l.b16 %v5008
    %v5024 = vunpack.c.l.b16 %v5009
    %v5025 = vunpack.c.l.b16 %v5010
    %v5026 = vpack.c.b16 %v5023, %v5022
    %v5027 = vpack.c.b16 %v5025, %v5024
    %v5031 = vsel %vm1362, 0, 0
    %5033 = vmatprep.subr.bf16.mxu0 0
    %5034 = vmatpush1.bf16.msra.mxu0 %v5026
    %5035 = vmatprep.subr.bf16.mxu0 0
    %5036 = vmatpush1.bf16.msra.mxu0 %v5027
    %5037 = vmatprep.subr.bf16.mxu0 0
    %5038 = vmatpush1.bf16.msra.mxu0 0
    %5039 = vmatprep.subr.bf16.mxu0 0
    %5040 = vmatpush1.bf16.msra.mxu0 0
    %5041 = vmatprep.subr.bf16.mxu0 0
    %5042 = vmatpush1.bf16.msra.mxu0 0
    %5043 = vmatprep.subr.bf16.mxu0 0
    %5044 = vmatpush1.bf16.msra.mxu0 0
    %5045 = vmatprep.subr.bf16.mxu0 0
    %5046 = vmatpush1.bf16.msra.mxu0 0
    %5047 = vmatprep.subr.bf16.mxu0 0
    %5048 = vmatpush1.bf16.msra.mxu0 0
    %5049 = vmatprep.subr.bf16.mxu0 0
    %5050 = vmatpush1.bf16.msra.mxu0 0
    %5051 = vmatprep.subr.bf16.mxu0 0
    %5052 = vmatpush1.bf16.msra.mxu0 0
    %5053 = vmatprep.subr.bf16.mxu0 0
    %5054 = vmatpush1.bf16.msra.mxu0 0
    %5055 = vmatprep.subr.bf16.mxu0 0
    %5056 = vmatpush1.bf16.msra.mxu0 0
    %5057 = vmatprep.subr.bf16.mxu0 0
    %5058 = vmatpush1.bf16.msra.mxu0 0
    %5059 = vmatprep.subr.bf16.mxu0 0
    %5060 = vmatpush1.bf16.msra.mxu0 0
    %5061 = vmatprep.subr.bf16.mxu0 0
    %5062 = vmatpush1.bf16.msra.mxu0 0
    %5063 = vmatprep.subr.bf16.mxu0 0
    %5064 = vmatpush1.bf16.msra.mxu0 0
    %5065 = vmatprep.mubr.bf16.mxu0 0
    %5066 = vmatmul.mubr.bf16.gmra.mrb[0].mxu0 %v5031
    %v5067 = vpop.f32.mrb[0].mxu0
    %v5068 = vadd.f32 %v5016, %v5067
    %v5069 = vpop.f32.mrb[0].mxu0
    %v5070 = vpop.f32.mrb[0].mxu0
    %v5071 = vpop.f32.mrb[0].mxu0
    %5072 = vdwg.mxu0
    %v5073 = vadd.f32 %v4999, %v5068
    %v5074 = vxor.u32 %v5073, 2147483648
    %v5075 = vmul.f32 %v5074, 1.442695
    %v5076 = vpow.pop %v5075
    %v5077 = vadd.f32 %v5076, 1.0
    %v5078 = vrcp.pop %v5077
    %v5079 = vmul.f32 1.0, %v5078
    %5081 = vrot.lane.b32.xlu0 %v5068, 64
    %v5082 = vpop.permute.xlu0 %5081
    %v5084 = vmul.f32 %v5079, %v5082
    %5086 = vrot.lane.b32.xlu0 %v5084, 64
    %v5087 = vpop.permute.xlu0 %5086
    %v5089 = vadd.f32 %v4999, %v5087
    %v5090 = vtanh.pop %v5089
    %v5091 = vsub.f32 1.0, %v5079
    %5093 = vrot.lane.b32.xlu0 %v5090, 96
    %v5094 = vpop.permute.xlu0 %5093
    %v5096 = vmul.f32 %v5091, %v5094
    %v5097 = vmul.f32 %v5079, 0.0
    %v5098 = vadd.f32 %v5096, %v5097
    %v5099 = vpack.c.bf16 %v5098, %v5098
    %5101 = vrot.lane.b32.xlu0 %v5099, 96
    %v5102 = vpop.permute.xlu0 %5101
    %v5104 = vsel %vm1362, %v5102, 0
    %5106 = vmatprep.subr.bf16.mxu0 0
    %5107 = vmatpush1.bf16.msra.mxu0 %v5026
    %5108 = vmatprep.subr.bf16.mxu0 0
    %5109 = vmatpush1.bf16.msra.mxu0 %v5027
    %5110 = vmatprep.subr.bf16.mxu0 0
    %5111 = vmatpush1.bf16.msra.mxu0 0
    %5112 = vmatprep.subr.bf16.mxu0 0
    %5113 = vmatpush1.bf16.msra.mxu0 0
    %5114 = vmatprep.subr.bf16.mxu0 0
    %5115 = vmatpush1.bf16.msra.mxu0 0
    %5116 = vmatprep.subr.bf16.mxu0 0
    %5117 = vmatpush1.bf16.msra.mxu0 0
    %5118 = vmatprep.subr.bf16.mxu0 0
    %5119 = vmatpush1.bf16.msra.mxu0 0
    %5120 = vmatprep.subr.bf16.mxu0 0
    %5121 = vmatpush1.bf16.msra.mxu0 0
    %5122 = vmatprep.subr.bf16.mxu0 0
    %5123 = vmatpush1.bf16.msra.mxu0 0
    %5124 = vmatprep.subr.bf16.mxu0 0
    %5125 = vmatpush1.bf16.msra.mxu0 0
    %5126 = vmatprep.subr.bf16.mxu0 0
    %5127 = vmatpush1.bf16.msra.mxu0 0
    %5128 = vmatprep.subr.bf16.mxu0 0
    %5129 = vmatpush1.bf16.msra.mxu0 0
    %5130 = vmatprep.subr.bf16.mxu0 0
    %5131 = vmatpush1.bf16.msra.mxu0 0
    %5132 = vmatprep.subr.bf16.mxu0 0
    %5133 = vmatpush1.bf16.msra.mxu0 0
    %5134 = vmatprep.subr.bf16.mxu0 0
    %5135 = vmatpush1.bf16.msra.mxu0 0
    %5136 = vmatprep.subr.bf16.mxu0 0
    %5137 = vmatpush1.bf16.msra.mxu0 0
    %5138 = vmatprep.mubr.bf16.mxu0 0
    %5139 = vmatmul.mubr.bf16.gmra.mrb[0].mxu0 %v5104
    %v5140 = vpop.f32.mrb[0].mxu0
    %v5141 = vadd.f32 %v5016, %v5140
    %v5142 = vpop.f32.mrb[0].mxu0
    %v5143 = vpop.f32.mrb[0].mxu0
    %v5144 = vpop.f32.mrb[0].mxu0
    %5145 = vdwg.mxu0
    %v5146 = vadd.f32 %v5004, %v5141
    %v5147 = vxor.u32 %v5146, 2147483648
    %v5148 = vmul.f32 %v5147, 1.442695
    %v5149 = vpow.pop %v5148
    %v5150 = vadd.f32 %v5149, 1.0
    %v5151 = vrcp.pop %v5150
    %v5152 = vmul.f32 1.0, %v5151
    %5154 = vrot.lane.b32.xlu0 %v5141, 64
    %v5155 = vpop.permute.xlu0 %5154
    %v5157 = vmul.f32 %v5152, %v5155
    %5159 = vrot.lane.b32.xlu0 %v5157, 64
    %v5160 = vpop.permute.xlu0 %5159
    %v5162 = vadd.f32 %v5004, %v5160
    %v5163 = vtanh.pop %v5162
    %v5164 = vsub.f32 1.0, %v5152
    %5166 = vrot.lane.b32.xlu0 %v5163, 96
    %v5167 = vpop.permute.xlu0 %5166
    %v5169 = vmul.f32 %v5164, %v5167
    %v5170 = vmul.f32 %v5152, %v5098
    %v5171 = vadd.f32 %v5169, %v5170
    %v5172 = vpack.c.bf16 %v5171, %v5171
    %v5173 = vld [vmem:[%s61] sm:$0xf]
    %v5174 = vld [vmem:[%s61 + $0x4] sm:$0xf]
    %v5175 = vld [vmem:[%s61 + $0x8] sm:$0xf]
    %v5176 = vld [vmem:[%s61 + $0xc] sm:$0xf]
    %v5177 = vld [vmem:[%s63] sm:$0x1]
    %v5179 = vlaneseq
    %v5180 = vshrl.u32 %v5179, 7
    %v5181 = vsub.s32 0, %v5180
    %v5182 = vrot.slane %v5177, %v5181
    %5185 = vrot.lane.b32.xlu0 %v5172, 96
    %v5186 = vpop.permute.xlu0 %5185
    %v5191 = vunpack.c.l.b16 %v5173
    %v5192 = vunpack.c.l.b16 %v5174
    %v5193 = vunpack.c.l.b16 %v5175
    %v5194 = vunpack.c.l.b16 %v5176
    %v5195 = vpack.c.b16 %v5192, %v5191
    %v5196 = vpack.c.b16 %v5194, %v5193
    %v5200 = vsel %vm1362, %v5186, 0
    %5202 = vmatprep.subr.bf16.mxu0 0
    %5203 = vmatpush1.bf16.msra.mxu0 %v5195
    %5204 = vmatprep.subr.bf16.mxu0 0
    %5205 = vmatpush1.bf16.msra.mxu0 %v5196
    %5206 = vmatprep.subr.bf16.mxu0 0
    %5207 = vmatpush1.bf16.msra.mxu0 0
    %5208 = vmatprep.subr.bf16.mxu0 0
    %5209 = vmatpush1.bf16.msra.mxu0 0
    %5210 = vmatprep.subr.bf16.mxu0 0
    %5211 = vmatpush1.bf16.msra.mxu0 0
    %5212 = vmatprep.subr.bf16.mxu0 0
    %5213 = vmatpush1.bf16.msra.mxu0 0
    %5214 = vmatprep.subr.bf16.mxu0 0
    %5215 = vmatpush1.bf16.msra.mxu0 0
    %5216 = vmatprep.subr.bf16.mxu0 0
    %5217 = vmatpush1.bf16.msra.mxu0 0
    %5218 = vmatprep.subr.bf16.mxu0 0
    %5219 = vmatpush1.bf16.msra.mxu0 0
    %5220 = vmatprep.subr.bf16.mxu0 0
    %5221 = vmatpush1.bf16.msra.mxu0 0
    %5222 = vmatprep.subr.bf16.mxu0 0
    %5223 = vmatpush1.bf16.msra.mxu0 0
    %5224 = vmatprep.subr.bf16.mxu0 0
    %5225 = vmatpush1.bf16.msra.mxu0 0
    %5226 = vmatprep.subr.bf16.mxu0 0
    %5227 = vmatpush1.bf16.msra.mxu0 0
    %5228 = vmatprep.subr.bf16.mxu0 0
    %5229 = vmatpush1.bf16.msra.mxu0 0
    %5230 = vmatprep.subr.bf16.mxu0 0
    %5231 = vmatpush1.bf16.msra.mxu0 0
    %5232 = vmatprep.subr.bf16.mxu0 0
    %5233 = vmatpush1.bf16.msra.mxu0 0
    %5234 = vmatprep.mubr.bf16.mxu0 0
    %5235 = vmatmul.mubr.bf16.gmra.mrb[0].mxu0 %v5200
    %v5236 = vpop.f32.mrb[0].mxu0
    %v5237 = vadd.f32 %v5182, %v5236
    %v5238 = vpop.f32.mrb[0].mxu0
    %v5239 = vpop.f32.mrb[0].mxu0
    %v5240 = vpop.f32.mrb[0].mxu0
    %5241 = vdwg.mxu0
    %v5242 = vmul.f32 %v5237, 0.35355338
    %v5243 = vpack.c.bf16 %v5242, %v5242
    %v5244 = vld [vmem:[%s65] sm:$0xf]
    %v5245 = vld [vmem:[%s65 + $0x4] sm:$0xf]
    %v5246 = vld [vmem:[%s65 + $0x8] sm:$0xf]
    %v5247 = vld [vmem:[%s65 + $0xc] sm:$0xf]
    %v5252 = vunpack.c.l.b16 %v5244
    %v5253 = vunpack.c.l.b16 %v5245
    %v5254 = vunpack.c.l.b16 %v5246
    %v5255 = vunpack.c.l.b16 %v5247
    %v5256 = vpack.c.b16 %v5253, %v5252
    %v5257 = vpack.c.b16 %v5255, %v5254
    %v5261 = vsel %vm1362, %v5243, 0
    %5263 = vmatprep.subr.bf16.mxu0 0
    %5264 = vmatpush1.bf16.msra.mxu0 %v5256
    %5265 = vmatprep.subr.bf16.mxu0 0
    %5266 = vmatpush1.bf16.msra.mxu0 %v5257
    %5267 = vmatprep.subr.bf16.mxu0 0
    %5268 = vmatpush1.bf16.msra.mxu0 0
    %5269 = vmatprep.subr.bf16.mxu0 0
    %5270 = vmatpush1.bf16.msra.mxu0 0
    %5271 = vmatprep.subr.bf16.mxu0 0
    %5272 = vmatpush1.bf16.msra.mxu0 0
    %5273 = vmatprep.subr.bf16.mxu0 0
    %5274 = vmatpush1.bf16.msra.mxu0 0
    %5275 = vmatprep.subr.bf16.mxu0 0
    %5276 = vmatpush1.bf16.msra.mxu0 0
    %5277 = vmatprep.subr.bf16.mxu0 0
    %5278 = vmatpush1.bf16.msra.mxu0 0
    %5279 = vmatprep.subr.bf16.mxu0 0
    %5280 = vmatpush1.bf16.msra.mxu0 0
    %5281 = vmatprep.subr.bf16.mxu0 0
    %5282 = vmatpush1.bf16.msra.mxu0 0
    %5283 = vmatprep.subr.bf16.mxu0 0
    %5284 = vmatpush1.bf16.msra.mxu0 0
    %5285 = vmatprep.subr.bf16.mxu0 0
    %5286 = vmatpush1.bf16.msra.mxu0 0
    %5287 = vmatprep.subr.bf16.mxu0 0
    %5288 = vmatpush1.bf16.msra.mxu0 0
    %5289 = vmatprep.subr.bf16.mxu0 0
    %5290 = vmatpush1.bf16.msra.mxu0 0
    %5291 = vmatprep.subr.bf16.mxu0 0
    %5292 = vmatpush1.bf16.msra.mxu0 0
    %5293 = vmatprep.subr.bf16.mxu0 0
    %5294 = vmatpush1.bf16.msra.mxu0 0
    %5295 = vmatprep.mubr.bf16.mxu0 0
    %5296 = vmatmul.mubr.bf16.gmra.mrb[0].mxu0 %v5261
    %v5297 = vpop.f32.mrb[0].mxu0
    %v5298 = vadd.f32 0.0, %v5297
    %v5299 = vpop.f32.mrb[0].mxu0
    %v5300 = vpop.f32.mrb[0].mxu0
    %v5301 = vpop.f32.mrb[0].mxu0
    %5302 = vdwg.mxu0
    %v5303 = vsel %vm1362, %v5298, -inf
    %5304 = vmax.xlane.f32.xlu0 %v5303
    %v5305 = vpop.xlane.xlu0 %5304
    %v5306 = vsub.f32 %v5298, %v5305
    %v5307 = vmul.f32 %v5306, 1.442695
    %v5308 = vpow.pop %v5307
    %v5309 = vld [vmem:[%s69] sm:$0xff]
    %v5310 = vld [vmem:[%s69 + $0x8] sm:$0xff]
    %v5311 = vld [vmem:[%s69 + $0x10] sm:$0xff]
    %v5312 = vld [vmem:[%s69 + $0x18] sm:$0xff]
    %v5314 = vsel %vm1362, %v5308, 0
    %5316 = vmatprep.subr.mxu0 0.0
    %5317 = vmatpush1.msra.mxu0 %v5309
    %5318 = vmatprep.subr.mxu0 0.0
    %5319 = vmatpush1.msra.mxu0 %v5310
    %5320 = vmatprep.subr.mxu0 0.0
    %5321 = vmatpush1.msra.mxu0 %v5311
    %5322 = vmatprep.subr.mxu0 0.0
    %5323 = vmatpush1.msra.mxu0 %v5312
    %5324 = vmatprep.subr.mxu0 0.0
    %5325 = vmatpush1.msra.mxu0 0.0
    %5326 = vmatprep.subr.mxu0 0.0
    %5327 = vmatpush1.msra.mxu0 0.0
    %5328 = vmatprep.subr.mxu0 0.0
    %5329 = vmatpush1.msra.mxu0 0.0
    %5330 = vmatprep.subr.mxu0 0.0
    %5331 = vmatpush1.msra.mxu0 0.0
    %5332 = vmatprep.subr.mxu0 0.0
    %5333 = vmatpush1.msra.mxu0 0.0
    %5334 = vmatprep.subr.mxu0 0.0
    %5335 = vmatpush1.msra.mxu0 0.0
    %5336 = vmatprep.subr.mxu0 0.0
    %5337 = vmatpush1.msra.mxu0 0.0
    %5338 = vmatprep.subr.mxu0 0.0
    %5339 = vmatpush1.msra.mxu0 0.0
    %5340 = vmatprep.subr.mxu0 0.0
    %5341 = vmatpush1.msra.mxu0 0.0
    %5342 = vmatprep.subr.mxu0 0.0
    %5343 = vmatpush1.msra.mxu0 0.0
    %5344 = vmatprep.subr.mxu0 0.0
    %5345 = vmatpush1.msra.mxu0 0.0
    %5346 = vmatprep.subr.mxu0 0.0
    %5347 = vmatpush1.msra.mxu0 0.0
    %5348 = vmatprep.subr.mxu0 0.0
    %5349 = vmatpush1.msra.mxu0 0.0
    %5350 = vmatprep.subr.mxu0 0.0
    %5351 = vmatpush1.msra.mxu0 0.0
    %5352 = vmatprep.subr.mxu0 0.0
    %5353 = vmatpush1.msra.mxu0 0.0
    %5354 = vmatprep.subr.mxu0 0.0
    %5355 = vmatpush1.msra.mxu0 0.0
    %5356 = vmatprep.subr.mxu0 0.0
    %5357 = vmatpush1.msra.mxu0 0.0
    %5358 = vmatprep.subr.mxu0 0.0
    %5359 = vmatpush1.msra.mxu0 0.0
    %5360 = vmatprep.subr.mxu0 0.0
    %5361 = vmatpush1.msra.mxu0 0.0
    %5362 = vmatprep.subr.mxu0 0.0
    %5363 = vmatpush1.msra.mxu0 0.0
    %5364 = vmatprep.subr.mxu0 0.0
    %5365 = vmatpush1.msra.mxu0 0.0
    %5366 = vmatprep.subr.mxu0 0.0
    %5367 = vmatpush1.msra.mxu0 0.0
    %5368 = vmatprep.subr.mxu0 0.0
    %5369 = vmatpush1.msra.mxu0 0.0
    %5370 = vmatprep.subr.mxu0 0.0
    %5371 = vmatpush1.msra.mxu0 0.0
    %5372 = vmatprep.subr.mxu0 0.0
    %5373 = vmatpush1.msra.mxu0 0.0
    %5374 = vmatprep.subr.mxu0 0.0
    %5375 = vmatpush1.msra.mxu0 0.0
    %5376 = vmatprep.subr.mxu0 0.0
    %5377 = vmatpush1.msra.mxu0 0.0
    %5378 = vmatprep.subr.mxu0 0.0
    %5379 = vmatpush1.msra.mxu0 0.0
    %5380 = vmatprep.mubr.f32.mxu0 0.0
    %5381 = vmatmul.mubr.f32.gmra.mrb[0].mxu0 %v5314
    %v5382 = vpop.f32.mrb[0].mxu0
    %v5383 = vadd.f32 0.0, %v5382
    %v5384 = vpop.f32.mrb[0].mxu0
    %5385 = vdwg.mxu0
    %v5386 = vrcp.pop %v5383
    %v5387 = vmul.f32 %v5308, %v5386
    %v5388 = vpack.c.bf16 %v5387, %v5387
    %v5389 = vld [vmem:[%s67] sm:$0xf]
    %v5390 = vld [vmem:[%s67 + $0x4] sm:$0xf]
    %v5391 = vld [vmem:[%s67 + $0x8] sm:$0xf]
    %v5392 = vld [vmem:[%s67 + $0xc] sm:$0xf]
    %v5397 = vunpack.c.l.b16 %v5389
    %v5398 = vunpack.c.l.b16 %v5390
    %v5399 = vunpack.c.l.b16 %v5391
    %v5400 = vunpack.c.l.b16 %v5392
    %v5401 = vpack.c.b16 %v5398, %v5397
    %v5402 = vpack.c.b16 %v5400, %v5399
    %v5406 = vsel %vm1362, %v5388, 0
    %5408 = vmatprep.subr.bf16.mxu0 0
    %5409 = vmatpush1.bf16.msra.mxu0 %v5401
    %5410 = vmatprep.subr.bf16.mxu0 0
    %5411 = vmatpush1.bf16.msra.mxu0 %v5402
    %5412 = vmatprep.subr.bf16.mxu0 0
    %5413 = vmatpush1.bf16.msra.mxu0 0
    %5414 = vmatprep.subr.bf16.mxu0 0
    %5415 = vmatpush1.bf16.msra.mxu0 0
    %5416 = vmatprep.subr.bf16.mxu0 0
    %5417 = vmatpush1.bf16.msra.mxu0 0
    %5418 = vmatprep.subr.bf16.mxu0 0
    %5419 = vmatpush1.bf16.msra.mxu0 0
    %5420 = vmatprep.subr.bf16.mxu0 0
    %5421 = vmatpush1.bf16.msra.mxu0 0
    %5422 = vmatprep.subr.bf16.mxu0 0
    %5423 = vmatpush1.bf16.msra.mxu0 0
    %5424 = vmatprep.subr.bf16.mxu0 0
    %5425 = vmatpush1.bf16.msra.mxu0 0
    %5426 = vmatprep.subr.bf16.mxu0 0
    %5427 = vmatpush1.bf16.msra.mxu0 0
    %5428 = vmatprep.subr.bf16.mxu0 0
    %5429 = vmatpush1.bf16.msra.mxu0 0
    %5430 = vmatprep.subr.bf16.mxu0 0
    %5431 = vmatpush1.bf16.msra.mxu0 0
    %5432 = vmatprep.subr.bf16.mxu0 0
    %5433 = vmatpush1.bf16.msra.mxu0 0
    %5434 = vmatprep.subr.bf16.mxu0 0
    %5435 = vmatpush1.bf16.msra.mxu0 0
    %5436 = vmatprep.subr.bf16.mxu0 0
    %5437 = vmatpush1.bf16.msra.mxu0 0
    %5438 = vmatprep.subr.bf16.mxu0 0
    %5439 = vmatpush1.bf16.msra.mxu0 0
    %5440 = vmatprep.mubr.bf16.mxu0 0
    %5441 = vmatmul.mubr.bf16.gmra.mrb[0].mxu0 %v5406
    %v5442 = vpop.f32.mrb[0].mxu0
    %v5443 = vadd.f32 0.0, %v5442
    %v5444 = vpop.f32.mrb[0].mxu0
    %v5445 = vpop.f32.mrb[0].mxu0
    %v5446 = vpop.f32.mrb[0].mxu0
    %5447 = vdwg.mxu0
    %v5448 = vpack.c.bf16 %v5443, %v5443
    %v5449 = vld [vmem:[%s71] sm:$0xf]
    %v5450 = vld [vmem:[%s71 + $0x4] sm:$0xf]
    %v5451 = vld [vmem:[%s71 + $0x8] sm:$0xf]
    %v5452 = vld [vmem:[%s71 + $0xc] sm:$0xf]
    %v5453 = vld [vmem:[%s73] sm:$0x1]
    %v5455 = vlaneseq
    %v5456 = vshrl.u32 %v5455, 7
    %v5457 = vsub.s32 0, %v5456
    %v5458 = vrot.slane %v5453, %v5457
    %v5464 = vunpack.c.l.b16 %v5449
    %v5465 = vunpack.c.l.b16 %v5450
    %v5466 = vunpack.c.l.b16 %v5451
    %v5467 = vunpack.c.l.b16 %v5452
    %v5468 = vpack.c.b16 %v5465, %v5464
    %v5469 = vpack.c.b16 %v5467, %v5466
    %v5473 = vsel %vm1362, %v5448, 0
    %5475 = vmatprep.subr.bf16.mxu0 0
    %5476 = vmatpush1.bf16.msra.mxu0 %v5468
    %5477 = vmatprep.subr.bf16.mxu0 0
    %5478 = vmatpush1.bf16.msra.mxu0 %v5469
    %5479 = vmatprep.subr.bf16.mxu0 0
    %5480 = vmatpush1.bf16.msra.mxu0 0
    %5481 = vmatprep.subr.bf16.mxu0 0
    %5482 = vmatpush1.bf16.msra.mxu0 0
    %5483 = vmatprep.subr.bf16.mxu0 0
    %5484 = vmatpush1.bf16.msra.mxu0 0
    %5485 = vmatprep.subr.bf16.mxu0 0
    %5486 = vmatpush1.bf16.msra.mxu0 0
    %5487 = vmatprep.subr.bf16.mxu0 0
    %5488 = vmatpush1.bf16.msra.mxu0 0
    %5489 = vmatprep.subr.bf16.mxu0 0
    %5490 = vmatpush1.bf16.msra.mxu0 0
    %5491 = vmatprep.subr.bf16.mxu0 0
    %5492 = vmatpush1.bf16.msra.mxu0 0
    %5493 = vmatprep.subr.bf16.mxu0 0
    %5494 = vmatpush1.bf16.msra.mxu0 0
    %5495 = vmatprep.subr.bf16.mxu0 0
    %5496 = vmatpush1.bf16.msra.mxu0 0
    %5497 = vmatprep.subr.bf16.mxu0 0
    %5498 = vmatpush1.bf16.msra.mxu0 0
    %5499 = vmatprep.subr.bf16.mxu0 0
    %5500 = vmatpush1.bf16.msra.mxu0 0
    %5501 = vmatprep.subr.bf16.mxu0 0
    %5502 = vmatpush1.bf16.msra.mxu0 0
    %5503 = vmatprep.subr.bf16.mxu0 0
    %5504 = vmatpush1.bf16.msra.mxu0 0
    %5505 = vmatprep.subr.bf16.mxu0 0
    %5506 = vmatpush1.bf16.msra.mxu0 0
    %5507 = vmatprep.mubr.bf16.mxu0 0
    %5508 = vmatmul.mubr.bf16.gmra.mrb[0].mxu0 %v5473
    %v5509 = vpop.f32.mrb[0].mxu0
    %v5510 = vadd.f32 %v5458, %v5509
    %v5511 = vpop.f32.mrb[0].mxu0
    %v5512 = vpop.f32.mrb[0].mxu0
    %v5513 = vpop.f32.mrb[0].mxu0
    %5514 = vdwg.mxu0
    %vm5515 = vcmask 254976
    %5516 = vst.msk [vmem:[#allocation2] sm:$0x3] %vm5515, %v5510
    // Predicated region
    $region150: #{global_style_token_encoder.1} parent=1 // pred_check
      _
    $region151: #{global_style_token_encoder.1} parent=1 // pred_check_branch
      %5518 = sbr.rel (0) target = $region153
    $region152: #{global_style_token_encoder.1} parent=1 // pred_region
      %s5520 = ssub.s32 32, 32
      %5521 = vsyncadd [#allocation3], %s5520
      %s5523 = sshll.u32 [#allocation2], 4
      %s5524 = int_to_ptr.vmem [resolvable:$true] %s5523
      %5526 = dma.vmem_to_hbm [thread:$0]  %s5524, 32, %s75, [#allocation3]
    $region153: #{global_style_token_encoder.1} parent=1 // pred_fallthru
      _
    // Predicated region
    $region154: #{global_style_token_encoder.1} parent=1 // pred_check
      _
    $region155: #{global_style_token_encoder.1} parent=1 // pred_check_branch
      %5528 = sbr.rel (0) target = $region157
    $region156: #{global_style_token_encoder.1} parent=1 // pred_region
      %5529 = dma.done [#allocation3], 32
    $region157: #{global_style_token_encoder.1} parent=1 // pred_fallthru
      _
    %5530 = vsyncpa [#allocation3], 1

</llo_original>
